<compile_context>
chip_gen: v7x
topology: tpu7x:2x2x1
jax: 0.10.0
libtpu: 0.0.40
codegen_flags: <defaults>
</compile_context>

<pallas_src>
import jax
import jax.numpy as jnp
import numpy as np
from jax import lax
from jax.experimental import pallas as pl
from jax.experimental.pallas import tpu as pltpu

_BN_EPS = 1e-5
_LANE = 128            # pad every feature dimension to the TPU lane width


def _eye(n, dtype=jnp.float32):
    r = lax.broadcasted_iota(jnp.int32, (n, n), 0)
    c = lax.broadcasted_iota(jnp.int32, (n, n), 1)
    return (r == c).astype(dtype)


# ---------------------------------------------------------------------------
# Fused kernel
# ---------------------------------------------------------------------------
def vdpnet_kernel(x_ref, w_ref, wt_ref, b_ref, sw_ref, g_ref, be_ref,
                  mu_out_ref, sig_out_ref, s2_ref):
    f32 = jnp.float32
    B, P = x_ref.shape
    eye = _eye(P)                                     # built once for the net

    def bn(z, k):
        # torch.nn.BatchNorm1d, training mode (biased batch stats, eps=1e-5).
        # Applied to mu only (Sigma untouched) — same as the reference model.
        mean = jnp.mean(z, axis=0, keepdims=True)
        var = jnp.mean((z - mean) ** 2, axis=0, keepdims=True)
        return (z - mean) * lax.rsqrt(var + _BN_EPS) * g_ref[k] + be_ref[k]

    # ---------------- layer 1: FC(input) -> BN1 -> VDP ReLU -----------------
    x = x_ref[...]                                                   # [B,P]
    z1 = jnp.dot(x, w_ref[0], preferred_element_type=f32) + b_ref[0]
    mu1 = bn(z1, 0)
    m1 = (mu1 > 0).astype(f32)
    a1 = mu1 * m1
    ssq0 = jnp.sum(x * x, axis=1, keepdims=True)                     # [B,1]
    # Sigma_1 is diagonal; keep only its (masked) diagonal d1 and trace.
    d1 = sw_ref[0] * ssq0 * m1                                       # [B,P]
    tr1 = jnp.sum(d1, axis=1, keepdims=True)                         # [B,1]

    # ---------------- layer 2: FC -> BN2 -> VDP ReLU -------------------------
    z2 = jnp.dot(a1, w_ref[1], preferred_element_type=f32) + b_ref[1]
    mu2 = bn(z2, 1)
    m2 = (mu2 > 0).astype(f32)
    a2 = mu2 * m2
    ssq1 = jnp.sum(a1 * a1, axis=1, keepdims=True)                   # [B,1]
    dadd2 = sw_ref[1] * (ssq1 + tr1)                                 # [B,P]
    # Sigma_2 = M2 ∘ (W2^T diag(d1) W2 + diag(dadd2))
    # stacked lhs L_b = W2^T diag(d1_b): one VPU broadcast-scale of W2^T, then
    # ONE big MXU matmul over the whole batch.
    L = (wt_ref[1][None, :, :] * d1[:, None, :]).reshape(B * P, P)   # [BP,P]
    r2 = jnp.dot(L, w_ref[1], preferred_element_type=f32).reshape(B, P, P)
    diag2 = jnp.sum(r2 * eye[None, :, :], axis=2)                    # [B,P]
    tr2 = jnp.sum(m2 * (diag2 + dadd2), axis=1, keepdims=True)       # [B,1]
    mask2 = m2[:, :, None] * m2[:, None, :]                          # [B,P,P]
    s2 = r2 * mask2 + (dadd2 * m2)[:, None, :] * eye[None, :, :]
    s2_ref[...] = s2.reshape(B * P, P)          # VMEM-resident across layer 3

    # ---------------- layer 3: FC -> BN3 -> VDP ReLU -------------------------
    z3 = jnp.dot(a2, w_ref[2], preferred_element_type=f32) + b_ref[2]
    mu3 = bn(z3, 2)
    m3 = (mu3 > 0).astype(f32)
    a3 = mu3 * m3
    ssq2 = jnp.sum(a2 * a2, axis=1, keepdims=True)                   # [B,1]
    dadd3 = sw_ref[2] * (ssq2 + tr2)                                 # [B,P]
    # U_b = S2_b @ W3 : the second (and last) big MXU matmul of the net.
    u = jnp.dot(s2_ref[...], w_ref[2],
                preferred_element_type=f32).reshape(B, P, P)         # [B,P,P]
    # tr(Sigma_3) = sum_o m3_o ((W3^T S2 W3)[o,o] + dadd3_o)
    #            = sum_{i,o} U[b,i,o] W3[i,o] m3[b,o] + sum_o m3_o dadd3_o
    tr3 = (jnp.sum(jnp.sum(u * w_ref[2][None, :, :] * m3[:, None, :], axis=2),
                   axis=1, keepdims=True)
           + jnp.sum(m3 * dadd3, axis=1, keepdims=True))             # [B,1]
    # Layer 4 is 1-wide: never build Sigma_3/Sigma_4 matrices.  With
    # v = m3 ⊙ w4[:,0] the ReLU mask folds into v, so
    #   w4^T Sigma_3 w4 = v^T (W3^T S2 W3) v + v^T diag(dadd3) v
    #                   = (W3 v)·(U v) + sum(v^2 * dadd3)
    v = m3 * wt_ref[3][0:1, :]                                       # [B,P]
    wv = jnp.dot(v, wt_ref[2], preferred_element_type=f32)           # [B,P]
    uv = jnp.sum(u * v[:, None, :], axis=2)                          # [B,P]
    quad = jnp.sum(wv * uv, axis=1, keepdims=True)                   # [B,1]
    dq = jnp.sum(v * v * dadd3, axis=1, keepdims=True)               # [B,1]

    # ---------------- layer 4: FC -> BN4 (no ReLU) ---------------------------
    z4 = jnp.dot(a3, w_ref[3], preferred_element_type=f32) + b_ref[3]
    mu4 = bn(z4, 3)
    ssq3 = jnp.sum(a3 * a3, axis=1, keepdims=True)                   # [B,1]

    mu_out_ref[...] = mu4                                            # [B,P]
    # lane-dense sigma slab: column 0 holds sigma_4, padded lanes stay 0
    # (sw_ref[3] is zero-padded).
    sig_out_ref[...] = (quad + dq) * eye[0:1, :] + sw_ref[3] * (ssq3 + tr3)


# ---------------------------------------------------------------------------
# Host-side wrapper (lane padding + single pallas_call + final slice)
# ---------------------------------------------------------------------------
def _pad_mat(a, p):
    out = jnp.zeros((p, p), jnp.float32)
    return out.at[:a.shape[0], :a.shape[1]].set(a)


def _pad_row(a, p):            # a: [1, f]
    out = jnp.zeros((1, p), jnp.float32)
    return out.at[:, :a.shape[1]].set(a)


@jax.jit
def vdpnet_forward(x, params):
    """Fused VDPNet forward. Returns (mu [B,1], sigma [B,1,1])."""
    p = _LANE
    batch, in_f = x.shape
    x_p = jnp.zeros((batch, p), jnp.float32).at[:, :in_f].set(x)

    # NOTE: padded lanes of gamma/beta/sw/b MUST be zero so padded features
    # stay exactly 0 through FC/BN/ReLU/Sigma propagation.  (gamma padded with
    # 1s would leak nonzero values into the padded lanes.)
    w_stack = jnp.stack([_pad_mat(q['w'], p) for q in params])        # [4,P,P]
    wt_stack = jnp.stack([_pad_mat(q['w'], p).T for q in params])     # [4,P,P]
    b_stack = jnp.stack([_pad_row(q['b'], p) for q in params])        # [4,1,P]
    sw_stack = jnp.stack([_pad_row(q['sw'], p) for q in params])
    g_stack = jnp.stack([_pad_row(q['gamma'], p) for q in params])
    be_stack = jnp.stack([_pad_row(q['beta'], p) for q in params])

    vmem = pl.BlockSpec(memory_space=pltpu.MemorySpace.VMEM)
    mu_p, sig_p = pl.pallas_call(
        vdpnet_kernel,
        out_shape=(jax.ShapeDtypeStruct((batch, p), jnp.float32),
                   jax.ShapeDtypeStruct((batch, p), jnp.float32)),
        in_specs=[vmem] * 7,
        out_specs=(vmem, vmem),
        scratch_shapes=[pltpu.VMEM((batch * p, p), jnp.float32)],  # Sigma_2 slab
        compiler_params=pltpu.CompilerParams(
            vmem_limit_bytes=32 * 1024 * 1024),
    )(x_p, w_stack, wt_stack, b_stack, sw_stack, g_stack, be_stack)

    n_out = params[-1]['w'].shape[1]              # = 1
    return mu_p[:, :n_out], sig_p[:, :n_out][:, :, None]


# ---------------------------------------------------------------------------
# Deterministic parameter init (shapes from VDPNet.__init__)
# ---------------------------------------------------------------------------
def init_params(key, layer_1, layer_2, layer_3):
    sizes = [(12, layer_1), (layer_1, layer_2), (layer_2, layer_3), (layer_3, 1)]
    params = []
    for fin, fout in sizes:
        key, k1, k2, k3 = jax.random.split(key, 4)
        w = jax.random.normal(k1, (fin, fout), jnp.float32) / jnp.sqrt(float(fin))
        b = 0.1 * jax.random.normal(k2, (1, fout), jnp.float32)
        rho = 0.1 * jax.random.normal(k3, (1, fout), jnp.float32) - 4.0
        sw = jnp.log1p(jnp.exp(rho))                     # softplus(rho) > 0
        gamma = jnp.ones((1, fout), jnp.float32)         # BN weight
        beta = jnp.zeros((1, fout), jnp.float32)         # BN bias
        params.append(dict(w=w, b=b, sw=sw, gamma=gamma, beta=beta))
    return params


# ---------------------------------------------------------------------------
# Pure-JAX reference for correctness check
# ---------------------------------------------------------------------------
def ref_forward(x, params):
    def bn(mu, g, be):
        mean = mu.mean(0, keepdims=True)
        var = ((mu - mean) ** 2).mean(0, keepdims=True)
        return (mu - mean) * lax.rsqrt(var + _BN_EPS) * g + be

    p = params[0]
    mu = x @ p['w'] + p['b']
    diag_vals = jnp.sum(x * x, axis=1, keepdims=True) * p['sw']
    sig = diag_vals[:, :, None] * jnp.eye(p['w'].shape[1])
    mu = bn(mu, p['gamma'], p['beta'])
    mask = (mu > 0).astype(jnp.float32)
    mu = mu * mask
    sig = sig * mask[:, :, None] * mask[:, None, :]

    for li, p in enumerate(params[1:], start=1):
        w = p['w']
        mu_new = mu @ w + p['b']
        sig_prop = jnp.einsum('io,bij,jp->bop', w, sig, w)
        scal = jnp.sum(mu * mu, axis=1) + jnp.trace(sig, axis1=1, axis2=2)
        sig_new = sig_prop + (scal[:, None] * p['sw'])[:, :, None] * jnp.eye(w.shape[1])
        mu_new = bn(mu_new, p['gamma'], p['beta'])
        if li < 3:
            mask = (mu_new > 0).astype(jnp.float32)
            mu_new = mu_new * mask
            sig_new = sig_new * mask[:, :, None] * mask[:, None, :]
        mu, sig = mu_new, sig_new
    return mu, sig


if __name__ == "__main__":
    key = jax.random.PRNGKey(0)
    k_x, k_p = jax.random.split(key)

    batch = 8
    layer_1, layer_2, layer_3 = 32, 16, 8

    x = jax.random.normal(k_x, (batch, 12), jnp.float32)
    params = init_params(k_p, layer_1, layer_2, layer_3)

    mu, sig = jax.block_until_ready(vdpnet_forward(x, params))

    assert mu.shape == (batch, 1) and sig.shape == (batch, 1, 1)
    mu_ref, sig_ref = ref_forward(x, params)
    np.testing.assert_allclose(np.asarray(mu), np.asarray(mu_ref),
                               rtol=2e-3, atol=2e-3)
    np.testing.assert_allclose(np.asarray(sig), np.asarray(sig_ref),
                               rtol=2e-3, atol=2e-3)

    print("KERNEL_OK")
</pallas_src>

<mosaic_0001>
module attributes {stable_mosaic.version = 11 : i64} {
  func.func @vdpnet_kernel(%arg0: memref<8x128xf32, #tpu.memory_space<vmem>>, %arg1: memref<4x128x128xf32, #tpu.memory_space<vmem>>, %arg2: memref<4x128x128xf32, #tpu.memory_space<vmem>>, %arg3: memref<4x1x128xf32, #tpu.memory_space<vmem>>, %arg4: memref<4x1x128xf32, #tpu.memory_space<vmem>>, %arg5: memref<4x1x128xf32, #tpu.memory_space<vmem>>, %arg6: memref<4x1x128xf32, #tpu.memory_space<vmem>>, %arg7: memref<8x128xf32, #tpu.memory_space<vmem>>, %arg8: memref<8x128xf32, #tpu.memory_space<vmem>>, %arg9: memref<1024x128xf32, #tpu.memory_space<vmem>>) attributes {dimension_semantics = [], scalar_prefetch = 0 : i64, scratch_operands = 1 : i64, tpu.core_type = #tpu.core_type<tc>} {
    %0 = tpu.iota {dimensions = array<i32: 0>} : vector<128x128xi32>
    %1 = tpu.iota {dimensions = array<i32: 1>} : vector<128x128xi32>
    %2 = arith.cmpi eq, %0, %1 : vector<128x128xi32>
    %3 = arith.extui %2 : vector<128x128xi1> to vector<128x128xi32>
    %4 = arith.sitofp %3 : vector<128x128xi32> to vector<128x128xf32>
    %c0 = arith.constant 0 : index
    %c0_0 = arith.constant 0 : index
    %5 = vector.load %arg0[%c0, %c0_0] : memref<8x128xf32, #tpu.memory_space<vmem>>, vector<8x128xf32>
    %c0_1 = arith.constant 0 : index
    %c0_2 = arith.constant 0 : index
    %c0_3 = arith.constant 0 : index
    %6 = vector.load %arg1[%c0_1, %c0_2, %c0_3] : memref<4x128x128xf32, #tpu.memory_space<vmem>>, vector<1x128x128xf32>
    %7 = vector.shape_cast %6 : vector<1x128x128xf32> to vector<128x128xf32>
    %cst = arith.constant dense<0.000000e+00> : vector<8x128xf32>
    %8 = tpu.matmul %5, %7, %cst {dimension_numbers = #tpu.dot_dimension_numbers<[1], [0], [0], [1], [0, 0, 1, 1], [], []>} : vector<8x128xf32>, vector<128x128xf32>, vector<8x128xf32> -> vector<8x128xf32>
    %c0_4 = arith.constant 0 : index
    %c0_5 = arith.constant 0 : index
    %c0_6 = arith.constant 0 : index
    %9 = vector.load %arg3[%c0_4, %c0_5, %c0_6] : memref<4x1x128xf32, #tpu.memory_space<vmem>>, vector<1x1x128xf32>
    %10 = vector.shape_cast %9 : vector<1x1x128xf32> to vector<1x128xf32>
    %11 = vector.broadcast %10 : vector<1x128xf32> to vector<8x128xf32>
    %12 = arith.addf %8, %11 : vector<8x128xf32>
    %cst_7 = arith.constant dense<0.000000e+00> : vector<128xf32>
    %13 = vector.multi_reduction <add>, %12, %cst_7 [0] : vector<8x128xf32> to vector<128xf32>
    %14 = vector.shape_cast %13 : vector<128xf32> to vector<1x128xf32>
    %cst_8 = arith.constant 8.000000e+00 : f32
    %15 = vector.broadcast %cst_8 : f32 to vector<1x128xf32>
    %16 = arith.divf %14, %15 : vector<1x128xf32>
    %17 = vector.broadcast %16 : vector<1x128xf32> to vector<8x128xf32>
    %18 = arith.subf %12, %17 : vector<8x128xf32>
    %19 = arith.mulf %18, %18 : vector<8x128xf32>
    %cst_9 = arith.constant dense<0.000000e+00> : vector<128xf32>
    %20 = vector.multi_reduction <add>, %19, %cst_9 [0] : vector<8x128xf32> to vector<128xf32>
    %21 = vector.shape_cast %20 : vector<128xf32> to vector<1x128xf32>
    %cst_10 = arith.constant 8.000000e+00 : f32
    %22 = vector.broadcast %cst_10 : f32 to vector<1x128xf32>
    %23 = arith.divf %21, %22 : vector<1x128xf32>
    %24 = vector.broadcast %16 : vector<1x128xf32> to vector<8x128xf32>
    %25 = arith.subf %12, %24 : vector<8x128xf32>
    %cst_11 = arith.constant 9.99999974E-6 : f32
    %26 = vector.broadcast %cst_11 : f32 to vector<1x128xf32>
    %27 = arith.addf %23, %26 : vector<1x128xf32>
    %28 = math.rsqrt %27 : vector<1x128xf32>
    %29 = vector.broadcast %28 : vector<1x128xf32> to vector<8x128xf32>
    %30 = arith.mulf %25, %29 : vector<8x128xf32>
    %c0_12 = arith.constant 0 : index
    %c0_13 = arith.constant 0 : index
    %c0_14 = arith.constant 0 : index
    %31 = vector.load %arg5[%c0_12, %c0_13, %c0_14] : memref<4x1x128xf32, #tpu.memory_space<vmem>>, vector<1x1x128xf32>
    %32 = vector.shape_cast %31 : vector<1x1x128xf32> to vector<1x128xf32>
    %33 = vector.broadcast %32 : vector<1x128xf32> to vector<8x128xf32>
    %34 = arith.mulf %30, %33 : vector<8x128xf32>
    %c0_15 = arith.constant 0 : index
    %c0_16 = arith.constant 0 : index
    %c0_17 = arith.constant 0 : index
    %35 = vector.load %arg6[%c0_15, %c0_16, %c0_17] : memref<4x1x128xf32, #tpu.memory_space<vmem>>, vector<1x1x128xf32>
    %36 = vector.shape_cast %35 : vector<1x1x128xf32> to vector<1x128xf32>
    %37 = vector.broadcast %36 : vector<1x128xf32> to vector<8x128xf32>
    %38 = arith.addf %34, %37 : vector<8x128xf32>
    %cst_18 = arith.constant 0.000000e+00 : f32
    %39 = vector.broadcast %cst_18 : f32 to vector<8x128xf32>
    %40 = arith.cmpf ogt, %38, %39 : vector<8x128xf32>
    %41 = arith.extui %40 : vector<8x128xi1> to vector<8x128xi32>
    %42 = arith.sitofp %41 : vector<8x128xi32> to vector<8x128xf32>
    %43 = arith.mulf %38, %42 : vector<8x128xf32>
    %44 = arith.mulf %5, %5 : vector<8x128xf32>
    %cst_19 = arith.constant dense<0.000000e+00> : vector<8xf32>
    %45 = vector.multi_reduction <add>, %44, %cst_19 [1] : vector<8x128xf32> to vector<8xf32>
    %46 = vector.shape_cast %45 : vector<8xf32> to vector<8x1xf32>
    %c0_20 = arith.constant 0 : index
    %c0_21 = arith.constant 0 : index
    %c0_22 = arith.constant 0 : index
    %47 = vector.load %arg4[%c0_20, %c0_21, %c0_22] : memref<4x1x128xf32, #tpu.memory_space<vmem>>, vector<1x1x128xf32>
    %48 = vector.shape_cast %47 : vector<1x1x128xf32> to vector<1x128xf32>
    %49 = vector.broadcast %48 : vector<1x128xf32> to vector<8x128xf32>
    %50 = vector.broadcast %46 : vector<8x1xf32> to vector<8x128xf32>
    %51 = arith.mulf %49, %50 : vector<8x128xf32>
    %52 = arith.mulf %51, %42 : vector<8x128xf32>
    %cst_23 = arith.constant dense<0.000000e+00> : vector<8xf32>
    %53 = vector.multi_reduction <add>, %52, %cst_23 [1] : vector<8x128xf32> to vector<8xf32>
    %54 = vector.shape_cast %53 : vector<8xf32> to vector<8x1xf32>
    %c1 = arith.constant 1 : index
    %c0_24 = arith.constant 0 : index
    %c0_25 = arith.constant 0 : index
    %55 = vector.load %arg1[%c1, %c0_24, %c0_25] : memref<4x128x128xf32, #tpu.memory_space<vmem>>, vector<1x128x128xf32>
    %56 = vector.shape_cast %55 : vector<1x128x128xf32> to vector<128x128xf32>
    %cst_26 = arith.constant dense<0.000000e+00> : vector<8x128xf32>
    %57 = tpu.matmul %43, %56, %cst_26 {dimension_numbers = #tpu.dot_dimension_numbers<[1], [0], [0], [1], [0, 0, 1, 1], [], []>} : vector<8x128xf32>, vector<128x128xf32>, vector<8x128xf32> -> vector<8x128xf32>
    %c1_27 = arith.constant 1 : index
    %c0_28 = arith.constant 0 : index
    %c0_29 = arith.constant 0 : index
    %58 = vector.load %arg3[%c1_27, %c0_28, %c0_29] : memref<4x1x128xf32, #tpu.memory_space<vmem>>, vector<1x1x128xf32>
    %59 = vector.shape_cast %58 : vector<1x1x128xf32> to vector<1x128xf32>
    %60 = vector.broadcast %59 : vector<1x128xf32> to vector<8x128xf32>
    %61 = arith.addf %57, %60 : vector<8x128xf32>
    %cst_30 = arith.constant dense<0.000000e+00> : vector<128xf32>
    %62 = vector.multi_reduction <add>, %61, %cst_30 [0] : vector<8x128xf32> to vector<128xf32>
    %63 = vector.shape_cast %62 : vector<128xf32> to vector<1x128xf32>
    %cst_31 = arith.constant 8.000000e+00 : f32
    %64 = vector.broadcast %cst_31 : f32 to vector<1x128xf32>
    %65 = arith.divf %63, %64 : vector<1x128xf32>
    %66 = vector.broadcast %65 : vector<1x128xf32> to vector<8x128xf32>
    %67 = arith.subf %61, %66 : vector<8x128xf32>
    %68 = arith.mulf %67, %67 : vector<8x128xf32>
    %cst_32 = arith.constant dense<0.000000e+00> : vector<128xf32>
    %69 = vector.multi_reduction <add>, %68, %cst_32 [0] : vector<8x128xf32> to vector<128xf32>
    %70 = vector.shape_cast %69 : vector<128xf32> to vector<1x128xf32>
    %cst_33 = arith.constant 8.000000e+00 : f32
    %71 = vector.broadcast %cst_33 : f32 to vector<1x128xf32>
    %72 = arith.divf %70, %71 : vector<1x128xf32>
    %73 = vector.broadcast %65 : vector<1x128xf32> to vector<8x128xf32>
    %74 = arith.subf %61, %73 : vector<8x128xf32>
    %cst_34 = arith.constant 9.99999974E-6 : f32
    %75 = vector.broadcast %cst_34 : f32 to vector<1x128xf32>
    %76 = arith.addf %72, %75 : vector<1x128xf32>
    %77 = math.rsqrt %76 : vector<1x128xf32>
    %78 = vector.broadcast %77 : vector<1x128xf32> to vector<8x128xf32>
    %79 = arith.mulf %74, %78 : vector<8x128xf32>
    %c1_35 = arith.constant 1 : index
    %c0_36 = arith.constant 0 : index
    %c0_37 = arith.constant 0 : index
    %80 = vector.load %arg5[%c1_35, %c0_36, %c0_37] : memref<4x1x128xf32, #tpu.memory_space<vmem>>, vector<1x1x128xf32>
    %81 = vector.shape_cast %80 : vector<1x1x128xf32> to vector<1x128xf32>
    %82 = vector.broadcast %81 : vector<1x128xf32> to vector<8x128xf32>
    %83 = arith.mulf %79, %82 : vector<8x128xf32>
    %c1_38 = arith.constant 1 : index
    %c0_39 = arith.constant 0 : index
    %c0_40 = arith.constant 0 : index
    %84 = vector.load %arg6[%c1_38, %c0_39, %c0_40] : memref<4x1x128xf32, #tpu.memory_space<vmem>>, vector<1x1x128xf32>
    %85 = vector.shape_cast %84 : vector<1x1x128xf32> to vector<1x128xf32>
    %86 = vector.broadcast %85 : vector<1x128xf32> to vector<8x128xf32>
    %87 = arith.addf %83, %86 : vector<8x128xf32>
    %cst_41 = arith.constant 0.000000e+00 : f32
    %88 = vector.broadcast %cst_41 : f32 to vector<8x128xf32>
    %89 = arith.cmpf ogt, %87, %88 : vector<8x128xf32>
    %90 = arith.extui %89 : vector<8x128xi1> to vector<8x128xi32>
    %91 = arith.sitofp %90 : vector<8x128xi32> to vector<8x128xf32>
    %92 = arith.mulf %87, %91 : vector<8x128xf32>
    %93 = arith.mulf %43, %43 : vector<8x128xf32>
    %cst_42 = arith.constant dense<0.000000e+00> : vector<8xf32>
    %94 = vector.multi_reduction <add>, %93, %cst_42 [1] : vector<8x128xf32> to vector<8xf32>
    %95 = vector.shape_cast %94 : vector<8xf32> to vector<8x1xf32>
    %c1_43 = arith.constant 1 : index
    %c0_44 = arith.constant 0 : index
    %c0_45 = arith.constant 0 : index
    %96 = vector.load %arg4[%c1_43, %c0_44, %c0_45] : memref<4x1x128xf32, #tpu.memory_space<vmem>>, vector<1x1x128xf32>
    %97 = vector.shape_cast %96 : vector<1x1x128xf32> to vector<1x128xf32>
    %98 = arith.addf %95, %54 : vector<8x1xf32>
    %99 = vector.broadcast %97 : vector<1x128xf32> to vector<8x128xf32>
    %100 = vector.broadcast %98 : vector<8x1xf32> to vector<8x128xf32>
    %101 = arith.mulf %99, %100 : vector<8x128xf32>
    %c1_46 = arith.constant 1 : index
    %c0_47 = arith.constant 0 : index
    %c0_48 = arith.constant 0 : index
    %102 = vector.load %arg2[%c1_46, %c0_47, %c0_48] : memref<4x128x128xf32, #tpu.memory_space<vmem>>, vector<1x128x128xf32>
    %103 = vector.shape_cast %102 : vector<1x128x128xf32> to vector<128x128xf32>
    %104 = vector.shape_cast %103 : vector<128x128xf32> to vector<1x128x128xf32>
    %105 = vector.shape_cast %52 : vector<8x128xf32> to vector<8x1x128xf32>
    %106 = vector.broadcast %104 : vector<1x128x128xf32> to vector<8x128x128xf32>
    %107 = vector.broadcast %105 : vector<8x1x128xf32> to vector<8x128x128xf32>
    %108 = arith.mulf %106, %107 : vector<8x128x128xf32>
    %109 = vector.shape_cast %108 : vector<8x128x128xf32> to vector<1024x128xf32>
    %c1_49 = arith.constant 1 : index
    %c0_50 = arith.constant 0 : index
    %c0_51 = arith.constant 0 : index
    %110 = vector.load %arg1[%c1_49, %c0_50, %c0_51] : memref<4x128x128xf32, #tpu.memory_space<vmem>>, vector<1x128x128xf32>
    %111 = vector.shape_cast %110 : vector<1x128x128xf32> to vector<128x128xf32>
    %cst_52 = arith.constant dense<0.000000e+00> : vector<1024x128xf32>
    %112 = tpu.matmul %109, %111, %cst_52 {dimension_numbers = #tpu.dot_dimension_numbers<[1], [0], [0], [1], [0, 0, 1, 1], [], []>} : vector<1024x128xf32>, vector<128x128xf32>, vector<1024x128xf32> -> vector<1024x128xf32>
    %113 = vector.shape_cast %112 : vector<1024x128xf32> to vector<8x128x128xf32>
    %114 = vector.shape_cast %4 : vector<128x128xf32> to vector<1x128x128xf32>
    %115 = vector.broadcast %114 : vector<1x128x128xf32> to vector<8x128x128xf32>
    %116 = arith.mulf %113, %115 : vector<8x128x128xf32>
    %cst_53 = arith.constant dense<0.000000e+00> : vector<8x128xf32>
    %117 = vector.multi_reduction <add>, %116, %cst_53 [2] : vector<8x128x128xf32> to vector<8x128xf32>
    %118 = arith.addf %117, %101 : vector<8x128xf32>
    %119 = arith.mulf %91, %118 : vector<8x128xf32>
    %cst_54 = arith.constant dense<0.000000e+00> : vector<8xf32>
    %120 = vector.multi_reduction <add>, %119, %cst_54 [1] : vector<8x128xf32> to vector<8xf32>
    %121 = vector.shape_cast %120 : vector<8xf32> to vector<8x1xf32>
    %122 = vector.shape_cast %91 : vector<8x128xf32> to vector<8x128x1xf32>
    %123 = vector.shape_cast %91 : vector<8x128xf32> to vector<8x1x128xf32>
    %124 = vector.broadcast %122 : vector<8x128x1xf32> to vector<8x128x128xf32>
    %125 = vector.broadcast %123 : vector<8x1x128xf32> to vector<8x128x128xf32>
    %126 = arith.mulf %124, %125 : vector<8x128x128xf32>
    %127 = arith.mulf %113, %126 : vector<8x128x128xf32>
    %128 = arith.mulf %101, %91 : vector<8x128xf32>
    %129 = vector.shape_cast %128 : vector<8x128xf32> to vector<8x1x128xf32>
    %130 = vector.shape_cast %4 : vector<128x128xf32> to vector<1x128x128xf32>
    %131 = vector.broadcast %129 : vector<8x1x128xf32> to vector<8x128x128xf32>
    %132 = vector.broadcast %130 : vector<1x128x128xf32> to vector<8x128x128xf32>
    %133 = arith.mulf %131, %132 : vector<8x128x128xf32>
    %134 = arith.addf %127, %133 : vector<8x128x128xf32>
    %135 = vector.shape_cast %134 : vector<8x128x128xf32> to vector<1024x128xf32>
    %c0_55 = arith.constant 0 : index
    %c0_56 = arith.constant 0 : index
    %136 = vector.load %arg9[%c0_55, %c0_56] : memref<1024x128xf32, #tpu.memory_space<vmem>>, vector<1024x128xf32>
    tpu.vector_store %arg9[%c0_55, %c0_56], %135 {strides = array<i32>} : memref<1024x128xf32, #tpu.memory_space<vmem>>, vector<1024x128xf32>,
    %c2 = arith.constant 2 : index
    %c0_57 = arith.constant 0 : index
    %c0_58 = arith.constant 0 : index
    %137 = vector.load %arg1[%c2, %c0_57, %c0_58] : memref<4x128x128xf32, #tpu.memory_space<vmem>>, vector<1x128x128xf32>
    %138 = vector.shape_cast %137 : vector<1x128x128xf32> to vector<128x128xf32>
    %cst_59 = arith.constant dense<0.000000e+00> : vector<8x128xf32>
    %139 = tpu.matmul %92, %138, %cst_59 {dimension_numbers = #tpu.dot_dimension_numbers<[1], [0], [0], [1], [0, 0, 1, 1], [], []>} : vector<8x128xf32>, vector<128x128xf32>, vector<8x128xf32> -> vector<8x128xf32>
    %c2_60 = arith.constant 2 : index
    %c0_61 = arith.constant 0 : index
    %c0_62 = arith.constant 0 : index
    %140 = vector.load %arg3[%c2_60, %c0_61, %c0_62] : memref<4x1x128xf32, #tpu.memory_space<vmem>>, vector<1x1x128xf32>
    %141 = vector.shape_cast %140 : vector<1x1x128xf32> to vector<1x128xf32>
    %142 = vector.broadcast %141 : vector<1x128xf32> to vector<8x128xf32>
    %143 = arith.addf %139, %142 : vector<8x128xf32>
    %cst_63 = arith.constant dense<0.000000e+00> : vector<128xf32>
    %144 = vector.multi_reduction <add>, %143, %cst_63 [0] : vector<8x128xf32> to vector<128xf32>
    %145 = vector.shape_cast %144 : vector<128xf32> to vector<1x128xf32>
    %cst_64 = arith.constant 8.000000e+00 : f32
    %146 = vector.broadcast %cst_64 : f32 to vector<1x128xf32>
    %147 = arith.divf %145, %146 : vector<1x128xf32>
    %148 = vector.broadcast %147 : vector<1x128xf32> to vector<8x128xf32>
    %149 = arith.subf %143, %148 : vector<8x128xf32>
    %150 = arith.mulf %149, %149 : vector<8x128xf32>
    %cst_65 = arith.constant dense<0.000000e+00> : vector<128xf32>
    %151 = vector.multi_reduction <add>, %150, %cst_65 [0] : vector<8x128xf32> to vector<128xf32>
    %152 = vector.shape_cast %151 : vector<128xf32> to vector<1x128xf32>
    %cst_66 = arith.constant 8.000000e+00 : f32
    %153 = vector.broadcast %cst_66 : f32 to vector<1x128xf32>
    %154 = arith.divf %152, %153 : vector<1x128xf32>
    %155 = vector.broadcast %147 : vector<1x128xf32> to vector<8x128xf32>
    %156 = arith.subf %143, %155 : vector<8x128xf32>
    %cst_67 = arith.constant 9.99999974E-6 : f32
    %157 = vector.broadcast %cst_67 : f32 to vector<1x128xf32>
    %158 = arith.addf %154, %157 : vector<1x128xf32>
    %159 = math.rsqrt %158 : vector<1x128xf32>
    %160 = vector.broadcast %159 : vector<1x128xf32> to vector<8x128xf32>
    %161 = arith.mulf %156, %160 : vector<8x128xf32>
    %c2_68 = arith.constant 2 : index
    %c0_69 = arith.constant 0 : index
    %c0_70 = arith.constant 0 : index
    %162 = vector.load %arg5[%c2_68, %c0_69, %c0_70] : memref<4x1x128xf32, #tpu.memory_space<vmem>>, vector<1x1x128xf32>
    %163 = vector.shape_cast %162 : vector<1x1x128xf32> to vector<1x128xf32>
    %164 = vector.broadcast %163 : vector<1x128xf32> to vector<8x128xf32>
    %165 = arith.mulf %161, %164 : vector<8x128xf32>
    %c2_71 = arith.constant 2 : index
    %c0_72 = arith.constant 0 : index
    %c0_73 = arith.constant 0 : index
    %166 = vector.load %arg6[%c2_71, %c0_72, %c0_73] : memref<4x1x128xf32, #tpu.memory_space<vmem>>, vector<1x1x128xf32>
    %167 = vector.shape_cast %166 : vector<1x1x128xf32> to vector<1x128xf32>
    %168 = vector.broadcast %167 : vector<1x128xf32> to vector<8x128xf32>
    %169 = arith.addf %165, %168 : vector<8x128xf32>
    %cst_74 = arith.constant 0.000000e+00 : f32
    %170 = vector.broadcast %cst_74 : f32 to vector<8x128xf32>
    %171 = arith.cmpf ogt, %169, %170 : vector<8x128xf32>
    %172 = arith.extui %171 : vector<8x128xi1> to vector<8x128xi32>
    %173 = arith.sitofp %172 : vector<8x128xi32> to vector<8x128xf32>
    %174 = arith.mulf %169, %173 : vector<8x128xf32>
    %175 = arith.mulf %92, %92 : vector<8x128xf32>
    %cst_75 = arith.constant dense<0.000000e+00> : vector<8xf32>
    %176 = vector.multi_reduction <add>, %175, %cst_75 [1] : vector<8x128xf32> to vector<8xf32>
    %177 = vector.shape_cast %176 : vector<8xf32> to vector<8x1xf32>
    %c2_76 = arith.constant 2 : index
    %c0_77 = arith.constant 0 : index
    %c0_78 = arith.constant 0 : index
    %178 = vector.load %arg4[%c2_76, %c0_77, %c0_78] : memref<4x1x128xf32, #tpu.memory_space<vmem>>, vector<1x1x128xf32>
    %179 = vector.shape_cast %178 : vector<1x1x128xf32> to vector<1x128xf32>
    %180 = arith.addf %177, %121 : vector<8x1xf32>
    %181 = vector.broadcast %179 : vector<1x128xf32> to vector<8x128xf32>
    %182 = vector.broadcast %180 : vector<8x1xf32> to vector<8x128xf32>
    %183 = arith.mulf %181, %182 : vector<8x128xf32>
    %c0_79 = arith.constant 0 : index
    %c0_80 = arith.constant 0 : index
    %184 = vector.load %arg9[%c0_79, %c0_80] : memref<1024x128xf32, #tpu.memory_space<vmem>>, vector<1024x128xf32>
    %c2_81 = arith.constant 2 : index
    %c0_82 = arith.constant 0 : index
    %c0_83 = arith.constant 0 : index
    %185 = vector.load %arg1[%c2_81, %c0_82, %c0_83] : memref<4x128x128xf32, #tpu.memory_space<vmem>>, vector<1x128x128xf32>
    %186 = vector.shape_cast %185 : vector<1x128x128xf32> to vector<128x128xf32>
    %cst_84 = arith.constant dense<0.000000e+00> : vector<1024x128xf32>
    %187 = tpu.matmul %184, %186, %cst_84 {dimension_numbers = #tpu.dot_dimension_numbers<[1], [0], [0], [1], [0, 0, 1, 1], [], []>} : vector<1024x128xf32>, vector<128x128xf32>, vector<1024x128xf32> -> vector<1024x128xf32>
    %188 = vector.shape_cast %187 : vector<1024x128xf32> to vector<8x128x128xf32>
    %c2_85 = arith.constant 2 : index
    %c0_86 = arith.constant 0 : index
    %c0_87 = arith.constant 0 : index
    %189 = vector.load %arg1[%c2_85, %c0_86, %c0_87] : memref<4x128x128xf32, #tpu.memory_space<vmem>>, vector<1x128x128xf32>
    %190 = vector.shape_cast %189 : vector<1x128x128xf32> to vector<128x128xf32>
    %191 = vector.shape_cast %190 : vector<128x128xf32> to vector<1x128x128xf32>
    %192 = vector.broadcast %191 : vector<1x128x128xf32> to vector<8x128x128xf32>
    %193 = arith.mulf %188, %192 : vector<8x128x128xf32>
    %194 = vector.shape_cast %173 : vector<8x128xf32> to vector<8x1x128xf32>
    %195 = vector.broadcast %194 : vector<8x1x128xf32> to vector<8x128x128xf32>
    %196 = arith.mulf %193, %195 : vector<8x128x128xf32>
    %cst_88 = arith.constant dense<0.000000e+00> : vector<8x128xf32>
    %197 = vector.multi_reduction <add>, %196, %cst_88 [2] : vector<8x128x128xf32> to vector<8x128xf32>
    %cst_89 = arith.constant dense<0.000000e+00> : vector<8xf32>
    %198 = vector.multi_reduction <add>, %197, %cst_89 [1] : vector<8x128xf32> to vector<8xf32>
    %199 = vector.shape_cast %198 : vector<8xf32> to vector<8x1xf32>
    %200 = arith.mulf %173, %183 : vector<8x128xf32>
    %cst_90 = arith.constant dense<0.000000e+00> : vector<8xf32>
    %201 = vector.multi_reduction <add>, %200, %cst_90 [1] : vector<8x128xf32> to vector<8xf32>
    %202 = vector.shape_cast %201 : vector<8xf32> to vector<8x1xf32>
    %203 = arith.addf %199, %202 : vector<8x1xf32>
    %c3 = arith.constant 3 : index
    %c0_91 = arith.constant 0 : index
    %c0_92 = arith.constant 0 : index
    %204 = vector.load %arg2[%c3, %c0_91, %c0_92] : memref<4x128x128xf32, #tpu.memory_space<vmem>>, vector<1x128x128xf32>
    %205 = vector.shape_cast %204 : vector<1x128x128xf32> to vector<128x128xf32>
    %206 = vector.extract_strided_slice %205 {offsets = [0, 0], sizes = [1, 128], strides = [1, 1]} : vector<128x128xf32> to vector<1x128xf32>
    %207 = vector.broadcast %206 : vector<1x128xf32> to vector<8x128xf32>
    %208 = arith.mulf %173, %207 : vector<8x128xf32>
    %c2_93 = arith.constant 2 : index
    %c0_94 = arith.constant 0 : index
    %c0_95 = arith.constant 0 : index
    %209 = vector.load %arg2[%c2_93, %c0_94, %c0_95] : memref<4x128x128xf32, #tpu.memory_space<vmem>>, vector<1x128x128xf32>
    %210 = vector.shape_cast %209 : vector<1x128x128xf32> to vector<128x128xf32>
    %cst_96 = arith.constant dense<0.000000e+00> : vector<8x128xf32>
    %211 = tpu.matmul %208, %210, %cst_96 {dimension_numbers = #tpu.dot_dimension_numbers<[1], [0], [0], [1], [0, 0, 1, 1], [], []>} : vector<8x128xf32>, vector<128x128xf32>, vector<8x128xf32> -> vector<8x128xf32>
    %212 = vector.shape_cast %208 : vector<8x128xf32> to vector<8x1x128xf32>
    %213 = vector.broadcast %212 : vector<8x1x128xf32> to vector<8x128x128xf32>
    %214 = arith.mulf %188, %213 : vector<8x128x128xf32>
    %cst_97 = arith.constant dense<0.000000e+00> : vector<8x128xf32>
    %215 = vector.multi_reduction <add>, %214, %cst_97 [2] : vector<8x128x128xf32> to vector<8x128xf32>
    %216 = arith.mulf %211, %215 : vector<8x128xf32>
    %cst_98 = arith.constant dense<0.000000e+00> : vector<8xf32>
    %217 = vector.multi_reduction <add>, %216, %cst_98 [1] : vector<8x128xf32> to vector<8xf32>
    %218 = vector.shape_cast %217 : vector<8xf32> to vector<8x1xf32>
    %219 = arith.mulf %208, %208 : vector<8x128xf32>
    %220 = arith.mulf %219, %183 : vector<8x128xf32>
    %cst_99 = arith.constant dense<0.000000e+00> : vector<8xf32>
    %221 = vector.multi_reduction <add>, %220, %cst_99 [1] : vector<8x128xf32> to vector<8xf32>
    %222 = vector.shape_cast %221 : vector<8xf32> to vector<8x1xf32>
    %c3_100 = arith.constant 3 : index
    %c0_101 = arith.constant 0 : index
    %c0_102 = arith.constant 0 : index
    %223 = vector.load %arg1[%c3_100, %c0_101, %c0_102] : memref<4x128x128xf32, #tpu.memory_space<vmem>>, vector<1x128x128xf32>
    %224 = vector.shape_cast %223 : vector<1x128x128xf32> to vector<128x128xf32>
    %cst_103 = arith.constant dense<0.000000e+00> : vector<8x128xf32>
    %225 = tpu.matmul %174, %224, %cst_103 {dimension_numbers = #tpu.dot_dimension_numbers<[1], [0], [0], [1], [0, 0, 1, 1], [], []>} : vector<8x128xf32>, vector<128x128xf32>, vector<8x128xf32> -> vector<8x128xf32>
    %c3_104 = arith.constant 3 : index
    %c0_105 = arith.constant 0 : index
    %c0_106 = arith.constant 0 : index
    %226 = vector.load %arg3[%c3_104, %c0_105, %c0_106] : memref<4x1x128xf32, #tpu.memory_space<vmem>>, vector<1x1x128xf32>
    %227 = vector.shape_cast %226 : vector<1x1x128xf32> to vector<1x128xf32>
    %228 = vector.broadcast %227 : vector<1x128xf32> to vector<8x128xf32>
    %229 = arith.addf %225, %228 : vector<8x128xf32>
    %cst_107 = arith.constant dense<0.000000e+00> : vector<128xf32>
    %230 = vector.multi_reduction <add>, %229, %cst_107 [0] : vector<8x128xf32> to vector<128xf32>
    %231 = vector.shape_cast %230 : vector<128xf32> to vector<1x128xf32>
    %cst_108 = arith.constant 8.000000e+00 : f32
    %232 = vector.broadcast %cst_108 : f32 to vector<1x128xf32>
    %233 = arith.divf %231, %232 : vector<1x128xf32>
    %234 = vector.broadcast %233 : vector<1x128xf32> to vector<8x128xf32>
    %235 = arith.subf %229, %234 : vector<8x128xf32>
    %236 = arith.mulf %235, %235 : vector<8x128xf32>
    %cst_109 = arith.constant dense<0.000000e+00> : vector<128xf32>
    %237 = vector.multi_reduction <add>, %236, %cst_109 [0] : vector<8x128xf32> to vector<128xf32>
    %238 = vector.shape_cast %237 : vector<128xf32> to vector<1x128xf32>
    %cst_110 = arith.constant 8.000000e+00 : f32
    %239 = vector.broadcast %cst_110 : f32 to vector<1x128xf32>
    %240 = arith.divf %238, %239 : vector<1x128xf32>
    %241 = vector.broadcast %233 : vector<1x128xf32> to vector<8x128xf32>
    %242 = arith.subf %229, %241 : vector<8x128xf32>
    %cst_111 = arith.constant 9.99999974E-6 : f32
    %243 = vector.broadcast %cst_111 : f32 to vector<1x128xf32>
    %244 = arith.addf %240, %243 : vector<1x128xf32>
    %245 = math.rsqrt %244 : vector<1x128xf32>
    %246 = vector.broadcast %245 : vector<1x128xf32> to vector<8x128xf32>
    %247 = arith.mulf %242, %246 : vector<8x128xf32>
    %c3_112 = arith.constant 3 : index
    %c0_113 = arith.constant 0 : index
    %c0_114 = arith.constant 0 : index
    %248 = vector.load %arg5[%c3_112, %c0_113, %c0_114] : memref<4x1x128xf32, #tpu.memory_space<vmem>>, vector<1x1x128xf32>
    %249 = vector.shape_cast %248 : vector<1x1x128xf32> to vector<1x128xf32>
    %250 = vector.broadcast %249 : vector<1x128xf32> to vector<8x128xf32>
    %251 = arith.mulf %247, %250 : vector<8x128xf32>
    %c3_115 = arith.constant 3 : index
    %c0_116 = arith.constant 0 : index
    %c0_117 = arith.constant 0 : index
    %252 = vector.load %arg6[%c3_115, %c0_116, %c0_117] : memref<4x1x128xf32, #tpu.memory_space<vmem>>, vector<1x1x128xf32>
    %253 = vector.shape_cast %252 : vector<1x1x128xf32> to vector<1x128xf32>
    %254 = vector.broadcast %253 : vector<1x128xf32> to vector<8x128xf32>
    %255 = arith.addf %251, %254 : vector<8x128xf32>
    %256 = arith.mulf %174, %174 : vector<8x128xf32>
    %cst_118 = arith.constant dense<0.000000e+00> : vector<8xf32>
    %257 = vector.multi_reduction <add>, %256, %cst_118 [1] : vector<8x128xf32> to vector<8xf32>
    %258 = vector.shape_cast %257 : vector<8xf32> to vector<8x1xf32>
    %c0_119 = arith.constant 0 : index
    %c0_120 = arith.constant 0 : index
    %259 = vector.load %arg7[%c0_119, %c0_120] : memref<8x128xf32, #tpu.memory_space<vmem>>, vector<8x128xf32>
    tpu.vector_store %arg7[%c0_119, %c0_120], %255 {strides = array<i32>} : memref<8x128xf32, #tpu.memory_space<vmem>>, vector<8x128xf32>,
    %260 = arith.addf %218, %222 : vector<8x1xf32>
    %261 = vector.extract_strided_slice %4 {offsets = [0, 0], sizes = [1, 128], strides = [1, 1]} : vector<128x128xf32> to vector<1x128xf32>
    %262 = vector.broadcast %260 : vector<8x1xf32> to vector<8x128xf32>
    %263 = vector.broadcast %261 : vector<1x128xf32> to vector<8x128xf32>
    %264 = arith.mulf %262, %263 : vector<8x128xf32>
    %c3_121 = arith.constant 3 : index
    %c0_122 = arith.constant 0 : index
    %c0_123 = arith.constant 0 : index
    %265 = vector.load %arg4[%c3_121, %c0_122, %c0_123] : memref<4x1x128xf32, #tpu.memory_space<vmem>>, vector<1x1x128xf32>
    %266 = vector.shape_cast %265 : vector<1x1x128xf32> to vector<1x128xf32>
    %267 = arith.addf %258, %203 : vector<8x1xf32>
    %268 = vector.broadcast %266 : vector<1x128xf32> to vector<8x128xf32>
    %269 = vector.broadcast %267 : vector<8x1xf32> to vector<8x128xf32>
    %270 = arith.mulf %268, %269 : vector<8x128xf32>
    %271 = arith.addf %264, %270 : vector<8x128xf32>
    %c0_124 = arith.constant 0 : index
    %c0_125 = arith.constant 0 : index
    %272 = vector.load %arg8[%c0_124, %c0_125] : memref<8x128xf32, #tpu.memory_space<vmem>>, vector<8x128xf32>
    tpu.vector_store %arg8[%c0_124, %c0_125], %271 {strides = array<i32>} : memref<8x128xf32, #tpu.memory_space<vmem>>, vector<8x128xf32>,
    return
  }
}

</mosaic_0001>

<llo_original>
// kernel: vdpnet_forward.1
$region0: #{vdpnet_forward.1}
  #allocation0 [shape = 'u32[]', space=smem, size = 0x4, offset = 0x4, fixed_abs, tag = 'smem constant byte address 0x4 - core index']
  #allocation1 [shape = 'u32[144,128]{1,0:T(1,128)}', space=vmem, size = 0x12000, scoped, tag = 'internal scratch']
  #allocation2 [shape = 'f32[1024,128]{1,0:T(8,128)}', space=vmem, size = 0x80000, scoped, tag = 'scratch operand']
  %s0 = inlined_call_operand.vmem [shape: f32[8,128], index: 0, kind: input, shape index: {}]
  %s1 = inlined_call_operand.vmem [shape: f32[4,128,128], index: 1, kind: input, shape index: {}]
  %s2 = inlined_call_operand.vmem [shape: f32[4,128,128], index: 2, kind: input, shape index: {}]
  %s3 = inlined_call_operand.vmem [shape: f32[4,1,128], index: 3, kind: input, shape index: {}]
  %s4 = inlined_call_operand.vmem [shape: f32[4,1,128], index: 4, kind: input, shape index: {}]
  %s5 = inlined_call_operand.vmem [shape: f32[4,1,128], index: 5, kind: input, shape index: {}]
  %s6 = inlined_call_operand.vmem [shape: f32[4,1,128], index: 6, kind: input, shape index: {}]
  %s7 = inlined_call_operand.vmem [shape: f32[8,128], index: 7, kind: output, shape index: {0}]
  %s8 = inlined_call_operand.vmem [shape: f32[8,128], index: 8, kind: output, shape index: {1}]
  %9 = xla_tuple %s7, %s8
  %s10 = sld [smem:[#allocation0]]
  $region46: #{vdpnet_forward.1} parent=0
    _
  %s12 = ssub.s32 1, %s10
  %s13 = scalar_select 0, %s12, %s10
  // Predicated region
  $region2: #{vdpnet_forward.1} parent=0 // pred_check
    _
  $region3: #{vdpnet_forward.1} parent=0 // pred_check_branch
    %15 = sbr.rel (0) target = $region5
  $region4: #{vdpnet_forward.1} parent=0 // pred_region
    _
  $region5: #{vdpnet_forward.1} parent=0 // pred_fallthru
    _
  // Predicated region
  $region6: #{vdpnet_forward.1} parent=0 // pred_check
    _
  $region7: #{vdpnet_forward.1} parent=0 // pred_check_branch
    %17 = sbr.rel (0) target = $region9
  $region8: #{vdpnet_forward.1} parent=0 // pred_region
    _
  $region9: #{vdpnet_forward.1} parent=0 // pred_fallthru
    _
  // Predicated region
  $region10: #{vdpnet_forward.1} parent=0 // pred_check
    _
  $region11: #{vdpnet_forward.1} parent=0 // pred_check_branch
    %19 = sbr.rel (0) target = $region13
  $region12: #{vdpnet_forward.1} parent=0 // pred_region
    _
  $region13: #{vdpnet_forward.1} parent=0 // pred_fallthru
    _
  // Predicated region
  $region14: #{vdpnet_forward.1} parent=0 // pred_check
    _
  $region15: #{vdpnet_forward.1} parent=0 // pred_check_branch
    %21 = sbr.rel (0) target = $region17
  $region16: #{vdpnet_forward.1} parent=0 // pred_region
    _
  $region17: #{vdpnet_forward.1} parent=0 // pred_fallthru
    _
  // Predicated region
  $region18: #{vdpnet_forward.1} parent=0 // pred_check
    _
  $region19: #{vdpnet_forward.1} parent=0 // pred_check_branch
    %23 = sbr.rel (0) target = $region21
  $region20: #{vdpnet_forward.1} parent=0 // pred_region
    _
  $region21: #{vdpnet_forward.1} parent=0 // pred_fallthru
    _
  // Predicated region
  $region22: #{vdpnet_forward.1} parent=0 // pred_check
    _
  $region23: #{vdpnet_forward.1} parent=0 // pred_check_branch
    %25 = sbr.rel (0) target = $region25
  $region24: #{vdpnet_forward.1} parent=0 // pred_region
    _
  $region25: #{vdpnet_forward.1} parent=0 // pred_fallthru
    _
  // Predicated region
  $region26: #{vdpnet_forward.1} parent=0 // pred_check
    _
  $region27: #{vdpnet_forward.1} parent=0 // pred_check_branch
    %27 = sbr.rel (0) target = $region29
  $region28: #{vdpnet_forward.1} parent=0 // pred_region
    _
  $region29: #{vdpnet_forward.1} parent=0 // pred_fallthru
    _
  %v28 = vlaneseq
  %v29 = vshrl.u32 %v28, 7
  %v30 = vadd.s32 %v29, 8
  %v31 = vadd.s32 %v29, 16
  %v32 = vadd.s32 %v29, 24
  %v33 = vadd.s32 %v29, 32
  %v34 = vadd.s32 %v29, 40
  %v35 = vadd.s32 %v29, 48
  %v36 = vadd.s32 %v29, 56
  %v37 = vadd.s32 %v29, 64
  %v38 = vadd.s32 %v29, 72
  %v39 = vadd.s32 %v29, 80
  %v40 = vadd.s32 %v29, 88
  %v41 = vadd.s32 %v29, 96
  %v42 = vadd.s32 %v29, 104
  %v43 = vadd.s32 %v29, 112
  %v44 = vadd.s32 %v29, 120
  %v45 = vlaneseq
  %v46 = vand.u32 %v45, 127
  %vm47 = vcmp.eq.s32.totalorder %v29, %v46
  %vm48 = vcmp.eq.s32.totalorder %v30, %v46
  %vm49 = vcmp.eq.s32.totalorder %v31, %v46
  %vm50 = vcmp.eq.s32.totalorder %v32, %v46
  %vm51 = vcmp.eq.s32.totalorder %v33, %v46
  %vm52 = vcmp.eq.s32.totalorder %v34, %v46
  %vm53 = vcmp.eq.s32.totalorder %v35, %v46
  %vm54 = vcmp.eq.s32.totalorder %v36, %v46
  %vm55 = vcmp.eq.s32.totalorder %v37, %v46
  %vm56 = vcmp.eq.s32.totalorder %v38, %v46
  %vm57 = vcmp.eq.s32.totalorder %v39, %v46
  %vm58 = vcmp.eq.s32.totalorder %v40, %v46
  %vm59 = vcmp.eq.s32.totalorder %v41, %v46
  %vm60 = vcmp.eq.s32.totalorder %v42, %v46
  %vm61 = vcmp.eq.s32.totalorder %v43, %v46
  %vm62 = vcmp.eq.s32.totalorder %v44, %v46
  %v63 = vsel %vm47, 1, 0
  %v64 = vsel %vm48, 1, 0
  %v65 = vsel %vm49, 1, 0
  %v66 = vsel %vm50, 1, 0
  %v67 = vsel %vm51, 1, 0
  %v68 = vsel %vm52, 1, 0
  %v69 = vsel %vm53, 1, 0
  %v70 = vsel %vm54, 1, 0
  %v71 = vsel %vm55, 1, 0
  %v72 = vsel %vm56, 1, 0
  %v73 = vsel %vm57, 1, 0
  %v74 = vsel %vm58, 1, 0
  %v75 = vsel %vm59, 1, 0
  %v76 = vsel %vm60, 1, 0
  %v77 = vsel %vm61, 1, 0
  %v78 = vsel %vm62, 1, 0
  %v79 = vcvt.s32.f32 %v63
  %v80 = vcvt.s32.f32 %v64
  %v81 = vcvt.s32.f32 %v65
  %v82 = vcvt.s32.f32 %v66
  %v83 = vcvt.s32.f32 %v67
  %v84 = vcvt.s32.f32 %v68
  %v85 = vcvt.s32.f32 %v69
  %v86 = vcvt.s32.f32 %v70
  %v87 = vcvt.s32.f32 %v71
  %v88 = vcvt.s32.f32 %v72
  %v89 = vcvt.s32.f32 %v73
  %v90 = vcvt.s32.f32 %v74
  %v91 = vcvt.s32.f32 %v75
  %v92 = vcvt.s32.f32 %v76
  %v93 = vcvt.s32.f32 %v77
  %v94 = vcvt.s32.f32 %v78
  %v95 = vld [vmem:[%s0] sm:$0xff]
  %v96 = vld [vmem:[%s1] sm:$0xff]
  %v97 = vld [vmem:[%s1 + $0x8] sm:$0xff]
  %v98 = vld [vmem:[%s1 + $0x10] sm:$0xff]
  %v99 = vld [vmem:[%s1 + $0x18] sm:$0xff]
  %v100 = vld [vmem:[%s1 + $0x20] sm:$0xff]
  %v101 = vld [vmem:[%s1 + $0x28] sm:$0xff]
  %v102 = vld [vmem:[%s1 + $0x30] sm:$0xff]
  %v103 = vld [vmem:[%s1 + $0x38] sm:$0xff]
  %v104 = vld [vmem:[%s1 + $0x40] sm:$0xff]
  %v105 = vld [vmem:[%s1 + $0x48] sm:$0xff]
  %v106 = vld [vmem:[%s1 + $0x50] sm:$0xff]
  %v107 = vld [vmem:[%s1 + $0x58] sm:$0xff]
  %v108 = vld [vmem:[%s1 + $0x60] sm:$0xff]
  %v109 = vld [vmem:[%s1 + $0x68] sm:$0xff]
  %v110 = vld [vmem:[%s1 + $0x70] sm:$0xff]
  %v111 = vld [vmem:[%s1 + $0x78] sm:$0xff]
  %v112 = vld [vmem:[%s3] sm:$0x1]
  %v114 = vlaneseq
  %v115 = vshrl.u32 %v114, 7
  %v116 = vsub.s32 0, %v115
  %v117 = vrot.slane %v112, %v116
  %119 = vmatprep.subr.mxu0 0.0
  %120 = vmatpush1.msra.mxu0 %v96
  %121 = vmatprep.subr.mxu0 0.0
  %122 = vmatpush1.msra.mxu0 %v97
  %123 = vmatprep.subr.mxu0 0.0
  %124 = vmatpush1.msra.mxu0 %v98
  %125 = vmatprep.subr.mxu0 0.0
  %126 = vmatpush1.msra.mxu0 %v99
  %127 = vmatprep.subr.mxu0 0.0
  %128 = vmatpush1.msra.mxu0 %v100
  %129 = vmatprep.subr.mxu0 0.0
  %130 = vmatpush1.msra.mxu0 %v101
  %131 = vmatprep.subr.mxu0 0.0
  %132 = vmatpush1.msra.mxu0 %v102
  %133 = vmatprep.subr.mxu0 0.0
  %134 = vmatpush1.msra.mxu0 %v103
  %135 = vmatprep.subr.mxu0 0.0
  %136 = vmatpush1.msra.mxu0 %v104
  %137 = vmatprep.subr.mxu0 0.0
  %138 = vmatpush1.msra.mxu0 %v105
  %139 = vmatprep.subr.mxu0 0.0
  %140 = vmatpush1.msra.mxu0 %v106
  %141 = vmatprep.subr.mxu0 0.0
  %142 = vmatpush1.msra.mxu0 %v107
  %143 = vmatprep.subr.mxu0 0.0
  %144 = vmatpush1.msra.mxu0 %v108
  %145 = vmatprep.subr.mxu0 0.0
  %146 = vmatpush1.msra.mxu0 %v109
  %147 = vmatprep.subr.mxu0 0.0
  %148 = vmatpush1.msra.mxu0 %v110
  %149 = vmatprep.subr.mxu0 0.0
  %150 = vmatpush1.msra.mxu0 %v111
  %151 = vmatprep.subr.mxu0 0.0
  %152 = vmatpush1.msra.mxu0 0.0
  %153 = vmatprep.subr.mxu0 0.0
  %154 = vmatpush1.msra.mxu0 0.0
  %155 = vmatprep.subr.mxu0 0.0
  %156 = vmatpush1.msra.mxu0 0.0
  %157 = vmatprep.subr.mxu0 0.0
  %158 = vmatpush1.msra.mxu0 0.0
  %159 = vmatprep.subr.mxu0 0.0
  %160 = vmatpush1.msra.mxu0 0.0
  %161 = vmatprep.subr.mxu0 0.0
  %162 = vmatpush1.msra.mxu0 0.0
  %163 = vmatprep.subr.mxu0 0.0
  %164 = vmatpush1.msra.mxu0 0.0
  %165 = vmatprep.subr.mxu0 0.0
  %166 = vmatpush1.msra.mxu0 0.0
  %167 = vmatprep.subr.mxu0 0.0
  %168 = vmatpush1.msra.mxu0 0.0
  %169 = vmatprep.subr.mxu0 0.0
  %170 = vmatpush1.msra.mxu0 0.0
  %171 = vmatprep.subr.mxu0 0.0
  %172 = vmatpush1.msra.mxu0 0.0
  %173 = vmatprep.subr.mxu0 0.0
  %174 = vmatpush1.msra.mxu0 0.0
  %175 = vmatprep.subr.mxu0 0.0
  %176 = vmatpush1.msra.mxu0 0.0
  %177 = vmatprep.subr.mxu0 0.0
  %178 = vmatpush1.msra.mxu0 0.0
  %179 = vmatprep.subr.mxu0 0.0
  %180 = vmatpush1.msra.mxu0 0.0
  %181 = vmatprep.subr.mxu0 0.0
  %182 = vmatpush1.msra.mxu0 0.0
  %183 = vmatprep.mubr.f32.mxu0 0.0
  %184 = vmatmul.mubr.f32.gmra.mrb[0].mxu0 %v95
  %v185 = vpop.f32.mrb[0].mxu0
  %v186 = vadd.f32 %v117, %v185
  %v187 = vpop.f32.mrb[0].mxu0
  %188 = vdwg.mxu0
  %v189 = vrot.slane %v186, 4
  %v190 = vadd.f32 %v186, %v189
  %v191 = vrot.slane %v190, 2
  %v192 = vadd.f32 %v190, %v191
  %v193 = vrot.slane %v192, 1
  %v194 = vadd.f32 %v192, %v193
  %v195 = vrcp.pop 8.0
  %v196 = vmul.f32 %v194, %v195
  %v197 = vsub.f32 %v186, %v196
  %v198 = vmul.f32 %v197, %v197
  %v199 = vrot.slane %v198, 4
  %v200 = vadd.f32 %v198, %v199
  %v201 = vrot.slane %v200, 2
  %v202 = vadd.f32 %v200, %v201
  %v203 = vrot.slane %v202, 1
  %v204 = vadd.f32 %v202, %v203
  %v205 = vmul.f32 %v204, %v195
  %v206 = vadd.f32 %v205, 1e-05
  %v207 = vrsqrt.pop %v206
  %v208 = vmul.f32 %v197, %v207
  %v209 = vld [vmem:[%s5] sm:$0x1]
  %v211 = vlaneseq
  %v212 = vshrl.u32 %v211, 7
  %v213 = vsub.s32 0, %v212
  %v214 = vrot.slane %v209, %v213
  %v216 = vmul.f32 %v208, %v214
  %v217 = vld [vmem:[%s6] sm:$0x1]
  %v219 = vlaneseq
  %v220 = vshrl.u32 %v219, 7
  %v221 = vsub.s32 0, %v220
  %v222 = vrot.slane %v217, %v221
  %v224 = vadd.f32 %v216, %v222
  %vm225 = vcmp.gt.f32.partialorder %v224, 0.0
  %v226 = vsel %vm225, 1, 0
  %v227 = vcvt.s32.f32 %v226
  %v228 = vmul.f32 %v224, %v227
  %v229 = vmul.f32 %v95, %v95
  %230 = vadd.xlane.f32.xlu0 %v229
  %v231 = vpop.xlane.xlu0 %230
  %v232 = vld [vmem:[%s4] sm:$0x1]
  %v234 = vlaneseq
  %v235 = vshrl.u32 %v234, 7
  %v236 = vsub.s32 0, %v235
  %v237 = vrot.slane %v232, %v236
  %v239 = vmul.f32 %v237, %v231
  %v240 = vmul.f32 %v239, %v227
  %241 = vadd.xlane.f32.xlu0 %v240
  %v242 = vpop.xlane.xlu0 %241
  %s243 = scalar_lea.vmem %s1, 128
  %v244 = vld [vmem:[%s243] sm:$0xff]
  %v245 = vld [vmem:[%s243 + $0x8] sm:$0xff]
  %v246 = vld [vmem:[%s243 + $0x10] sm:$0xff]
  %v247 = vld [vmem:[%s243 + $0x18] sm:$0xff]
  %v248 = vld [vmem:[%s243 + $0x20] sm:$0xff]
  %v249 = vld [vmem:[%s243 + $0x28] sm:$0xff]
  %v250 = vld [vmem:[%s243 + $0x30] sm:$0xff]
  %v251 = vld [vmem:[%s243 + $0x38] sm:$0xff]
  %v252 = vld [vmem:[%s243 + $0x40] sm:$0xff]
  %v253 = vld [vmem:[%s243 + $0x48] sm:$0xff]
  %v254 = vld [vmem:[%s243 + $0x50] sm:$0xff]
  %v255 = vld [vmem:[%s243 + $0x58] sm:$0xff]
  %v256 = vld [vmem:[%s243 + $0x60] sm:$0xff]
  %v257 = vld [vmem:[%s243 + $0x68] sm:$0xff]
  %v258 = vld [vmem:[%s243 + $0x70] sm:$0xff]
  %v259 = vld [vmem:[%s243 + $0x78] sm:$0xff]
  %s260 = scalar_lea.vmem %s3, 1
  %v261 = vld [vmem:[%s260] sm:$0x1]
  %v263 = vlaneseq
  %v264 = vshrl.u32 %v263, 7
  %v265 = vsub.s32 0, %v264
  %v266 = vrot.slane %v261, %v265
  %268 = vmatprep.subr.mxu0 0.0
  %269 = vmatpush1.msra.mxu0 %v244
  %270 = vmatprep.subr.mxu0 0.0
  %271 = vmatpush1.msra.mxu0 %v245
  %272 = vmatprep.subr.mxu0 0.0
  %273 = vmatpush1.msra.mxu0 %v246
  %274 = vmatprep.subr.mxu0 0.0
  %275 = vmatpush1.msra.mxu0 %v247
  %276 = vmatprep.subr.mxu0 0.0
  %277 = vmatpush1.msra.mxu0 %v248
  %278 = vmatprep.subr.mxu0 0.0
  %279 = vmatpush1.msra.mxu0 %v249
  %280 = vmatprep.subr.mxu0 0.0
  %281 = vmatpush1.msra.mxu0 %v250
  %282 = vmatprep.subr.mxu0 0.0
  %283 = vmatpush1.msra.mxu0 %v251
  %284 = vmatprep.subr.mxu0 0.0
  %285 = vmatpush1.msra.mxu0 %v252
  %286 = vmatprep.subr.mxu0 0.0
  %287 = vmatpush1.msra.mxu0 %v253
  %288 = vmatprep.subr.mxu0 0.0
  %289 = vmatpush1.msra.mxu0 %v254
  %290 = vmatprep.subr.mxu0 0.0
  %291 = vmatpush1.msra.mxu0 %v255
  %292 = vmatprep.subr.mxu0 0.0
  %293 = vmatpush1.msra.mxu0 %v256
  %294 = vmatprep.subr.mxu0 0.0
  %295 = vmatpush1.msra.mxu0 %v257
  %296 = vmatprep.subr.mxu0 0.0
  %297 = vmatpush1.msra.mxu0 %v258
  %298 = vmatprep.subr.mxu0 0.0
  %299 = vmatpush1.msra.mxu0 %v259
  %300 = vmatprep.subr.mxu0 0.0
  %301 = vmatpush1.msra.mxu0 0.0
  %302 = vmatprep.subr.mxu0 0.0
  %303 = vmatpush1.msra.mxu0 0.0
  %304 = vmatprep.subr.mxu0 0.0
  %305 = vmatpush1.msra.mxu0 0.0
  %306 = vmatprep.subr.mxu0 0.0
  %307 = vmatpush1.msra.mxu0 0.0
  %308 = vmatprep.subr.mxu0 0.0
  %309 = vmatpush1.msra.mxu0 0.0
  %310 = vmatprep.subr.mxu0 0.0
  %311 = vmatpush1.msra.mxu0 0.0
  %312 = vmatprep.subr.mxu0 0.0
  %313 = vmatpush1.msra.mxu0 0.0
  %314 = vmatprep.subr.mxu0 0.0
  %315 = vmatpush1.msra.mxu0 0.0
  %316 = vmatprep.subr.mxu0 0.0
  %317 = vmatpush1.msra.mxu0 0.0
  %318 = vmatprep.subr.mxu0 0.0
  %319 = vmatpush1.msra.mxu0 0.0
  %320 = vmatprep.subr.mxu0 0.0
  %321 = vmatpush1.msra.mxu0 0.0
  %322 = vmatprep.subr.mxu0 0.0
  %323 = vmatpush1.msra.mxu0 0.0
  %324 = vmatprep.subr.mxu0 0.0
  %325 = vmatpush1.msra.mxu0 0.0
  %326 = vmatprep.subr.mxu0 0.0
  %327 = vmatpush1.msra.mxu0 0.0
  %328 = vmatprep.subr.mxu0 0.0
  %329 = vmatpush1.msra.mxu0 0.0
  %330 = vmatprep.subr.mxu0 0.0
  %331 = vmatpush1.msra.mxu0 0.0
  %332 = vmatprep.mubr.f32.mxu0 0.0
  %333 = vmatmul.mubr.f32.gmra.mrb[0].mxu0 %v228
  %v334 = vpop.f32.mrb[0].mxu0
  %v335 = vadd.f32 %v266, %v334
  %v336 = vpop.f32.mrb[0].mxu0
  %337 = vdwg.mxu0
  %v338 = vrot.slane %v335, 4
  %v339 = vadd.f32 %v335, %v338
  %v340 = vrot.slane %v339, 2
  %v341 = vadd.f32 %v339, %v340
  %v342 = vrot.slane %v341, 1
  %v343 = vadd.f32 %v341, %v342
  %v344 = vmul.f32 %v343, %v195
  %v345 = vsub.f32 %v335, %v344
  %v346 = vmul.f32 %v345, %v345
  %v347 = vrot.slane %v346, 4
  %v348 = vadd.f32 %v346, %v347
  %v349 = vrot.slane %v348, 2
  %v350 = vadd.f32 %v348, %v349
  %v351 = vrot.slane %v350, 1
  %v352 = vadd.f32 %v350, %v351
  %v353 = vmul.f32 %v352, %v195
  %v354 = vadd.f32 %v353, 1e-05
  %v355 = vrsqrt.pop %v354
  %v356 = vmul.f32 %v345, %v355
  %s357 = scalar_lea.vmem %s5, 1
  %v358 = vld [vmem:[%s357] sm:$0x1]
  %v360 = vlaneseq
  %v361 = vshrl.u32 %v360, 7
  %v362 = vsub.s32 0, %v361
  %v363 = vrot.slane %v358, %v362
  %v365 = vmul.f32 %v356, %v363
  %s366 = scalar_lea.vmem %s6, 1
  %v367 = vld [vmem:[%s366] sm:$0x1]
  %v369 = vlaneseq
  %v370 = vshrl.u32 %v369, 7
  %v371 = vsub.s32 0, %v370
  %v372 = vrot.slane %v367, %v371
  %v374 = vadd.f32 %v365, %v372
  %vm375 = vcmp.gt.f32.partialorder %v374, 0.0
  %v376 = vsel %vm375, 1, 0
  %v377 = vcvt.s32.f32 %v376
  %v378 = vmul.f32 %v374, %v377
  %v379 = vmul.f32 %v228, %v228
  %380 = vadd.xlane.f32.xlu0 %v379
  %v381 = vpop.xlane.xlu0 %380
  %s382 = scalar_lea.vmem %s4, 1
  %v383 = vld [vmem:[%s382] sm:$0x1]
  %v384 = vadd.f32 %v381, %v242
  %v386 = vlaneseq
  %v387 = vshrl.u32 %v386, 7
  %v388 = vsub.s32 0, %v387
  %v389 = vrot.slane %v383, %v388
  %v391 = vmul.f32 %v389, %v384
  %s392 = scalar_lea.vmem %s2, 128
  %v393 = vld [vmem:[%s392] sm:$0xff]
  %v394 = vld [vmem:[%s392 + $0x8] sm:$0xff]
  %v395 = vld [vmem:[%s392 + $0x10] sm:$0xff]
  %v396 = vld [vmem:[%s392 + $0x18] sm:$0xff]
  %v397 = vld [vmem:[%s392 + $0x20] sm:$0xff]
  %v398 = vld [vmem:[%s392 + $0x28] sm:$0xff]
  %v399 = vld [vmem:[%s392 + $0x30] sm:$0xff]
  %v400 = vld [vmem:[%s392 + $0x38] sm:$0xff]
  %v401 = vld [vmem:[%s392 + $0x40] sm:$0xff]
  %v402 = vld [vmem:[%s392 + $0x48] sm:$0xff]
  %v403 = vld [vmem:[%s392 + $0x50] sm:$0xff]
  %v404 = vld [vmem:[%s392 + $0x58] sm:$0xff]
  %v405 = vld [vmem:[%s392 + $0x60] sm:$0xff]
  %v406 = vld [vmem:[%s392 + $0x68] sm:$0xff]
  %v407 = vld [vmem:[%s392 + $0x70] sm:$0xff]
  %v408 = vld [vmem:[%s392 + $0x78] sm:$0xff]
  %v410 = vcombine.high %v240, %v240
  %v412 = vunpack.c.l.s4 1966171168
  %v413 = vunpack.c.0.s8 %v412
  %v414 = vlaneseq
  %v415 = vshrl.u32 %v414, 7
  %v416 = vsub.s32 %v413, %v415
  %v417 = vrot.slane %v240, %v416
  %v419 = vunpack.c.l.s4 1966171168
  %v420 = vunpack.c.0.s8 %v419
  %v421 = vlaneseq
  %v422 = vshrl.u32 %v421, 7
  %v423 = vsub.s32 %v420, %v422
  %v424 = vrot.slane %v410, %v423
  %v425 = vcombine.high %v417, %v417
  %v426 = vcombine.high %v424, %v424
  %v428 = vunpack.c.l.s4 1966171168
  %v429 = vunpack.c.0.s8 %v428
  %v430 = vlaneseq
  %v431 = vshrl.u32 %v430, 7
  %v432 = vsub.s32 %v429, %v431
  %v433 = vrot.slane %v417, %v432
  %v435 = vunpack.c.l.s4 1966171168
  %v436 = vunpack.c.0.s8 %v435
  %v437 = vlaneseq
  %v438 = vshrl.u32 %v437, 7
  %v439 = vsub.s32 %v436, %v438
  %v440 = vrot.slane %v424, %v439
  %v442 = vunpack.c.l.s4 1966171168
  %v443 = vunpack.c.0.s8 %v442
  %v444 = vlaneseq
  %v445 = vshrl.u32 %v444, 7
  %v446 = vsub.s32 %v443, %v445
  %v447 = vrot.slane %v425, %v446
  %v449 = vunpack.c.l.s4 1966171168
  %v450 = vunpack.c.0.s8 %v449
  %v451 = vlaneseq
  %v452 = vshrl.u32 %v451, 7
  %v453 = vsub.s32 %v450, %v452
  %v454 = vrot.slane %v426, %v453
  %v455 = vcombine.high %v433, %v433
  %v456 = vcombine.high %v440, %v440
  %v457 = vcombine.high %v447, %v447
  %v458 = vcombine.high %v454, %v454
  %v459 = vlaneseq
  %v460 = vshrl.u32 %v459, 7
  %v461 = vsub.s32 0, %v460
  %v462 = vrot.slane %v433, %v461
  %v463 = vlaneseq
  %v464 = vshrl.u32 %v463, 7
  %v465 = vsub.s32 0, %v464
  %v466 = vrot.slane %v447, %v465
  %v467 = vlaneseq
  %v468 = vshrl.u32 %v467, 7
  %v469 = vsub.s32 0, %v468
  %v470 = vrot.slane %v455, %v469
  %v471 = vlaneseq
  %v472 = vshrl.u32 %v471, 7
  %v473 = vsub.s32 0, %v472
  %v474 = vrot.slane %v457, %v473
  %v475 = vlaneseq
  %v476 = vshrl.u32 %v475, 7
  %v477 = vsub.s32 0, %v476
  %v478 = vrot.slane %v440, %v477
  %v479 = vlaneseq
  %v480 = vshrl.u32 %v479, 7
  %v481 = vsub.s32 0, %v480
  %v482 = vrot.slane %v454, %v481
  %v483 = vlaneseq
  %v484 = vshrl.u32 %v483, 7
  %v485 = vsub.s32 0, %v484
  %v486 = vrot.slane %v456, %v485
  %v487 = vlaneseq
  %v488 = vshrl.u32 %v487, 7
  %v489 = vsub.s32 0, %v488
  %v490 = vrot.slane %v458, %v489
  %v499 = vmul.f32 %v393, %v462
  %v500 = vmul.f32 %v394, %v462
  %v501 = vmul.f32 %v395, %v462
  %v502 = vmul.f32 %v396, %v462
  %v503 = vmul.f32 %v397, %v462
  %v504 = vmul.f32 %v398, %v462
  %v505 = vmul.f32 %v399, %v462
  %v506 = vmul.f32 %v400, %v462
  %v507 = vmul.f32 %v401, %v462
  %v508 = vmul.f32 %v402, %v462
  %v509 = vmul.f32 %v403, %v462
  %v510 = vmul.f32 %v404, %v462
  %v511 = vmul.f32 %v405, %v462
  %v512 = vmul.f32 %v406, %v462
  %v513 = vmul.f32 %v407, %v462
  %v514 = vmul.f32 %v408, %v462
  %v515 = vmul.f32 %v393, %v466
  %v516 = vmul.f32 %v394, %v466
  %v517 = vmul.f32 %v395, %v466
  %v518 = vmul.f32 %v396, %v466
  %v519 = vmul.f32 %v397, %v466
  %v520 = vmul.f32 %v398, %v466
  %v521 = vmul.f32 %v399, %v466
  %v522 = vmul.f32 %v400, %v466
  %v523 = vmul.f32 %v401, %v466
  %v524 = vmul.f32 %v402, %v466
  %v525 = vmul.f32 %v403, %v466
  %v526 = vmul.f32 %v404, %v466
  %v527 = vmul.f32 %v405, %v466
  %v528 = vmul.f32 %v406, %v466
  %v529 = vmul.f32 %v407, %v466
  %v530 = vmul.f32 %v408, %v466
  %v531 = vmul.f32 %v393, %v470
  %v532 = vmul.f32 %v394, %v470
  %v533 = vmul.f32 %v395, %v470
  %v534 = vmul.f32 %v396, %v470
  %v535 = vmul.f32 %v397, %v470
  %v536 = vmul.f32 %v398, %v470
  %v537 = vmul.f32 %v399, %v470
  %v538 = vmul.f32 %v400, %v470
  %v539 = vmul.f32 %v401, %v470
  %v540 = vmul.f32 %v402, %v470
  %v541 = vmul.f32 %v403, %v470
  %v542 = vmul.f32 %v404, %v470
  %v543 = vmul.f32 %v405, %v470
  %v544 = vmul.f32 %v406, %v470
  %v545 = vmul.f32 %v407, %v470
  %v546 = vmul.f32 %v408, %v470
  %v547 = vmul.f32 %v393, %v474
  %v548 = vmul.f32 %v394, %v474
  %v549 = vmul.f32 %v395, %v474
  %v550 = vmul.f32 %v396, %v474
  %v551 = vmul.f32 %v397, %v474
  %v552 = vmul.f32 %v398, %v474
  %v553 = vmul.f32 %v399, %v474
  %v554 = vmul.f32 %v400, %v474
  %v555 = vmul.f32 %v401, %v474
  %v556 = vmul.f32 %v402, %v474
  %v557 = vmul.f32 %v403, %v474
  %v558 = vmul.f32 %v404, %v474
  %v559 = vmul.f32 %v405, %v474
  %v560 = vmul.f32 %v406, %v474
  %v561 = vmul.f32 %v407, %v474
  %v562 = vmul.f32 %v408, %v474
  %v563 = vmul.f32 %v393, %v478
  %v564 = vmul.f32 %v394, %v478
  %v565 = vmul.f32 %v395, %v478
  %v566 = vmul.f32 %v396, %v478
  %v567 = vmul.f32 %v397, %v478
  %v568 = vmul.f32 %v398, %v478
  %v569 = vmul.f32 %v399, %v478
  %v570 = vmul.f32 %v400, %v478
  %v571 = vmul.f32 %v401, %v478
  %v572 = vmul.f32 %v402, %v478
  %v573 = vmul.f32 %v403, %v478
  %v574 = vmul.f32 %v404, %v478
  %v575 = vmul.f32 %v405, %v478
  %v576 = vmul.f32 %v406, %v478
  %v577 = vmul.f32 %v407, %v478
  %v578 = vmul.f32 %v408, %v478
  %v579 = vmul.f32 %v393, %v482
  %v580 = vmul.f32 %v394, %v482
  %v581 = vmul.f32 %v395, %v482
  %v582 = vmul.f32 %v396, %v482
  %v583 = vmul.f32 %v397, %v482
  %v584 = vmul.f32 %v398, %v482
  %v585 = vmul.f32 %v399, %v482
  %v586 = vmul.f32 %v400, %v482
  %v587 = vmul.f32 %v401, %v482
  %v588 = vmul.f32 %v402, %v482
  %v589 = vmul.f32 %v403, %v482
  %v590 = vmul.f32 %v404, %v482
  %v591 = vmul.f32 %v405, %v482
  %v592 = vmul.f32 %v406, %v482
  %v593 = vmul.f32 %v407, %v482
  %v594 = vmul.f32 %v408, %v482
  %v595 = vmul.f32 %v393, %v486
  %v596 = vmul.f32 %v394, %v486
  %v597 = vmul.f32 %v395, %v486
  %v598 = vmul.f32 %v396, %v486
  %v599 = vmul.f32 %v397, %v486
  %v600 = vmul.f32 %v398, %v486
  %v601 = vmul.f32 %v399, %v486
  %v602 = vmul.f32 %v400, %v486
  %v603 = vmul.f32 %v401, %v486
  %v604 = vmul.f32 %v402, %v486
  %v605 = vmul.f32 %v403, %v486
  %v606 = vmul.f32 %v404, %v486
  %v607 = vmul.f32 %v405, %v486
  %v608 = vmul.f32 %v406, %v486
  %v609 = vmul.f32 %v407, %v486
  %v610 = vmul.f32 %v408, %v486
  %v611 = vmul.f32 %v393, %v490
  %v612 = vmul.f32 %v394, %v490
  %v613 = vmul.f32 %v395, %v490
  %v614 = vmul.f32 %v396, %v490
  %v615 = vmul.f32 %v397, %v490
  %v616 = vmul.f32 %v398, %v490
  %v617 = vmul.f32 %v399, %v490
  %v618 = vmul.f32 %v400, %v490
  %v619 = vmul.f32 %v401, %v490
  %v620 = vmul.f32 %v402, %v490
  %v621 = vmul.f32 %v403, %v490
  %v622 = vmul.f32 %v404, %v490
  %v623 = vmul.f32 %v405, %v490
  %v624 = vmul.f32 %v406, %v490
  %v625 = vmul.f32 %v407, %v490
  %v626 = vmul.f32 %v408, %v490
  %627 = vmatprep.subr.mxu0 0.0
  %628 = vmatpush1.msra.mxu0 %v244
  %629 = vmatprep.subr.mxu0 0.0
  %630 = vmatpush1.msra.mxu0 %v245
  %631 = vmatprep.subr.mxu0 0.0
  %632 = vmatpush1.msra.mxu0 %v246
  %633 = vmatprep.subr.mxu0 0.0
  %634 = vmatpush1.msra.mxu0 %v247
  %635 = vmatprep.subr.mxu0 0.0
  %636 = vmatpush1.msra.mxu0 %v248
  %637 = vmatprep.subr.mxu0 0.0
  %638 = vmatpush1.msra.mxu0 %v249
  %639 = vmatprep.subr.mxu0 0.0
  %640 = vmatpush1.msra.mxu0 %v250
  %641 = vmatprep.subr.mxu0 0.0
  %642 = vmatpush1.msra.mxu0 %v251
  %643 = vmatprep.subr.mxu0 0.0
  %644 = vmatpush1.msra.mxu0 %v252
  %645 = vmatprep.subr.mxu0 0.0
  %646 = vmatpush1.msra.mxu0 %v253
  %647 = vmatprep.subr.mxu0 0.0
  %648 = vmatpush1.msra.mxu0 %v254
  %649 = vmatprep.subr.mxu0 0.0
  %650 = vmatpush1.msra.mxu0 %v255
  %651 = vmatprep.subr.mxu0 0.0
  %652 = vmatpush1.msra.mxu0 %v256
  %653 = vmatprep.subr.mxu0 0.0
  %654 = vmatpush1.msra.mxu0 %v257
  %655 = vmatprep.subr.mxu0 0.0
  %656 = vmatpush1.msra.mxu0 %v258
  %657 = vmatprep.subr.mxu0 0.0
  %658 = vmatpush1.msra.mxu0 %v259
  %659 = vmatprep.subr.mxu0 0.0
  %660 = vmatpush1.msra.mxu0 0.0
  %661 = vmatprep.subr.mxu0 0.0
  %662 = vmatpush1.msra.mxu0 0.0
  %663 = vmatprep.subr.mxu0 0.0
  %664 = vmatpush1.msra.mxu0 0.0
  %665 = vmatprep.subr.mxu0 0.0
  %666 = vmatpush1.msra.mxu0 0.0
  %667 = vmatprep.subr.mxu0 0.0
  %668 = vmatpush1.msra.mxu0 0.0
  %669 = vmatprep.subr.mxu0 0.0
  %670 = vmatpush1.msra.mxu0 0.0
  %671 = vmatprep.subr.mxu0 0.0
  %672 = vmatpush1.msra.mxu0 0.0
  %673 = vmatprep.subr.mxu0 0.0
  %674 = vmatpush1.msra.mxu0 0.0
  %675 = vmatprep.subr.mxu0 0.0
  %676 = vmatpush1.msra.mxu0 0.0
  %677 = vmatprep.subr.mxu0 0.0
  %678 = vmatpush1.msra.mxu0 0.0
  %679 = vmatprep.subr.mxu0 0.0
  %680 = vmatpush1.msra.mxu0 0.0
  %681 = vmatprep.subr.mxu0 0.0
  %682 = vmatpush1.msra.mxu0 0.0
  %683 = vmatprep.subr.mxu0 0.0
  %684 = vmatpush1.msra.mxu0 0.0
  %685 = vmatprep.subr.mxu0 0.0
  %686 = vmatpush1.msra.mxu0 0.0
  %687 = vmatprep.subr.mxu0 0.0
  %688 = vmatpush1.msra.mxu0 0.0
  %689 = vmatprep.subr.mxu0 0.0
  %690 = vmatpush1.msra.mxu0 0.0
  %691 = vmatprep.mubr.f32.mxu0 0.0
  %692 = vmatmul.mubr.f32.gmra.mrb[0].mxu0 %v499
  %v693 = vpop.f32.mrb[0].mxu0
  %v694 = vadd.f32 0.0, %v693
  %v695 = vpop.f32.mrb[0].mxu0
  %696 = vmatprep.mubr.f32.mxu0 0.0
  %697 = vmatmul.mubr.f32.gmra.mrb[0].mxu0 %v500
  %v698 = vpop.f32.mrb[0].mxu0
  %v699 = vadd.f32 0.0, %v698
  %v700 = vpop.f32.mrb[0].mxu0
  %701 = vmatprep.mubr.f32.mxu0 0.0
  %702 = vmatmul.mubr.f32.gmra.mrb[0].mxu0 %v501
  %v703 = vpop.f32.mrb[0].mxu0
  %v704 = vadd.f32 0.0, %v703
  %v705 = vpop.f32.mrb[0].mxu0
  %706 = vmatprep.mubr.f32.mxu0 0.0
  %707 = vmatmul.mubr.f32.gmra.mrb[0].mxu0 %v502
  %v708 = vpop.f32.mrb[0].mxu0
  %v709 = vadd.f32 0.0, %v708
  %v710 = vpop.f32.mrb[0].mxu0
  %711 = vmatprep.mubr.f32.mxu0 0.0
  %712 = vmatmul.mubr.f32.gmra.mrb[0].mxu0 %v503
  %v713 = vpop.f32.mrb[0].mxu0
  %v714 = vadd.f32 0.0, %v713
  %v715 = vpop.f32.mrb[0].mxu0
  %716 = vmatprep.mubr.f32.mxu0 0.0
  %717 = vmatmul.mubr.f32.gmra.mrb[0].mxu0 %v504
  %v718 = vpop.f32.mrb[0].mxu0
  %v719 = vadd.f32 0.0, %v718
  %v720 = vpop.f32.mrb[0].mxu0
  %721 = vmatprep.mubr.f32.mxu0 0.0
  %722 = vmatmul.mubr.f32.gmra.mrb[0].mxu0 %v505
  %v723 = vpop.f32.mrb[0].mxu0
  %v724 = vadd.f32 0.0, %v723
  %v725 = vpop.f32.mrb[0].mxu0
  %726 = vmatprep.mubr.f32.mxu0 0.0
  %727 = vmatmul.mubr.f32.gmra.mrb[0].mxu0 %v506
  %v728 = vpop.f32.mrb[0].mxu0
  %v729 = vadd.f32 0.0, %v728
  %v730 = vpop.f32.mrb[0].mxu0
  %731 = vmatprep.mubr.f32.mxu0 0.0
  %732 = vmatmul.mubr.f32.gmra.mrb[0].mxu0 %v507
  %v733 = vpop.f32.mrb[0].mxu0
  %v734 = vadd.f32 0.0, %v733
  %v735 = vpop.f32.mrb[0].mxu0
  %736 = vmatprep.mubr.f32.mxu0 0.0
  %737 = vmatmul.mubr.f32.gmra.mrb[0].mxu0 %v508
  %v738 = vpop.f32.mrb[0].mxu0
  %v739 = vadd.f32 0.0, %v738
  %v740 = vpop.f32.mrb[0].mxu0
  %741 = vmatprep.mubr.f32.mxu0 0.0
  %742 = vmatmul.mubr.f32.gmra.mrb[0].mxu0 %v509
  %v743 = vpop.f32.mrb[0].mxu0
  %v744 = vadd.f32 0.0, %v743
  %v745 = vpop.f32.mrb[0].mxu0
  %746 = vmatprep.mubr.f32.mxu0 0.0
  %747 = vmatmul.mubr.f32.gmra.mrb[0].mxu0 %v510
  %v748 = vpop.f32.mrb[0].mxu0
  %v749 = vadd.f32 0.0, %v748
  %v750 = vpop.f32.mrb[0].mxu0
  %751 = vmatprep.mubr.f32.mxu0 0.0
  %752 = vmatmul.mubr.f32.gmra.mrb[0].mxu0 %v511
  %v753 = vpop.f32.mrb[0].mxu0
  %v754 = vadd.f32 0.0, %v753
  %v755 = vpop.f32.mrb[0].mxu0
  %756 = vmatprep.mubr.f32.mxu0 0.0
  %757 = vmatmul.mubr.f32.gmra.mrb[0].mxu0 %v512
  %v758 = vpop.f32.mrb[0].mxu0
  %v759 = vadd.f32 0.0, %v758
  %v760 = vpop.f32.mrb[0].mxu0
  %761 = vmatprep.mubr.f32.mxu0 0.0
  %762 = vmatmul.mubr.f32.gmra.mrb[0].mxu0 %v513
  %v763 = vpop.f32.mrb[0].mxu0
  %v764 = vadd.f32 0.0, %v763
  %v765 = vpop.f32.mrb[0].mxu0
  %766 = vmatprep.mubr.f32.mxu0 0.0
  %767 = vmatmul.mubr.f32.gmra.mrb[0].mxu0 %v514
  %v768 = vpop.f32.mrb[0].mxu0
  %v769 = vadd.f32 0.0, %v768
  %v770 = vpop.f32.mrb[0].mxu0
  %771 = vmatprep.mubr.f32.mxu0 0.0
  %772 = vmatmul.mubr.f32.gmra.mrb[0].mxu0 %v515
  %v773 = vpop.f32.mrb[0].mxu0
  %v774 = vadd.f32 0.0, %v773
  %v775 = vpop.f32.mrb[0].mxu0
  %776 = vmatprep.mubr.f32.mxu0 0.0
  %777 = vmatmul.mubr.f32.gmra.mrb[0].mxu0 %v516
  %v778 = vpop.f32.mrb[0].mxu0
  %v779 = vadd.f32 0.0, %v778
  %v780 = vpop.f32.mrb[0].mxu0
  %781 = vmatprep.mubr.f32.mxu0 0.0
  %782 = vmatmul.mubr.f32.gmra.mrb[0].mxu0 %v517
  %v783 = vpop.f32.mrb[0].mxu0
  %v784 = vadd.f32 0.0, %v783
  %v785 = vpop.f32.mrb[0].mxu0
  %786 = vmatprep.mubr.f32.mxu0 0.0
  %787 = vmatmul.mubr.f32.gmra.mrb[0].mxu0 %v518
  %v788 = vpop.f32.mrb[0].mxu0
  %v789 = vadd.f32 0.0, %v788
  %v790 = vpop.f32.mrb[0].mxu0
  %791 = vmatprep.mubr.f32.mxu0 0.0
  %792 = vmatmul.mubr.f32.gmra.mrb[0].mxu0 %v519
  %v793 = vpop.f32.mrb[0].mxu0
  %v794 = vadd.f32 0.0, %v793
  %v795 = vpop.f32.mrb[0].mxu0
  %796 = vmatprep.mubr.f32.mxu0 0.0
  %797 = vmatmul.mubr.f32.gmra.mrb[0].mxu0 %v520
  %v798 = vpop.f32.mrb[0].mxu0
  %v799 = vadd.f32 0.0, %v798
  %v800 = vpop.f32.mrb[0].mxu0
  %801 = vmatprep.mubr.f32.mxu0 0.0
  %802 = vmatmul.mubr.f32.gmra.mrb[0].mxu0 %v521
  %v803 = vpop.f32.mrb[0].mxu0
  %v804 = vadd.f32 0.0, %v803
  %v805 = vpop.f32.mrb[0].mxu0
  %806 = vmatprep.mubr.f32.mxu0 0.0
  %807 = vmatmul.mubr.f32.gmra.mrb[0].mxu0 %v522
  %v808 = vpop.f32.mrb[0].mxu0
  %v809 = vadd.f32 0.0, %v808
  %v810 = vpop.f32.mrb[0].mxu0
  %811 = vmatprep.mubr.f32.mxu0 0.0
  %812 = vmatmul.mubr.f32.gmra.mrb[0].mxu0 %v523
  %v813 = vpop.f32.mrb[0].mxu0
  %v814 = vadd.f32 0.0, %v813
  %v815 = vpop.f32.mrb[0].mxu0
  %816 = vmatprep.mubr.f32.mxu0 0.0
  %817 = vmatmul.mubr.f32.gmra.mrb[0].mxu0 %v524
  %v818 = vpop.f32.mrb[0].mxu0
  %v819 = vadd.f32 0.0, %v818
  %v820 = vpop.f32.mrb[0].mxu0
  %821 = vmatprep.mubr.f32.mxu0 0.0
  %822 = vmatmul.mubr.f32.gmra.mrb[0].mxu0 %v525
  %v823 = vpop.f32.mrb[0].mxu0
  %v824 = vadd.f32 0.0, %v823
  %v825 = vpop.f32.mrb[0].mxu0
  %826 = vmatprep.mubr.f32.mxu0 0.0
  %827 = vmatmul.mubr.f32.gmra.mrb[0].mxu0 %v526
  %v828 = vpop.f32.mrb[0].mxu0
  %v829 = vadd.f32 0.0, %v828
  %v830 = vpop.f32.mrb[0].mxu0
  %831 = vmatprep.mubr.f32.mxu0 0.0
  %832 = vmatmul.mubr.f32.gmra.mrb[0].mxu0 %v527
  %v833 = vpop.f32.mrb[0].mxu0
  %v834 = vadd.f32 0.0, %v833
  %v835 = vpop.f32.mrb[0].mxu0
  %836 = vmatprep.mubr.f32.mxu0 0.0
  %837 = vmatmul.mubr.f32.gmra.mrb[0].mxu0 %v528
  %v838 = vpop.f32.mrb[0].mxu0
  %v839 = vadd.f32 0.0, %v838
  %v840 = vpop.f32.mrb[0].mxu0
  %841 = vmatprep.mubr.f32.mxu0 0.0
  %842 = vmatmul.mubr.f32.gmra.mrb[0].mxu0 %v529
  %v843 = vpop.f32.mrb[0].mxu0
  %v844 = vadd.f32 0.0, %v843
  %v845 = vpop.f32.mrb[0].mxu0
  %846 = vmatprep.mubr.f32.mxu0 0.0
  %847 = vmatmul.mubr.f32.gmra.mrb[0].mxu0 %v530
  %v848 = vpop.f32.mrb[0].mxu0
  %v849 = vadd.f32 0.0, %v848
  %v850 = vpop.f32.mrb[0].mxu0
  %851 = vmatprep.mubr.f32.mxu0 0.0
  %852 = vmatmul.mubr.f32.gmra.mrb[0].mxu0 %v531
  %v853 = vpop.f32.mrb[0].mxu0
  %v854 = vadd.f32 0.0, %v853
  %v855 = vpop.f32.mrb[0].mxu0
  %856 = vmatprep.mubr.f32.mxu0 0.0
  %857 = vmatmul.mubr.f32.gmra.mrb[0].mxu0 %v532
  %v858 = vpop.f32.mrb[0].mxu0
  %v859 = vadd.f32 0.0, %v858
  %v860 = vpop.f32.mrb[0].mxu0
  %861 = vmatprep.mubr.f32.mxu0 0.0
  %862 = vmatmul.mubr.f32.gmra.mrb[0].mxu0 %v533
  %v863 = vpop.f32.mrb[0].mxu0
  %v864 = vadd.f32 0.0, %v863
  %v865 = vpop.f32.mrb[0].mxu0
  %866 = vmatprep.mubr.f32.mxu0 0.0
  %867 = vmatmul.mubr.f32.gmra.mrb[0].mxu0 %v534
  %v868 = vpop.f32.mrb[0].mxu0
  %v869 = vadd.f32 0.0, %v868
  %v870 = vpop.f32.mrb[0].mxu0
  %871 = vmatprep.mubr.f32.mxu0 0.0
  %872 = vmatmul.mubr.f32.gmra.mrb[0].mxu0 %v535
  %v873 = vpop.f32.mrb[0].mxu0
  %v874 = vadd.f32 0.0, %v873
  %v875 = vpop.f32.mrb[0].mxu0
  %876 = vmatprep.mubr.f32.mxu0 0.0
  %877 = vmatmul.mubr.f32.gmra.mrb[0].mxu0 %v536
  %v878 = vpop.f32.mrb[0].mxu0
  %v879 = vadd.f32 0.0, %v878
  %v880 = vpop.f32.mrb[0].mxu0
  %881 = vmatprep.mubr.f32.mxu0 0.0
  %882 = vmatmul.mubr.f32.gmra.mrb[0].mxu0 %v537
  %v883 = vpop.f32.mrb[0].mxu0
  %v884 = vadd.f32 0.0, %v883
  %v885 = vpop.f32.mrb[0].mxu0
  %886 = vmatprep.mubr.f32.mxu0 0.0
  %887 = vmatmul.mubr.f32.gmra.mrb[0].mxu0 %v538
  %v888 = vpop.f32.mrb[0].mxu0
  %v889 = vadd.f32 0.0, %v888
  %v890 = vpop.f32.mrb[0].mxu0
  %891 = vmatprep.mubr.f32.mxu0 0.0
  %892 = vmatmul.mubr.f32.gmra.mrb[0].mxu0 %v539
  %v893 = vpop.f32.mrb[0].mxu0
  %v894 = vadd.f32 0.0, %v893
  %v895 = vpop.f32.mrb[0].mxu0
  %896 = vmatprep.mubr.f32.mxu0 0.0
  %897 = vmatmul.mubr.f32.gmra.mrb[0].mxu0 %v540
  %v898 = vpop.f32.mrb[0].mxu0
  %v899 = vadd.f32 0.0, %v898
  %v900 = vpop.f32.mrb[0].mxu0
  %901 = vmatprep.mubr.f32.mxu0 0.0
  %902 = vmatmul.mubr.f32.gmra.mrb[0].mxu0 %v541
  %v903 = vpop.f32.mrb[0].mxu0
  %v904 = vadd.f32 0.0, %v903
  %v905 = vpop.f32.mrb[0].mxu0
  %906 = vmatprep.mubr.f32.mxu0 0.0
  %907 = vmatmul.mubr.f32.gmra.mrb[0].mxu0 %v542
  %v908 = vpop.f32.mrb[0].mxu0
  %v909 = vadd.f32 0.0, %v908
  %v910 = vpop.f32.mrb[0].mxu0
  %911 = vmatprep.mubr.f32.mxu0 0.0
  %912 = vmatmul.mubr.f32.gmra.mrb[0].mxu0 %v543
  %v913 = vpop.f32.mrb[0].mxu0
  %v914 = vadd.f32 0.0, %v913
  %v915 = vpop.f32.mrb[0].mxu0
  %916 = vmatprep.mubr.f32.mxu0 0.0
  %917 = vmatmul.mubr.f32.gmra.mrb[0].mxu0 %v544
  %v918 = vpop.f32.mrb[0].mxu0
  %v919 = vadd.f32 0.0, %v918
  %v920 = vpop.f32.mrb[0].mxu0
  %921 = vmatprep.mubr.f32.mxu0 0.0
  %922 = vmatmul.mubr.f32.gmra.mrb[0].mxu0 %v545
  %v923 = vpop.f32.mrb[0].mxu0
  %v924 = vadd.f32 0.0, %v923
  %v925 = vpop.f32.mrb[0].mxu0
  %926 = vmatprep.mubr.f32.mxu0 0.0
  %927 = vmatmul.mubr.f32.gmra.mrb[0].mxu0 %v546
  %v928 = vpop.f32.mrb[0].mxu0
  %v929 = vadd.f32 0.0, %v928
  %v930 = vpop.f32.mrb[0].mxu0
  %931 = vmatprep.mubr.f32.mxu0 0.0
  %932 = vmatmul.mubr.f32.gmra.mrb[0].mxu0 %v547
  %v933 = vpop.f32.mrb[0].mxu0
  %v934 = vadd.f32 0.0, %v933
  %v935 = vpop.f32.mrb[0].mxu0
  %936 = vmatprep.mubr.f32.mxu0 0.0
  %937 = vmatmul.mubr.f32.gmra.mrb[0].mxu0 %v548
  %v938 = vpop.f32.mrb[0].mxu0
  %v939 = vadd.f32 0.0, %v938
  %v940 = vpop.f32.mrb[0].mxu0
  %941 = vmatprep.mubr.f32.mxu0 0.0
  %942 = vmatmul.mubr.f32.gmra.mrb[0].mxu0 %v549
  %v943 = vpop.f32.mrb[0].mxu0
  %v944 = vadd.f32 0.0, %v943
  %v945 = vpop.f32.mrb[0].mxu0
  %946 = vmatprep.mubr.f32.mxu0 0.0
  %947 = vmatmul.mubr.f32.gmra.mrb[0].mxu0 %v550
  %v948 = vpop.f32.mrb[0].mxu0
  %v949 = vadd.f32 0.0, %v948
  %v950 = vpop.f32.mrb[0].mxu0
  %951 = vmatprep.mubr.f32.mxu0 0.0
  %952 = vmatmul.mubr.f32.gmra.mrb[0].mxu0 %v551
  %v953 = vpop.f32.mrb[0].mxu0
  %v954 = vadd.f32 0.0, %v953
  %v955 = vpop.f32.mrb[0].mxu0
  %956 = vmatprep.mubr.f32.mxu0 0.0
  %957 = vmatmul.mubr.f32.gmra.mrb[0].mxu0 %v552
  %v958 = vpop.f32.mrb[0].mxu0
  %v959 = vadd.f32 0.0, %v958
  %v960 = vpop.f32.mrb[0].mxu0
  %961 = vmatprep.mubr.f32.mxu0 0.0
  %962 = vmatmul.mubr.f32.gmra.mrb[0].mxu0 %v553
  %v963 = vpop.f32.mrb[0].mxu0
  %v964 = vadd.f32 0.0, %v963
  %v965 = vpop.f32.mrb[0].mxu0
  %966 = vmatprep.mubr.f32.mxu0 0.0
  %967 = vmatmul.mubr.f32.gmra.mrb[0].mxu0 %v554
  %v968 = vpop.f32.mrb[0].mxu0
  %v969 = vadd.f32 0.0, %v968
  %v970 = vpop.f32.mrb[0].mxu0
  %971 = vmatprep.mubr.f32.mxu0 0.0
  %972 = vmatmul.mubr.f32.gmra.mrb[0].mxu0 %v555
  %v973 = vpop.f32.mrb[0].mxu0
  %v974 = vadd.f32 0.0, %v973
  %v975 = vpop.f32.mrb[0].mxu0
  %976 = vmatprep.mubr.f32.mxu0 0.0
  %977 = vmatmul.mubr.f32.gmra.mrb[0].mxu0 %v556
  %v978 = vpop.f32.mrb[0].mxu0
  %v979 = vadd.f32 0.0, %v978
  %v980 = vpop.f32.mrb[0].mxu0
  %981 = vmatprep.mubr.f32.mxu0 0.0
  %982 = vmatmul.mubr.f32.gmra.mrb[0].mxu0 %v557
  %v983 = vpop.f32.mrb[0].mxu0
  %v984 = vadd.f32 0.0, %v983
  %v985 = vpop.f32.mrb[0].mxu0
  %986 = vmatprep.mubr.f32.mxu0 0.0
  %987 = vmatmul.mubr.f32.gmra.mrb[0].mxu0 %v558
  %v988 = vpop.f32.mrb[0].mxu0
  %v989 = vadd.f32 0.0, %v988
  %v990 = vpop.f32.mrb[0].mxu0
  %991 = vmatprep.mubr.f32.mxu0 0.0
  %992 = vmatmul.mubr.f32.gmra.mrb[0].mxu0 %v559
  %v993 = vpop.f32.mrb[0].mxu0
  %v994 = vadd.f32 0.0, %v993
  %v995 = vpop.f32.mrb[0].mxu0
  %996 = vmatprep.mubr.f32.mxu0 0.0
  %997 = vmatmul.mubr.f32.gmra.mrb[0].mxu0 %v560
  %v998 = vpop.f32.mrb[0].mxu0
  %v999 = vadd.f32 0.0, %v998
  %v1000 = vpop.f32.mrb[0].mxu0
  %1001 = vmatprep.mubr.f32.mxu0 0.0
  %1002 = vmatmul.mubr.f32.gmra.mrb[0].mxu0 %v561
  %v1003 = vpop.f32.mrb[0].mxu0
  %v1004 = vadd.f32 0.0, %v1003
  %v1005 = vpop.f32.mrb[0].mxu0
  %1006 = vmatprep.mubr.f32.mxu0 0.0
  %1007 = vmatmul.mubr.f32.gmra.mrb[0].mxu0 %v562
  %v1008 = vpop.f32.mrb[0].mxu0
  %v1009 = vadd.f32 0.0, %v1008
  %v1010 = vpop.f32.mrb[0].mxu0
  %1011 = vmatprep.mubr.f32.mxu0 0.0
  %1012 = vmatmul.mubr.f32.gmra.mrb[0].mxu0 %v563
  %v1013 = vpop.f32.mrb[0].mxu0
  %v1014 = vadd.f32 0.0, %v1013
  %v1015 = vpop.f32.mrb[0].mxu0
  %1016 = vmatprep.mubr.f32.mxu0 0.0
  %1017 = vmatmul.mubr.f32.gmra.mrb[0].mxu0 %v564
  %v1018 = vpop.f32.mrb[0].mxu0
  %v1019 = vadd.f32 0.0, %v1018
  %v1020 = vpop.f32.mrb[0].mxu0
  %1021 = vmatprep.mubr.f32.mxu0 0.0
  %1022 = vmatmul.mubr.f32.gmra.mrb[0].mxu0 %v565
  %v1023 = vpop.f32.mrb[0].mxu0
  %v1024 = vadd.f32 0.0, %v1023
  %v1025 = vpop.f32.mrb[0].mxu0
  %1026 = vmatprep.mubr.f32.mxu0 0.0
  %1027 = vmatmul.mubr.f32.gmra.mrb[0].mxu0 %v566
  %v1028 = vpop.f32.mrb[0].mxu0
  %v1029 = vadd.f32 0.0, %v1028
  %v1030 = vpop.f32.mrb[0].mxu0
  %1031 = vmatprep.mubr.f32.mxu0 0.0
  %1032 = vmatmul.mubr.f32.gmra.mrb[0].mxu0 %v567
  %v1033 = vpop.f32.mrb[0].mxu0
  %v1034 = vadd.f32 0.0, %v1033
  %v1035 = vpop.f32.mrb[0].mxu0
  %1036 = vmatprep.mubr.f32.mxu0 0.0
  %1037 = vmatmul.mubr.f32.gmra.mrb[0].mxu0 %v568
  %v1038 = vpop.f32.mrb[0].mxu0
  %v1039 = vadd.f32 0.0, %v1038
  %v1040 = vpop.f32.mrb[0].mxu0
  %1041 = vmatprep.mubr.f32.mxu0 0.0
  %1042 = vmatmul.mubr.f32.gmra.mrb[0].mxu0 %v569
  %v1043 = vpop.f32.mrb[0].mxu0
  %v1044 = vadd.f32 0.0, %v1043
  %v1045 = vpop.f32.mrb[0].mxu0
  %1046 = vmatprep.mubr.f32.mxu0 0.0
  %1047 = vmatmul.mubr.f32.gmra.mrb[0].mxu0 %v570
  %v1048 = vpop.f32.mrb[0].mxu0
  %v1049 = vadd.f32 0.0, %v1048
  %v1050 = vpop.f32.mrb[0].mxu0
  %1051 = vmatprep.mubr.f32.mxu0 0.0
  %1052 = vmatmul.mubr.f32.gmra.mrb[0].mxu0 %v571
  %v1053 = vpop.f32.mrb[0].mxu0
  %v1054 = vadd.f32 0.0, %v1053
  %v1055 = vpop.f32.mrb[0].mxu0
  %1056 = vmatprep.mubr.f32.mxu0 0.0
  %1057 = vmatmul.mubr.f32.gmra.mrb[0].mxu0 %v572
  %v1058 = vpop.f32.mrb[0].mxu0
  %v1059 = vadd.f32 0.0, %v1058
  %v1060 = vpop.f32.mrb[0].mxu0
  %1061 = vmatprep.mubr.f32.mxu0 0.0
  %1062 = vmatmul.mubr.f32.gmra.mrb[0].mxu0 %v573
  %v1063 = vpop.f32.mrb[0].mxu0
  %v1064 = vadd.f32 0.0, %v1063
  %v1065 = vpop.f32.mrb[0].mxu0
  %1066 = vmatprep.mubr.f32.mxu0 0.0
  %1067 = vmatmul.mubr.f32.gmra.mrb[0].mxu0 %v574
  %v1068 = vpop.f32.mrb[0].mxu0
  %v1069 = vadd.f32 0.0, %v1068
  %v1070 = vpop.f32.mrb[0].mxu0
  %1071 = vmatprep.mubr.f32.mxu0 0.0
  %1072 = vmatmul.mubr.f32.gmra.mrb[0].mxu0 %v575
  %v1073 = vpop.f32.mrb[0].mxu0
  %v1074 = vadd.f32 0.0, %v1073
  %v1075 = vpop.f32.mrb[0].mxu0
  %1076 = vmatprep.mubr.f32.mxu0 0.0
  %1077 = vmatmul.mubr.f32.gmra.mrb[0].mxu0 %v576
  %v1078 = vpop.f32.mrb[0].mxu0
  %v1079 = vadd.f32 0.0, %v1078
  %v1080 = vpop.f32.mrb[0].mxu0
  %1081 = vmatprep.mubr.f32.mxu0 0.0
  %1082 = vmatmul.mubr.f32.gmra.mrb[0].mxu0 %v577
  %v1083 = vpop.f32.mrb[0].mxu0
  %v1084 = vadd.f32 0.0, %v1083
  %v1085 = vpop.f32.mrb[0].mxu0
  %1086 = vmatprep.mubr.f32.mxu0 0.0
  %1087 = vmatmul.mubr.f32.gmra.mrb[0].mxu0 %v578
  %v1088 = vpop.f32.mrb[0].mxu0
  %v1089 = vadd.f32 0.0, %v1088
  %v1090 = vpop.f32.mrb[0].mxu0
  %1091 = vmatprep.mubr.f32.mxu0 0.0
  %1092 = vmatmul.mubr.f32.gmra.mrb[0].mxu0 %v579
  %v1093 = vpop.f32.mrb[0].mxu0
  %v1094 = vadd.f32 0.0, %v1093
  %v1095 = vpop.f32.mrb[0].mxu0
  %1096 = vmatprep.mubr.f32.mxu0 0.0
  %1097 = vmatmul.mubr.f32.gmra.mrb[0].mxu0 %v580
  %v1098 = vpop.f32.mrb[0].mxu0
  %v1099 = vadd.f32 0.0, %v1098
  %v1100 = vpop.f32.mrb[0].mxu0
  %1101 = vmatprep.mubr.f32.mxu0 0.0
  %1102 = vmatmul.mubr.f32.gmra.mrb[0].mxu0 %v581
  %v1103 = vpop.f32.mrb[0].mxu0
  %v1104 = vadd.f32 0.0, %v1103
  %v1105 = vpop.f32.mrb[0].mxu0
  %1106 = vmatprep.mubr.f32.mxu0 0.0
  %1107 = vmatmul.mubr.f32.gmra.mrb[0].mxu0 %v582
  %v1108 = vpop.f32.mrb[0].mxu0
  %v1109 = vadd.f32 0.0, %v1108
  %v1110 = vpop.f32.mrb[0].mxu0
  %1111 = vmatprep.mubr.f32.mxu0 0.0
  %1112 = vmatmul.mubr.f32.gmra.mrb[0].mxu0 %v583
  %v1113 = vpop.f32.mrb[0].mxu0
  %v1114 = vadd.f32 0.0, %v1113
  %v1115 = vpop.f32.mrb[0].mxu0
  %1116 = vmatprep.mubr.f32.mxu0 0.0
  %1117 = vmatmul.mubr.f32.gmra.mrb[0].mxu0 %v584
  %v1118 = vpop.f32.mrb[0].mxu0
  %v1119 = vadd.f32 0.0, %v1118
  %v1120 = vpop.f32.mrb[0].mxu0
  %1121 = vmatprep.mubr.f32.mxu0 0.0
  %1122 = vmatmul.mubr.f32.gmra.mrb[0].mxu0 %v585
  %v1123 = vpop.f32.mrb[0].mxu0
  %v1124 = vadd.f32 0.0, %v1123
  %v1125 = vpop.f32.mrb[0].mxu0
  %1126 = vmatprep.mubr.f32.mxu0 0.0
  %1127 = vmatmul.mubr.f32.gmra.mrb[0].mxu0 %v586
  %v1128 = vpop.f32.mrb[0].mxu0
  %v1129 = vadd.f32 0.0, %v1128
  %v1130 = vpop.f32.mrb[0].mxu0
  %1131 = vmatprep.mubr.f32.mxu0 0.0
  %1132 = vmatmul.mubr.f32.gmra.mrb[0].mxu0 %v587
  %v1133 = vpop.f32.mrb[0].mxu0
  %v1134 = vadd.f32 0.0, %v1133
  %v1135 = vpop.f32.mrb[0].mxu0
  %1136 = vmatprep.mubr.f32.mxu0 0.0
  %1137 = vmatmul.mubr.f32.gmra.mrb[0].mxu0 %v588
  %v1138 = vpop.f32.mrb[0].mxu0
  %v1139 = vadd.f32 0.0, %v1138
  %v1140 = vpop.f32.mrb[0].mxu0
  %1141 = vmatprep.mubr.f32.mxu0 0.0
  %1142 = vmatmul.mubr.f32.gmra.mrb[0].mxu0 %v589
  %v1143 = vpop.f32.mrb[0].mxu0
  %v1144 = vadd.f32 0.0, %v1143
  %v1145 = vpop.f32.mrb[0].mxu0
  %1146 = vmatprep.mubr.f32.mxu0 0.0
  %1147 = vmatmul.mubr.f32.gmra.mrb[0].mxu0 %v590
  %v1148 = vpop.f32.mrb[0].mxu0
  %v1149 = vadd.f32 0.0, %v1148
  %v1150 = vpop.f32.mrb[0].mxu0
  %1151 = vmatprep.mubr.f32.mxu0 0.0
  %1152 = vmatmul.mubr.f32.gmra.mrb[0].mxu0 %v591
  %v1153 = vpop.f32.mrb[0].mxu0
  %v1154 = vadd.f32 0.0, %v1153
  %v1155 = vpop.f32.mrb[0].mxu0
  %1156 = vmatprep.mubr.f32.mxu0 0.0
  %1157 = vmatmul.mubr.f32.gmra.mrb[0].mxu0 %v592
  %v1158 = vpop.f32.mrb[0].mxu0
  %v1159 = vadd.f32 0.0, %v1158
  %v1160 = vpop.f32.mrb[0].mxu0
  %1161 = vmatprep.mubr.f32.mxu0 0.0
  %1162 = vmatmul.mubr.f32.gmra.mrb[0].mxu0 %v593
  %v1163 = vpop.f32.mrb[0].mxu0
  %v1164 = vadd.f32 0.0, %v1163
  %v1165 = vpop.f32.mrb[0].mxu0
  %1166 = vmatprep.mubr.f32.mxu0 0.0
  %1167 = vmatmul.mubr.f32.gmra.mrb[0].mxu0 %v594
  %v1168 = vpop.f32.mrb[0].mxu0
  %v1169 = vadd.f32 0.0, %v1168
  %v1170 = vpop.f32.mrb[0].mxu0
  %1171 = vmatprep.mubr.f32.mxu0 0.0
  %1172 = vmatmul.mubr.f32.gmra.mrb[0].mxu0 %v595
  %v1173 = vpop.f32.mrb[0].mxu0
  %v1174 = vadd.f32 0.0, %v1173
  %v1175 = vpop.f32.mrb[0].mxu0
  %1176 = vmatprep.mubr.f32.mxu0 0.0
  %1177 = vmatmul.mubr.f32.gmra.mrb[0].mxu0 %v596
  %v1178 = vpop.f32.mrb[0].mxu0
  %v1179 = vadd.f32 0.0, %v1178
  %v1180 = vpop.f32.mrb[0].mxu0
  %1181 = vmatprep.mubr.f32.mxu0 0.0
  %1182 = vmatmul.mubr.f32.gmra.mrb[0].mxu0 %v597
  %v1183 = vpop.f32.mrb[0].mxu0
  %v1184 = vadd.f32 0.0, %v1183
  %v1185 = vpop.f32.mrb[0].mxu0
  %1186 = vmatprep.mubr.f32.mxu0 0.0
  %1187 = vmatmul.mubr.f32.gmra.mrb[0].mxu0 %v598
  %v1188 = vpop.f32.mrb[0].mxu0
  %v1189 = vadd.f32 0.0, %v1188
  %v1190 = vpop.f32.mrb[0].mxu0
  %1191 = vmatprep.mubr.f32.mxu0 0.0
  %1192 = vmatmul.mubr.f32.gmra.mrb[0].mxu0 %v599
  %v1193 = vpop.f32.mrb[0].mxu0
  %v1194 = vadd.f32 0.0, %v1193
  %v1195 = vpop.f32.mrb[0].mxu0
  %1196 = vmatprep.mubr.f32.mxu0 0.0
  %1197 = vmatmul.mubr.f32.gmra.mrb[0].mxu0 %v600
  %v1198 = vpop.f32.mrb[0].mxu0
  %v1199 = vadd.f32 0.0, %v1198
  %v1200 = vpop.f32.mrb[0].mxu0
  %1201 = vmatprep.mubr.f32.mxu0 0.0
  %1202 = vmatmul.mubr.f32.gmra.mrb[0].mxu0 %v601
  %v1203 = vpop.f32.mrb[0].mxu0
  %v1204 = vadd.f32 0.0, %v1203
  %v1205 = vpop.f32.mrb[0].mxu0
  %1206 = vmatprep.mubr.f32.mxu0 0.0
  %1207 = vmatmul.mubr.f32.gmra.mrb[0].mxu0 %v602
  %v1208 = vpop.f32.mrb[0].mxu0
  %v1209 = vadd.f32 0.0, %v1208
  %v1210 = vpop.f32.mrb[0].mxu0
  %1211 = vmatprep.mubr.f32.mxu0 0.0
  %1212 = vmatmul.mubr.f32.gmra.mrb[0].mxu0 %v603
  %v1213 = vpop.f32.mrb[0].mxu0
  %v1214 = vadd.f32 0.0, %v1213
  %v1215 = vpop.f32.mrb[0].mxu0
  %1216 = vmatprep.mubr.f32.mxu0 0.0
  %1217 = vmatmul.mubr.f32.gmra.mrb[0].mxu0 %v604
  %v1218 = vpop.f32.mrb[0].mxu0
  %v1219 = vadd.f32 0.0, %v1218
  %v1220 = vpop.f32.mrb[0].mxu0
  %1221 = vmatprep.mubr.f32.mxu0 0.0
  %1222 = vmatmul.mubr.f32.gmra.mrb[0].mxu0 %v605
  %v1223 = vpop.f32.mrb[0].mxu0
  %v1224 = vadd.f32 0.0, %v1223
  %v1225 = vpop.f32.mrb[0].mxu0
  %1226 = vmatprep.mubr.f32.mxu0 0.0
  %1227 = vmatmul.mubr.f32.gmra.mrb[0].mxu0 %v606
  %v1228 = vpop.f32.mrb[0].mxu0
  %v1229 = vadd.f32 0.0, %v1228
  %v1230 = vpop.f32.mrb[0].mxu0
  %1231 = vmatprep.mubr.f32.mxu0 0.0
  %1232 = vmatmul.mubr.f32.gmra.mrb[0].mxu0 %v607
  %v1233 = vpop.f32.mrb[0].mxu0
  %v1234 = vadd.f32 0.0, %v1233
  %v1235 = vpop.f32.mrb[0].mxu0
  %1236 = vmatprep.mubr.f32.mxu0 0.0
  %1237 = vmatmul.mubr.f32.gmra.mrb[0].mxu0 %v608
  %v1238 = vpop.f32.mrb[0].mxu0
  %v1239 = vadd.f32 0.0, %v1238
  %v1240 = vpop.f32.mrb[0].mxu0
  %1241 = vmatprep.mubr.f32.mxu0 0.0
  %1242 = vmatmul.mubr.f32.gmra.mrb[0].mxu0 %v609
  %v1243 = vpop.f32.mrb[0].mxu0
  %v1244 = vadd.f32 0.0, %v1243
  %v1245 = vpop.f32.mrb[0].mxu0
  %1246 = vmatprep.mubr.f32.mxu0 0.0
  %1247 = vmatmul.mubr.f32.gmra.mrb[0].mxu0 %v610
  %v1248 = vpop.f32.mrb[0].mxu0
  %v1249 = vadd.f32 0.0, %v1248
  %v1250 = vpop.f32.mrb[0].mxu0
  %1251 = vmatprep.mubr.f32.mxu0 0.0
  %1252 = vmatmul.mubr.f32.gmra.mrb[0].mxu0 %v611
  %v1253 = vpop.f32.mrb[0].mxu0
  %v1254 = vadd.f32 0.0, %v1253
  %v1255 = vpop.f32.mrb[0].mxu0
  %1256 = vmatprep.mubr.f32.mxu0 0.0
  %1257 = vmatmul.mubr.f32.gmra.mrb[0].mxu0 %v612
  %v1258 = vpop.f32.mrb[0].mxu0
  %v1259 = vadd.f32 0.0, %v1258
  %v1260 = vpop.f32.mrb[0].mxu0
  %1261 = vmatprep.mubr.f32.mxu0 0.0
  %1262 = vmatmul.mubr.f32.gmra.mrb[0].mxu0 %v613
  %v1263 = vpop.f32.mrb[0].mxu0
  %v1264 = vadd.f32 0.0, %v1263
  %v1265 = vpop.f32.mrb[0].mxu0
  %1266 = vmatprep.mubr.f32.mxu0 0.0
  %1267 = vmatmul.mubr.f32.gmra.mrb[0].mxu0 %v614
  %v1268 = vpop.f32.mrb[0].mxu0
  %v1269 = vadd.f32 0.0, %v1268
  %v1270 = vpop.f32.mrb[0].mxu0
  %1271 = vmatprep.mubr.f32.mxu0 0.0
  %1272 = vmatmul.mubr.f32.gmra.mrb[0].mxu0 %v615
  %v1273 = vpop.f32.mrb[0].mxu0
  %v1274 = vadd.f32 0.0, %v1273
  %v1275 = vpop.f32.mrb[0].mxu0
  %1276 = vmatprep.mubr.f32.mxu0 0.0
  %1277 = vmatmul.mubr.f32.gmra.mrb[0].mxu0 %v616
  %v1278 = vpop.f32.mrb[0].mxu0
  %v1279 = vadd.f32 0.0, %v1278
  %v1280 = vpop.f32.mrb[0].mxu0
  %1281 = vmatprep.mubr.f32.mxu0 0.0
  %1282 = vmatmul.mubr.f32.gmra.mrb[0].mxu0 %v617
  %v1283 = vpop.f32.mrb[0].mxu0
  %v1284 = vadd.f32 0.0, %v1283
  %v1285 = vpop.f32.mrb[0].mxu0
  %1286 = vmatprep.mubr.f32.mxu0 0.0
  %1287 = vmatmul.mubr.f32.gmra.mrb[0].mxu0 %v618
  %v1288 = vpop.f32.mrb[0].mxu0
  %v1289 = vadd.f32 0.0, %v1288
  %v1290 = vpop.f32.mrb[0].mxu0
  %1291 = vmatprep.mubr.f32.mxu0 0.0
  %1292 = vmatmul.mubr.f32.gmra.mrb[0].mxu0 %v619
  %v1293 = vpop.f32.mrb[0].mxu0
  %v1294 = vadd.f32 0.0, %v1293
  %v1295 = vpop.f32.mrb[0].mxu0
  %1296 = vmatprep.mubr.f32.mxu0 0.0
  %1297 = vmatmul.mubr.f32.gmra.mrb[0].mxu0 %v620
  %v1298 = vpop.f32.mrb[0].mxu0
  %v1299 = vadd.f32 0.0, %v1298
  %v1300 = vpop.f32.mrb[0].mxu0
  %1301 = vmatprep.mubr.f32.mxu0 0.0
  %1302 = vmatmul.mubr.f32.gmra.mrb[0].mxu0 %v621
  %v1303 = vpop.f32.mrb[0].mxu0
  %v1304 = vadd.f32 0.0, %v1303
  %v1305 = vpop.f32.mrb[0].mxu0
  %1306 = vmatprep.mubr.f32.mxu0 0.0
  %1307 = vmatmul.mubr.f32.gmra.mrb[0].mxu0 %v622
  %v1308 = vpop.f32.mrb[0].mxu0
  %v1309 = vadd.f32 0.0, %v1308
  %v1310 = vpop.f32.mrb[0].mxu0
  %1311 = vmatprep.mubr.f32.mxu0 0.0
  %1312 = vmatmul.mubr.f32.gmra.mrb[0].mxu0 %v623
  %v1313 = vpop.f32.mrb[0].mxu0
  %v1314 = vadd.f32 0.0, %v1313
  %v1315 = vpop.f32.mrb[0].mxu0
  %1316 = vmatprep.mubr.f32.mxu0 0.0
  %1317 = vmatmul.mubr.f32.gmra.mrb[0].mxu0 %v624
  %v1318 = vpop.f32.mrb[0].mxu0
  %v1319 = vadd.f32 0.0, %v1318
  %v1320 = vpop.f32.mrb[0].mxu0
  %1321 = vmatprep.mubr.f32.mxu0 0.0
  %1322 = vmatmul.mubr.f32.gmra.mrb[0].mxu0 %v625
  %v1323 = vpop.f32.mrb[0].mxu0
  %v1324 = vadd.f32 0.0, %v1323
  %v1325 = vpop.f32.mrb[0].mxu0
  %1326 = vmatprep.mubr.f32.mxu0 0.0
  %1327 = vmatmul.mubr.f32.gmra.mrb[0].mxu0 %v626
  %v1328 = vpop.f32.mrb[0].mxu0
  %v1329 = vadd.f32 0.0, %v1328
  %v1330 = vpop.f32.mrb[0].mxu0
  %1331 = vdwg.mxu0
  %v1332 = vmul.f32 %v694, %v79
  %v1333 = vmul.f32 %v699, %v80
  %v1334 = vmul.f32 %v704, %v81
  %v1335 = vmul.f32 %v709, %v82
  %v1336 = vmul.f32 %v714, %v83
  %v1337 = vmul.f32 %v719, %v84
  %v1338 = vmul.f32 %v724, %v85
  %v1339 = vmul.f32 %v729, %v86
  %v1340 = vmul.f32 %v734, %v87
  %v1341 = vmul.f32 %v739, %v88
  %v1342 = vmul.f32 %v744, %v89
  %v1343 = vmul.f32 %v749, %v90
  %v1344 = vmul.f32 %v754, %v91
  %v1345 = vmul.f32 %v759, %v92
  %v1346 = vmul.f32 %v764, %v93
  %v1347 = vmul.f32 %v769, %v94
  %v1348 = vmul.f32 %v774, %v79
  %v1349 = vmul.f32 %v779, %v80
  %v1350 = vmul.f32 %v784, %v81
  %v1351 = vmul.f32 %v789, %v82
  %v1352 = vmul.f32 %v794, %v83
  %v1353 = vmul.f32 %v799, %v84
  %v1354 = vmul.f32 %v804, %v85
  %v1355 = vmul.f32 %v809, %v86
  %v1356 = vmul.f32 %v814, %v87
  %v1357 = vmul.f32 %v819, %v88
  %v1358 = vmul.f32 %v824, %v89
  %v1359 = vmul.f32 %v829, %v90
  %v1360 = vmul.f32 %v834, %v91
  %v1361 = vmul.f32 %v839, %v92
  %v1362 = vmul.f32 %v844, %v93
  %v1363 = vmul.f32 %v849, %v94
  %v1364 = vmul.f32 %v854, %v79
  %v1365 = vmul.f32 %v859, %v80
  %v1366 = vmul.f32 %v864, %v81
  %v1367 = vmul.f32 %v869, %v82
  %v1368 = vmul.f32 %v874, %v83
  %v1369 = vmul.f32 %v879, %v84
  %v1370 = vmul.f32 %v884, %v85
  %v1371 = vmul.f32 %v889, %v86
  %v1372 = vmul.f32 %v894, %v87
  %v1373 = vmul.f32 %v899, %v88
  %v1374 = vmul.f32 %v904, %v89
  %v1375 = vmul.f32 %v909, %v90
  %v1376 = vmul.f32 %v914, %v91
  %v1377 = vmul.f32 %v919, %v92
  %v1378 = vmul.f32 %v924, %v93
  %v1379 = vmul.f32 %v929, %v94
  %v1380 = vmul.f32 %v934, %v79
  %v1381 = vmul.f32 %v939, %v80
  %v1382 = vmul.f32 %v944, %v81
  %v1383 = vmul.f32 %v949, %v82
  %v1384 = vmul.f32 %v954, %v83
  %v1385 = vmul.f32 %v959, %v84
  %v1386 = vmul.f32 %v964, %v85
  %v1387 = vmul.f32 %v969, %v86
  %v1388 = vmul.f32 %v974, %v87
  %v1389 = vmul.f32 %v979, %v88
  %v1390 = vmul.f32 %v984, %v89
  %v1391 = vmul.f32 %v989, %v90
  %v1392 = vmul.f32 %v994, %v91
  %v1393 = vmul.f32 %v999, %v92
  %v1394 = vmul.f32 %v1004, %v93
  %v1395 = vmul.f32 %v1009, %v94
  %v1396 = vmul.f32 %v1014, %v79
  %v1397 = vmul.f32 %v1019, %v80
  %v1398 = vmul.f32 %v1024, %v81
  %v1399 = vmul.f32 %v1029, %v82
  %v1400 = vmul.f32 %v1034, %v83
  %v1401 = vmul.f32 %v1039, %v84
  %v1402 = vmul.f32 %v1044, %v85
  %v1403 = vmul.f32 %v1049, %v86
  %v1404 = vmul.f32 %v1054, %v87
  %v1405 = vmul.f32 %v1059, %v88
  %v1406 = vmul.f32 %v1064, %v89
  %v1407 = vmul.f32 %v1069, %v90
  %v1408 = vmul.f32 %v1074, %v91
  %v1409 = vmul.f32 %v1079, %v92
  %v1410 = vmul.f32 %v1084, %v93
  %v1411 = vmul.f32 %v1089, %v94
  %v1412 = vmul.f32 %v1094, %v79
  %v1413 = vmul.f32 %v1099, %v80
  %v1414 = vmul.f32 %v1104, %v81
  %v1415 = vmul.f32 %v1109, %v82
  %v1416 = vmul.f32 %v1114, %v83
  %v1417 = vmul.f32 %v1119, %v84
  %v1418 = vmul.f32 %v1124, %v85
  %v1419 = vmul.f32 %v1129, %v86
  %v1420 = vmul.f32 %v1134, %v87
  %v1421 = vmul.f32 %v1139, %v88
  %v1422 = vmul.f32 %v1144, %v89
  %v1423 = vmul.f32 %v1149, %v90
  %v1424 = vmul.f32 %v1154, %v91
  %v1425 = vmul.f32 %v1159, %v92
  %v1426 = vmul.f32 %v1164, %v93
  %v1427 = vmul.f32 %v1169, %v94
  %v1428 = vmul.f32 %v1174, %v79
  %v1429 = vmul.f32 %v1179, %v80
  %v1430 = vmul.f32 %v1184, %v81
  %v1431 = vmul.f32 %v1189, %v82
  %v1432 = vmul.f32 %v1194, %v83
  %v1433 = vmul.f32 %v1199, %v84
  %v1434 = vmul.f32 %v1204, %v85
  %v1435 = vmul.f32 %v1209, %v86
  %v1436 = vmul.f32 %v1214, %v87
  %v1437 = vmul.f32 %v1219, %v88
  %v1438 = vmul.f32 %v1224, %v89
  %v1439 = vmul.f32 %v1229, %v90
  %v1440 = vmul.f32 %v1234, %v91
  %v1441 = vmul.f32 %v1239, %v92
  %v1442 = vmul.f32 %v1244, %v93
  %v1443 = vmul.f32 %v1249, %v94
  %v1444 = vmul.f32 %v1254, %v79
  %v1445 = vmul.f32 %v1259, %v80
  %v1446 = vmul.f32 %v1264, %v81
  %v1447 = vmul.f32 %v1269, %v82
  %v1448 = vmul.f32 %v1274, %v83
  %v1449 = vmul.f32 %v1279, %v84
  %v1450 = vmul.f32 %v1284, %v85
  %v1451 = vmul.f32 %v1289, %v86
  %v1452 = vmul.f32 %v1294, %v87
  %v1453 = vmul.f32 %v1299, %v88
  %v1454 = vmul.f32 %v1304, %v89
  %v1455 = vmul.f32 %v1309, %v90
  %v1456 = vmul.f32 %v1314, %v91
  %v1457 = vmul.f32 %v1319, %v92
  %v1458 = vmul.f32 %v1324, %v93
  %v1459 = vmul.f32 %v1329, %v94
  %1460 = vadd.xlane.f32.xlu0 %v1332
  %v1461 = vpop.xlane.xlu0 %1460
  %1462 = vadd.xlane.f32.xlu0 %v1333
  %v1463 = vpop.xlane.xlu0 %1462
  %1464 = vadd.xlane.f32.xlu0 %v1334
  %v1465 = vpop.xlane.xlu0 %1464
  %1466 = vadd.xlane.f32.xlu0 %v1335
  %v1467 = vpop.xlane.xlu0 %1466
  %1468 = vadd.xlane.f32.xlu0 %v1336
  %v1469 = vpop.xlane.xlu0 %1468
  %1470 = vadd.xlane.f32.xlu0 %v1337
  %v1471 = vpop.xlane.xlu0 %1470
  %1472 = vadd.xlane.f32.xlu0 %v1338
  %v1473 = vpop.xlane.xlu0 %1472
  %1474 = vadd.xlane.f32.xlu0 %v1339
  %v1475 = vpop.xlane.xlu0 %1474
  %1476 = vadd.xlane.f32.xlu0 %v1340
  %v1477 = vpop.xlane.xlu0 %1476
  %1478 = vadd.xlane.f32.xlu0 %v1341
  %v1479 = vpop.xlane.xlu0 %1478
  %1480 = vadd.xlane.f32.xlu0 %v1342
  %v1481 = vpop.xlane.xlu0 %1480
  %1482 = vadd.xlane.f32.xlu0 %v1343
  %v1483 = vpop.xlane.xlu0 %1482
  %1484 = vadd.xlane.f32.xlu0 %v1344
  %v1485 = vpop.xlane.xlu0 %1484
  %1486 = vadd.xlane.f32.xlu0 %v1345
  %v1487 = vpop.xlane.xlu0 %1486
  %1488 = vadd.xlane.f32.xlu0 %v1346
  %v1489 = vpop.xlane.xlu0 %1488
  %1490 = vadd.xlane.f32.xlu0 %v1347
  %v1491 = vpop.xlane.xlu0 %1490
  %1492 = vadd.xlane.f32.xlu0 %v1348
  %v1493 = vpop.xlane.xlu0 %1492
  %1494 = vadd.xlane.f32.xlu0 %v1349
  %v1495 = vpop.xlane.xlu0 %1494
  %1496 = vadd.xlane.f32.xlu0 %v1350
  %v1497 = vpop.xlane.xlu0 %1496
  %1498 = vadd.xlane.f32.xlu0 %v1351
  %v1499 = vpop.xlane.xlu0 %1498
  %1500 = vadd.xlane.f32.xlu0 %v1352
  %v1501 = vpop.xlane.xlu0 %1500
  %1502 = vadd.xlane.f32.xlu0 %v1353
  %v1503 = vpop.xlane.xlu0 %1502
  %1504 = vadd.xlane.f32.xlu0 %v1354
  %v1505 = vpop.xlane.xlu0 %1504
  %1506 = vadd.xlane.f32.xlu0 %v1355
  %v1507 = vpop.xlane.xlu0 %1506
  %1508 = vadd.xlane.f32.xlu0 %v1356
  %v1509 = vpop.xlane.xlu0 %1508
  %1510 = vadd.xlane.f32.xlu0 %v1357
  %v1511 = vpop.xlane.xlu0 %1510
  %1512 = vadd.xlane.f32.xlu0 %v1358
  %v1513 = vpop.xlane.xlu0 %1512
  %1514 = vadd.xlane.f32.xlu0 %v1359
  %v1515 = vpop.xlane.xlu0 %1514
  %1516 = vadd.xlane.f32.xlu0 %v1360
  %v1517 = vpop.xlane.xlu0 %1516
  %1518 = vadd.xlane.f32.xlu0 %v1361
  %v1519 = vpop.xlane.xlu0 %1518
  %1520 = vadd.xlane.f32.xlu0 %v1362
  %v1521 = vpop.xlane.xlu0 %1520
  %1522 = vadd.xlane.f32.xlu0 %v1363
  %v1523 = vpop.xlane.xlu0 %1522
  %1524 = vadd.xlane.f32.xlu0 %v1364
  %v1525 = vpop.xlane.xlu0 %1524
  %1526 = vadd.xlane.f32.xlu0 %v1365
  %v1527 = vpop.xlane.xlu0 %1526
  %1528 = vadd.xlane.f32.xlu0 %v1366
  %v1529 = vpop.xlane.xlu0 %1528
  %1530 = vadd.xlane.f32.xlu0 %v1367
  %v1531 = vpop.xlane.xlu0 %1530
  %1532 = vadd.xlane.f32.xlu0 %v1368
  %v1533 = vpop.xlane.xlu0 %1532
  %1534 = vadd.xlane.f32.xlu0 %v1369
  %v1535 = vpop.xlane.xlu0 %1534
  %1536 = vadd.xlane.f32.xlu0 %v1370
  %v1537 = vpop.xlane.xlu0 %1536
  %1538 = vadd.xlane.f32.xlu0 %v1371
  %v1539 = vpop.xlane.xlu0 %1538
  %1540 = vadd.xlane.f32.xlu0 %v1372
  %v1541 = vpop.xlane.xlu0 %1540
  %1542 = vadd.xlane.f32.xlu0 %v1373
  %v1543 = vpop.xlane.xlu0 %1542
  %1544 = vadd.xlane.f32.xlu0 %v1374
  %v1545 = vpop.xlane.xlu0 %1544
  %1546 = vadd.xlane.f32.xlu0 %v1375
  %v1547 = vpop.xlane.xlu0 %1546
  %1548 = vadd.xlane.f32.xlu0 %v1376
  %v1549 = vpop.xlane.xlu0 %1548
  %1550 = vadd.xlane.f32.xlu0 %v1377
  %v1551 = vpop.xlane.xlu0 %1550
  %1552 = vadd.xlane.f32.xlu0 %v1378
  %v1553 = vpop.xlane.xlu0 %1552
  %1554 = vadd.xlane.f32.xlu0 %v1379
  %v1555 = vpop.xlane.xlu0 %1554
  %1556 = vadd.xlane.f32.xlu0 %v1380
  %v1557 = vpop.xlane.xlu0 %1556
  %1558 = vadd.xlane.f32.xlu0 %v1381
  %v1559 = vpop.xlane.xlu0 %1558
  %1560 = vadd.xlane.f32.xlu0 %v1382
  %v1561 = vpop.xlane.xlu0 %1560
  %1562 = vadd.xlane.f32.xlu0 %v1383
  %v1563 = vpop.xlane.xlu0 %1562
  %1564 = vadd.xlane.f32.xlu0 %v1384
  %v1565 = vpop.xlane.xlu0 %1564
  %1566 = vadd.xlane.f32.xlu0 %v1385
  %v1567 = vpop.xlane.xlu0 %1566
  %1568 = vadd.xlane.f32.xlu0 %v1386
  %v1569 = vpop.xlane.xlu0 %1568
  %1570 = vadd.xlane.f32.xlu0 %v1387
  %v1571 = vpop.xlane.xlu0 %1570
  %1572 = vadd.xlane.f32.xlu0 %v1388
  %v1573 = vpop.xlane.xlu0 %1572
  %1574 = vadd.xlane.f32.xlu0 %v1389
  %v1575 = vpop.xlane.xlu0 %1574
  %1576 = vadd.xlane.f32.xlu0 %v1390
  %v1577 = vpop.xlane.xlu0 %1576
  %1578 = vadd.xlane.f32.xlu0 %v1391
  %v1579 = vpop.xlane.xlu0 %1578
  %1580 = vadd.xlane.f32.xlu0 %v1392
  %v1581 = vpop.xlane.xlu0 %1580
  %1582 = vadd.xlane.f32.xlu0 %v1393
  %v1583 = vpop.xlane.xlu0 %1582
  %1584 = vadd.xlane.f32.xlu0 %v1394
  %v1585 = vpop.xlane.xlu0 %1584
  %1586 = vadd.xlane.f32.xlu0 %v1395
  %v1587 = vpop.xlane.xlu0 %1586
  %1588 = vadd.xlane.f32.xlu0 %v1396
  %v1589 = vpop.xlane.xlu0 %1588
  %1590 = vadd.xlane.f32.xlu0 %v1397
  %v1591 = vpop.xlane.xlu0 %1590
  %1592 = vadd.xlane.f32.xlu0 %v1398
  %v1593 = vpop.xlane.xlu0 %1592
  %1594 = vadd.xlane.f32.xlu0 %v1399
  %v1595 = vpop.xlane.xlu0 %1594
  %1596 = vadd.xlane.f32.xlu0 %v1400
  %v1597 = vpop.xlane.xlu0 %1596
  %1598 = vadd.xlane.f32.xlu0 %v1401
  %v1599 = vpop.xlane.xlu0 %1598
  %1600 = vadd.xlane.f32.xlu0 %v1402
  %v1601 = vpop.xlane.xlu0 %1600
  %1602 = vadd.xlane.f32.xlu0 %v1403
  %v1603 = vpop.xlane.xlu0 %1602
  %1604 = vadd.xlane.f32.xlu0 %v1404
  %v1605 = vpop.xlane.xlu0 %1604
  %1606 = vadd.xlane.f32.xlu0 %v1405
  %v1607 = vpop.xlane.xlu0 %1606
  %1608 = vadd.xlane.f32.xlu0 %v1406
  %v1609 = vpop.xlane.xlu0 %1608
  %1610 = vadd.xlane.f32.xlu0 %v1407
  %v1611 = vpop.xlane.xlu0 %1610
  %1612 = vadd.xlane.f32.xlu0 %v1408
  %v1613 = vpop.xlane.xlu0 %1612
  %1614 = vadd.xlane.f32.xlu0 %v1409
  %v1615 = vpop.xlane.xlu0 %1614
  %1616 = vadd.xlane.f32.xlu0 %v1410
  %v1617 = vpop.xlane.xlu0 %1616
  %1618 = vadd.xlane.f32.xlu0 %v1411
  %v1619 = vpop.xlane.xlu0 %1618
  %1620 = vadd.xlane.f32.xlu0 %v1412
  %v1621 = vpop.xlane.xlu0 %1620
  %1622 = vadd.xlane.f32.xlu0 %v1413
  %v1623 = vpop.xlane.xlu0 %1622
  %1624 = vadd.xlane.f32.xlu0 %v1414
  %v1625 = vpop.xlane.xlu0 %1624
  %1626 = vadd.xlane.f32.xlu0 %v1415
  %v1627 = vpop.xlane.xlu0 %1626
  %1628 = vadd.xlane.f32.xlu0 %v1416
  %v1629 = vpop.xlane.xlu0 %1628
  %1630 = vadd.xlane.f32.xlu0 %v1417
  %v1631 = vpop.xlane.xlu0 %1630
  %1632 = vadd.xlane.f32.xlu0 %v1418
  %v1633 = vpop.xlane.xlu0 %1632
  %1634 = vadd.xlane.f32.xlu0 %v1419
  %v1635 = vpop.xlane.xlu0 %1634
  %1636 = vadd.xlane.f32.xlu0 %v1420
  %v1637 = vpop.xlane.xlu0 %1636
  %1638 = vadd.xlane.f32.xlu0 %v1421
  %v1639 = vpop.xlane.xlu0 %1638
  %1640 = vadd.xlane.f32.xlu0 %v1422
  %v1641 = vpop.xlane.xlu0 %1640
  %1642 = vadd.xlane.f32.xlu0 %v1423
  %v1643 = vpop.xlane.xlu0 %1642
  %1644 = vadd.xlane.f32.xlu0 %v1424
  %v1645 = vpop.xlane.xlu0 %1644
  %1646 = vadd.xlane.f32.xlu0 %v1425
  %v1647 = vpop.xlane.xlu0 %1646
  %1648 = vadd.xlane.f32.xlu0 %v1426
  %v1649 = vpop.xlane.xlu0 %1648
  %1650 = vadd.xlane.f32.xlu0 %v1427
  %v1651 = vpop.xlane.xlu0 %1650
  %1652 = vadd.xlane.f32.xlu0 %v1428
  %v1653 = vpop.xlane.xlu0 %1652
  %1654 = vadd.xlane.f32.xlu0 %v1429
  %v1655 = vpop.xlane.xlu0 %1654
  %1656 = vadd.xlane.f32.xlu0 %v1430
  %v1657 = vpop.xlane.xlu0 %1656
  %1658 = vadd.xlane.f32.xlu0 %v1431
  %v1659 = vpop.xlane.xlu0 %1658
  %1660 = vadd.xlane.f32.xlu0 %v1432
  %v1661 = vpop.xlane.xlu0 %1660
  %1662 = vadd.xlane.f32.xlu0 %v1433
  %v1663 = vpop.xlane.xlu0 %1662
  %1664 = vadd.xlane.f32.xlu0 %v1434
  %v1665 = vpop.xlane.xlu0 %1664
  %1666 = vadd.xlane.f32.xlu0 %v1435
  %v1667 = vpop.xlane.xlu0 %1666
  %1668 = vadd.xlane.f32.xlu0 %v1436
  %v1669 = vpop.xlane.xlu0 %1668
  %1670 = vadd.xlane.f32.xlu0 %v1437
  %v1671 = vpop.xlane.xlu0 %1670
  %1672 = vadd.xlane.f32.xlu0 %v1438
  %v1673 = vpop.xlane.xlu0 %1672
  %1674 = vadd.xlane.f32.xlu0 %v1439
  %v1675 = vpop.xlane.xlu0 %1674
  %1676 = vadd.xlane.f32.xlu0 %v1440
  %v1677 = vpop.xlane.xlu0 %1676
  %1678 = vadd.xlane.f32.xlu0 %v1441
  %v1679 = vpop.xlane.xlu0 %1678
  %1680 = vadd.xlane.f32.xlu0 %v1442
  %v1681 = vpop.xlane.xlu0 %1680
  %1682 = vadd.xlane.f32.xlu0 %v1443
  %v1683 = vpop.xlane.xlu0 %1682
  %1684 = vadd.xlane.f32.xlu0 %v1444
  %v1685 = vpop.xlane.xlu0 %1684
  %1686 = vadd.xlane.f32.xlu0 %v1445
  %v1687 = vpop.xlane.xlu0 %1686
  %1688 = vadd.xlane.f32.xlu0 %v1446
  %v1689 = vpop.xlane.xlu0 %1688
  %1690 = vadd.xlane.f32.xlu0 %v1447
  %v1691 = vpop.xlane.xlu0 %1690
  %1692 = vadd.xlane.f32.xlu0 %v1448
  %v1693 = vpop.xlane.xlu0 %1692
  %1694 = vadd.xlane.f32.xlu0 %v1449
  %v1695 = vpop.xlane.xlu0 %1694
  %1696 = vadd.xlane.f32.xlu0 %v1450
  %v1697 = vpop.xlane.xlu0 %1696
  %1698 = vadd.xlane.f32.xlu0 %v1451
  %v1699 = vpop.xlane.xlu0 %1698
  %1700 = vadd.xlane.f32.xlu0 %v1452
  %v1701 = vpop.xlane.xlu0 %1700
  %1702 = vadd.xlane.f32.xlu0 %v1453
  %v1703 = vpop.xlane.xlu0 %1702
  %1704 = vadd.xlane.f32.xlu0 %v1454
  %v1705 = vpop.xlane.xlu0 %1704
  %1706 = vadd.xlane.f32.xlu0 %v1455
  %v1707 = vpop.xlane.xlu0 %1706
  %1708 = vadd.xlane.f32.xlu0 %v1456
  %v1709 = vpop.xlane.xlu0 %1708
  %1710 = vadd.xlane.f32.xlu0 %v1457
  %v1711 = vpop.xlane.xlu0 %1710
  %1712 = vadd.xlane.f32.xlu0 %v1458
  %v1713 = vpop.xlane.xlu0 %1712
  %1714 = vadd.xlane.f32.xlu0 %v1459
  %v1715 = vpop.xlane.xlu0 %1714
  %v1717 = vlaneseq
  %v1718 = vshrl.u32 %v1717, 7
  %v1719 = vsub.s32 0, %v1718
  %v1720 = vrot.slane %v391, %v1719
  %1722 = vbcast.lane.b32.xlu0 %v1720, 256
  %v1723 = vpop.permute.xlu0 %1722
  %s1725 = sor.u32 256, 8
  %1726 = vbcast.lane.b32.xlu0 %v1720, %s1725
  %v1727 = vpop.permute.xlu0 %1726
  %s1729 = sor.u32 256, 16
  %1730 = vbcast.lane.b32.xlu0 %v1720, %s1729
  %v1731 = vpop.permute.xlu0 %1730
  %s1733 = sor.u32 256, 24
  %1734 = vbcast.lane.b32.xlu0 %v1720, %s1733
  %v1735 = vpop.permute.xlu0 %1734
  %s1737 = sor.u32 256, 32
  %1738 = vbcast.lane.b32.xlu0 %v1720, %s1737
  %v1739 = vpop.permute.xlu0 %1738
  %s1741 = sor.u32 256, 40
  %1742 = vbcast.lane.b32.xlu0 %v1720, %s1741
  %v1743 = vpop.permute.xlu0 %1742
  %s1745 = sor.u32 256, 48
  %1746 = vbcast.lane.b32.xlu0 %v1720, %s1745
  %v1747 = vpop.permute.xlu0 %1746
  %s1749 = sor.u32 256, 56
  %1750 = vbcast.lane.b32.xlu0 %v1720, %s1749
  %v1751 = vpop.permute.xlu0 %1750
  %s1753 = sor.u32 256, 64
  %1754 = vbcast.lane.b32.xlu0 %v1720, %s1753
  %v1755 = vpop.permute.xlu0 %1754
  %s1757 = sor.u32 256, 72
  %1758 = vbcast.lane.b32.xlu0 %v1720, %s1757
  %v1759 = vpop.permute.xlu0 %1758
  %s1761 = sor.u32 256, 80
  %1762 = vbcast.lane.b32.xlu0 %v1720, %s1761
  %v1763 = vpop.permute.xlu0 %1762
  %s1765 = sor.u32 256, 88
  %1766 = vbcast.lane.b32.xlu0 %v1720, %s1765
  %v1767 = vpop.permute.xlu0 %1766
  %s1769 = sor.u32 256, 96
  %1770 = vbcast.lane.b32.xlu0 %v1720, %s1769
  %v1771 = vpop.permute.xlu0 %1770
  %s1773 = sor.u32 256, 104
  %1774 = vbcast.lane.b32.xlu0 %v1720, %s1773
  %v1775 = vpop.permute.xlu0 %1774
  %s1777 = sor.u32 256, 112
  %1778 = vbcast.lane.b32.xlu0 %v1720, %s1777
  %v1779 = vpop.permute.xlu0 %1778
  %s1781 = sor.u32 256, 120
  %1782 = vbcast.lane.b32.xlu0 %v1720, %s1781
  %v1783 = vpop.permute.xlu0 %1782
  %v1784 = vlaneseq
  %v1785 = vshrl.u32 %v1784, 7
  %v1786 = vsub.s32 1, %v1785
  %v1787 = vrot.slane %v391, %v1786
  %1789 = vbcast.lane.b32.xlu0 %v1787, 256
  %v1790 = vpop.permute.xlu0 %1789
  %s1792 = sor.u32 256, 8
  %1793 = vbcast.lane.b32.xlu0 %v1787, %s1792
  %v1794 = vpop.permute.xlu0 %1793
  %s1796 = sor.u32 256, 16
  %1797 = vbcast.lane.b32.xlu0 %v1787, %s1796
  %v1798 = vpop.permute.xlu0 %1797
  %s1800 = sor.u32 256, 24
  %1801 = vbcast.lane.b32.xlu0 %v1787, %s1800
  %v1802 = vpop.permute.xlu0 %1801
  %s1804 = sor.u32 256, 32
  %1805 = vbcast.lane.b32.xlu0 %v1787, %s1804
  %v1806 = vpop.permute.xlu0 %1805
  %s1808 = sor.u32 256, 40
  %1809 = vbcast.lane.b32.xlu0 %v1787, %s1808
  %v1810 = vpop.permute.xlu0 %1809
  %s1812 = sor.u32 256, 48
  %1813 = vbcast.lane.b32.xlu0 %v1787, %s1812
  %v1814 = vpop.permute.xlu0 %1813
  %s1816 = sor.u32 256, 56
  %1817 = vbcast.lane.b32.xlu0 %v1787, %s1816
  %v1818 = vpop.permute.xlu0 %1817
  %s1820 = sor.u32 256, 64
  %1821 = vbcast.lane.b32.xlu0 %v1787, %s1820
  %v1822 = vpop.permute.xlu0 %1821
  %s1824 = sor.u32 256, 72
  %1825 = vbcast.lane.b32.xlu0 %v1787, %s1824
  %v1826 = vpop.permute.xlu0 %1825
  %s1828 = sor.u32 256, 80
  %1829 = vbcast.lane.b32.xlu0 %v1787, %s1828
  %v1830 = vpop.permute.xlu0 %1829
  %s1832 = sor.u32 256, 88
  %1833 = vbcast.lane.b32.xlu0 %v1787, %s1832
  %v1834 = vpop.permute.xlu0 %1833
  %s1836 = sor.u32 256, 96
  %1837 = vbcast.lane.b32.xlu0 %v1787, %s1836
  %v1838 = vpop.permute.xlu0 %1837
  %s1840 = sor.u32 256, 104
  %1841 = vbcast.lane.b32.xlu0 %v1787, %s1840
  %v1842 = vpop.permute.xlu0 %1841
  %s1844 = sor.u32 256, 112
  %1845 = vbcast.lane.b32.xlu0 %v1787, %s1844
  %v1846 = vpop.permute.xlu0 %1845
  %s1848 = sor.u32 256, 120
  %1849 = vbcast.lane.b32.xlu0 %v1787, %s1848
  %v1850 = vpop.permute.xlu0 %1849
  %v1851 = vlaneseq
  %v1852 = vshrl.u32 %v1851, 7
  %v1853 = vsub.s32 2, %v1852
  %v1854 = vrot.slane %v391, %v1853
  %1856 = vbcast.lane.b32.xlu0 %v1854, 256
  %v1857 = vpop.permute.xlu0 %1856
  %s1859 = sor.u32 256, 8
  %1860 = vbcast.lane.b32.xlu0 %v1854, %s1859
  %v1861 = vpop.permute.xlu0 %1860
  %s1863 = sor.u32 256, 16
  %1864 = vbcast.lane.b32.xlu0 %v1854, %s1863
  %v1865 = vpop.permute.xlu0 %1864
  %s1867 = sor.u32 256, 24
  %1868 = vbcast.lane.b32.xlu0 %v1854, %s1867
  %v1869 = vpop.permute.xlu0 %1868
  %s1871 = sor.u32 256, 32
  %1872 = vbcast.lane.b32.xlu0 %v1854, %s1871
  %v1873 = vpop.permute.xlu0 %1872
  %s1875 = sor.u32 256, 40
  %1876 = vbcast.lane.b32.xlu0 %v1854, %s1875
  %v1877 = vpop.permute.xlu0 %1876
  %s1879 = sor.u32 256, 48
  %1880 = vbcast.lane.b32.xlu0 %v1854, %s1879
  %v1881 = vpop.permute.xlu0 %1880
  %s1883 = sor.u32 256, 56
  %1884 = vbcast.lane.b32.xlu0 %v1854, %s1883
  %v1885 = vpop.permute.xlu0 %1884
  %s1887 = sor.u32 256, 64
  %1888 = vbcast.lane.b32.xlu0 %v1854, %s1887
  %v1889 = vpop.permute.xlu0 %1888
  %s1891 = sor.u32 256, 72
  %1892 = vbcast.lane.b32.xlu0 %v1854, %s1891
  %v1893 = vpop.permute.xlu0 %1892
  %s1895 = sor.u32 256, 80
  %1896 = vbcast.lane.b32.xlu0 %v1854, %s1895
  %v1897 = vpop.permute.xlu0 %1896
  %s1899 = sor.u32 256, 88
  %1900 = vbcast.lane.b32.xlu0 %v1854, %s1899
  %v1901 = vpop.permute.xlu0 %1900
  %s1903 = sor.u32 256, 96
  %1904 = vbcast.lane.b32.xlu0 %v1854, %s1903
  %v1905 = vpop.permute.xlu0 %1904
  %s1907 = sor.u32 256, 104
  %1908 = vbcast.lane.b32.xlu0 %v1854, %s1907
  %v1909 = vpop.permute.xlu0 %1908
  %s1911 = sor.u32 256, 112
  %1912 = vbcast.lane.b32.xlu0 %v1854, %s1911
  %v1913 = vpop.permute.xlu0 %1912
  %s1915 = sor.u32 256, 120
  %1916 = vbcast.lane.b32.xlu0 %v1854, %s1915
  %v1917 = vpop.permute.xlu0 %1916
  %v1918 = vlaneseq
  %v1919 = vshrl.u32 %v1918, 7
  %v1920 = vsub.s32 3, %v1919
  %v1921 = vrot.slane %v391, %v1920
  %1923 = vbcast.lane.b32.xlu0 %v1921, 256
  %v1924 = vpop.permute.xlu0 %1923
  %s1926 = sor.u32 256, 8
  %1927 = vbcast.lane.b32.xlu0 %v1921, %s1926
  %v1928 = vpop.permute.xlu0 %1927
  %s1930 = sor.u32 256, 16
  %1931 = vbcast.lane.b32.xlu0 %v1921, %s1930
  %v1932 = vpop.permute.xlu0 %1931
  %s1934 = sor.u32 256, 24
  %1935 = vbcast.lane.b32.xlu0 %v1921, %s1934
  %v1936 = vpop.permute.xlu0 %1935
  %s1938 = sor.u32 256, 32
  %1939 = vbcast.lane.b32.xlu0 %v1921, %s1938
  %v1940 = vpop.permute.xlu0 %1939
  %s1942 = sor.u32 256, 40
  %1943 = vbcast.lane.b32.xlu0 %v1921, %s1942
  %v1944 = vpop.permute.xlu0 %1943
  %s1946 = sor.u32 256, 48
  %1947 = vbcast.lane.b32.xlu0 %v1921, %s1946
  %v1948 = vpop.permute.xlu0 %1947
  %s1950 = sor.u32 256, 56
  %1951 = vbcast.lane.b32.xlu0 %v1921, %s1950
  %v1952 = vpop.permute.xlu0 %1951
  %s1954 = sor.u32 256, 64
  %1955 = vbcast.lane.b32.xlu0 %v1921, %s1954
  %v1956 = vpop.permute.xlu0 %1955
  %s1958 = sor.u32 256, 72
  %1959 = vbcast.lane.b32.xlu0 %v1921, %s1958
  %v1960 = vpop.permute.xlu0 %1959
  %s1962 = sor.u32 256, 80
  %1963 = vbcast.lane.b32.xlu0 %v1921, %s1962
  %v1964 = vpop.permute.xlu0 %1963
  %s1966 = sor.u32 256, 88
  %1967 = vbcast.lane.b32.xlu0 %v1921, %s1966
  %v1968 = vpop.permute.xlu0 %1967
  %s1970 = sor.u32 256, 96
  %1971 = vbcast.lane.b32.xlu0 %v1921, %s1970
  %v1972 = vpop.permute.xlu0 %1971
  %s1974 = sor.u32 256, 104
  %1975 = vbcast.lane.b32.xlu0 %v1921, %s1974
  %v1976 = vpop.permute.xlu0 %1975
  %s1978 = sor.u32 256, 112
  %1979 = vbcast.lane.b32.xlu0 %v1921, %s1978
  %v1980 = vpop.permute.xlu0 %1979
  %s1982 = sor.u32 256, 120
  %1983 = vbcast.lane.b32.xlu0 %v1921, %s1982
  %v1984 = vpop.permute.xlu0 %1983
  %v1985 = vlaneseq
  %v1986 = vshrl.u32 %v1985, 7
  %v1987 = vsub.s32 4, %v1986
  %v1988 = vrot.slane %v391, %v1987
  %1990 = vbcast.lane.b32.xlu0 %v1988, 256
  %v1991 = vpop.permute.xlu0 %1990
  %s1993 = sor.u32 256, 8
  %1994 = vbcast.lane.b32.xlu0 %v1988, %s1993
  %v1995 = vpop.permute.xlu0 %1994
  %s1997 = sor.u32 256, 16
  %1998 = vbcast.lane.b32.xlu0 %v1988, %s1997
  %v1999 = vpop.permute.xlu0 %1998
  %s2001 = sor.u32 256, 24
  %2002 = vbcast.lane.b32.xlu0 %v1988, %s2001
  %v2003 = vpop.permute.xlu0 %2002
  %s2005 = sor.u32 256, 32
  %2006 = vbcast.lane.b32.xlu0 %v1988, %s2005
  %v2007 = vpop.permute.xlu0 %2006
  %s2009 = sor.u32 256, 40
  %2010 = vbcast.lane.b32.xlu0 %v1988, %s2009
  %v2011 = vpop.permute.xlu0 %2010
  %s2013 = sor.u32 256, 48
  %2014 = vbcast.lane.b32.xlu0 %v1988, %s2013
  %v2015 = vpop.permute.xlu0 %2014
  %s2017 = sor.u32 256, 56
  %2018 = vbcast.lane.b32.xlu0 %v1988, %s2017
  %v2019 = vpop.permute.xlu0 %2018
  %s2021 = sor.u32 256, 64
  %2022 = vbcast.lane.b32.xlu0 %v1988, %s2021
  %v2023 = vpop.permute.xlu0 %2022
  %s2025 = sor.u32 256, 72
  %2026 = vbcast.lane.b32.xlu0 %v1988, %s2025
  %v2027 = vpop.permute.xlu0 %2026
  %s2029 = sor.u32 256, 80
  %2030 = vbcast.lane.b32.xlu0 %v1988, %s2029
  %v2031 = vpop.permute.xlu0 %2030
  %s2033 = sor.u32 256, 88
  %2034 = vbcast.lane.b32.xlu0 %v1988, %s2033
  %v2035 = vpop.permute.xlu0 %2034
  %s2037 = sor.u32 256, 96
  %2038 = vbcast.lane.b32.xlu0 %v1988, %s2037
  %v2039 = vpop.permute.xlu0 %2038
  %s2041 = sor.u32 256, 104
  %2042 = vbcast.lane.b32.xlu0 %v1988, %s2041
  %v2043 = vpop.permute.xlu0 %2042
  %s2045 = sor.u32 256, 112
  %2046 = vbcast.lane.b32.xlu0 %v1988, %s2045
  %v2047 = vpop.permute.xlu0 %2046
  %s2049 = sor.u32 256, 120
  %2050 = vbcast.lane.b32.xlu0 %v1988, %s2049
  %v2051 = vpop.permute.xlu0 %2050
  %v2052 = vlaneseq
  %v2053 = vshrl.u32 %v2052, 7
  %v2054 = vsub.s32 5, %v2053
  %v2055 = vrot.slane %v391, %v2054
  %2057 = vbcast.lane.b32.xlu0 %v2055, 256
  %v2058 = vpop.permute.xlu0 %2057
  %s2060 = sor.u32 256, 8
  %2061 = vbcast.lane.b32.xlu0 %v2055, %s2060
  %v2062 = vpop.permute.xlu0 %2061
  %s2064 = sor.u32 256, 16
  %2065 = vbcast.lane.b32.xlu0 %v2055, %s2064
  %v2066 = vpop.permute.xlu0 %2065
  %s2068 = sor.u32 256, 24
  %2069 = vbcast.lane.b32.xlu0 %v2055, %s2068
  %v2070 = vpop.permute.xlu0 %2069
  %s2072 = sor.u32 256, 32
  %2073 = vbcast.lane.b32.xlu0 %v2055, %s2072
  %v2074 = vpop.permute.xlu0 %2073
  %s2076 = sor.u32 256, 40
  %2077 = vbcast.lane.b32.xlu0 %v2055, %s2076
  %v2078 = vpop.permute.xlu0 %2077
  %s2080 = sor.u32 256, 48
  %2081 = vbcast.lane.b32.xlu0 %v2055, %s2080
  %v2082 = vpop.permute.xlu0 %2081
  %s2084 = sor.u32 256, 56
  %2085 = vbcast.lane.b32.xlu0 %v2055, %s2084
  %v2086 = vpop.permute.xlu0 %2085
  %s2088 = sor.u32 256, 64
  %2089 = vbcast.lane.b32.xlu0 %v2055, %s2088
  %v2090 = vpop.permute.xlu0 %2089
  %s2092 = sor.u32 256, 72
  %2093 = vbcast.lane.b32.xlu0 %v2055, %s2092
  %v2094 = vpop.permute.xlu0 %2093
  %s2096 = sor.u32 256, 80
  %2097 = vbcast.lane.b32.xlu0 %v2055, %s2096
  %v2098 = vpop.permute.xlu0 %2097
  %s2100 = sor.u32 256, 88
  %2101 = vbcast.lane.b32.xlu0 %v2055, %s2100
  %v2102 = vpop.permute.xlu0 %2101
  %s2104 = sor.u32 256, 96
  %2105 = vbcast.lane.b32.xlu0 %v2055, %s2104
  %v2106 = vpop.permute.xlu0 %2105
  %s2108 = sor.u32 256, 104
  %2109 = vbcast.lane.b32.xlu0 %v2055, %s2108
  %v2110 = vpop.permute.xlu0 %2109
  %s2112 = sor.u32 256, 112
  %2113 = vbcast.lane.b32.xlu0 %v2055, %s2112
  %v2114 = vpop.permute.xlu0 %2113
  %s2116 = sor.u32 256, 120
  %2117 = vbcast.lane.b32.xlu0 %v2055, %s2116
  %v2118 = vpop.permute.xlu0 %2117
  %v2119 = vlaneseq
  %v2120 = vshrl.u32 %v2119, 7
  %v2121 = vsub.s32 6, %v2120
  %v2122 = vrot.slane %v391, %v2121
  %2124 = vbcast.lane.b32.xlu0 %v2122, 256
  %v2125 = vpop.permute.xlu0 %2124
  %s2127 = sor.u32 256, 8
  %2128 = vbcast.lane.b32.xlu0 %v2122, %s2127
  %v2129 = vpop.permute.xlu0 %2128
  %s2131 = sor.u32 256, 16
  %2132 = vbcast.lane.b32.xlu0 %v2122, %s2131
  %v2133 = vpop.permute.xlu0 %2132
  %s2135 = sor.u32 256, 24
  %2136 = vbcast.lane.b32.xlu0 %v2122, %s2135
  %v2137 = vpop.permute.xlu0 %2136
  %s2139 = sor.u32 256, 32
  %2140 = vbcast.lane.b32.xlu0 %v2122, %s2139
  %v2141 = vpop.permute.xlu0 %2140
  %s2143 = sor.u32 256, 40
  %2144 = vbcast.lane.b32.xlu0 %v2122, %s2143
  %v2145 = vpop.permute.xlu0 %2144
  %s2147 = sor.u32 256, 48
  %2148 = vbcast.lane.b32.xlu0 %v2122, %s2147
  %v2149 = vpop.permute.xlu0 %2148
  %s2151 = sor.u32 256, 56
  %2152 = vbcast.lane.b32.xlu0 %v2122, %s2151
  %v2153 = vpop.permute.xlu0 %2152
  %s2155 = sor.u32 256, 64
  %2156 = vbcast.lane.b32.xlu0 %v2122, %s2155
  %v2157 = vpop.permute.xlu0 %2156
  %s2159 = sor.u32 256, 72
  %2160 = vbcast.lane.b32.xlu0 %v2122, %s2159
  %v2161 = vpop.permute.xlu0 %2160
  %s2163 = sor.u32 256, 80
  %2164 = vbcast.lane.b32.xlu0 %v2122, %s2163
  %v2165 = vpop.permute.xlu0 %2164
  %s2167 = sor.u32 256, 88
  %2168 = vbcast.lane.b32.xlu0 %v2122, %s2167
  %v2169 = vpop.permute.xlu0 %2168
  %s2171 = sor.u32 256, 96
  %2172 = vbcast.lane.b32.xlu0 %v2122, %s2171
  %v2173 = vpop.permute.xlu0 %2172
  %s2175 = sor.u32 256, 104
  %2176 = vbcast.lane.b32.xlu0 %v2122, %s2175
  %v2177 = vpop.permute.xlu0 %2176
  %s2179 = sor.u32 256, 112
  %2180 = vbcast.lane.b32.xlu0 %v2122, %s2179
  %v2181 = vpop.permute.xlu0 %2180
  %s2183 = sor.u32 256, 120
  %2184 = vbcast.lane.b32.xlu0 %v2122, %s2183
  %v2185 = vpop.permute.xlu0 %2184
  %v2186 = vlaneseq
  %v2187 = vshrl.u32 %v2186, 7
  %v2188 = vsub.s32 7, %v2187
  %v2189 = vrot.slane %v391, %v2188
  %2191 = vbcast.lane.b32.xlu0 %v2189, 256
  %v2192 = vpop.permute.xlu0 %2191
  %s2194 = sor.u32 256, 8
  %2195 = vbcast.lane.b32.xlu0 %v2189, %s2194
  %v2196 = vpop.permute.xlu0 %2195
  %s2198 = sor.u32 256, 16
  %2199 = vbcast.lane.b32.xlu0 %v2189, %s2198
  %v2200 = vpop.permute.xlu0 %2199
  %s2202 = sor.u32 256, 24
  %2203 = vbcast.lane.b32.xlu0 %v2189, %s2202
  %v2204 = vpop.permute.xlu0 %2203
  %s2206 = sor.u32 256, 32
  %2207 = vbcast.lane.b32.xlu0 %v2189, %s2206
  %v2208 = vpop.permute.xlu0 %2207
  %s2210 = sor.u32 256, 40
  %2211 = vbcast.lane.b32.xlu0 %v2189, %s2210
  %v2212 = vpop.permute.xlu0 %2211
  %s2214 = sor.u32 256, 48
  %2215 = vbcast.lane.b32.xlu0 %v2189, %s2214
  %v2216 = vpop.permute.xlu0 %2215
  %s2218 = sor.u32 256, 56
  %2219 = vbcast.lane.b32.xlu0 %v2189, %s2218
  %v2220 = vpop.permute.xlu0 %2219
  %s2222 = sor.u32 256, 64
  %2223 = vbcast.lane.b32.xlu0 %v2189, %s2222
  %v2224 = vpop.permute.xlu0 %2223
  %s2226 = sor.u32 256, 72
  %2227 = vbcast.lane.b32.xlu0 %v2189, %s2226
  %v2228 = vpop.permute.xlu0 %2227
  %s2230 = sor.u32 256, 80
  %2231 = vbcast.lane.b32.xlu0 %v2189, %s2230
  %v2232 = vpop.permute.xlu0 %2231
  %s2234 = sor.u32 256, 88
  %2235 = vbcast.lane.b32.xlu0 %v2189, %s2234
  %v2236 = vpop.permute.xlu0 %2235
  %s2238 = sor.u32 256, 96
  %2239 = vbcast.lane.b32.xlu0 %v2189, %s2238
  %v2240 = vpop.permute.xlu0 %2239
  %s2242 = sor.u32 256, 104
  %2243 = vbcast.lane.b32.xlu0 %v2189, %s2242
  %v2244 = vpop.permute.xlu0 %2243
  %s2246 = sor.u32 256, 112
  %2247 = vbcast.lane.b32.xlu0 %v2189, %s2246
  %v2248 = vpop.permute.xlu0 %2247
  %s2250 = sor.u32 256, 120
  %2251 = vbcast.lane.b32.xlu0 %v2189, %s2250
  %v2252 = vpop.permute.xlu0 %2251
  %v2381 = vadd.f32 %v1461, %v1723
  %v2382 = vadd.f32 %v1463, %v1727
  %v2383 = vadd.f32 %v1465, %v1731
  %v2384 = vadd.f32 %v1467, %v1735
  %v2385 = vadd.f32 %v1469, %v1739
  %v2386 = vadd.f32 %v1471, %v1743
  %v2387 = vadd.f32 %v1473, %v1747
  %v2388 = vadd.f32 %v1475, %v1751
  %v2389 = vadd.f32 %v1477, %v1755
  %v2390 = vadd.f32 %v1479, %v1759
  %v2391 = vadd.f32 %v1481, %v1763
  %v2392 = vadd.f32 %v1483, %v1767
  %v2393 = vadd.f32 %v1485, %v1771
  %v2394 = vadd.f32 %v1487, %v1775
  %v2395 = vadd.f32 %v1489, %v1779
  %v2396 = vadd.f32 %v1491, %v1783
  %v2397 = vadd.f32 %v1493, %v1790
  %v2398 = vadd.f32 %v1495, %v1794
  %v2399 = vadd.f32 %v1497, %v1798
  %v2400 = vadd.f32 %v1499, %v1802
  %v2401 = vadd.f32 %v1501, %v1806
  %v2402 = vadd.f32 %v1503, %v1810
  %v2403 = vadd.f32 %v1505, %v1814
  %v2404 = vadd.f32 %v1507, %v1818
  %v2405 = vadd.f32 %v1509, %v1822
  %v2406 = vadd.f32 %v1511, %v1826
  %v2407 = vadd.f32 %v1513, %v1830
  %v2408 = vadd.f32 %v1515, %v1834
  %v2409 = vadd.f32 %v1517, %v1838
  %v2410 = vadd.f32 %v1519, %v1842
  %v2411 = vadd.f32 %v1521, %v1846
  %v2412 = vadd.f32 %v1523, %v1850
  %v2413 = vadd.f32 %v1525, %v1857
  %v2414 = vadd.f32 %v1527, %v1861
  %v2415 = vadd.f32 %v1529, %v1865
  %v2416 = vadd.f32 %v1531, %v1869
  %v2417 = vadd.f32 %v1533, %v1873
  %v2418 = vadd.f32 %v1535, %v1877
  %v2419 = vadd.f32 %v1537, %v1881
  %v2420 = vadd.f32 %v1539, %v1885
  %v2421 = vadd.f32 %v1541, %v1889
  %v2422 = vadd.f32 %v1543, %v1893
  %v2423 = vadd.f32 %v1545, %v1897
  %v2424 = vadd.f32 %v1547, %v1901
  %v2425 = vadd.f32 %v1549, %v1905
  %v2426 = vadd.f32 %v1551, %v1909
  %v2427 = vadd.f32 %v1553, %v1913
  %v2428 = vadd.f32 %v1555, %v1917
  %v2429 = vadd.f32 %v1557, %v1924
  %v2430 = vadd.f32 %v1559, %v1928
  %v2431 = vadd.f32 %v1561, %v1932
  %v2432 = vadd.f32 %v1563, %v1936
  %v2433 = vadd.f32 %v1565, %v1940
  %v2434 = vadd.f32 %v1567, %v1944
  %v2435 = vadd.f32 %v1569, %v1948
  %v2436 = vadd.f32 %v1571, %v1952
  %v2437 = vadd.f32 %v1573, %v1956
  %v2438 = vadd.f32 %v1575, %v1960
  %v2439 = vadd.f32 %v1577, %v1964
  %v2440 = vadd.f32 %v1579, %v1968
  %v2441 = vadd.f32 %v1581, %v1972
  %v2442 = vadd.f32 %v1583, %v1976
  %v2443 = vadd.f32 %v1585, %v1980
  %v2444 = vadd.f32 %v1587, %v1984
  %v2445 = vadd.f32 %v1589, %v1991
  %v2446 = vadd.f32 %v1591, %v1995
  %v2447 = vadd.f32 %v1593, %v1999
  %v2448 = vadd.f32 %v1595, %v2003
  %v2449 = vadd.f32 %v1597, %v2007
  %v2450 = vadd.f32 %v1599, %v2011
  %v2451 = vadd.f32 %v1601, %v2015
  %v2452 = vadd.f32 %v1603, %v2019
  %v2453 = vadd.f32 %v1605, %v2023
  %v2454 = vadd.f32 %v1607, %v2027
  %v2455 = vadd.f32 %v1609, %v2031
  %v2456 = vadd.f32 %v1611, %v2035
  %v2457 = vadd.f32 %v1613, %v2039
  %v2458 = vadd.f32 %v1615, %v2043
  %v2459 = vadd.f32 %v1617, %v2047
  %v2460 = vadd.f32 %v1619, %v2051
  %v2461 = vadd.f32 %v1621, %v2058
  %v2462 = vadd.f32 %v1623, %v2062
  %v2463 = vadd.f32 %v1625, %v2066
  %v2464 = vadd.f32 %v1627, %v2070
  %v2465 = vadd.f32 %v1629, %v2074
  %v2466 = vadd.f32 %v1631, %v2078
  %v2467 = vadd.f32 %v1633, %v2082
  %v2468 = vadd.f32 %v1635, %v2086
  %v2469 = vadd.f32 %v1637, %v2090
  %v2470 = vadd.f32 %v1639, %v2094
  %v2471 = vadd.f32 %v1641, %v2098
  %v2472 = vadd.f32 %v1643, %v2102
  %v2473 = vadd.f32 %v1645, %v2106
  %v2474 = vadd.f32 %v1647, %v2110
  %v2475 = vadd.f32 %v1649, %v2114
  %v2476 = vadd.f32 %v1651, %v2118
  %v2477 = vadd.f32 %v1653, %v2125
  %v2478 = vadd.f32 %v1655, %v2129
  %v2479 = vadd.f32 %v1657, %v2133
  %v2480 = vadd.f32 %v1659, %v2137
  %v2481 = vadd.f32 %v1661, %v2141
  %v2482 = vadd.f32 %v1663, %v2145
  %v2483 = vadd.f32 %v1665, %v2149
  %v2484 = vadd.f32 %v1667, %v2153
  %v2485 = vadd.f32 %v1669, %v2157
  %v2486 = vadd.f32 %v1671, %v2161
  %v2487 = vadd.f32 %v1673, %v2165
  %v2488 = vadd.f32 %v1675, %v2169
  %v2489 = vadd.f32 %v1677, %v2173
  %v2490 = vadd.f32 %v1679, %v2177
  %v2491 = vadd.f32 %v1681, %v2181
  %v2492 = vadd.f32 %v1683, %v2185
  %v2493 = vadd.f32 %v1685, %v2192
  %v2494 = vadd.f32 %v1687, %v2196
  %v2495 = vadd.f32 %v1689, %v2200
  %v2496 = vadd.f32 %v1691, %v2204
  %v2497 = vadd.f32 %v1693, %v2208
  %v2498 = vadd.f32 %v1695, %v2212
  %v2499 = vadd.f32 %v1697, %v2216
  %v2500 = vadd.f32 %v1699, %v2220
  %v2501 = vadd.f32 %v1701, %v2224
  %v2502 = vadd.f32 %v1703, %v2228
  %v2503 = vadd.f32 %v1705, %v2232
  %v2504 = vadd.f32 %v1707, %v2236
  %v2505 = vadd.f32 %v1709, %v2240
  %v2506 = vadd.f32 %v1711, %v2244
  %v2507 = vadd.f32 %v1713, %v2248
  %v2508 = vadd.f32 %v1715, %v2252
  %2637 = vset.pattern.permute.xlu0 0
  %2638 = vperm.xlu0 %2637, %v2381
  %v2639 = vpop.permute.xlu0 %2638
  %2640 = vset.pattern.permute.xlu0 0
  %2641 = vperm.xlu0 %2640, %v2382
  %v2642 = vpop.permute.xlu0 %2641
  %2643 = vset.pattern.permute.xlu0 0
  %2644 = vperm.xlu0 %2643, %v2383
  %v2645 = vpop.permute.xlu0 %2644
  %2646 = vset.pattern.permute.xlu0 0
  %2647 = vperm.xlu0 %2646, %v2384
  %v2648 = vpop.permute.xlu0 %2647
  %2649 = vset.pattern.permute.xlu0 0
  %2650 = vperm.xlu0 %2649, %v2385
  %v2651 = vpop.permute.xlu0 %2650
  %2652 = vset.pattern.permute.xlu0 0
  %2653 = vperm.xlu0 %2652, %v2386
  %v2654 = vpop.permute.xlu0 %2653
  %2655 = vset.pattern.permute.xlu0 0
  %2656 = vperm.xlu0 %2655, %v2387
  %v2657 = vpop.permute.xlu0 %2656
  %2658 = vset.pattern.permute.xlu0 0
  %2659 = vperm.xlu0 %2658, %v2388
  %v2660 = vpop.permute.xlu0 %2659
  %2661 = vset.pattern.permute.xlu0 0
  %2662 = vperm.xlu0 %2661, %v2389
  %v2663 = vpop.permute.xlu0 %2662
  %2664 = vset.pattern.permute.xlu0 0
  %2665 = vperm.xlu0 %2664, %v2390
  %v2666 = vpop.permute.xlu0 %2665
  %2667 = vset.pattern.permute.xlu0 0
  %2668 = vperm.xlu0 %2667, %v2391
  %v2669 = vpop.permute.xlu0 %2668
  %2670 = vset.pattern.permute.xlu0 0
  %2671 = vperm.xlu0 %2670, %v2392
  %v2672 = vpop.permute.xlu0 %2671
  %2673 = vset.pattern.permute.xlu0 0
  %2674 = vperm.xlu0 %2673, %v2393
  %v2675 = vpop.permute.xlu0 %2674
  %2676 = vset.pattern.permute.xlu0 0
  %2677 = vperm.xlu0 %2676, %v2394
  %v2678 = vpop.permute.xlu0 %2677
  %2679 = vset.pattern.permute.xlu0 0
  %2680 = vperm.xlu0 %2679, %v2395
  %v2681 = vpop.permute.xlu0 %2680
  %2682 = vset.pattern.permute.xlu0 0
  %2683 = vperm.xlu0 %2682, %v2396
  %v2684 = vpop.permute.xlu0 %2683
  %2685 = vset.pattern.permute.xlu0 0
  %2686 = vperm.xlu0 %2685, %v2397
  %v2687 = vpop.permute.xlu0 %2686
  %2688 = vset.pattern.permute.xlu0 0
  %2689 = vperm.xlu0 %2688, %v2398
  %v2690 = vpop.permute.xlu0 %2689
  %2691 = vset.pattern.permute.xlu0 0
  %2692 = vperm.xlu0 %2691, %v2399
  %v2693 = vpop.permute.xlu0 %2692
  %2694 = vset.pattern.permute.xlu0 0
  %2695 = vperm.xlu0 %2694, %v2400
  %v2696 = vpop.permute.xlu0 %2695
  %2697 = vset.pattern.permute.xlu0 0
  %2698 = vperm.xlu0 %2697, %v2401
  %v2699 = vpop.permute.xlu0 %2698
  %2700 = vset.pattern.permute.xlu0 0
  %2701 = vperm.xlu0 %2700, %v2402
  %v2702 = vpop.permute.xlu0 %2701
  %2703 = vset.pattern.permute.xlu0 0
  %2704 = vperm.xlu0 %2703, %v2403
  %v2705 = vpop.permute.xlu0 %2704
  %2706 = vset.pattern.permute.xlu0 0
  %2707 = vperm.xlu0 %2706, %v2404
  %v2708 = vpop.permute.xlu0 %2707
  %2709 = vset.pattern.permute.xlu0 0
  %2710 = vperm.xlu0 %2709, %v2405
  %v2711 = vpop.permute.xlu0 %2710
  %2712 = vset.pattern.permute.xlu0 0
  %2713 = vperm.xlu0 %2712, %v2406
  %v2714 = vpop.permute.xlu0 %2713
  %2715 = vset.pattern.permute.xlu0 0
  %2716 = vperm.xlu0 %2715, %v2407
  %v2717 = vpop.permute.xlu0 %2716
  %2718 = vset.pattern.permute.xlu0 0
  %2719 = vperm.xlu0 %2718, %v2408
  %v2720 = vpop.permute.xlu0 %2719
  %2721 = vset.pattern.permute.xlu0 0
  %2722 = vperm.xlu0 %2721, %v2409
  %v2723 = vpop.permute.xlu0 %2722
  %2724 = vset.pattern.permute.xlu0 0
  %2725 = vperm.xlu0 %2724, %v2410
  %v2726 = vpop.permute.xlu0 %2725
  %2727 = vset.pattern.permute.xlu0 0
  %2728 = vperm.xlu0 %2727, %v2411
  %v2729 = vpop.permute.xlu0 %2728
  %2730 = vset.pattern.permute.xlu0 0
  %2731 = vperm.xlu0 %2730, %v2412
  %v2732 = vpop.permute.xlu0 %2731
  %2733 = vset.pattern.permute.xlu0 0
  %2734 = vperm.xlu0 %2733, %v2413
  %v2735 = vpop.permute.xlu0 %2734
  %2736 = vset.pattern.permute.xlu0 0
  %2737 = vperm.xlu0 %2736, %v2414
  %v2738 = vpop.permute.xlu0 %2737
  %2739 = vset.pattern.permute.xlu0 0
  %2740 = vperm.xlu0 %2739, %v2415
  %v2741 = vpop.permute.xlu0 %2740
  %2742 = vset.pattern.permute.xlu0 0
  %2743 = vperm.xlu0 %2742, %v2416
  %v2744 = vpop.permute.xlu0 %2743
  %2745 = vset.pattern.permute.xlu0 0
  %2746 = vperm.xlu0 %2745, %v2417
  %v2747 = vpop.permute.xlu0 %2746
  %2748 = vset.pattern.permute.xlu0 0
  %2749 = vperm.xlu0 %2748, %v2418
  %v2750 = vpop.permute.xlu0 %2749
  %2751 = vset.pattern.permute.xlu0 0
  %2752 = vperm.xlu0 %2751, %v2419
  %v2753 = vpop.permute.xlu0 %2752
  %2754 = vset.pattern.permute.xlu0 0
  %2755 = vperm.xlu0 %2754, %v2420
  %v2756 = vpop.permute.xlu0 %2755
  %2757 = vset.pattern.permute.xlu0 0
  %2758 = vperm.xlu0 %2757, %v2421
  %v2759 = vpop.permute.xlu0 %2758
  %2760 = vset.pattern.permute.xlu0 0
  %2761 = vperm.xlu0 %2760, %v2422
  %v2762 = vpop.permute.xlu0 %2761
  %2763 = vset.pattern.permute.xlu0 0
  %2764 = vperm.xlu0 %2763, %v2423
  %v2765 = vpop.permute.xlu0 %2764
  %2766 = vset.pattern.permute.xlu0 0
  %2767 = vperm.xlu0 %2766, %v2424
  %v2768 = vpop.permute.xlu0 %2767
  %2769 = vset.pattern.permute.xlu0 0
  %2770 = vperm.xlu0 %2769, %v2425
  %v2771 = vpop.permute.xlu0 %2770
  %2772 = vset.pattern.permute.xlu0 0
  %2773 = vperm.xlu0 %2772, %v2426
  %v2774 = vpop.permute.xlu0 %2773
  %2775 = vset.pattern.permute.xlu0 0
  %2776 = vperm.xlu0 %2775, %v2427
  %v2777 = vpop.permute.xlu0 %2776
  %2778 = vset.pattern.permute.xlu0 0
  %2779 = vperm.xlu0 %2778, %v2428
  %v2780 = vpop.permute.xlu0 %2779
  %2781 = vset.pattern.permute.xlu0 0
  %2782 = vperm.xlu0 %2781, %v2429
  %v2783 = vpop.permute.xlu0 %2782
  %2784 = vset.pattern.permute.xlu0 0
  %2785 = vperm.xlu0 %2784, %v2430
  %v2786 = vpop.permute.xlu0 %2785
  %2787 = vset.pattern.permute.xlu0 0
  %2788 = vperm.xlu0 %2787, %v2431
  %v2789 = vpop.permute.xlu0 %2788
  %2790 = vset.pattern.permute.xlu0 0
  %2791 = vperm.xlu0 %2790, %v2432
  %v2792 = vpop.permute.xlu0 %2791
  %2793 = vset.pattern.permute.xlu0 0
  %2794 = vperm.xlu0 %2793, %v2433
  %v2795 = vpop.permute.xlu0 %2794
  %2796 = vset.pattern.permute.xlu0 0
  %2797 = vperm.xlu0 %2796, %v2434
  %v2798 = vpop.permute.xlu0 %2797
  %2799 = vset.pattern.permute.xlu0 0
  %2800 = vperm.xlu0 %2799, %v2435
  %v2801 = vpop.permute.xlu0 %2800
  %2802 = vset.pattern.permute.xlu0 0
  %2803 = vperm.xlu0 %2802, %v2436
  %v2804 = vpop.permute.xlu0 %2803
  %2805 = vset.pattern.permute.xlu0 0
  %2806 = vperm.xlu0 %2805, %v2437
  %v2807 = vpop.permute.xlu0 %2806
  %2808 = vset.pattern.permute.xlu0 0
  %2809 = vperm.xlu0 %2808, %v2438
  %v2810 = vpop.permute.xlu0 %2809
  %2811 = vset.pattern.permute.xlu0 0
  %2812 = vperm.xlu0 %2811, %v2439
  %v2813 = vpop.permute.xlu0 %2812
  %2814 = vset.pattern.permute.xlu0 0
  %2815 = vperm.xlu0 %2814, %v2440
  %v2816 = vpop.permute.xlu0 %2815
  %2817 = vset.pattern.permute.xlu0 0
  %2818 = vperm.xlu0 %2817, %v2441
  %v2819 = vpop.permute.xlu0 %2818
  %2820 = vset.pattern.permute.xlu0 0
  %2821 = vperm.xlu0 %2820, %v2442
  %v2822 = vpop.permute.xlu0 %2821
  %2823 = vset.pattern.permute.xlu0 0
  %2824 = vperm.xlu0 %2823, %v2443
  %v2825 = vpop.permute.xlu0 %2824
  %2826 = vset.pattern.permute.xlu0 0
  %2827 = vperm.xlu0 %2826, %v2444
  %v2828 = vpop.permute.xlu0 %2827
  %2829 = vset.pattern.permute.xlu0 0
  %2830 = vperm.xlu0 %2829, %v2445
  %v2831 = vpop.permute.xlu0 %2830
  %2832 = vset.pattern.permute.xlu0 0
  %2833 = vperm.xlu0 %2832, %v2446
  %v2834 = vpop.permute.xlu0 %2833
  %2835 = vset.pattern.permute.xlu0 0
  %2836 = vperm.xlu0 %2835, %v2447
  %v2837 = vpop.permute.xlu0 %2836
  %2838 = vset.pattern.permute.xlu0 0
  %2839 = vperm.xlu0 %2838, %v2448
  %v2840 = vpop.permute.xlu0 %2839
  %2841 = vset.pattern.permute.xlu0 0
  %2842 = vperm.xlu0 %2841, %v2449
  %v2843 = vpop.permute.xlu0 %2842
  %2844 = vset.pattern.permute.xlu0 0
  %2845 = vperm.xlu0 %2844, %v2450
  %v2846 = vpop.permute.xlu0 %2845
  %2847 = vset.pattern.permute.xlu0 0
  %2848 = vperm.xlu0 %2847, %v2451
  %v2849 = vpop.permute.xlu0 %2848
  %2850 = vset.pattern.permute.xlu0 0
  %2851 = vperm.xlu0 %2850, %v2452
  %v2852 = vpop.permute.xlu0 %2851
  %2853 = vset.pattern.permute.xlu0 0
  %2854 = vperm.xlu0 %2853, %v2453
  %v2855 = vpop.permute.xlu0 %2854
  %2856 = vset.pattern.permute.xlu0 0
  %2857 = vperm.xlu0 %2856, %v2454
  %v2858 = vpop.permute.xlu0 %2857
  %2859 = vset.pattern.permute.xlu0 0
  %2860 = vperm.xlu0 %2859, %v2455
  %v2861 = vpop.permute.xlu0 %2860
  %2862 = vset.pattern.permute.xlu0 0
  %2863 = vperm.xlu0 %2862, %v2456
  %v2864 = vpop.permute.xlu0 %2863
  %2865 = vset.pattern.permute.xlu0 0
  %2866 = vperm.xlu0 %2865, %v2457
  %v2867 = vpop.permute.xlu0 %2866
  %2868 = vset.pattern.permute.xlu0 0
  %2869 = vperm.xlu0 %2868, %v2458
  %v2870 = vpop.permute.xlu0 %2869
  %2871 = vset.pattern.permute.xlu0 0
  %2872 = vperm.xlu0 %2871, %v2459
  %v2873 = vpop.permute.xlu0 %2872
  %2874 = vset.pattern.permute.xlu0 0
  %2875 = vperm.xlu0 %2874, %v2460
  %v2876 = vpop.permute.xlu0 %2875
  %2877 = vset.pattern.permute.xlu0 0
  %2878 = vperm.xlu0 %2877, %v2461
  %v2879 = vpop.permute.xlu0 %2878
  %2880 = vset.pattern.permute.xlu0 0
  %2881 = vperm.xlu0 %2880, %v2462
  %v2882 = vpop.permute.xlu0 %2881
  %2883 = vset.pattern.permute.xlu0 0
  %2884 = vperm.xlu0 %2883, %v2463
  %v2885 = vpop.permute.xlu0 %2884
  %2886 = vset.pattern.permute.xlu0 0
  %2887 = vperm.xlu0 %2886, %v2464
  %v2888 = vpop.permute.xlu0 %2887
  %2889 = vset.pattern.permute.xlu0 0
  %2890 = vperm.xlu0 %2889, %v2465
  %v2891 = vpop.permute.xlu0 %2890
  %2892 = vset.pattern.permute.xlu0 0
  %2893 = vperm.xlu0 %2892, %v2466
  %v2894 = vpop.permute.xlu0 %2893
  %2895 = vset.pattern.permute.xlu0 0
  %2896 = vperm.xlu0 %2895, %v2467
  %v2897 = vpop.permute.xlu0 %2896
  %2898 = vset.pattern.permute.xlu0 0
  %2899 = vperm.xlu0 %2898, %v2468
  %v2900 = vpop.permute.xlu0 %2899
  %2901 = vset.pattern.permute.xlu0 0
  %2902 = vperm.xlu0 %2901, %v2469
  %v2903 = vpop.permute.xlu0 %2902
  %2904 = vset.pattern.permute.xlu0 0
  %2905 = vperm.xlu0 %2904, %v2470
  %v2906 = vpop.permute.xlu0 %2905
  %2907 = vset.pattern.permute.xlu0 0
  %2908 = vperm.xlu0 %2907, %v2471
  %v2909 = vpop.permute.xlu0 %2908
  %2910 = vset.pattern.permute.xlu0 0
  %2911 = vperm.xlu0 %2910, %v2472
  %v2912 = vpop.permute.xlu0 %2911
  %2913 = vset.pattern.permute.xlu0 0
  %2914 = vperm.xlu0 %2913, %v2473
  %v2915 = vpop.permute.xlu0 %2914
  %2916 = vset.pattern.permute.xlu0 0
  %2917 = vperm.xlu0 %2916, %v2474
  %v2918 = vpop.permute.xlu0 %2917
  %2919 = vset.pattern.permute.xlu0 0
  %2920 = vperm.xlu0 %2919, %v2475
  %v2921 = vpop.permute.xlu0 %2920
  %2922 = vset.pattern.permute.xlu0 0
  %2923 = vperm.xlu0 %2922, %v2476
  %v2924 = vpop.permute.xlu0 %2923
  %2925 = vset.pattern.permute.xlu0 0
  %2926 = vperm.xlu0 %2925, %v2477
  %v2927 = vpop.permute.xlu0 %2926
  %2928 = vset.pattern.permute.xlu0 0
  %2929 = vperm.xlu0 %2928, %v2478
  %v2930 = vpop.permute.xlu0 %2929
  %2931 = vset.pattern.permute.xlu0 0
  %2932 = vperm.xlu0 %2931, %v2479
  %v2933 = vpop.permute.xlu0 %2932
  %2934 = vset.pattern.permute.xlu0 0
  %2935 = vperm.xlu0 %2934, %v2480
  %v2936 = vpop.permute.xlu0 %2935
  %2937 = vset.pattern.permute.xlu0 0
  %2938 = vperm.xlu0 %2937, %v2481
  %v2939 = vpop.permute.xlu0 %2938
  %2940 = vset.pattern.permute.xlu0 0
  %2941 = vperm.xlu0 %2940, %v2482
  %v2942 = vpop.permute.xlu0 %2941
  %2943 = vset.pattern.permute.xlu0 0
  %2944 = vperm.xlu0 %2943, %v2483
  %v2945 = vpop.permute.xlu0 %2944
  %2946 = vset.pattern.permute.xlu0 0
  %2947 = vperm.xlu0 %2946, %v2484
  %v2948 = vpop.permute.xlu0 %2947
  %2949 = vset.pattern.permute.xlu0 0
  %2950 = vperm.xlu0 %2949, %v2485
  %v2951 = vpop.permute.xlu0 %2950
  %2952 = vset.pattern.permute.xlu0 0
  %2953 = vperm.xlu0 %2952, %v2486
  %v2954 = vpop.permute.xlu0 %2953
  %2955 = vset.pattern.permute.xlu0 0
  %2956 = vperm.xlu0 %2955, %v2487
  %v2957 = vpop.permute.xlu0 %2956
  %2958 = vset.pattern.permute.xlu0 0
  %2959 = vperm.xlu0 %2958, %v2488
  %v2960 = vpop.permute.xlu0 %2959
  %2961 = vset.pattern.permute.xlu0 0
  %2962 = vperm.xlu0 %2961, %v2489
  %v2963 = vpop.permute.xlu0 %2962
  %2964 = vset.pattern.permute.xlu0 0
  %2965 = vperm.xlu0 %2964, %v2490
  %v2966 = vpop.permute.xlu0 %2965
  %2967 = vset.pattern.permute.xlu0 0
  %2968 = vperm.xlu0 %2967, %v2491
  %v2969 = vpop.permute.xlu0 %2968
  %2970 = vset.pattern.permute.xlu0 0
  %2971 = vperm.xlu0 %2970, %v2492
  %v2972 = vpop.permute.xlu0 %2971
  %2973 = vset.pattern.permute.xlu0 0
  %2974 = vperm.xlu0 %2973, %v2493
  %v2975 = vpop.permute.xlu0 %2974
  %2976 = vset.pattern.permute.xlu0 0
  %2977 = vperm.xlu0 %2976, %v2494
  %v2978 = vpop.permute.xlu0 %2977
  %2979 = vset.pattern.permute.xlu0 0
  %2980 = vperm.xlu0 %2979, %v2495
  %v2981 = vpop.permute.xlu0 %2980
  %2982 = vset.pattern.permute.xlu0 0
  %2983 = vperm.xlu0 %2982, %v2496
  %v2984 = vpop.permute.xlu0 %2983
  %2985 = vset.pattern.permute.xlu0 0
  %2986 = vperm.xlu0 %2985, %v2497
  %v2987 = vpop.permute.xlu0 %2986
  %2988 = vset.pattern.permute.xlu0 0
  %2989 = vperm.xlu0 %2988, %v2498
  %v2990 = vpop.permute.xlu0 %2989
  %2991 = vset.pattern.permute.xlu0 0
  %2992 = vperm.xlu0 %2991, %v2499
  %v2993 = vpop.permute.xlu0 %2992
  %2994 = vset.pattern.permute.xlu0 0
  %2995 = vperm.xlu0 %2994, %v2500
  %v2996 = vpop.permute.xlu0 %2995
  %2997 = vset.pattern.permute.xlu0 0
  %2998 = vperm.xlu0 %2997, %v2501
  %v2999 = vpop.permute.xlu0 %2998
  %3000 = vset.pattern.permute.xlu0 0
  %3001 = vperm.xlu0 %3000, %v2502
  %v3002 = vpop.permute.xlu0 %3001
  %3003 = vset.pattern.permute.xlu0 0
  %3004 = vperm.xlu0 %3003, %v2503
  %v3005 = vpop.permute.xlu0 %3004
  %3006 = vset.pattern.permute.xlu0 0
  %3007 = vperm.xlu0 %3006, %v2504
  %v3008 = vpop.permute.xlu0 %3007
  %3009 = vset.pattern.permute.xlu0 0
  %3010 = vperm.xlu0 %3009, %v2505
  %v3011 = vpop.permute.xlu0 %3010
  %3012 = vset.pattern.permute.xlu0 0
  %3013 = vperm.xlu0 %3012, %v2506
  %v3014 = vpop.permute.xlu0 %3013
  %3015 = vset.pattern.permute.xlu0 0
  %3016 = vperm.xlu0 %3015, %v2507
  %v3017 = vpop.permute.xlu0 %3016
  %3018 = vset.pattern.permute.xlu0 0
  %3019 = vperm.xlu0 %3018, %v2508
  %v3020 = vpop.permute.xlu0 %3019
  %v3021 = vlaneseq
  %v3022 = vshrl.u32 %v3021, 7
  %v3023 = vsub.s32 %v46, %v3022
  %v3024 = vrot.slane %v2639, %v3023
  %v3025 = vadd.s32 %v46, 4294967288
  %v3026 = vlaneseq
  %v3027 = vshrl.u32 %v3026, 7
  %v3028 = vsub.s32 %v3025, %v3027
  %v3029 = vrot.slane %v2642, %v3028
  %vm3030 = vcmask 130112
  %v3031 = vsel %vm3030, %v3029, %v3024
  %v3032 = vadd.s32 %v46, 4294967280
  %v3033 = vlaneseq
  %v3034 = vshrl.u32 %v3033, 7
  %v3035 = vsub.s32 %v3032, %v3034
  %v3036 = vrot.slane %v2645, %v3035
  %vm3037 = vcmask 195712
  %v3038 = vsel %vm3037, %v3036, %v3031
  %v3039 = vadd.s32 %v46, 4294967272
  %v3040 = vlaneseq
  %v3041 = vshrl.u32 %v3040, 7
  %v3042 = vsub.s32 %v3039, %v3041
  %v3043 = vrot.slane %v2648, %v3042
  %vm3044 = vcmask 261312
  %v3045 = vsel %vm3044, %v3043, %v3038
  %v3046 = vadd.s32 %v46, 4294967264
  %v3047 = vlaneseq
  %v3048 = vshrl.u32 %v3047, 7
  %v3049 = vsub.s32 %v3046, %v3048
  %v3050 = vrot.slane %v2651, %v3049
  %vm3051 = vcmask 326912
  %v3052 = vsel %vm3051, %v3050, %v3045
  %v3053 = vadd.s32 %v46, 4294967256
  %v3054 = vlaneseq
  %v3055 = vshrl.u32 %v3054, 7
  %v3056 = vsub.s32 %v3053, %v3055
  %v3057 = vrot.slane %v2654, %v3056
  %vm3058 = vcmask 392512
  %v3059 = vsel %vm3058, %v3057, %v3052
  %v3060 = vadd.s32 %v46, 4294967248
  %v3061 = vlaneseq
  %v3062 = vshrl.u32 %v3061, 7
  %v3063 = vsub.s32 %v3060, %v3062
  %v3064 = vrot.slane %v2657, %v3063
  %vm3065 = vcmask 458112
  %v3066 = vsel %vm3065, %v3064, %v3059
  %v3067 = vadd.s32 %v46, 4294967240
  %v3068 = vlaneseq
  %v3069 = vshrl.u32 %v3068, 7
  %v3070 = vsub.s32 %v3067, %v3069
  %v3071 = vrot.slane %v2660, %v3070
  %vm3072 = vcmask 523712
  %v3073 = vsel %vm3072, %v3071, %v3066
  %v3074 = vadd.s32 %v46, 4294967232
  %v3075 = vlaneseq
  %v3076 = vshrl.u32 %v3075, 7
  %v3077 = vsub.s32 %v3074, %v3076
  %v3078 = vrot.slane %v2663, %v3077
  %vm3079 = vcmask 589312
  %v3080 = vsel %vm3079, %v3078, %v3073
  %v3081 = vadd.s32 %v46, 4294967224
  %v3082 = vlaneseq
  %v3083 = vshrl.u32 %v3082, 7
  %v3084 = vsub.s32 %v3081, %v3083
  %v3085 = vrot.slane %v2666, %v3084
  %vm3086 = vcmask 654912
  %v3087 = vsel %vm3086, %v3085, %v3080
  %v3088 = vadd.s32 %v46, 4294967216
  %v3089 = vlaneseq
  %v3090 = vshrl.u32 %v3089, 7
  %v3091 = vsub.s32 %v3088, %v3090
  %v3092 = vrot.slane %v2669, %v3091
  %vm3093 = vcmask 720512
  %v3094 = vsel %vm3093, %v3092, %v3087
  %v3095 = vadd.s32 %v46, 4294967208
  %v3096 = vlaneseq
  %v3097 = vshrl.u32 %v3096, 7
  %v3098 = vsub.s32 %v3095, %v3097
  %v3099 = vrot.slane %v2672, %v3098
  %vm3100 = vcmask 786112
  %v3101 = vsel %vm3100, %v3099, %v3094
  %v3102 = vadd.s32 %v46, 4294967200
  %v3103 = vlaneseq
  %v3104 = vshrl.u32 %v3103, 7
  %v3105 = vsub.s32 %v3102, %v3104
  %v3106 = vrot.slane %v2675, %v3105
  %vm3107 = vcmask 851712
  %v3108 = vsel %vm3107, %v3106, %v3101
  %v3109 = vadd.s32 %v46, 4294967192
  %v3110 = vlaneseq
  %v3111 = vshrl.u32 %v3110, 7
  %v3112 = vsub.s32 %v3109, %v3111
  %v3113 = vrot.slane %v2678, %v3112
  %vm3114 = vcmask 917312
  %v3115 = vsel %vm3114, %v3113, %v3108
  %v3116 = vadd.s32 %v46, 4294967184
  %v3117 = vlaneseq
  %v3118 = vshrl.u32 %v3117, 7
  %v3119 = vsub.s32 %v3116, %v3118
  %v3120 = vrot.slane %v2681, %v3119
  %vm3121 = vcmask 982912
  %v3122 = vsel %vm3121, %v3120, %v3115
  %v3123 = vadd.s32 %v46, 4294967176
  %v3124 = vlaneseq
  %v3125 = vshrl.u32 %v3124, 7
  %v3126 = vsub.s32 %v3123, %v3125
  %v3127 = vrot.slane %v2684, %v3126
  %vm3128 = vcmask 1048512
  %v3129 = vsel %vm3128, %v3127, %v3122
  %v3130 = vlaneseq
  %v3131 = vshrl.u32 %v3130, 7
  %v3132 = vsub.s32 %v46, %v3131
  %v3133 = vrot.slane %v2687, %v3132
  %v3134 = vlaneseq
  %v3135 = vshrl.u32 %v3134, 7
  %v3136 = vsub.s32 %v3025, %v3135
  %v3137 = vrot.slane %v2690, %v3136
  %v3138 = vsel %vm3030, %v3137, %v3133
  %v3139 = vlaneseq
  %v3140 = vshrl.u32 %v3139, 7
  %v3141 = vsub.s32 %v3032, %v3140
  %v3142 = vrot.slane %v2693, %v3141
  %v3143 = vsel %vm3037, %v3142, %v3138
  %v3144 = vlaneseq
  %v3145 = vshrl.u32 %v3144, 7
  %v3146 = vsub.s32 %v3039, %v3145
  %v3147 = vrot.slane %v2696, %v3146
  %v3148 = vsel %vm3044, %v3147, %v3143
  %v3149 = vlaneseq
  %v3150 = vshrl.u32 %v3149, 7
  %v3151 = vsub.s32 %v3046, %v3150
  %v3152 = vrot.slane %v2699, %v3151
  %v3153 = vsel %vm3051, %v3152, %v3148
  %v3154 = vlaneseq
  %v3155 = vshrl.u32 %v3154, 7
  %v3156 = vsub.s32 %v3053, %v3155
  %v3157 = vrot.slane %v2702, %v3156
  %v3158 = vsel %vm3058, %v3157, %v3153
  %v3159 = vlaneseq
  %v3160 = vshrl.u32 %v3159, 7
  %v3161 = vsub.s32 %v3060, %v3160
  %v3162 = vrot.slane %v2705, %v3161
  %v3163 = vsel %vm3065, %v3162, %v3158
  %v3164 = vlaneseq
  %v3165 = vshrl.u32 %v3164, 7
  %v3166 = vsub.s32 %v3067, %v3165
  %v3167 = vrot.slane %v2708, %v3166
  %v3168 = vsel %vm3072, %v3167, %v3163
  %v3169 = vlaneseq
  %v3170 = vshrl.u32 %v3169, 7
  %v3171 = vsub.s32 %v3074, %v3170
  %v3172 = vrot.slane %v2711, %v3171
  %v3173 = vsel %vm3079, %v3172, %v3168
  %v3174 = vlaneseq
  %v3175 = vshrl.u32 %v3174, 7
  %v3176 = vsub.s32 %v3081, %v3175
  %v3177 = vrot.slane %v2714, %v3176
  %v3178 = vsel %vm3086, %v3177, %v3173
  %v3179 = vlaneseq
  %v3180 = vshrl.u32 %v3179, 7
  %v3181 = vsub.s32 %v3088, %v3180
  %v3182 = vrot.slane %v2717, %v3181
  %v3183 = vsel %vm3093, %v3182, %v3178
  %v3184 = vlaneseq
  %v3185 = vshrl.u32 %v3184, 7
  %v3186 = vsub.s32 %v3095, %v3185
  %v3187 = vrot.slane %v2720, %v3186
  %v3188 = vsel %vm3100, %v3187, %v3183
  %v3189 = vlaneseq
  %v3190 = vshrl.u32 %v3189, 7
  %v3191 = vsub.s32 %v3102, %v3190
  %v3192 = vrot.slane %v2723, %v3191
  %v3193 = vsel %vm3107, %v3192, %v3188
  %v3194 = vlaneseq
  %v3195 = vshrl.u32 %v3194, 7
  %v3196 = vsub.s32 %v3109, %v3195
  %v3197 = vrot.slane %v2726, %v3196
  %v3198 = vsel %vm3114, %v3197, %v3193
  %v3199 = vlaneseq
  %v3200 = vshrl.u32 %v3199, 7
  %v3201 = vsub.s32 %v3116, %v3200
  %v3202 = vrot.slane %v2729, %v3201
  %v3203 = vsel %vm3121, %v3202, %v3198
  %v3204 = vlaneseq
  %v3205 = vshrl.u32 %v3204, 7
  %v3206 = vsub.s32 %v3123, %v3205
  %v3207 = vrot.slane %v2732, %v3206
  %v3208 = vsel %vm3128, %v3207, %v3203
  %v3209 = vlaneseq
  %v3210 = vshrl.u32 %v3209, 7
  %v3211 = vsub.s32 %v46, %v3210
  %v3212 = vrot.slane %v2735, %v3211
  %v3213 = vlaneseq
  %v3214 = vshrl.u32 %v3213, 7
  %v3215 = vsub.s32 %v3025, %v3214
  %v3216 = vrot.slane %v2738, %v3215
  %v3217 = vsel %vm3030, %v3216, %v3212
  %v3218 = vlaneseq
  %v3219 = vshrl.u32 %v3218, 7
  %v3220 = vsub.s32 %v3032, %v3219
  %v3221 = vrot.slane %v2741, %v3220
  %v3222 = vsel %vm3037, %v3221, %v3217
  %v3223 = vlaneseq
  %v3224 = vshrl.u32 %v3223, 7
  %v3225 = vsub.s32 %v3039, %v3224
  %v3226 = vrot.slane %v2744, %v3225
  %v3227 = vsel %vm3044, %v3226, %v3222
  %v3228 = vlaneseq
  %v3229 = vshrl.u32 %v3228, 7
  %v3230 = vsub.s32 %v3046, %v3229
  %v3231 = vrot.slane %v2747, %v3230
  %v3232 = vsel %vm3051, %v3231, %v3227
  %v3233 = vlaneseq
  %v3234 = vshrl.u32 %v3233, 7
  %v3235 = vsub.s32 %v3053, %v3234
  %v3236 = vrot.slane %v2750, %v3235
  %v3237 = vsel %vm3058, %v3236, %v3232
  %v3238 = vlaneseq
  %v3239 = vshrl.u32 %v3238, 7
  %v3240 = vsub.s32 %v3060, %v3239
  %v3241 = vrot.slane %v2753, %v3240
  %v3242 = vsel %vm3065, %v3241, %v3237
  %v3243 = vlaneseq
  %v3244 = vshrl.u32 %v3243, 7
  %v3245 = vsub.s32 %v3067, %v3244
  %v3246 = vrot.slane %v2756, %v3245
  %v3247 = vsel %vm3072, %v3246, %v3242
  %v3248 = vlaneseq
  %v3249 = vshrl.u32 %v3248, 7
  %v3250 = vsub.s32 %v3074, %v3249
  %v3251 = vrot.slane %v2759, %v3250
  %v3252 = vsel %vm3079, %v3251, %v3247
  %v3253 = vlaneseq
  %v3254 = vshrl.u32 %v3253, 7
  %v3255 = vsub.s32 %v3081, %v3254
  %v3256 = vrot.slane %v2762, %v3255
  %v3257 = vsel %vm3086, %v3256, %v3252
  %v3258 = vlaneseq
  %v3259 = vshrl.u32 %v3258, 7
  %v3260 = vsub.s32 %v3088, %v3259
  %v3261 = vrot.slane %v2765, %v3260
  %v3262 = vsel %vm3093, %v3261, %v3257
  %v3263 = vlaneseq
  %v3264 = vshrl.u32 %v3263, 7
  %v3265 = vsub.s32 %v3095, %v3264
  %v3266 = vrot.slane %v2768, %v3265
  %v3267 = vsel %vm3100, %v3266, %v3262
  %v3268 = vlaneseq
  %v3269 = vshrl.u32 %v3268, 7
  %v3270 = vsub.s32 %v3102, %v3269
  %v3271 = vrot.slane %v2771, %v3270
  %v3272 = vsel %vm3107, %v3271, %v3267
  %v3273 = vlaneseq
  %v3274 = vshrl.u32 %v3273, 7
  %v3275 = vsub.s32 %v3109, %v3274
  %v3276 = vrot.slane %v2774, %v3275
  %v3277 = vsel %vm3114, %v3276, %v3272
  %v3278 = vlaneseq
  %v3279 = vshrl.u32 %v3278, 7
  %v3280 = vsub.s32 %v3116, %v3279
  %v3281 = vrot.slane %v2777, %v3280
  %v3282 = vsel %vm3121, %v3281, %v3277
  %v3283 = vlaneseq
  %v3284 = vshrl.u32 %v3283, 7
  %v3285 = vsub.s32 %v3123, %v3284
  %v3286 = vrot.slane %v2780, %v3285
  %v3287 = vsel %vm3128, %v3286, %v3282
  %v3288 = vlaneseq
  %v3289 = vshrl.u32 %v3288, 7
  %v3290 = vsub.s32 %v46, %v3289
  %v3291 = vrot.slane %v2783, %v3290
  %v3292 = vlaneseq
  %v3293 = vshrl.u32 %v3292, 7
  %v3294 = vsub.s32 %v3025, %v3293
  %v3295 = vrot.slane %v2786, %v3294
  %v3296 = vsel %vm3030, %v3295, %v3291
  %v3297 = vlaneseq
  %v3298 = vshrl.u32 %v3297, 7
  %v3299 = vsub.s32 %v3032, %v3298
  %v3300 = vrot.slane %v2789, %v3299
  %v3301 = vsel %vm3037, %v3300, %v3296
  %v3302 = vlaneseq
  %v3303 = vshrl.u32 %v3302, 7
  %v3304 = vsub.s32 %v3039, %v3303
  %v3305 = vrot.slane %v2792, %v3304
  %v3306 = vsel %vm3044, %v3305, %v3301
  %v3307 = vlaneseq
  %v3308 = vshrl.u32 %v3307, 7
  %v3309 = vsub.s32 %v3046, %v3308
  %v3310 = vrot.slane %v2795, %v3309
  %v3311 = vsel %vm3051, %v3310, %v3306
  %v3312 = vlaneseq
  %v3313 = vshrl.u32 %v3312, 7
  %v3314 = vsub.s32 %v3053, %v3313
  %v3315 = vrot.slane %v2798, %v3314
  %v3316 = vsel %vm3058, %v3315, %v3311
  %v3317 = vlaneseq
  %v3318 = vshrl.u32 %v3317, 7
  %v3319 = vsub.s32 %v3060, %v3318
  %v3320 = vrot.slane %v2801, %v3319
  %v3321 = vsel %vm3065, %v3320, %v3316
  %v3322 = vlaneseq
  %v3323 = vshrl.u32 %v3322, 7
  %v3324 = vsub.s32 %v3067, %v3323
  %v3325 = vrot.slane %v2804, %v3324
  %v3326 = vsel %vm3072, %v3325, %v3321
  %v3327 = vlaneseq
  %v3328 = vshrl.u32 %v3327, 7
  %v3329 = vsub.s32 %v3074, %v3328
  %v3330 = vrot.slane %v2807, %v3329
  %v3331 = vsel %vm3079, %v3330, %v3326
  %v3332 = vlaneseq
  %v3333 = vshrl.u32 %v3332, 7
  %v3334 = vsub.s32 %v3081, %v3333
  %v3335 = vrot.slane %v2810, %v3334
  %v3336 = vsel %vm3086, %v3335, %v3331
  %v3337 = vlaneseq
  %v3338 = vshrl.u32 %v3337, 7
  %v3339 = vsub.s32 %v3088, %v3338
  %v3340 = vrot.slane %v2813, %v3339
  %v3341 = vsel %vm3093, %v3340, %v3336
  %v3342 = vlaneseq
  %v3343 = vshrl.u32 %v3342, 7
  %v3344 = vsub.s32 %v3095, %v3343
  %v3345 = vrot.slane %v2816, %v3344
  %v3346 = vsel %vm3100, %v3345, %v3341
  %v3347 = vlaneseq
  %v3348 = vshrl.u32 %v3347, 7
  %v3349 = vsub.s32 %v3102, %v3348
  %v3350 = vrot.slane %v2819, %v3349
  %v3351 = vsel %vm3107, %v3350, %v3346
  %v3352 = vlaneseq
  %v3353 = vshrl.u32 %v3352, 7
  %v3354 = vsub.s32 %v3109, %v3353
  %v3355 = vrot.slane %v2822, %v3354
  %v3356 = vsel %vm3114, %v3355, %v3351
  %v3357 = vlaneseq
  %v3358 = vshrl.u32 %v3357, 7
  %v3359 = vsub.s32 %v3116, %v3358
  %v3360 = vrot.slane %v2825, %v3359
  %v3361 = vsel %vm3121, %v3360, %v3356
  %v3362 = vlaneseq
  %v3363 = vshrl.u32 %v3362, 7
  %v3364 = vsub.s32 %v3123, %v3363
  %v3365 = vrot.slane %v2828, %v3364
  %v3366 = vsel %vm3128, %v3365, %v3361
  %v3367 = vlaneseq
  %v3368 = vshrl.u32 %v3367, 7
  %v3369 = vsub.s32 %v46, %v3368
  %v3370 = vrot.slane %v2831, %v3369
  %v3371 = vlaneseq
  %v3372 = vshrl.u32 %v3371, 7
  %v3373 = vsub.s32 %v3025, %v3372
  %v3374 = vrot.slane %v2834, %v3373
  %v3375 = vsel %vm3030, %v3374, %v3370
  %v3376 = vlaneseq
  %v3377 = vshrl.u32 %v3376, 7
  %v3378 = vsub.s32 %v3032, %v3377
  %v3379 = vrot.slane %v2837, %v3378
  %v3380 = vsel %vm3037, %v3379, %v3375
  %v3381 = vlaneseq
  %v3382 = vshrl.u32 %v3381, 7
  %v3383 = vsub.s32 %v3039, %v3382
  %v3384 = vrot.slane %v2840, %v3383
  %v3385 = vsel %vm3044, %v3384, %v3380
  %v3386 = vlaneseq
  %v3387 = vshrl.u32 %v3386, 7
  %v3388 = vsub.s32 %v3046, %v3387
  %v3389 = vrot.slane %v2843, %v3388
  %v3390 = vsel %vm3051, %v3389, %v3385
  %v3391 = vlaneseq
  %v3392 = vshrl.u32 %v3391, 7
  %v3393 = vsub.s32 %v3053, %v3392
  %v3394 = vrot.slane %v2846, %v3393
  %v3395 = vsel %vm3058, %v3394, %v3390
  %v3396 = vlaneseq
  %v3397 = vshrl.u32 %v3396, 7
  %v3398 = vsub.s32 %v3060, %v3397
  %v3399 = vrot.slane %v2849, %v3398
  %v3400 = vsel %vm3065, %v3399, %v3395
  %v3401 = vlaneseq
  %v3402 = vshrl.u32 %v3401, 7
  %v3403 = vsub.s32 %v3067, %v3402
  %v3404 = vrot.slane %v2852, %v3403
  %v3405 = vsel %vm3072, %v3404, %v3400
  %v3406 = vlaneseq
  %v3407 = vshrl.u32 %v3406, 7
  %v3408 = vsub.s32 %v3074, %v3407
  %v3409 = vrot.slane %v2855, %v3408
  %v3410 = vsel %vm3079, %v3409, %v3405
  %v3411 = vlaneseq
  %v3412 = vshrl.u32 %v3411, 7
  %v3413 = vsub.s32 %v3081, %v3412
  %v3414 = vrot.slane %v2858, %v3413
  %v3415 = vsel %vm3086, %v3414, %v3410
  %v3416 = vlaneseq
  %v3417 = vshrl.u32 %v3416, 7
  %v3418 = vsub.s32 %v3088, %v3417
  %v3419 = vrot.slane %v2861, %v3418
  %v3420 = vsel %vm3093, %v3419, %v3415
  %v3421 = vlaneseq
  %v3422 = vshrl.u32 %v3421, 7
  %v3423 = vsub.s32 %v3095, %v3422
  %v3424 = vrot.slane %v2864, %v3423
  %v3425 = vsel %vm3100, %v3424, %v3420
  %v3426 = vlaneseq
  %v3427 = vshrl.u32 %v3426, 7
  %v3428 = vsub.s32 %v3102, %v3427
  %v3429 = vrot.slane %v2867, %v3428
  %v3430 = vsel %vm3107, %v3429, %v3425
  %v3431 = vlaneseq
  %v3432 = vshrl.u32 %v3431, 7
  %v3433 = vsub.s32 %v3109, %v3432
  %v3434 = vrot.slane %v2870, %v3433
  %v3435 = vsel %vm3114, %v3434, %v3430
  %v3436 = vlaneseq
  %v3437 = vshrl.u32 %v3436, 7
  %v3438 = vsub.s32 %v3116, %v3437
  %v3439 = vrot.slane %v2873, %v3438
  %v3440 = vsel %vm3121, %v3439, %v3435
  %v3441 = vlaneseq
  %v3442 = vshrl.u32 %v3441, 7
  %v3443 = vsub.s32 %v3123, %v3442
  %v3444 = vrot.slane %v2876, %v3443
  %v3445 = vsel %vm3128, %v3444, %v3440
  %v3446 = vlaneseq
  %v3447 = vshrl.u32 %v3446, 7
  %v3448 = vsub.s32 %v46, %v3447
  %v3449 = vrot.slane %v2879, %v3448
  %v3450 = vlaneseq
  %v3451 = vshrl.u32 %v3450, 7
  %v3452 = vsub.s32 %v3025, %v3451
  %v3453 = vrot.slane %v2882, %v3452
  %v3454 = vsel %vm3030, %v3453, %v3449
  %v3455 = vlaneseq
  %v3456 = vshrl.u32 %v3455, 7
  %v3457 = vsub.s32 %v3032, %v3456
  %v3458 = vrot.slane %v2885, %v3457
  %v3459 = vsel %vm3037, %v3458, %v3454
  %v3460 = vlaneseq
  %v3461 = vshrl.u32 %v3460, 7
  %v3462 = vsub.s32 %v3039, %v3461
  %v3463 = vrot.slane %v2888, %v3462
  %v3464 = vsel %vm3044, %v3463, %v3459
  %v3465 = vlaneseq
  %v3466 = vshrl.u32 %v3465, 7
  %v3467 = vsub.s32 %v3046, %v3466
  %v3468 = vrot.slane %v2891, %v3467
  %v3469 = vsel %vm3051, %v3468, %v3464
  %v3470 = vlaneseq
  %v3471 = vshrl.u32 %v3470, 7
  %v3472 = vsub.s32 %v3053, %v3471
  %v3473 = vrot.slane %v2894, %v3472
  %v3474 = vsel %vm3058, %v3473, %v3469
  %v3475 = vlaneseq
  %v3476 = vshrl.u32 %v3475, 7
  %v3477 = vsub.s32 %v3060, %v3476
  %v3478 = vrot.slane %v2897, %v3477
  %v3479 = vsel %vm3065, %v3478, %v3474
  %v3480 = vlaneseq
  %v3481 = vshrl.u32 %v3480, 7
  %v3482 = vsub.s32 %v3067, %v3481
  %v3483 = vrot.slane %v2900, %v3482
  %v3484 = vsel %vm3072, %v3483, %v3479
  %v3485 = vlaneseq
  %v3486 = vshrl.u32 %v3485, 7
  %v3487 = vsub.s32 %v3074, %v3486
  %v3488 = vrot.slane %v2903, %v3487
  %v3489 = vsel %vm3079, %v3488, %v3484
  %v3490 = vlaneseq
  %v3491 = vshrl.u32 %v3490, 7
  %v3492 = vsub.s32 %v3081, %v3491
  %v3493 = vrot.slane %v2906, %v3492
  %v3494 = vsel %vm3086, %v3493, %v3489
  %v3495 = vlaneseq
  %v3496 = vshrl.u32 %v3495, 7
  %v3497 = vsub.s32 %v3088, %v3496
  %v3498 = vrot.slane %v2909, %v3497
  %v3499 = vsel %vm3093, %v3498, %v3494
  %v3500 = vlaneseq
  %v3501 = vshrl.u32 %v3500, 7
  %v3502 = vsub.s32 %v3095, %v3501
  %v3503 = vrot.slane %v2912, %v3502
  %v3504 = vsel %vm3100, %v3503, %v3499
  %v3505 = vlaneseq
  %v3506 = vshrl.u32 %v3505, 7
  %v3507 = vsub.s32 %v3102, %v3506
  %v3508 = vrot.slane %v2915, %v3507
  %v3509 = vsel %vm3107, %v3508, %v3504
  %v3510 = vlaneseq
  %v3511 = vshrl.u32 %v3510, 7
  %v3512 = vsub.s32 %v3109, %v3511
  %v3513 = vrot.slane %v2918, %v3512
  %v3514 = vsel %vm3114, %v3513, %v3509
  %v3515 = vlaneseq
  %v3516 = vshrl.u32 %v3515, 7
  %v3517 = vsub.s32 %v3116, %v3516
  %v3518 = vrot.slane %v2921, %v3517
  %v3519 = vsel %vm3121, %v3518, %v3514
  %v3520 = vlaneseq
  %v3521 = vshrl.u32 %v3520, 7
  %v3522 = vsub.s32 %v3123, %v3521
  %v3523 = vrot.slane %v2924, %v3522
  %v3524 = vsel %vm3128, %v3523, %v3519
  %v3525 = vlaneseq
  %v3526 = vshrl.u32 %v3525, 7
  %v3527 = vsub.s32 %v46, %v3526
  %v3528 = vrot.slane %v2927, %v3527
  %v3529 = vlaneseq
  %v3530 = vshrl.u32 %v3529, 7
  %v3531 = vsub.s32 %v3025, %v3530
  %v3532 = vrot.slane %v2930, %v3531
  %v3533 = vsel %vm3030, %v3532, %v3528
  %v3534 = vlaneseq
  %v3535 = vshrl.u32 %v3534, 7
  %v3536 = vsub.s32 %v3032, %v3535
  %v3537 = vrot.slane %v2933, %v3536
  %v3538 = vsel %vm3037, %v3537, %v3533
  %v3539 = vlaneseq
  %v3540 = vshrl.u32 %v3539, 7
  %v3541 = vsub.s32 %v3039, %v3540
  %v3542 = vrot.slane %v2936, %v3541
  %v3543 = vsel %vm3044, %v3542, %v3538
  %v3544 = vlaneseq
  %v3545 = vshrl.u32 %v3544, 7
  %v3546 = vsub.s32 %v3046, %v3545
  %v3547 = vrot.slane %v2939, %v3546
  %v3548 = vsel %vm3051, %v3547, %v3543
  %v3549 = vlaneseq
  %v3550 = vshrl.u32 %v3549, 7
  %v3551 = vsub.s32 %v3053, %v3550
  %v3552 = vrot.slane %v2942, %v3551
  %v3553 = vsel %vm3058, %v3552, %v3548
  %v3554 = vlaneseq
  %v3555 = vshrl.u32 %v3554, 7
  %v3556 = vsub.s32 %v3060, %v3555
  %v3557 = vrot.slane %v2945, %v3556
  %v3558 = vsel %vm3065, %v3557, %v3553
  %v3559 = vlaneseq
  %v3560 = vshrl.u32 %v3559, 7
  %v3561 = vsub.s32 %v3067, %v3560
  %v3562 = vrot.slane %v2948, %v3561
  %v3563 = vsel %vm3072, %v3562, %v3558
  %v3564 = vlaneseq
  %v3565 = vshrl.u32 %v3564, 7
  %v3566 = vsub.s32 %v3074, %v3565
  %v3567 = vrot.slane %v2951, %v3566
  %v3568 = vsel %vm3079, %v3567, %v3563
  %v3569 = vlaneseq
  %v3570 = vshrl.u32 %v3569, 7
  %v3571 = vsub.s32 %v3081, %v3570
  %v3572 = vrot.slane %v2954, %v3571
  %v3573 = vsel %vm3086, %v3572, %v3568
  %v3574 = vlaneseq
  %v3575 = vshrl.u32 %v3574, 7
  %v3576 = vsub.s32 %v3088, %v3575
  %v3577 = vrot.slane %v2957, %v3576
  %v3578 = vsel %vm3093, %v3577, %v3573
  %v3579 = vlaneseq
  %v3580 = vshrl.u32 %v3579, 7
  %v3581 = vsub.s32 %v3095, %v3580
  %v3582 = vrot.slane %v2960, %v3581
  %v3583 = vsel %vm3100, %v3582, %v3578
  %v3584 = vlaneseq
  %v3585 = vshrl.u32 %v3584, 7
  %v3586 = vsub.s32 %v3102, %v3585
  %v3587 = vrot.slane %v2963, %v3586
  %v3588 = vsel %vm3107, %v3587, %v3583
  %v3589 = vlaneseq
  %v3590 = vshrl.u32 %v3589, 7
  %v3591 = vsub.s32 %v3109, %v3590
  %v3592 = vrot.slane %v2966, %v3591
  %v3593 = vsel %vm3114, %v3592, %v3588
  %v3594 = vlaneseq
  %v3595 = vshrl.u32 %v3594, 7
  %v3596 = vsub.s32 %v3116, %v3595
  %v3597 = vrot.slane %v2969, %v3596
  %v3598 = vsel %vm3121, %v3597, %v3593
  %v3599 = vlaneseq
  %v3600 = vshrl.u32 %v3599, 7
  %v3601 = vsub.s32 %v3123, %v3600
  %v3602 = vrot.slane %v2972, %v3601
  %v3603 = vsel %vm3128, %v3602, %v3598
  %v3604 = vlaneseq
  %v3605 = vshrl.u32 %v3604, 7
  %v3606 = vsub.s32 %v46, %v3605
  %v3607 = vrot.slane %v2975, %v3606
  %v3608 = vlaneseq
  %v3609 = vshrl.u32 %v3608, 7
  %v3610 = vsub.s32 %v3025, %v3609
  %v3611 = vrot.slane %v2978, %v3610
  %v3612 = vsel %vm3030, %v3611, %v3607
  %v3613 = vlaneseq
  %v3614 = vshrl.u32 %v3613, 7
  %v3615 = vsub.s32 %v3032, %v3614
  %v3616 = vrot.slane %v2981, %v3615
  %v3617 = vsel %vm3037, %v3616, %v3612
  %v3618 = vlaneseq
  %v3619 = vshrl.u32 %v3618, 7
  %v3620 = vsub.s32 %v3039, %v3619
  %v3621 = vrot.slane %v2984, %v3620
  %v3622 = vsel %vm3044, %v3621, %v3617
  %v3623 = vlaneseq
  %v3624 = vshrl.u32 %v3623, 7
  %v3625 = vsub.s32 %v3046, %v3624
  %v3626 = vrot.slane %v2987, %v3625
  %v3627 = vsel %vm3051, %v3626, %v3622
  %v3628 = vlaneseq
  %v3629 = vshrl.u32 %v3628, 7
  %v3630 = vsub.s32 %v3053, %v3629
  %v3631 = vrot.slane %v2990, %v3630
  %v3632 = vsel %vm3058, %v3631, %v3627
  %v3633 = vlaneseq
  %v3634 = vshrl.u32 %v3633, 7
  %v3635 = vsub.s32 %v3060, %v3634
  %v3636 = vrot.slane %v2993, %v3635
  %v3637 = vsel %vm3065, %v3636, %v3632
  %v3638 = vlaneseq
  %v3639 = vshrl.u32 %v3638, 7
  %v3640 = vsub.s32 %v3067, %v3639
  %v3641 = vrot.slane %v2996, %v3640
  %v3642 = vsel %vm3072, %v3641, %v3637
  %v3643 = vlaneseq
  %v3644 = vshrl.u32 %v3643, 7
  %v3645 = vsub.s32 %v3074, %v3644
  %v3646 = vrot.slane %v2999, %v3645
  %v3647 = vsel %vm3079, %v3646, %v3642
  %v3648 = vlaneseq
  %v3649 = vshrl.u32 %v3648, 7
  %v3650 = vsub.s32 %v3081, %v3649
  %v3651 = vrot.slane %v3002, %v3650
  %v3652 = vsel %vm3086, %v3651, %v3647
  %v3653 = vlaneseq
  %v3654 = vshrl.u32 %v3653, 7
  %v3655 = vsub.s32 %v3088, %v3654
  %v3656 = vrot.slane %v3005, %v3655
  %v3657 = vsel %vm3093, %v3656, %v3652
  %v3658 = vlaneseq
  %v3659 = vshrl.u32 %v3658, 7
  %v3660 = vsub.s32 %v3095, %v3659
  %v3661 = vrot.slane %v3008, %v3660
  %v3662 = vsel %vm3100, %v3661, %v3657
  %v3663 = vlaneseq
  %v3664 = vshrl.u32 %v3663, 7
  %v3665 = vsub.s32 %v3102, %v3664
  %v3666 = vrot.slane %v3011, %v3665
  %v3667 = vsel %vm3107, %v3666, %v3662
  %v3668 = vlaneseq
  %v3669 = vshrl.u32 %v3668, 7
  %v3670 = vsub.s32 %v3109, %v3669
  %v3671 = vrot.slane %v3014, %v3670
  %v3672 = vsel %vm3114, %v3671, %v3667
  %v3673 = vlaneseq
  %v3674 = vshrl.u32 %v3673, 7
  %v3675 = vsub.s32 %v3116, %v3674
  %v3676 = vrot.slane %v3017, %v3675
  %v3677 = vsel %vm3121, %v3676, %v3672
  %v3678 = vlaneseq
  %v3679 = vshrl.u32 %v3678, 7
  %v3680 = vsub.s32 %v3123, %v3679
  %v3681 = vrot.slane %v3020, %v3680
  %v3682 = vsel %vm3128, %v3681, %v3677
  %vm3683 = vcmask 1041409
  %v3684 = vsel %vm3683, %v3208, %v3129
  %vm3685 = vcmask 1042434
  %v3686 = vsel %vm3685, %v3287, %v3684
  %vm3687 = vcmask 1043459
  %v3688 = vsel %vm3687, %v3366, %v3686
  %vm3689 = vcmask 1044484
  %v3690 = vsel %vm3689, %v3445, %v3688
  %vm3691 = vcmask 1045509
  %v3692 = vsel %vm3691, %v3524, %v3690
  %vm3693 = vcmask 1046534
  %v3694 = vsel %vm3693, %v3603, %v3692
  %vm3695 = vcmask 1047559
  %v3696 = vsel %vm3695, %v3682, %v3694
  %v3698 = vmul.f32 %v377, %v3696
  %3699 = vadd.xlane.f32.xlu0 %v3698
  %v3700 = vpop.xlane.xlu0 %3699
  %v3701 = vlaneseq
  %v3702 = vshrl.u32 %v3701, 7
  %v3703 = vsub.s32 0, %v3702
  %v3704 = vrot.slane %v377, %v3703
  %3706 = vbcast.lane.b32.xlu0 %v3704, 256
  %v3707 = vpop.permute.xlu0 %3706
  %s3709 = sor.u32 256, 8
  %3710 = vbcast.lane.b32.xlu0 %v3704, %s3709
  %v3711 = vpop.permute.xlu0 %3710
  %s3713 = sor.u32 256, 16
  %3714 = vbcast.lane.b32.xlu0 %v3704, %s3713
  %v3715 = vpop.permute.xlu0 %3714
  %s3717 = sor.u32 256, 24
  %3718 = vbcast.lane.b32.xlu0 %v3704, %s3717
  %v3719 = vpop.permute.xlu0 %3718
  %s3721 = sor.u32 256, 32
  %3722 = vbcast.lane.b32.xlu0 %v3704, %s3721
  %v3723 = vpop.permute.xlu0 %3722
  %s3725 = sor.u32 256, 40
  %3726 = vbcast.lane.b32.xlu0 %v3704, %s3725
  %v3727 = vpop.permute.xlu0 %3726
  %s3729 = sor.u32 256, 48
  %3730 = vbcast.lane.b32.xlu0 %v3704, %s3729
  %v3731 = vpop.permute.xlu0 %3730
  %s3733 = sor.u32 256, 56
  %3734 = vbcast.lane.b32.xlu0 %v3704, %s3733
  %v3735 = vpop.permute.xlu0 %3734
  %s3737 = sor.u32 256, 64
  %3738 = vbcast.lane.b32.xlu0 %v3704, %s3737
  %v3739 = vpop.permute.xlu0 %3738
  %s3741 = sor.u32 256, 72
  %3742 = vbcast.lane.b32.xlu0 %v3704, %s3741
  %v3743 = vpop.permute.xlu0 %3742
  %s3745 = sor.u32 256, 80
  %3746 = vbcast.lane.b32.xlu0 %v3704, %s3745
  %v3747 = vpop.permute.xlu0 %3746
  %s3749 = sor.u32 256, 88
  %3750 = vbcast.lane.b32.xlu0 %v3704, %s3749
  %v3751 = vpop.permute.xlu0 %3750
  %s3753 = sor.u32 256, 96
  %3754 = vbcast.lane.b32.xlu0 %v3704, %s3753
  %v3755 = vpop.permute.xlu0 %3754
  %s3757 = sor.u32 256, 104
  %3758 = vbcast.lane.b32.xlu0 %v3704, %s3757
  %v3759 = vpop.permute.xlu0 %3758
  %s3761 = sor.u32 256, 112
  %3762 = vbcast.lane.b32.xlu0 %v3704, %s3761
  %v3763 = vpop.permute.xlu0 %3762
  %s3765 = sor.u32 256, 120
  %3766 = vbcast.lane.b32.xlu0 %v3704, %s3765
  %v3767 = vpop.permute.xlu0 %3766
  %v3768 = vlaneseq
  %v3769 = vshrl.u32 %v3768, 7
  %v3770 = vsub.s32 1, %v3769
  %v3771 = vrot.slane %v377, %v3770
  %3773 = vbcast.lane.b32.xlu0 %v3771, 256
  %v3774 = vpop.permute.xlu0 %3773
  %s3776 = sor.u32 256, 8
  %3777 = vbcast.lane.b32.xlu0 %v3771, %s3776
  %v3778 = vpop.permute.xlu0 %3777
  %s3780 = sor.u32 256, 16
  %3781 = vbcast.lane.b32.xlu0 %v3771, %s3780
  %v3782 = vpop.permute.xlu0 %3781
  %s3784 = sor.u32 256, 24
  %3785 = vbcast.lane.b32.xlu0 %v3771, %s3784
  %v3786 = vpop.permute.xlu0 %3785
  %s3788 = sor.u32 256, 32
  %3789 = vbcast.lane.b32.xlu0 %v3771, %s3788
  %v3790 = vpop.permute.xlu0 %3789
  %s3792 = sor.u32 256, 40
  %3793 = vbcast.lane.b32.xlu0 %v3771, %s3792
  %v3794 = vpop.permute.xlu0 %3793
  %s3796 = sor.u32 256, 48
  %3797 = vbcast.lane.b32.xlu0 %v3771, %s3796
  %v3798 = vpop.permute.xlu0 %3797
  %s3800 = sor.u32 256, 56
  %3801 = vbcast.lane.b32.xlu0 %v3771, %s3800
  %v3802 = vpop.permute.xlu0 %3801
  %s3804 = sor.u32 256, 64
  %3805 = vbcast.lane.b32.xlu0 %v3771, %s3804
  %v3806 = vpop.permute.xlu0 %3805
  %s3808 = sor.u32 256, 72
  %3809 = vbcast.lane.b32.xlu0 %v3771, %s3808
  %v3810 = vpop.permute.xlu0 %3809
  %s3812 = sor.u32 256, 80
  %3813 = vbcast.lane.b32.xlu0 %v3771, %s3812
  %v3814 = vpop.permute.xlu0 %3813
  %s3816 = sor.u32 256, 88
  %3817 = vbcast.lane.b32.xlu0 %v3771, %s3816
  %v3818 = vpop.permute.xlu0 %3817
  %s3820 = sor.u32 256, 96
  %3821 = vbcast.lane.b32.xlu0 %v3771, %s3820
  %v3822 = vpop.permute.xlu0 %3821
  %s3824 = sor.u32 256, 104
  %3825 = vbcast.lane.b32.xlu0 %v3771, %s3824
  %v3826 = vpop.permute.xlu0 %3825
  %s3828 = sor.u32 256, 112
  %3829 = vbcast.lane.b32.xlu0 %v3771, %s3828
  %v3830 = vpop.permute.xlu0 %3829
  %s3832 = sor.u32 256, 120
  %3833 = vbcast.lane.b32.xlu0 %v3771, %s3832
  %v3834 = vpop.permute.xlu0 %3833
  %v3835 = vlaneseq
  %v3836 = vshrl.u32 %v3835, 7
  %v3837 = vsub.s32 2, %v3836
  %v3838 = vrot.slane %v377, %v3837
  %3840 = vbcast.lane.b32.xlu0 %v3838, 256
  %v3841 = vpop.permute.xlu0 %3840
  %s3843 = sor.u32 256, 8
  %3844 = vbcast.lane.b32.xlu0 %v3838, %s3843
  %v3845 = vpop.permute.xlu0 %3844
  %s3847 = sor.u32 256, 16
  %3848 = vbcast.lane.b32.xlu0 %v3838, %s3847
  %v3849 = vpop.permute.xlu0 %3848
  %s3851 = sor.u32 256, 24
  %3852 = vbcast.lane.b32.xlu0 %v3838, %s3851
  %v3853 = vpop.permute.xlu0 %3852
  %s3855 = sor.u32 256, 32
  %3856 = vbcast.lane.b32.xlu0 %v3838, %s3855
  %v3857 = vpop.permute.xlu0 %3856
  %s3859 = sor.u32 256, 40
  %3860 = vbcast.lane.b32.xlu0 %v3838, %s3859
  %v3861 = vpop.permute.xlu0 %3860
  %s3863 = sor.u32 256, 48
  %3864 = vbcast.lane.b32.xlu0 %v3838, %s3863
  %v3865 = vpop.permute.xlu0 %3864
  %s3867 = sor.u32 256, 56
  %3868 = vbcast.lane.b32.xlu0 %v3838, %s3867
  %v3869 = vpop.permute.xlu0 %3868
  %s3871 = sor.u32 256, 64
  %3872 = vbcast.lane.b32.xlu0 %v3838, %s3871
  %v3873 = vpop.permute.xlu0 %3872
  %s3875 = sor.u32 256, 72
  %3876 = vbcast.lane.b32.xlu0 %v3838, %s3875
  %v3877 = vpop.permute.xlu0 %3876
  %s3879 = sor.u32 256, 80
  %3880 = vbcast.lane.b32.xlu0 %v3838, %s3879
  %v3881 = vpop.permute.xlu0 %3880
  %s3883 = sor.u32 256, 88
  %3884 = vbcast.lane.b32.xlu0 %v3838, %s3883
  %v3885 = vpop.permute.xlu0 %3884
  %s3887 = sor.u32 256, 96
  %3888 = vbcast.lane.b32.xlu0 %v3838, %s3887
  %v3889 = vpop.permute.xlu0 %3888
  %s3891 = sor.u32 256, 104
  %3892 = vbcast.lane.b32.xlu0 %v3838, %s3891
  %v3893 = vpop.permute.xlu0 %3892
  %s3895 = sor.u32 256, 112
  %3896 = vbcast.lane.b32.xlu0 %v3838, %s3895
  %v3897 = vpop.permute.xlu0 %3896
  %s3899 = sor.u32 256, 120
  %3900 = vbcast.lane.b32.xlu0 %v3838, %s3899
  %v3901 = vpop.permute.xlu0 %3900
  %v3902 = vlaneseq
  %v3903 = vshrl.u32 %v3902, 7
  %v3904 = vsub.s32 3, %v3903
  %v3905 = vrot.slane %v377, %v3904
  %3907 = vbcast.lane.b32.xlu0 %v3905, 256
  %v3908 = vpop.permute.xlu0 %3907
  %s3910 = sor.u32 256, 8
  %3911 = vbcast.lane.b32.xlu0 %v3905, %s3910
  %v3912 = vpop.permute.xlu0 %3911
  %s3914 = sor.u32 256, 16
  %3915 = vbcast.lane.b32.xlu0 %v3905, %s3914
  %v3916 = vpop.permute.xlu0 %3915
  %s3918 = sor.u32 256, 24
  %3919 = vbcast.lane.b32.xlu0 %v3905, %s3918
  %v3920 = vpop.permute.xlu0 %3919
  %s3922 = sor.u32 256, 32
  %3923 = vbcast.lane.b32.xlu0 %v3905, %s3922
  %v3924 = vpop.permute.xlu0 %3923
  %s3926 = sor.u32 256, 40
  %3927 = vbcast.lane.b32.xlu0 %v3905, %s3926
  %v3928 = vpop.permute.xlu0 %3927
  %s3930 = sor.u32 256, 48
  %3931 = vbcast.lane.b32.xlu0 %v3905, %s3930
  %v3932 = vpop.permute.xlu0 %3931
  %s3934 = sor.u32 256, 56
  %3935 = vbcast.lane.b32.xlu0 %v3905, %s3934
  %v3936 = vpop.permute.xlu0 %3935
  %s3938 = sor.u32 256, 64
  %3939 = vbcast.lane.b32.xlu0 %v3905, %s3938
  %v3940 = vpop.permute.xlu0 %3939
  %s3942 = sor.u32 256, 72
  %3943 = vbcast.lane.b32.xlu0 %v3905, %s3942
  %v3944 = vpop.permute.xlu0 %3943
  %s3946 = sor.u32 256, 80
  %3947 = vbcast.lane.b32.xlu0 %v3905, %s3946
  %v3948 = vpop.permute.xlu0 %3947
  %s3950 = sor.u32 256, 88
  %3951 = vbcast.lane.b32.xlu0 %v3905, %s3950
  %v3952 = vpop.permute.xlu0 %3951
  %s3954 = sor.u32 256, 96
  %3955 = vbcast.lane.b32.xlu0 %v3905, %s3954
  %v3956 = vpop.permute.xlu0 %3955
  %s3958 = sor.u32 256, 104
  %3959 = vbcast.lane.b32.xlu0 %v3905, %s3958
  %v3960 = vpop.permute.xlu0 %3959
  %s3962 = sor.u32 256, 112
  %3963 = vbcast.lane.b32.xlu0 %v3905, %s3962
  %v3964 = vpop.permute.xlu0 %3963
  %s3966 = sor.u32 256, 120
  %3967 = vbcast.lane.b32.xlu0 %v3905, %s3966
  %v3968 = vpop.permute.xlu0 %3967
  %v3969 = vlaneseq
  %v3970 = vshrl.u32 %v3969, 7
  %v3971 = vsub.s32 4, %v3970
  %v3972 = vrot.slane %v377, %v3971
  %3974 = vbcast.lane.b32.xlu0 %v3972, 256
  %v3975 = vpop.permute.xlu0 %3974
  %s3977 = sor.u32 256, 8
  %3978 = vbcast.lane.b32.xlu0 %v3972, %s3977
  %v3979 = vpop.permute.xlu0 %3978
  %s3981 = sor.u32 256, 16
  %3982 = vbcast.lane.b32.xlu0 %v3972, %s3981
  %v3983 = vpop.permute.xlu0 %3982
  %s3985 = sor.u32 256, 24
  %3986 = vbcast.lane.b32.xlu0 %v3972, %s3985
  %v3987 = vpop.permute.xlu0 %3986
  %s3989 = sor.u32 256, 32
  %3990 = vbcast.lane.b32.xlu0 %v3972, %s3989
  %v3991 = vpop.permute.xlu0 %3990
  %s3993 = sor.u32 256, 40
  %3994 = vbcast.lane.b32.xlu0 %v3972, %s3993
  %v3995 = vpop.permute.xlu0 %3994
  %s3997 = sor.u32 256, 48
  %3998 = vbcast.lane.b32.xlu0 %v3972, %s3997
  %v3999 = vpop.permute.xlu0 %3998
  %s4001 = sor.u32 256, 56
  %4002 = vbcast.lane.b32.xlu0 %v3972, %s4001
  %v4003 = vpop.permute.xlu0 %4002
  %s4005 = sor.u32 256, 64
  %4006 = vbcast.lane.b32.xlu0 %v3972, %s4005
  %v4007 = vpop.permute.xlu0 %4006
  %s4009 = sor.u32 256, 72
  %4010 = vbcast.lane.b32.xlu0 %v3972, %s4009
  %v4011 = vpop.permute.xlu0 %4010
  %s4013 = sor.u32 256, 80
  %4014 = vbcast.lane.b32.xlu0 %v3972, %s4013
  %v4015 = vpop.permute.xlu0 %4014
  %s4017 = sor.u32 256, 88
  %4018 = vbcast.lane.b32.xlu0 %v3972, %s4017
  %v4019 = vpop.permute.xlu0 %4018
  %s4021 = sor.u32 256, 96
  %4022 = vbcast.lane.b32.xlu0 %v3972, %s4021
  %v4023 = vpop.permute.xlu0 %4022
  %s4025 = sor.u32 256, 104
  %4026 = vbcast.lane.b32.xlu0 %v3972, %s4025
  %v4027 = vpop.permute.xlu0 %4026
  %s4029 = sor.u32 256, 112
  %4030 = vbcast.lane.b32.xlu0 %v3972, %s4029
  %v4031 = vpop.permute.xlu0 %4030
  %s4033 = sor.u32 256, 120
  %4034 = vbcast.lane.b32.xlu0 %v3972, %s4033
  %v4035 = vpop.permute.xlu0 %4034
  %v4036 = vlaneseq
  %v4037 = vshrl.u32 %v4036, 7
  %v4038 = vsub.s32 5, %v4037
  %v4039 = vrot.slane %v377, %v4038
  %4041 = vbcast.lane.b32.xlu0 %v4039, 256
  %v4042 = vpop.permute.xlu0 %4041
  %s4044 = sor.u32 256, 8
  %4045 = vbcast.lane.b32.xlu0 %v4039, %s4044
  %v4046 = vpop.permute.xlu0 %4045
  %s4048 = sor.u32 256, 16
  %4049 = vbcast.lane.b32.xlu0 %v4039, %s4048
  %v4050 = vpop.permute.xlu0 %4049
  %s4052 = sor.u32 256, 24
  %4053 = vbcast.lane.b32.xlu0 %v4039, %s4052
  %v4054 = vpop.permute.xlu0 %4053
  %s4056 = sor.u32 256, 32
  %4057 = vbcast.lane.b32.xlu0 %v4039, %s4056
  %v4058 = vpop.permute.xlu0 %4057
  %s4060 = sor.u32 256, 40
  %4061 = vbcast.lane.b32.xlu0 %v4039, %s4060
  %v4062 = vpop.permute.xlu0 %4061
  %s4064 = sor.u32 256, 48
  %4065 = vbcast.lane.b32.xlu0 %v4039, %s4064
  %v4066 = vpop.permute.xlu0 %4065
  %s4068 = sor.u32 256, 56
  %4069 = vbcast.lane.b32.xlu0 %v4039, %s4068
  %v4070 = vpop.permute.xlu0 %4069
  %s4072 = sor.u32 256, 64
  %4073 = vbcast.lane.b32.xlu0 %v4039, %s4072
  %v4074 = vpop.permute.xlu0 %4073
  %s4076 = sor.u32 256, 72
  %4077 = vbcast.lane.b32.xlu0 %v4039, %s4076
  %v4078 = vpop.permute.xlu0 %4077
  %s4080 = sor.u32 256, 80
  %4081 = vbcast.lane.b32.xlu0 %v4039, %s4080
  %v4082 = vpop.permute.xlu0 %4081
  %s4084 = sor.u32 256, 88
  %4085 = vbcast.lane.b32.xlu0 %v4039, %s4084
  %v4086 = vpop.permute.xlu0 %4085
  %s4088 = sor.u32 256, 96
  %4089 = vbcast.lane.b32.xlu0 %v4039, %s4088
  %v4090 = vpop.permute.xlu0 %4089
  %s4092 = sor.u32 256, 104
  %4093 = vbcast.lane.b32.xlu0 %v4039, %s4092
  %v4094 = vpop.permute.xlu0 %4093
  %s4096 = sor.u32 256, 112
  %4097 = vbcast.lane.b32.xlu0 %v4039, %s4096
  %v4098 = vpop.permute.xlu0 %4097
  %s4100 = sor.u32 256, 120
  %4101 = vbcast.lane.b32.xlu0 %v4039, %s4100
  %v4102 = vpop.permute.xlu0 %4101
  %v4103 = vlaneseq
  %v4104 = vshrl.u32 %v4103, 7
  %v4105 = vsub.s32 6, %v4104
  %v4106 = vrot.slane %v377, %v4105
  %4108 = vbcast.lane.b32.xlu0 %v4106, 256
  %v4109 = vpop.permute.xlu0 %4108
  %s4111 = sor.u32 256, 8
  %4112 = vbcast.lane.b32.xlu0 %v4106, %s4111
  %v4113 = vpop.permute.xlu0 %4112
  %s4115 = sor.u32 256, 16
  %4116 = vbcast.lane.b32.xlu0 %v4106, %s4115
  %v4117 = vpop.permute.xlu0 %4116
  %s4119 = sor.u32 256, 24
  %4120 = vbcast.lane.b32.xlu0 %v4106, %s4119
  %v4121 = vpop.permute.xlu0 %4120
  %s4123 = sor.u32 256, 32
  %4124 = vbcast.lane.b32.xlu0 %v4106, %s4123
  %v4125 = vpop.permute.xlu0 %4124
  %s4127 = sor.u32 256, 40
  %4128 = vbcast.lane.b32.xlu0 %v4106, %s4127
  %v4129 = vpop.permute.xlu0 %4128
  %s4131 = sor.u32 256, 48
  %4132 = vbcast.lane.b32.xlu0 %v4106, %s4131
  %v4133 = vpop.permute.xlu0 %4132
  %s4135 = sor.u32 256, 56
  %4136 = vbcast.lane.b32.xlu0 %v4106, %s4135
  %v4137 = vpop.permute.xlu0 %4136
  %s4139 = sor.u32 256, 64
  %4140 = vbcast.lane.b32.xlu0 %v4106, %s4139
  %v4141 = vpop.permute.xlu0 %4140
  %s4143 = sor.u32 256, 72
  %4144 = vbcast.lane.b32.xlu0 %v4106, %s4143
  %v4145 = vpop.permute.xlu0 %4144
  %s4147 = sor.u32 256, 80
  %4148 = vbcast.lane.b32.xlu0 %v4106, %s4147
  %v4149 = vpop.permute.xlu0 %4148
  %s4151 = sor.u32 256, 88
  %4152 = vbcast.lane.b32.xlu0 %v4106, %s4151
  %v4153 = vpop.permute.xlu0 %4152
  %s4155 = sor.u32 256, 96
  %4156 = vbcast.lane.b32.xlu0 %v4106, %s4155
  %v4157 = vpop.permute.xlu0 %4156
  %s4159 = sor.u32 256, 104
  %4160 = vbcast.lane.b32.xlu0 %v4106, %s4159
  %v4161 = vpop.permute.xlu0 %4160
  %s4163 = sor.u32 256, 112
  %4164 = vbcast.lane.b32.xlu0 %v4106, %s4163
  %v4165 = vpop.permute.xlu0 %4164
  %s4167 = sor.u32 256, 120
  %4168 = vbcast.lane.b32.xlu0 %v4106, %s4167
  %v4169 = vpop.permute.xlu0 %4168
  %v4170 = vlaneseq
  %v4171 = vshrl.u32 %v4170, 7
  %v4172 = vsub.s32 7, %v4171
  %v4173 = vrot.slane %v377, %v4172
  %4175 = vbcast.lane.b32.xlu0 %v4173, 256
  %v4176 = vpop.permute.xlu0 %4175
  %s4178 = sor.u32 256, 8
  %4179 = vbcast.lane.b32.xlu0 %v4173, %s4178
  %v4180 = vpop.permute.xlu0 %4179
  %s4182 = sor.u32 256, 16
  %4183 = vbcast.lane.b32.xlu0 %v4173, %s4182
  %v4184 = vpop.permute.xlu0 %4183
  %s4186 = sor.u32 256, 24
  %4187 = vbcast.lane.b32.xlu0 %v4173, %s4186
  %v4188 = vpop.permute.xlu0 %4187
  %s4190 = sor.u32 256, 32
  %4191 = vbcast.lane.b32.xlu0 %v4173, %s4190
  %v4192 = vpop.permute.xlu0 %4191
  %s4194 = sor.u32 256, 40
  %4195 = vbcast.lane.b32.xlu0 %v4173, %s4194
  %v4196 = vpop.permute.xlu0 %4195
  %s4198 = sor.u32 256, 48
  %4199 = vbcast.lane.b32.xlu0 %v4173, %s4198
  %v4200 = vpop.permute.xlu0 %4199
  %s4202 = sor.u32 256, 56
  %4203 = vbcast.lane.b32.xlu0 %v4173, %s4202
  %v4204 = vpop.permute.xlu0 %4203
  %s4206 = sor.u32 256, 64
  %4207 = vbcast.lane.b32.xlu0 %v4173, %s4206
  %v4208 = vpop.permute.xlu0 %4207
  %s4210 = sor.u32 256, 72
  %4211 = vbcast.lane.b32.xlu0 %v4173, %s4210
  %v4212 = vpop.permute.xlu0 %4211
  %s4214 = sor.u32 256, 80
  %4215 = vbcast.lane.b32.xlu0 %v4173, %s4214
  %v4216 = vpop.permute.xlu0 %4215
  %s4218 = sor.u32 256, 88
  %4219 = vbcast.lane.b32.xlu0 %v4173, %s4218
  %v4220 = vpop.permute.xlu0 %4219
  %s4222 = sor.u32 256, 96
  %4223 = vbcast.lane.b32.xlu0 %v4173, %s4222
  %v4224 = vpop.permute.xlu0 %4223
  %s4226 = sor.u32 256, 104
  %4227 = vbcast.lane.b32.xlu0 %v4173, %s4226
  %v4228 = vpop.permute.xlu0 %4227
  %s4230 = sor.u32 256, 112
  %4231 = vbcast.lane.b32.xlu0 %v4173, %s4230
  %v4232 = vpop.permute.xlu0 %4231
  %s4234 = sor.u32 256, 120
  %4235 = vbcast.lane.b32.xlu0 %v4173, %s4234
  %v4236 = vpop.permute.xlu0 %4235
  %v4238 = vcombine.high %v377, %v377
  %v4240 = vunpack.c.l.s4 1966171168
  %v4241 = vunpack.c.0.s8 %v4240
  %v4242 = vlaneseq
  %v4243 = vshrl.u32 %v4242, 7
  %v4244 = vsub.s32 %v4241, %v4243
  %v4245 = vrot.slane %v377, %v4244
  %v4247 = vunpack.c.l.s4 1966171168
  %v4248 = vunpack.c.0.s8 %v4247
  %v4249 = vlaneseq
  %v4250 = vshrl.u32 %v4249, 7
  %v4251 = vsub.s32 %v4248, %v4250
  %v4252 = vrot.slane %v4238, %v4251
  %v4253 = vcombine.high %v4245, %v4245
  %v4254 = vcombine.high %v4252, %v4252
  %v4256 = vunpack.c.l.s4 1966171168
  %v4257 = vunpack.c.0.s8 %v4256
  %v4258 = vlaneseq
  %v4259 = vshrl.u32 %v4258, 7
  %v4260 = vsub.s32 %v4257, %v4259
  %v4261 = vrot.slane %v4245, %v4260
  %v4263 = vunpack.c.l.s4 1966171168
  %v4264 = vunpack.c.0.s8 %v4263
  %v4265 = vlaneseq
  %v4266 = vshrl.u32 %v4265, 7
  %v4267 = vsub.s32 %v4264, %v4266
  %v4268 = vrot.slane %v4252, %v4267
  %v4270 = vunpack.c.l.s4 1966171168
  %v4271 = vunpack.c.0.s8 %v4270
  %v4272 = vlaneseq
  %v4273 = vshrl.u32 %v4272, 7
  %v4274 = vsub.s32 %v4271, %v4273
  %v4275 = vrot.slane %v4253, %v4274
  %v4277 = vunpack.c.l.s4 1966171168
  %v4278 = vunpack.c.0.s8 %v4277
  %v4279 = vlaneseq
  %v4280 = vshrl.u32 %v4279, 7
  %v4281 = vsub.s32 %v4278, %v4280
  %v4282 = vrot.slane %v4254, %v4281
  %v4283 = vcombine.high %v4261, %v4261
  %v4284 = vcombine.high %v4268, %v4268
  %v4285 = vcombine.high %v4275, %v4275
  %v4286 = vcombine.high %v4282, %v4282
  %v4287 = vlaneseq
  %v4288 = vshrl.u32 %v4287, 7
  %v4289 = vsub.s32 0, %v4288
  %v4290 = vrot.slane %v4261, %v4289
  %v4291 = vlaneseq
  %v4292 = vshrl.u32 %v4291, 7
  %v4293 = vsub.s32 0, %v4292
  %v4294 = vrot.slane %v4275, %v4293
  %v4295 = vlaneseq
  %v4296 = vshrl.u32 %v4295, 7
  %v4297 = vsub.s32 0, %v4296
  %v4298 = vrot.slane %v4283, %v4297
  %v4299 = vlaneseq
  %v4300 = vshrl.u32 %v4299, 7
  %v4301 = vsub.s32 0, %v4300
  %v4302 = vrot.slane %v4285, %v4301
  %v4303 = vlaneseq
  %v4304 = vshrl.u32 %v4303, 7
  %v4305 = vsub.s32 0, %v4304
  %v4306 = vrot.slane %v4268, %v4305
  %v4307 = vlaneseq
  %v4308 = vshrl.u32 %v4307, 7
  %v4309 = vsub.s32 0, %v4308
  %v4310 = vrot.slane %v4282, %v4309
  %v4311 = vlaneseq
  %v4312 = vshrl.u32 %v4311, 7
  %v4313 = vsub.s32 0, %v4312
  %v4314 = vrot.slane %v4284, %v4313
  %v4315 = vlaneseq
  %v4316 = vshrl.u32 %v4315, 7
  %v4317 = vsub.s32 0, %v4316
  %v4318 = vrot.slane %v4286, %v4317
  %v4327 = vmul.f32 %v3707, %v4290
  %v4328 = vmul.f32 %v3711, %v4290
  %v4329 = vmul.f32 %v3715, %v4290
  %v4330 = vmul.f32 %v3719, %v4290
  %v4331 = vmul.f32 %v3723, %v4290
  %v4332 = vmul.f32 %v3727, %v4290
  %v4333 = vmul.f32 %v3731, %v4290
  %v4334 = vmul.f32 %v3735, %v4290
  %v4335 = vmul.f32 %v3739, %v4290
  %v4336 = vmul.f32 %v3743, %v4290
  %v4337 = vmul.f32 %v3747, %v4290
  %v4338 = vmul.f32 %v3751, %v4290
  %v4339 = vmul.f32 %v3755, %v4290
  %v4340 = vmul.f32 %v3759, %v4290
  %v4341 = vmul.f32 %v3763, %v4290
  %v4342 = vmul.f32 %v3767, %v4290
  %v4343 = vmul.f32 %v3774, %v4294
  %v4344 = vmul.f32 %v3778, %v4294
  %v4345 = vmul.f32 %v3782, %v4294
  %v4346 = vmul.f32 %v3786, %v4294
  %v4347 = vmul.f32 %v3790, %v4294
  %v4348 = vmul.f32 %v3794, %v4294
  %v4349 = vmul.f32 %v3798, %v4294
  %v4350 = vmul.f32 %v3802, %v4294
  %v4351 = vmul.f32 %v3806, %v4294
  %v4352 = vmul.f32 %v3810, %v4294
  %v4353 = vmul.f32 %v3814, %v4294
  %v4354 = vmul.f32 %v3818, %v4294
  %v4355 = vmul.f32 %v3822, %v4294
  %v4356 = vmul.f32 %v3826, %v4294
  %v4357 = vmul.f32 %v3830, %v4294
  %v4358 = vmul.f32 %v3834, %v4294
  %v4359 = vmul.f32 %v3841, %v4298
  %v4360 = vmul.f32 %v3845, %v4298
  %v4361 = vmul.f32 %v3849, %v4298
  %v4362 = vmul.f32 %v3853, %v4298
  %v4363 = vmul.f32 %v3857, %v4298
  %v4364 = vmul.f32 %v3861, %v4298
  %v4365 = vmul.f32 %v3865, %v4298
  %v4366 = vmul.f32 %v3869, %v4298
  %v4367 = vmul.f32 %v3873, %v4298
  %v4368 = vmul.f32 %v3877, %v4298
  %v4369 = vmul.f32 %v3881, %v4298
  %v4370 = vmul.f32 %v3885, %v4298
  %v4371 = vmul.f32 %v3889, %v4298
  %v4372 = vmul.f32 %v3893, %v4298
  %v4373 = vmul.f32 %v3897, %v4298
  %v4374 = vmul.f32 %v3901, %v4298
  %v4375 = vmul.f32 %v3908, %v4302
  %v4376 = vmul.f32 %v3912, %v4302
  %v4377 = vmul.f32 %v3916, %v4302
  %v4378 = vmul.f32 %v3920, %v4302
  %v4379 = vmul.f32 %v3924, %v4302
  %v4380 = vmul.f32 %v3928, %v4302
  %v4381 = vmul.f32 %v3932, %v4302
  %v4382 = vmul.f32 %v3936, %v4302
  %v4383 = vmul.f32 %v3940, %v4302
  %v4384 = vmul.f32 %v3944, %v4302
  %v4385 = vmul.f32 %v3948, %v4302
  %v4386 = vmul.f32 %v3952, %v4302
  %v4387 = vmul.f32 %v3956, %v4302
  %v4388 = vmul.f32 %v3960, %v4302
  %v4389 = vmul.f32 %v3964, %v4302
  %v4390 = vmul.f32 %v3968, %v4302
  %v4391 = vmul.f32 %v3975, %v4306
  %v4392 = vmul.f32 %v3979, %v4306
  %v4393 = vmul.f32 %v3983, %v4306
  %v4394 = vmul.f32 %v3987, %v4306
  %v4395 = vmul.f32 %v3991, %v4306
  %v4396 = vmul.f32 %v3995, %v4306
  %v4397 = vmul.f32 %v3999, %v4306
  %v4398 = vmul.f32 %v4003, %v4306
  %v4399 = vmul.f32 %v4007, %v4306
  %v4400 = vmul.f32 %v4011, %v4306
  %v4401 = vmul.f32 %v4015, %v4306
  %v4402 = vmul.f32 %v4019, %v4306
  %v4403 = vmul.f32 %v4023, %v4306
  %v4404 = vmul.f32 %v4027, %v4306
  %v4405 = vmul.f32 %v4031, %v4306
  %v4406 = vmul.f32 %v4035, %v4306
  %v4407 = vmul.f32 %v4042, %v4310
  %v4408 = vmul.f32 %v4046, %v4310
  %v4409 = vmul.f32 %v4050, %v4310
  %v4410 = vmul.f32 %v4054, %v4310
  %v4411 = vmul.f32 %v4058, %v4310
  %v4412 = vmul.f32 %v4062, %v4310
  %v4413 = vmul.f32 %v4066, %v4310
  %v4414 = vmul.f32 %v4070, %v4310
  %v4415 = vmul.f32 %v4074, %v4310
  %v4416 = vmul.f32 %v4078, %v4310
  %v4417 = vmul.f32 %v4082, %v4310
  %v4418 = vmul.f32 %v4086, %v4310
  %v4419 = vmul.f32 %v4090, %v4310
  %v4420 = vmul.f32 %v4094, %v4310
  %v4421 = vmul.f32 %v4098, %v4310
  %v4422 = vmul.f32 %v4102, %v4310
  %v4423 = vmul.f32 %v4109, %v4314
  %v4424 = vmul.f32 %v4113, %v4314
  %v4425 = vmul.f32 %v4117, %v4314
  %v4426 = vmul.f32 %v4121, %v4314
  %v4427 = vmul.f32 %v4125, %v4314
  %v4428 = vmul.f32 %v4129, %v4314
  %v4429 = vmul.f32 %v4133, %v4314
  %v4430 = vmul.f32 %v4137, %v4314
  %v4431 = vmul.f32 %v4141, %v4314
  %v4432 = vmul.f32 %v4145, %v4314
  %v4433 = vmul.f32 %v4149, %v4314
  %v4434 = vmul.f32 %v4153, %v4314
  %v4435 = vmul.f32 %v4157, %v4314
  %v4436 = vmul.f32 %v4161, %v4314
  %v4437 = vmul.f32 %v4165, %v4314
  %v4438 = vmul.f32 %v4169, %v4314
  %v4439 = vmul.f32 %v4176, %v4318
  %v4440 = vmul.f32 %v4180, %v4318
  %v4441 = vmul.f32 %v4184, %v4318
  %v4442 = vmul.f32 %v4188, %v4318
  %v4443 = vmul.f32 %v4192, %v4318
  %v4444 = vmul.f32 %v4196, %v4318
  %v4445 = vmul.f32 %v4200, %v4318
  %v4446 = vmul.f32 %v4204, %v4318
  %v4447 = vmul.f32 %v4208, %v4318
  %v4448 = vmul.f32 %v4212, %v4318
  %v4449 = vmul.f32 %v4216, %v4318
  %v4450 = vmul.f32 %v4220, %v4318
  %v4451 = vmul.f32 %v4224, %v4318
  %v4452 = vmul.f32 %v4228, %v4318
  %v4453 = vmul.f32 %v4232, %v4318
  %v4454 = vmul.f32 %v4236, %v4318
  %v4455 = vmul.f32 %v694, %v4327
  %v4456 = vmul.f32 %v699, %v4328
  %v4457 = vmul.f32 %v704, %v4329
  %v4458 = vmul.f32 %v709, %v4330
  %v4459 = vmul.f32 %v714, %v4331
  %v4460 = vmul.f32 %v719, %v4332
  %v4461 = vmul.f32 %v724, %v4333
  %v4462 = vmul.f32 %v729, %v4334
  %v4463 = vmul.f32 %v734, %v4335
  %v4464 = vmul.f32 %v739, %v4336
  %v4465 = vmul.f32 %v744, %v4337
  %v4466 = vmul.f32 %v749, %v4338
  %v4467 = vmul.f32 %v754, %v4339
  %v4468 = vmul.f32 %v759, %v4340
  %v4469 = vmul.f32 %v764, %v4341
  %v4470 = vmul.f32 %v769, %v4342
  %v4471 = vmul.f32 %v774, %v4343
  %v4472 = vmul.f32 %v779, %v4344
  %v4473 = vmul.f32 %v784, %v4345
  %v4474 = vmul.f32 %v789, %v4346
  %v4475 = vmul.f32 %v794, %v4347
  %v4476 = vmul.f32 %v799, %v4348
  %v4477 = vmul.f32 %v804, %v4349
  %v4478 = vmul.f32 %v809, %v4350
  %v4479 = vmul.f32 %v814, %v4351
  %v4480 = vmul.f32 %v819, %v4352
  %v4481 = vmul.f32 %v824, %v4353
  %v4482 = vmul.f32 %v829, %v4354
  %v4483 = vmul.f32 %v834, %v4355
  %v4484 = vmul.f32 %v839, %v4356
  %v4485 = vmul.f32 %v844, %v4357
  %v4486 = vmul.f32 %v849, %v4358
  %v4487 = vmul.f32 %v854, %v4359
  %v4488 = vmul.f32 %v859, %v4360
  %v4489 = vmul.f32 %v864, %v4361
  %v4490 = vmul.f32 %v869, %v4362
  %v4491 = vmul.f32 %v874, %v4363
  %v4492 = vmul.f32 %v879, %v4364
  %v4493 = vmul.f32 %v884, %v4365
  %v4494 = vmul.f32 %v889, %v4366
  %v4495 = vmul.f32 %v894, %v4367
  %v4496 = vmul.f32 %v899, %v4368
  %v4497 = vmul.f32 %v904, %v4369
  %v4498 = vmul.f32 %v909, %v4370
  %v4499 = vmul.f32 %v914, %v4371
  %v4500 = vmul.f32 %v919, %v4372
  %v4501 = vmul.f32 %v924, %v4373
  %v4502 = vmul.f32 %v929, %v4374
  %v4503 = vmul.f32 %v934, %v4375
  %v4504 = vmul.f32 %v939, %v4376
  %v4505 = vmul.f32 %v944, %v4377
  %v4506 = vmul.f32 %v949, %v4378
  %v4507 = vmul.f32 %v954, %v4379
  %v4508 = vmul.f32 %v959, %v4380
  %v4509 = vmul.f32 %v964, %v4381
  %v4510 = vmul.f32 %v969, %v4382
  %v4511 = vmul.f32 %v974, %v4383
  %v4512 = vmul.f32 %v979, %v4384
  %v4513 = vmul.f32 %v984, %v4385
  %v4514 = vmul.f32 %v989, %v4386
  %v4515 = vmul.f32 %v994, %v4387
  %v4516 = vmul.f32 %v999, %v4388
  %v4517 = vmul.f32 %v1004, %v4389
  %v4518 = vmul.f32 %v1009, %v4390
  %v4519 = vmul.f32 %v1014, %v4391
  %v4520 = vmul.f32 %v1019, %v4392
  %v4521 = vmul.f32 %v1024, %v4393
  %v4522 = vmul.f32 %v1029, %v4394
  %v4523 = vmul.f32 %v1034, %v4395
  %v4524 = vmul.f32 %v1039, %v4396
  %v4525 = vmul.f32 %v1044, %v4397
  %v4526 = vmul.f32 %v1049, %v4398
  %v4527 = vmul.f32 %v1054, %v4399
  %v4528 = vmul.f32 %v1059, %v4400
  %v4529 = vmul.f32 %v1064, %v4401
  %v4530 = vmul.f32 %v1069, %v4402
  %v4531 = vmul.f32 %v1074, %v4403
  %v4532 = vmul.f32 %v1079, %v4404
  %v4533 = vmul.f32 %v1084, %v4405
  %v4534 = vmul.f32 %v1089, %v4406
  %v4535 = vmul.f32 %v1094, %v4407
  %v4536 = vmul.f32 %v1099, %v4408
  %v4537 = vmul.f32 %v1104, %v4409
  %v4538 = vmul.f32 %v1109, %v4410
  %v4539 = vmul.f32 %v1114, %v4411
  %v4540 = vmul.f32 %v1119, %v4412
  %v4541 = vmul.f32 %v1124, %v4413
  %v4542 = vmul.f32 %v1129, %v4414
  %v4543 = vmul.f32 %v1134, %v4415
  %v4544 = vmul.f32 %v1139, %v4416
  %v4545 = vmul.f32 %v1144, %v4417
  %v4546 = vmul.f32 %v1149, %v4418
  %v4547 = vmul.f32 %v1154, %v4419
  %v4548 = vmul.f32 %v1159, %v4420
  %v4549 = vmul.f32 %v1164, %v4421
  %v4550 = vmul.f32 %v1169, %v4422
  %v4551 = vmul.f32 %v1174, %v4423
  %v4552 = vmul.f32 %v1179, %v4424
  %v4553 = vmul.f32 %v1184, %v4425
  %v4554 = vmul.f32 %v1189, %v4426
  %v4555 = vmul.f32 %v1194, %v4427
  %v4556 = vmul.f32 %v1199, %v4428
  %v4557 = vmul.f32 %v1204, %v4429
  %v4558 = vmul.f32 %v1209, %v4430
  %v4559 = vmul.f32 %v1214, %v4431
  %v4560 = vmul.f32 %v1219, %v4432
  %v4561 = vmul.f32 %v1224, %v4433
  %v4562 = vmul.f32 %v1229, %v4434
  %v4563 = vmul.f32 %v1234, %v4435
  %v4564 = vmul.f32 %v1239, %v4436
  %v4565 = vmul.f32 %v1244, %v4437
  %v4566 = vmul.f32 %v1249, %v4438
  %v4567 = vmul.f32 %v1254, %v4439
  %v4568 = vmul.f32 %v1259, %v4440
  %v4569 = vmul.f32 %v1264, %v4441
  %v4570 = vmul.f32 %v1269, %v4442
  %v4571 = vmul.f32 %v1274, %v4443
  %v4572 = vmul.f32 %v1279, %v4444
  %v4573 = vmul.f32 %v1284, %v4445
  %v4574 = vmul.f32 %v1289, %v4446
  %v4575 = vmul.f32 %v1294, %v4447
  %v4576 = vmul.f32 %v1299, %v4448
  %v4577 = vmul.f32 %v1304, %v4449
  %v4578 = vmul.f32 %v1309, %v4450
  %v4579 = vmul.f32 %v1314, %v4451
  %v4580 = vmul.f32 %v1319, %v4452
  %v4581 = vmul.f32 %v1324, %v4453
  %v4582 = vmul.f32 %v1329, %v4454
  %v4583 = vmul.f32 %v391, %v377
  %v4585 = vcombine.high %v4583, %v4583
  %v4587 = vunpack.c.l.s4 1966171168
  %v4588 = vunpack.c.0.s8 %v4587
  %v4589 = vlaneseq
  %v4590 = vshrl.u32 %v4589, 7
  %v4591 = vsub.s32 %v4588, %v4590
  %v4592 = vrot.slane %v4583, %v4591
  %v4594 = vunpack.c.l.s4 1966171168
  %v4595 = vunpack.c.0.s8 %v4594
  %v4596 = vlaneseq
  %v4597 = vshrl.u32 %v4596, 7
  %v4598 = vsub.s32 %v4595, %v4597
  %v4599 = vrot.slane %v4585, %v4598
  %v4600 = vcombine.high %v4592, %v4592
  %v4601 = vcombine.high %v4599, %v4599
  %v4603 = vunpack.c.l.s4 1966171168
  %v4604 = vunpack.c.0.s8 %v4603
  %v4605 = vlaneseq
  %v4606 = vshrl.u32 %v4605, 7
  %v4607 = vsub.s32 %v4604, %v4606
  %v4608 = vrot.slane %v4592, %v4607
  %v4610 = vunpack.c.l.s4 1966171168
  %v4611 = vunpack.c.0.s8 %v4610
  %v4612 = vlaneseq
  %v4613 = vshrl.u32 %v4612, 7
  %v4614 = vsub.s32 %v4611, %v4613
  %v4615 = vrot.slane %v4599, %v4614
  %v4617 = vunpack.c.l.s4 1966171168
  %v4618 = vunpack.c.0.s8 %v4617
  %v4619 = vlaneseq
  %v4620 = vshrl.u32 %v4619, 7
  %v4621 = vsub.s32 %v4618, %v4620
  %v4622 = vrot.slane %v4600, %v4621
  %v4624 = vunpack.c.l.s4 1966171168
  %v4625 = vunpack.c.0.s8 %v4624
  %v4626 = vlaneseq
  %v4627 = vshrl.u32 %v4626, 7
  %v4628 = vsub.s32 %v4625, %v4627
  %v4629 = vrot.slane %v4601, %v4628
  %v4630 = vcombine.high %v4608, %v4608
  %v4631 = vcombine.high %v4615, %v4615
  %v4632 = vcombine.high %v4622, %v4622
  %v4633 = vcombine.high %v4629, %v4629
  %v4634 = vlaneseq
  %v4635 = vshrl.u32 %v4634, 7
  %v4636 = vsub.s32 0, %v4635
  %v4637 = vrot.slane %v4608, %v4636
  %v4638 = vlaneseq
  %v4639 = vshrl.u32 %v4638, 7
  %v4640 = vsub.s32 0, %v4639
  %v4641 = vrot.slane %v4622, %v4640
  %v4642 = vlaneseq
  %v4643 = vshrl.u32 %v4642, 7
  %v4644 = vsub.s32 0, %v4643
  %v4645 = vrot.slane %v4630, %v4644
  %v4646 = vlaneseq
  %v4647 = vshrl.u32 %v4646, 7
  %v4648 = vsub.s32 0, %v4647
  %v4649 = vrot.slane %v4632, %v4648
  %v4650 = vlaneseq
  %v4651 = vshrl.u32 %v4650, 7
  %v4652 = vsub.s32 0, %v4651
  %v4653 = vrot.slane %v4615, %v4652
  %v4654 = vlaneseq
  %v4655 = vshrl.u32 %v4654, 7
  %v4656 = vsub.s32 0, %v4655
  %v4657 = vrot.slane %v4629, %v4656
  %v4658 = vlaneseq
  %v4659 = vshrl.u32 %v4658, 7
  %v4660 = vsub.s32 0, %v4659
  %v4661 = vrot.slane %v4631, %v4660
  %v4662 = vlaneseq
  %v4663 = vshrl.u32 %v4662, 7
  %v4664 = vsub.s32 0, %v4663
  %v4665 = vrot.slane %v4633, %v4664
  %v4674 = vmul.f32 %v4637, %v79
  %v4675 = vmul.f32 %v4637, %v80
  %v4676 = vmul.f32 %v4637, %v81
  %v4677 = vmul.f32 %v4637, %v82
  %v4678 = vmul.f32 %v4637, %v83
  %v4679 = vmul.f32 %v4637, %v84
  %v4680 = vmul.f32 %v4637, %v85
  %v4681 = vmul.f32 %v4637, %v86
  %v4682 = vmul.f32 %v4637, %v87
  %v4683 = vmul.f32 %v4637, %v88
  %v4684 = vmul.f32 %v4637, %v89
  %v4685 = vmul.f32 %v4637, %v90
  %v4686 = vmul.f32 %v4637, %v91
  %v4687 = vmul.f32 %v4637, %v92
  %v4688 = vmul.f32 %v4637, %v93
  %v4689 = vmul.f32 %v4637, %v94
  %v4690 = vmul.f32 %v4641, %v79
  %v4691 = vmul.f32 %v4641, %v80
  %v4692 = vmul.f32 %v4641, %v81
  %v4693 = vmul.f32 %v4641, %v82
  %v4694 = vmul.f32 %v4641, %v83
  %v4695 = vmul.f32 %v4641, %v84
  %v4696 = vmul.f32 %v4641, %v85
  %v4697 = vmul.f32 %v4641, %v86
  %v4698 = vmul.f32 %v4641, %v87
  %v4699 = vmul.f32 %v4641, %v88
  %v4700 = vmul.f32 %v4641, %v89
  %v4701 = vmul.f32 %v4641, %v90
  %v4702 = vmul.f32 %v4641, %v91
  %v4703 = vmul.f32 %v4641, %v92
  %v4704 = vmul.f32 %v4641, %v93
  %v4705 = vmul.f32 %v4641, %v94
  %v4706 = vmul.f32 %v4645, %v79
  %v4707 = vmul.f32 %v4645, %v80
  %v4708 = vmul.f32 %v4645, %v81
  %v4709 = vmul.f32 %v4645, %v82
  %v4710 = vmul.f32 %v4645, %v83
  %v4711 = vmul.f32 %v4645, %v84
  %v4712 = vmul.f32 %v4645, %v85
  %v4713 = vmul.f32 %v4645, %v86
  %v4714 = vmul.f32 %v4645, %v87
  %v4715 = vmul.f32 %v4645, %v88
  %v4716 = vmul.f32 %v4645, %v89
  %v4717 = vmul.f32 %v4645, %v90
  %v4718 = vmul.f32 %v4645, %v91
  %v4719 = vmul.f32 %v4645, %v92
  %v4720 = vmul.f32 %v4645, %v93
  %v4721 = vmul.f32 %v4645, %v94
  %v4722 = vmul.f32 %v4649, %v79
  %v4723 = vmul.f32 %v4649, %v80
  %v4724 = vmul.f32 %v4649, %v81
  %v4725 = vmul.f32 %v4649, %v82
  %v4726 = vmul.f32 %v4649, %v83
  %v4727 = vmul.f32 %v4649, %v84
  %v4728 = vmul.f32 %v4649, %v85
  %v4729 = vmul.f32 %v4649, %v86
  %v4730 = vmul.f32 %v4649, %v87
  %v4731 = vmul.f32 %v4649, %v88
  %v4732 = vmul.f32 %v4649, %v89
  %v4733 = vmul.f32 %v4649, %v90
  %v4734 = vmul.f32 %v4649, %v91
  %v4735 = vmul.f32 %v4649, %v92
  %v4736 = vmul.f32 %v4649, %v93
  %v4737 = vmul.f32 %v4649, %v94
  %v4738 = vmul.f32 %v4653, %v79
  %v4739 = vmul.f32 %v4653, %v80
  %v4740 = vmul.f32 %v4653, %v81
  %v4741 = vmul.f32 %v4653, %v82
  %v4742 = vmul.f32 %v4653, %v83
  %v4743 = vmul.f32 %v4653, %v84
  %v4744 = vmul.f32 %v4653, %v85
  %v4745 = vmul.f32 %v4653, %v86
  %v4746 = vmul.f32 %v4653, %v87
  %v4747 = vmul.f32 %v4653, %v88
  %v4748 = vmul.f32 %v4653, %v89
  %v4749 = vmul.f32 %v4653, %v90
  %v4750 = vmul.f32 %v4653, %v91
  %v4751 = vmul.f32 %v4653, %v92
  %v4752 = vmul.f32 %v4653, %v93
  %v4753 = vmul.f32 %v4653, %v94
  %v4754 = vmul.f32 %v4657, %v79
  %v4755 = vmul.f32 %v4657, %v80
  %v4756 = vmul.f32 %v4657, %v81
  %v4757 = vmul.f32 %v4657, %v82
  %v4758 = vmul.f32 %v4657, %v83
  %v4759 = vmul.f32 %v4657, %v84
  %v4760 = vmul.f32 %v4657, %v85
  %v4761 = vmul.f32 %v4657, %v86
  %v4762 = vmul.f32 %v4657, %v87
  %v4763 = vmul.f32 %v4657, %v88
  %v4764 = vmul.f32 %v4657, %v89
  %v4765 = vmul.f32 %v4657, %v90
  %v4766 = vmul.f32 %v4657, %v91
  %v4767 = vmul.f32 %v4657, %v92
  %v4768 = vmul.f32 %v4657, %v93
  %v4769 = vmul.f32 %v4657, %v94
  %v4770 = vmul.f32 %v4661, %v79
  %v4771 = vmul.f32 %v4661, %v80
  %v4772 = vmul.f32 %v4661, %v81
  %v4773 = vmul.f32 %v4661, %v82
  %v4774 = vmul.f32 %v4661, %v83
  %v4775 = vmul.f32 %v4661, %v84
  %v4776 = vmul.f32 %v4661, %v85
  %v4777 = vmul.f32 %v4661, %v86
  %v4778 = vmul.f32 %v4661, %v87
  %v4779 = vmul.f32 %v4661, %v88
  %v4780 = vmul.f32 %v4661, %v89
  %v4781 = vmul.f32 %v4661, %v90
  %v4782 = vmul.f32 %v4661, %v91
  %v4783 = vmul.f32 %v4661, %v92
  %v4784 = vmul.f32 %v4661, %v93
  %v4785 = vmul.f32 %v4661, %v94
  %v4786 = vmul.f32 %v4665, %v79
  %v4787 = vmul.f32 %v4665, %v80
  %v4788 = vmul.f32 %v4665, %v81
  %v4789 = vmul.f32 %v4665, %v82
  %v4790 = vmul.f32 %v4665, %v83
  %v4791 = vmul.f32 %v4665, %v84
  %v4792 = vmul.f32 %v4665, %v85
  %v4793 = vmul.f32 %v4665, %v86
  %v4794 = vmul.f32 %v4665, %v87
  %v4795 = vmul.f32 %v4665, %v88
  %v4796 = vmul.f32 %v4665, %v89
  %v4797 = vmul.f32 %v4665, %v90
  %v4798 = vmul.f32 %v4665, %v91
  %v4799 = vmul.f32 %v4665, %v92
  %v4800 = vmul.f32 %v4665, %v93
  %v4801 = vmul.f32 %v4665, %v94
  %v4802 = vadd.f32 %v4455, %v4674
  %v4803 = vadd.f32 %v4456, %v4675
  %v4804 = vadd.f32 %v4457, %v4676
  %v4805 = vadd.f32 %v4458, %v4677
  %v4806 = vadd.f32 %v4459, %v4678
  %v4807 = vadd.f32 %v4460, %v4679
  %v4808 = vadd.f32 %v4461, %v4680
  %v4809 = vadd.f32 %v4462, %v4681
  %v4810 = vadd.f32 %v4463, %v4682
  %v4811 = vadd.f32 %v4464, %v4683
  %v4812 = vadd.f32 %v4465, %v4684
  %v4813 = vadd.f32 %v4466, %v4685
  %v4814 = vadd.f32 %v4467, %v4686
  %v4815 = vadd.f32 %v4468, %v4687
  %v4816 = vadd.f32 %v4469, %v4688
  %v4817 = vadd.f32 %v4470, %v4689
  %v4818 = vadd.f32 %v4471, %v4690
  %v4819 = vadd.f32 %v4472, %v4691
  %v4820 = vadd.f32 %v4473, %v4692
  %v4821 = vadd.f32 %v4474, %v4693
  %v4822 = vadd.f32 %v4475, %v4694
  %v4823 = vadd.f32 %v4476, %v4695
  %v4824 = vadd.f32 %v4477, %v4696
  %v4825 = vadd.f32 %v4478, %v4697
  %v4826 = vadd.f32 %v4479, %v4698
  %v4827 = vadd.f32 %v4480, %v4699
  %v4828 = vadd.f32 %v4481, %v4700
  %v4829 = vadd.f32 %v4482, %v4701
  %v4830 = vadd.f32 %v4483, %v4702
  %v4831 = vadd.f32 %v4484, %v4703
  %v4832 = vadd.f32 %v4485, %v4704
  %v4833 = vadd.f32 %v4486, %v4705
  %v4834 = vadd.f32 %v4487, %v4706
  %v4835 = vadd.f32 %v4488, %v4707
  %v4836 = vadd.f32 %v4489, %v4708
  %v4837 = vadd.f32 %v4490, %v4709
  %v4838 = vadd.f32 %v4491, %v4710
  %v4839 = vadd.f32 %v4492, %v4711
  %v4840 = vadd.f32 %v4493, %v4712
  %v4841 = vadd.f32 %v4494, %v4713
  %v4842 = vadd.f32 %v4495, %v4714
  %v4843 = vadd.f32 %v4496, %v4715
  %v4844 = vadd.f32 %v4497, %v4716
  %v4845 = vadd.f32 %v4498, %v4717
  %v4846 = vadd.f32 %v4499, %v4718
  %v4847 = vadd.f32 %v4500, %v4719
  %v4848 = vadd.f32 %v4501, %v4720
  %v4849 = vadd.f32 %v4502, %v4721
  %v4850 = vadd.f32 %v4503, %v4722
  %v4851 = vadd.f32 %v4504, %v4723
  %v4852 = vadd.f32 %v4505, %v4724
  %v4853 = vadd.f32 %v4506, %v4725
  %v4854 = vadd.f32 %v4507, %v4726
  %v4855 = vadd.f32 %v4508, %v4727
  %v4856 = vadd.f32 %v4509, %v4728
  %v4857 = vadd.f32 %v4510, %v4729
  %v4858 = vadd.f32 %v4511, %v4730
  %v4859 = vadd.f32 %v4512, %v4731
  %v4860 = vadd.f32 %v4513, %v4732
  %v4861 = vadd.f32 %v4514, %v4733
  %v4862 = vadd.f32 %v4515, %v4734
  %v4863 = vadd.f32 %v4516, %v4735
  %v4864 = vadd.f32 %v4517, %v4736
  %v4865 = vadd.f32 %v4518, %v4737
  %v4866 = vadd.f32 %v4519, %v4738
  %v4867 = vadd.f32 %v4520, %v4739
  %v4868 = vadd.f32 %v4521, %v4740
  %v4869 = vadd.f32 %v4522, %v4741
  %v4870 = vadd.f32 %v4523, %v4742
  %v4871 = vadd.f32 %v4524, %v4743
  %v4872 = vadd.f32 %v4525, %v4744
  %v4873 = vadd.f32 %v4526, %v4745
  %v4874 = vadd.f32 %v4527, %v4746
  %v4875 = vadd.f32 %v4528, %v4747
  %v4876 = vadd.f32 %v4529, %v4748
  %v4877 = vadd.f32 %v4530, %v4749
  %v4878 = vadd.f32 %v4531, %v4750
  %v4879 = vadd.f32 %v4532, %v4751
  %v4880 = vadd.f32 %v4533, %v4752
  %v4881 = vadd.f32 %v4534, %v4753
  %v4882 = vadd.f32 %v4535, %v4754
  %v4883 = vadd.f32 %v4536, %v4755
  %v4884 = vadd.f32 %v4537, %v4756
  %v4885 = vadd.f32 %v4538, %v4757
  %v4886 = vadd.f32 %v4539, %v4758
  %v4887 = vadd.f32 %v4540, %v4759
  %v4888 = vadd.f32 %v4541, %v4760
  %v4889 = vadd.f32 %v4542, %v4761
  %v4890 = vadd.f32 %v4543, %v4762
  %v4891 = vadd.f32 %v4544, %v4763
  %v4892 = vadd.f32 %v4545, %v4764
  %v4893 = vadd.f32 %v4546, %v4765
  %v4894 = vadd.f32 %v4547, %v4766
  %v4895 = vadd.f32 %v4548, %v4767
  %v4896 = vadd.f32 %v4549, %v4768
  %v4897 = vadd.f32 %v4550, %v4769
  %v4898 = vadd.f32 %v4551, %v4770
  %v4899 = vadd.f32 %v4552, %v4771
  %v4900 = vadd.f32 %v4553, %v4772
  %v4901 = vadd.f32 %v4554, %v4773
  %v4902 = vadd.f32 %v4555, %v4774
  %v4903 = vadd.f32 %v4556, %v4775
  %v4904 = vadd.f32 %v4557, %v4776
  %v4905 = vadd.f32 %v4558, %v4777
  %v4906 = vadd.f32 %v4559, %v4778
  %v4907 = vadd.f32 %v4560, %v4779
  %v4908 = vadd.f32 %v4561, %v4780
  %v4909 = vadd.f32 %v4562, %v4781
  %v4910 = vadd.f32 %v4563, %v4782
  %v4911 = vadd.f32 %v4564, %v4783
  %v4912 = vadd.f32 %v4565, %v4784
  %v4913 = vadd.f32 %v4566, %v4785
  %v4914 = vadd.f32 %v4567, %v4786
  %v4915 = vadd.f32 %v4568, %v4787
  %v4916 = vadd.f32 %v4569, %v4788
  %v4917 = vadd.f32 %v4570, %v4789
  %v4918 = vadd.f32 %v4571, %v4790
  %v4919 = vadd.f32 %v4572, %v4791
  %v4920 = vadd.f32 %v4573, %v4792
  %v4921 = vadd.f32 %v4574, %v4793
  %v4922 = vadd.f32 %v4575, %v4794
  %v4923 = vadd.f32 %v4576, %v4795
  %v4924 = vadd.f32 %v4577, %v4796
  %v4925 = vadd.f32 %v4578, %v4797
  %v4926 = vadd.f32 %v4579, %v4798
  %v4927 = vadd.f32 %v4580, %v4799
  %v4928 = vadd.f32 %v4581, %v4800
  %v4929 = vadd.f32 %v4582, %v4801
  %4930 = vst [vmem:[#allocation2] sm:$0xff] %v4802
  %4931 = vst [vmem:[#allocation2 + $0x8] sm:$0xff] %v4803
  %4932 = vst [vmem:[#allocation2 + $0x10] sm:$0xff] %v4804
  %4933 = vst [vmem:[#allocation2 + $0x18] sm:$0xff] %v4805
  %4934 = vst [vmem:[#allocation2 + $0x20] sm:$0xff] %v4806
  %4935 = vst [vmem:[#allocation2 + $0x28] sm:$0xff] %v4807
  %4936 = vst [vmem:[#allocation2 + $0x30] sm:$0xff] %v4808
  %4937 = vst [vmem:[#allocation2 + $0x38] sm:$0xff] %v4809
  %4938 = vst [vmem:[#allocation2 + $0x40] sm:$0xff] %v4810
  %4939 = vst [vmem:[#allocation2 + $0x48] sm:$0xff] %v4811
  %4940 = vst [vmem:[#allocation2 + $0x50] sm:$0xff] %v4812
  %4941 = vst [vmem:[#allocation2 + $0x58] sm:$0xff] %v4813
  %4942 = vst [vmem:[#allocation2 + $0x60] sm:$0xff] %v4814
  %4943 = vst [vmem:[#allocation2 + $0x68] sm:$0xff] %v4815
  %4944 = vst [vmem:[#allocation2 + $0x70] sm:$0xff] %v4816
  %4945 = vst [vmem:[#allocation2 + $0x78] sm:$0xff] %v4817
  %4946 = vst [vmem:[#allocation2 + $0x80] sm:$0xff] %v4818
  %4947 = vst [vmem:[#allocation2 + $0x88] sm:$0xff] %v4819
  %4948 = vst [vmem:[#allocation2 + $0x90] sm:$0xff] %v4820
  %4949 = vst [vmem:[#allocation2 + $0x98] sm:$0xff] %v4821
  %4950 = vst [vmem:[#allocation2 + $0xa0] sm:$0xff] %v4822
  %4951 = vst [vmem:[#allocation2 + $0xa8] sm:$0xff] %v4823
  %4952 = vst [vmem:[#allocation2 + $0xb0] sm:$0xff] %v4824
  %4953 = vst [vmem:[#allocation2 + $0xb8] sm:$0xff] %v4825
  %4954 = vst [vmem:[#allocation2 + $0xc0] sm:$0xff] %v4826
  %4955 = vst [vmem:[#allocation2 + $0xc8] sm:$0xff] %v4827
  %4956 = vst [vmem:[#allocation2 + $0xd0] sm:$0xff] %v4828
  %4957 = vst [vmem:[#allocation2 + $0xd8] sm:$0xff] %v4829
  %4958 = vst [vmem:[#allocation2 + $0xe0] sm:$0xff] %v4830
  %4959 = vst [vmem:[#allocation2 + $0xe8] sm:$0xff] %v4831
  %4960 = vst [vmem:[#allocation2 + $0xf0] sm:$0xff] %v4832
  %4961 = vst [vmem:[#allocation2 + $0xf8] sm:$0xff] %v4833
  %4962 = vst [vmem:[#allocation2 + $0x100] sm:$0xff] %v4834
  %4963 = vst [vmem:[#allocation2 + $0x108] sm:$0xff] %v4835
  %4964 = vst [vmem:[#allocation2 + $0x110] sm:$0xff] %v4836
  %4965 = vst [vmem:[#allocation2 + $0x118] sm:$0xff] %v4837
  %4966 = vst [vmem:[#allocation2 + $0x120] sm:$0xff] %v4838
  %4967 = vst [vmem:[#allocation2 + $0x128] sm:$0xff] %v4839
  %4968 = vst [vmem:[#allocation2 + $0x130] sm:$0xff] %v4840
  %4969 = vst [vmem:[#allocation2 + $0x138] sm:$0xff] %v4841
  %4970 = vst [vmem:[#allocation2 + $0x140] sm:$0xff] %v4842
  %4971 = vst [vmem:[#allocation2 + $0x148] sm:$0xff] %v4843
  %4972 = vst [vmem:[#allocation2 + $0x150] sm:$0xff] %v4844
  %4973 = vst [vmem:[#allocation2 + $0x158] sm:$0xff] %v4845
  %4974 = vst [vmem:[#allocation2 + $0x160] sm:$0xff] %v4846
  %4975 = vst [vmem:[#allocation2 + $0x168] sm:$0xff] %v4847
  %4976 = vst [vmem:[#allocation2 + $0x170] sm:$0xff] %v4848
  %4977 = vst [vmem:[#allocation2 + $0x178] sm:$0xff] %v4849
  %4978 = vst [vmem:[#allocation2 + $0x180] sm:$0xff] %v4850
  %4979 = vst [vmem:[#allocation2 + $0x188] sm:$0xff] %v4851
  %4980 = vst [vmem:[#allocation2 + $0x190] sm:$0xff] %v4852
  %4981 = vst [vmem:[#allocation2 + $0x198] sm:$0xff] %v4853
  %4982 = vst [vmem:[#allocation2 + $0x1a0] sm:$0xff] %v4854
  %4983 = vst [vmem:[#allocation2 + $0x1a8] sm:$0xff] %v4855
  %4984 = vst [vmem:[#allocation2 + $0x1b0] sm:$0xff] %v4856
  %4985 = vst [vmem:[#allocation2 + $0x1b8] sm:$0xff] %v4857
  %4986 = vst [vmem:[#allocation2 + $0x1c0] sm:$0xff] %v4858
  %4987 = vst [vmem:[#allocation2 + $0x1c8] sm:$0xff] %v4859
  %4988 = vst [vmem:[#allocation2 + $0x1d0] sm:$0xff] %v4860
  %4989 = vst [vmem:[#allocation2 + $0x1d8] sm:$0xff] %v4861
  %4990 = vst [vmem:[#allocation2 + $0x1e0] sm:$0xff] %v4862
  %4991 = vst [vmem:[#allocation2 + $0x1e8] sm:$0xff] %v4863
  %4992 = vst [vmem:[#allocation2 + $0x1f0] sm:$0xff] %v4864
  %4993 = vst [vmem:[#allocation2 + $0x1f8] sm:$0xff] %v4865
  %4994 = vst [vmem:[#allocation2 + $0x200] sm:$0xff] %v4866
  %4995 = vst [vmem:[#allocation2 + $0x208] sm:$0xff] %v4867
  %4996 = vst [vmem:[#allocation2 + $0x210] sm:$0xff] %v4868
  %4997 = vst [vmem:[#allocation2 + $0x218] sm:$0xff] %v4869
  %4998 = vst [vmem:[#allocation2 + $0x220] sm:$0xff] %v4870
  %4999 = vst [vmem:[#allocation2 + $0x228] sm:$0xff] %v4871
  %5000 = vst [vmem:[#allocation2 + $0x230] sm:$0xff] %v4872
  %5001 = vst [vmem:[#allocation2 + $0x238] sm:$0xff] %v4873
  %5002 = vst [vmem:[#allocation2 + $0x240] sm:$0xff] %v4874
  %5003 = vst [vmem:[#allocation2 + $0x248] sm:$0xff] %v4875
  %5004 = vst [vmem:[#allocation2 + $0x250] sm:$0xff] %v4876
  %5005 = vst [vmem:[#allocation2 + $0x258] sm:$0xff] %v4877
  %5006 = vst [vmem:[#allocation2 + $0x260] sm:$0xff] %v4878
  %5007 = vst [vmem:[#allocation2 + $0x268] sm:$0xff] %v4879
  %5008 = vst [vmem:[#allocation2 + $0x270] sm:$0xff] %v4880
  %5009 = vst [vmem:[#allocation2 + $0x278] sm:$0xff] %v4881
  %5010 = vst [vmem:[#allocation2 + $0x280] sm:$0xff] %v4882
  %5011 = vst [vmem:[#allocation2 + $0x288] sm:$0xff] %v4883
  %5012 = vst [vmem:[#allocation2 + $0x290] sm:$0xff] %v4884
  %5013 = vst [vmem:[#allocation2 + $0x298] sm:$0xff] %v4885
  %5014 = vst [vmem:[#allocation2 + $0x2a0] sm:$0xff] %v4886
  %5015 = vst [vmem:[#allocation2 + $0x2a8] sm:$0xff] %v4887
  %5016 = vst [vmem:[#allocation2 + $0x2b0] sm:$0xff] %v4888
  %5017 = vst [vmem:[#allocation2 + $0x2b8] sm:$0xff] %v4889
  %5018 = vst [vmem:[#allocation2 + $0x2c0] sm:$0xff] %v4890
  %5019 = vst [vmem:[#allocation2 + $0x2c8] sm:$0xff] %v4891
  %5020 = vst [vmem:[#allocation2 + $0x2d0] sm:$0xff] %v4892
  %5021 = vst [vmem:[#allocation2 + $0x2d8] sm:$0xff] %v4893
  %5022 = vst [vmem:[#allocation2 + $0x2e0] sm:$0xff] %v4894
  %5023 = vst [vmem:[#allocation2 + $0x2e8] sm:$0xff] %v4895
  %5024 = vst [vmem:[#allocation2 + $0x2f0] sm:$0xff] %v4896
  %5025 = vst [vmem:[#allocation2 + $0x2f8] sm:$0xff] %v4897
  %5026 = vst [vmem:[#allocation2 + $0x300] sm:$0xff] %v4898
  %5027 = vst [vmem:[#allocation2 + $0x308] sm:$0xff] %v4899
  %5028 = vst [vmem:[#allocation2 + $0x310] sm:$0xff] %v4900
  %5029 = vst [vmem:[#allocation2 + $0x318] sm:$0xff] %v4901
  %5030 = vst [vmem:[#allocation2 + $0x320] sm:$0xff] %v4902
  %5031 = vst [vmem:[#allocation2 + $0x328] sm:$0xff] %v4903
  %5032 = vst [vmem:[#allocation2 + $0x330] sm:$0xff] %v4904
  %5033 = vst [vmem:[#allocation2 + $0x338] sm:$0xff] %v4905
  %5034 = vst [vmem:[#allocation2 + $0x340] sm:$0xff] %v4906
  %5035 = vst [vmem:[#allocation2 + $0x348] sm:$0xff] %v4907
  %5036 = vst [vmem:[#allocation2 + $0x350] sm:$0xff] %v4908
  %5037 = vst [vmem:[#allocation2 + $0x358] sm:$0xff] %v4909
  %5038 = vst [vmem:[#allocation2 + $0x360] sm:$0xff] %v4910
  %5039 = vst [vmem:[#allocation2 + $0x368] sm:$0xff] %v4911
  %5040 = vst [vmem:[#allocation2 + $0x370] sm:$0xff] %v4912
  %5041 = vst [vmem:[#allocation2 + $0x378] sm:$0xff] %v4913
  %5042 = vst [vmem:[#allocation2 + $0x380] sm:$0xff] %v4914
  %5043 = vst [vmem:[#allocation2 + $0x388] sm:$0xff] %v4915
  %5044 = vst [vmem:[#allocation2 + $0x390] sm:$0xff] %v4916
  %5045 = vst [vmem:[#allocation2 + $0x398] sm:$0xff] %v4917
  %5046 = vst [vmem:[#allocation2 + $0x3a0] sm:$0xff] %v4918
  %5047 = vst [vmem:[#allocation2 + $0x3a8] sm:$0xff] %v4919
  %5048 = vst [vmem:[#allocation2 + $0x3b0] sm:$0xff] %v4920
  %5049 = vst [vmem:[#allocation2 + $0x3b8] sm:$0xff] %v4921
  %5050 = vst [vmem:[#allocation2 + $0x3c0] sm:$0xff] %v4922
  %5051 = vst [vmem:[#allocation2 + $0x3c8] sm:$0xff] %v4923
  %5052 = vst [vmem:[#allocation2 + $0x3d0] sm:$0xff] %v4924
  %5053 = vst [vmem:[#allocation2 + $0x3d8] sm:$0xff] %v4925
  %5054 = vst [vmem:[#allocation2 + $0x3e0] sm:$0xff] %v4926
  %5055 = vst [vmem:[#allocation2 + $0x3e8] sm:$0xff] %v4927
  %5056 = vst [vmem:[#allocation2 + $0x3f0] sm:$0xff] %v4928
  %5057 = vst [vmem:[#allocation2 + $0x3f8] sm:$0xff] %v4929
  %s5058 = scalar_lea.vmem %s1, 256
  %v5059 = vld [vmem:[%s5058] sm:$0xff]
  %v5060 = vld [vmem:[%s5058 + $0x8] sm:$0xff]
  %v5061 = vld [vmem:[%s5058 + $0x10] sm:$0xff]
  %v5062 = vld [vmem:[%s5058 + $0x18] sm:$0xff]
  %v5063 = vld [vmem:[%s5058 + $0x20] sm:$0xff]
  %v5064 = vld [vmem:[%s5058 + $0x28] sm:$0xff]
  %v5065 = vld [vmem:[%s5058 + $0x30] sm:$0xff]
  %v5066 = vld [vmem:[%s5058 + $0x38] sm:$0xff]
  %v5067 = vld [vmem:[%s5058 + $0x40] sm:$0xff]
  %v5068 = vld [vmem:[%s5058 + $0x48] sm:$0xff]
  %v5069 = vld [vmem:[%s5058 + $0x50] sm:$0xff]
  %v5070 = vld [vmem:[%s5058 + $0x58] sm:$0xff]
  %v5071 = vld [vmem:[%s5058 + $0x60] sm:$0xff]
  %v5072 = vld [vmem:[%s5058 + $0x68] sm:$0xff]
  %v5073 = vld [vmem:[%s5058 + $0x70] sm:$0xff]
  %v5074 = vld [vmem:[%s5058 + $0x78] sm:$0xff]
  %s5075 = scalar_lea.vmem %s3, 2
  %v5076 = vld [vmem:[%s5075] sm:$0x1]
  %v5078 = vlaneseq
  %v5079 = vshrl.u32 %v5078, 7
  %v5080 = vsub.s32 0, %v5079
  %v5081 = vrot.slane %v5076, %v5080
  %5083 = vmatprep.subr.mxu0 0.0
  %5084 = vmatpush1.msra.mxu0 %v5059
  %5085 = vmatprep.subr.mxu0 0.0
  %5086 = vmatpush1.msra.mxu0 %v5060
  %5087 = vmatprep.subr.mxu0 0.0
  %5088 = vmatpush1.msra.mxu0 %v5061
  %5089 = vmatprep.subr.mxu0 0.0
  %5090 = vmatpush1.msra.mxu0 %v5062
  %5091 = vmatprep.subr.mxu0 0.0
  %5092 = vmatpush1.msra.mxu0 %v5063
  %5093 = vmatprep.subr.mxu0 0.0
  %5094 = vmatpush1.msra.mxu0 %v5064
  %5095 = vmatprep.subr.mxu0 0.0
  %5096 = vmatpush1.msra.mxu0 %v5065
  %5097 = vmatprep.subr.mxu0 0.0
  %5098 = vmatpush1.msra.mxu0 %v5066
  %5099 = vmatprep.subr.mxu0 0.0
  %5100 = vmatpush1.msra.mxu0 %v5067
  %5101 = vmatprep.subr.mxu0 0.0
  %5102 = vmatpush1.msra.mxu0 %v5068
  %5103 = vmatprep.subr.mxu0 0.0
  %5104 = vmatpush1.msra.mxu0 %v5069
  %5105 = vmatprep.subr.mxu0 0.0
  %5106 = vmatpush1.msra.mxu0 %v5070
  %5107 = vmatprep.subr.mxu0 0.0
  %5108 = vmatpush1.msra.mxu0 %v5071
  %5109 = vmatprep.subr.mxu0 0.0
  %5110 = vmatpush1.msra.mxu0 %v5072
  %5111 = vmatprep.subr.mxu0 0.0
  %5112 = vmatpush1.msra.mxu0 %v5073
  %5113 = vmatprep.subr.mxu0 0.0
  %5114 = vmatpush1.msra.mxu0 %v5074
  %5115 = vmatprep.subr.mxu0 0.0
  %5116 = vmatpush1.msra.mxu0 0.0
  %5117 = vmatprep.subr.mxu0 0.0
  %5118 = vmatpush1.msra.mxu0 0.0
  %5119 = vmatprep.subr.mxu0 0.0
  %5120 = vmatpush1.msra.mxu0 0.0
  %5121 = vmatprep.subr.mxu0 0.0
  %5122 = vmatpush1.msra.mxu0 0.0
  %5123 = vmatprep.subr.mxu0 0.0
  %5124 = vmatpush1.msra.mxu0 0.0
  %5125 = vmatprep.subr.mxu0 0.0
  %5126 = vmatpush1.msra.mxu0 0.0
  %5127 = vmatprep.subr.mxu0 0.0
  %5128 = vmatpush1.msra.mxu0 0.0
  %5129 = vmatprep.subr.mxu0 0.0
  %5130 = vmatpush1.msra.mxu0 0.0
  %5131 = vmatprep.subr.mxu0 0.0
  %5132 = vmatpush1.msra.mxu0 0.0
  %5133 = vmatprep.subr.mxu0 0.0
  %5134 = vmatpush1.msra.mxu0 0.0
  %5135 = vmatprep.subr.mxu0 0.0
  %5136 = vmatpush1.msra.mxu0 0.0
  %5137 = vmatprep.subr.mxu0 0.0
  %5138 = vmatpush1.msra.mxu0 0.0
  %5139 = vmatprep.subr.mxu0 0.0
  %5140 = vmatpush1.msra.mxu0 0.0
  %5141 = vmatprep.subr.mxu0 0.0
  %5142 = vmatpush1.msra.mxu0 0.0
  %5143 = vmatprep.subr.mxu0 0.0
  %5144 = vmatpush1.msra.mxu0 0.0
  %5145 = vmatprep.subr.mxu0 0.0
  %5146 = vmatpush1.msra.mxu0 0.0
  %5147 = vmatprep.mubr.f32.mxu0 0.0
  %5148 = vmatmul.mubr.f32.gmra.mrb[0].mxu0 %v378
  %v5149 = vpop.f32.mrb[0].mxu0
  %v5150 = vadd.f32 %v5081, %v5149
  %v5151 = vpop.f32.mrb[0].mxu0
  %5152 = vdwg.mxu0
  %v5153 = vrot.slane %v5150, 4
  %v5154 = vadd.f32 %v5150, %v5153
  %v5155 = vrot.slane %v5154, 2
  %v5156 = vadd.f32 %v5154, %v5155
  %v5157 = vrot.slane %v5156, 1
  %v5158 = vadd.f32 %v5156, %v5157
  %v5159 = vmul.f32 %v5158, %v195
  %v5160 = vsub.f32 %v5150, %v5159
  %v5161 = vmul.f32 %v5160, %v5160
  %v5162 = vrot.slane %v5161, 4
  %v5163 = vadd.f32 %v5161, %v5162
  %v5164 = vrot.slane %v5163, 2
  %v5165 = vadd.f32 %v5163, %v5164
  %v5166 = vrot.slane %v5165, 1
  %v5167 = vadd.f32 %v5165, %v5166
  %v5168 = vmul.f32 %v5167, %v195
  %v5169 = vadd.f32 %v5168, 1e-05
  %v5170 = vrsqrt.pop %v5169
  %v5171 = vmul.f32 %v5160, %v5170
  %s5172 = scalar_lea.vmem %s5, 2
  %v5173 = vld [vmem:[%s5172] sm:$0x1]
  %v5175 = vlaneseq
  %v5176 = vshrl.u32 %v5175, 7
  %v5177 = vsub.s32 0, %v5176
  %v5178 = vrot.slane %v5173, %v5177
  %v5180 = vmul.f32 %v5171, %v5178
  %s5181 = scalar_lea.vmem %s6, 2
  %v5182 = vld [vmem:[%s5181] sm:$0x1]
  %v5184 = vlaneseq
  %v5185 = vshrl.u32 %v5184, 7
  %v5186 = vsub.s32 0, %v5185
  %v5187 = vrot.slane %v5182, %v5186
  %v5189 = vadd.f32 %v5180, %v5187
  %vm5190 = vcmp.gt.f32.partialorder %v5189, 0.0
  %v5191 = vsel %vm5190, 1, 0
  %v5192 = vcvt.s32.f32 %v5191
  %v5193 = vmul.f32 %v5189, %v5192
  %v5194 = vmul.f32 %v378, %v378
  %5195 = vadd.xlane.f32.xlu0 %v5194
  %v5196 = vpop.xlane.xlu0 %5195
  %s5197 = scalar_lea.vmem %s4, 2
  %v5198 = vld [vmem:[%s5197] sm:$0x1]
  %v5199 = vadd.f32 %v5196, %v3700
  %v5201 = vlaneseq
  %v5202 = vshrl.u32 %v5201, 7
  %v5203 = vsub.s32 0, %v5202
  %v5204 = vrot.slane %v5198, %v5203
  %v5206 = vmul.f32 %v5204, %v5199
  %v5207 = vld [vmem:[#allocation2] sm:$0xff]
  %v5208 = vld [vmem:[#allocation2 + $0x8] sm:$0xff]
  %v5209 = vld [vmem:[#allocation2 + $0x10] sm:$0xff]
  %v5210 = vld [vmem:[#allocation2 + $0x18] sm:$0xff]
  %v5211 = vld [vmem:[#allocation2 + $0x20] sm:$0xff]
  %v5212 = vld [vmem:[#allocation2 + $0x28] sm:$0xff]
  %v5213 = vld [vmem:[#allocation2 + $0x30] sm:$0xff]
  %v5214 = vld [vmem:[#allocation2 + $0x38] sm:$0xff]
  %v5215 = vld [vmem:[#allocation2 + $0x40] sm:$0xff]
  %v5216 = vld [vmem:[#allocation2 + $0x48] sm:$0xff]
  %v5217 = vld [vmem:[#allocation2 + $0x50] sm:$0xff]
  %v5218 = vld [vmem:[#allocation2 + $0x58] sm:$0xff]
  %v5219 = vld [vmem:[#allocation2 + $0x60] sm:$0xff]
  %v5220 = vld [vmem:[#allocation2 + $0x68] sm:$0xff]
  %v5221 = vld [vmem:[#allocation2 + $0x70] sm:$0xff]
  %v5222 = vld [vmem:[#allocation2 + $0x78] sm:$0xff]
  %v5223 = vld [vmem:[#allocation2 + $0x80] sm:$0xff]
  %v5224 = vld [vmem:[#allocation2 + $0x88] sm:$0xff]
  %v5225 = vld [vmem:[#allocation2 + $0x90] sm:$0xff]
  %v5226 = vld [vmem:[#allocation2 + $0x98] sm:$0xff]
  %v5227 = vld [vmem:[#allocation2 + $0xa0] sm:$0xff]
  %v5228 = vld [vmem:[#allocation2 + $0xa8] sm:$0xff]
  %v5229 = vld [vmem:[#allocation2 + $0xb0] sm:$0xff]
  %v5230 = vld [vmem:[#allocation2 + $0xb8] sm:$0xff]
  %v5231 = vld [vmem:[#allocation2 + $0xc0] sm:$0xff]
  %v5232 = vld [vmem:[#allocation2 + $0xc8] sm:$0xff]
  %v5233 = vld [vmem:[#allocation2 + $0xd0] sm:$0xff]
  %v5234 = vld [vmem:[#allocation2 + $0xd8] sm:$0xff]
  %v5235 = vld [vmem:[#allocation2 + $0xe0] sm:$0xff]
  %v5236 = vld [vmem:[#allocation2 + $0xe8] sm:$0xff]
  %v5237 = vld [vmem:[#allocation2 + $0xf0] sm:$0xff]
  %v5238 = vld [vmem:[#allocation2 + $0xf8] sm:$0xff]
  %v5239 = vld [vmem:[#allocation2 + $0x100] sm:$0xff]
  %v5240 = vld [vmem:[#allocation2 + $0x108] sm:$0xff]
  %v5241 = vld [vmem:[#allocation2 + $0x110] sm:$0xff]
  %v5242 = vld [vmem:[#allocation2 + $0x118] sm:$0xff]
  %v5243 = vld [vmem:[#allocation2 + $0x120] sm:$0xff]
  %v5244 = vld [vmem:[#allocation2 + $0x128] sm:$0xff]
  %v5245 = vld [vmem:[#allocation2 + $0x130] sm:$0xff]
  %v5246 = vld [vmem:[#allocation2 + $0x138] sm:$0xff]
  %v5247 = vld [vmem:[#allocation2 + $0x140] sm:$0xff]
  %v5248 = vld [vmem:[#allocation2 + $0x148] sm:$0xff]
  %v5249 = vld [vmem:[#allocation2 + $0x150] sm:$0xff]
  %v5250 = vld [vmem:[#allocation2 + $0x158] sm:$0xff]
  %v5251 = vld [vmem:[#allocation2 + $0x160] sm:$0xff]
  %v5252 = vld [vmem:[#allocation2 + $0x168] sm:$0xff]
  %v5253 = vld [vmem:[#allocation2 + $0x170] sm:$0xff]
  %v5254 = vld [vmem:[#allocation2 + $0x178] sm:$0xff]
  %v5255 = vld [vmem:[#allocation2 + $0x180] sm:$0xff]
  %v5256 = vld [vmem:[#allocation2 + $0x188] sm:$0xff]
  %v5257 = vld [vmem:[#allocation2 + $0x190] sm:$0xff]
  %v5258 = vld [vmem:[#allocation2 + $0x198] sm:$0xff]
  %v5259 = vld [vmem:[#allocation2 + $0x1a0] sm:$0xff]
  %v5260 = vld [vmem:[#allocation2 + $0x1a8] sm:$0xff]
  %v5261 = vld [vmem:[#allocation2 + $0x1b0] sm:$0xff]
  %v5262 = vld [vmem:[#allocation2 + $0x1b8] sm:$0xff]
  %v5263 = vld [vmem:[#allocation2 + $0x1c0] sm:$0xff]
  %v5264 = vld [vmem:[#allocation2 + $0x1c8] sm:$0xff]
  %v5265 = vld [vmem:[#allocation2 + $0x1d0] sm:$0xff]
  %v5266 = vld [vmem:[#allocation2 + $0x1d8] sm:$0xff]
  %v5267 = vld [vmem:[#allocation2 + $0x1e0] sm:$0xff]
  %v5268 = vld [vmem:[#allocation2 + $0x1e8] sm:$0xff]
  %v5269 = vld [vmem:[#allocation2 + $0x1f0] sm:$0xff]
  %v5270 = vld [vmem:[#allocation2 + $0x1f8] sm:$0xff]
  %v5271 = vld [vmem:[#allocation2 + $0x200] sm:$0xff]
  %v5272 = vld [vmem:[#allocation2 + $0x208] sm:$0xff]
  %v5273 = vld [vmem:[#allocation2 + $0x210] sm:$0xff]
  %v5274 = vld [vmem:[#allocation2 + $0x218] sm:$0xff]
  %v5275 = vld [vmem:[#allocation2 + $0x220] sm:$0xff]
  %v5276 = vld [vmem:[#allocation2 + $0x228] sm:$0xff]
  %v5277 = vld [vmem:[#allocation2 + $0x230] sm:$0xff]
  %v5278 = vld [vmem:[#allocation2 + $0x238] sm:$0xff]
  %v5279 = vld [vmem:[#allocation2 + $0x240] sm:$0xff]
  %v5280 = vld [vmem:[#allocation2 + $0x248] sm:$0xff]
  %v5281 = vld [vmem:[#allocation2 + $0x250] sm:$0xff]
  %v5282 = vld [vmem:[#allocation2 + $0x258] sm:$0xff]
  %v5283 = vld [vmem:[#allocation2 + $0x260] sm:$0xff]
  %v5284 = vld [vmem:[#allocation2 + $0x268] sm:$0xff]
  %v5285 = vld [vmem:[#allocation2 + $0x270] sm:$0xff]
  %v5286 = vld [vmem:[#allocation2 + $0x278] sm:$0xff]
  %v5287 = vld [vmem:[#allocation2 + $0x280] sm:$0xff]
  %v5288 = vld [vmem:[#allocation2 + $0x288] sm:$0xff]
  %v5289 = vld [vmem:[#allocation2 + $0x290] sm:$0xff]
  %v5290 = vld [vmem:[#allocation2 + $0x298] sm:$0xff]
  %v5291 = vld [vmem:[#allocation2 + $0x2a0] sm:$0xff]
  %v5292 = vld [vmem:[#allocation2 + $0x2a8] sm:$0xff]
  %v5293 = vld [vmem:[#allocation2 + $0x2b0] sm:$0xff]
  %v5294 = vld [vmem:[#allocation2 + $0x2b8] sm:$0xff]
  %v5295 = vld [vmem:[#allocation2 + $0x2c0] sm:$0xff]
  %v5296 = vld [vmem:[#allocation2 + $0x2c8] sm:$0xff]
  %v5297 = vld [vmem:[#allocation2 + $0x2d0] sm:$0xff]
  %v5298 = vld [vmem:[#allocation2 + $0x2d8] sm:$0xff]
  %v5299 = vld [vmem:[#allocation2 + $0x2e0] sm:$0xff]
  %v5300 = vld [vmem:[#allocation2 + $0x2e8] sm:$0xff]
  %v5301 = vld [vmem:[#allocation2 + $0x2f0] sm:$0xff]
  %v5302 = vld [vmem:[#allocation2 + $0x2f8] sm:$0xff]
  %v5303 = vld [vmem:[#allocation2 + $0x300] sm:$0xff]
  %v5304 = vld [vmem:[#allocation2 + $0x308] sm:$0xff]
  %v5305 = vld [vmem:[#allocation2 + $0x310] sm:$0xff]
  %v5306 = vld [vmem:[#allocation2 + $0x318] sm:$0xff]
  %v5307 = vld [vmem:[#allocation2 + $0x320] sm:$0xff]
  %v5308 = vld [vmem:[#allocation2 + $0x328] sm:$0xff]
  %v5309 = vld [vmem:[#allocation2 + $0x330] sm:$0xff]
  %v5310 = vld [vmem:[#allocation2 + $0x338] sm:$0xff]
  %v5311 = vld [vmem:[#allocation2 + $0x340] sm:$0xff]
  %v5312 = vld [vmem:[#allocation2 + $0x348] sm:$0xff]
  %v5313 = vld [vmem:[#allocation2 + $0x350] sm:$0xff]
  %v5314 = vld [vmem:[#allocation2 + $0x358] sm:$0xff]
  %v5315 = vld [vmem:[#allocation2 + $0x360] sm:$0xff]
  %v5316 = vld [vmem:[#allocation2 + $0x368] sm:$0xff]
  %v5317 = vld [vmem:[#allocation2 + $0x370] sm:$0xff]
  %v5318 = vld [vmem:[#allocation2 + $0x378] sm:$0xff]
  %v5319 = vld [vmem:[#allocation2 + $0x380] sm:$0xff]
  %v5320 = vld [vmem:[#allocation2 + $0x388] sm:$0xff]
  %v5321 = vld [vmem:[#allocation2 + $0x390] sm:$0xff]
  %v5322 = vld [vmem:[#allocation2 + $0x398] sm:$0xff]
  %v5323 = vld [vmem:[#allocation2 + $0x3a0] sm:$0xff]
  %v5324 = vld [vmem:[#allocation2 + $0x3a8] sm:$0xff]
  %v5325 = vld [vmem:[#allocation2 + $0x3b0] sm:$0xff]
  %v5326 = vld [vmem:[#allocation2 + $0x3b8] sm:$0xff]
  %v5327 = vld [vmem:[#allocation2 + $0x3c0] sm:$0xff]
  %v5328 = vld [vmem:[#allocation2 + $0x3c8] sm:$0xff]
  %v5329 = vld [vmem:[#allocation2 + $0x3d0] sm:$0xff]
  %v5330 = vld [vmem:[#allocation2 + $0x3d8] sm:$0xff]
  %v5331 = vld [vmem:[#allocation2 + $0x3e0] sm:$0xff]
  %v5332 = vld [vmem:[#allocation2 + $0x3e8] sm:$0xff]
  %v5333 = vld [vmem:[#allocation2 + $0x3f0] sm:$0xff]
  %v5334 = vld [vmem:[#allocation2 + $0x3f8] sm:$0xff]
  %5335 = vmatprep.subr.mxu0 0.0
  %5336 = vmatpush1.msra.mxu0 %v5059
  %5337 = vmatprep.subr.mxu0 0.0
  %5338 = vmatpush1.msra.mxu0 %v5060
  %5339 = vmatprep.subr.mxu0 0.0
  %5340 = vmatpush1.msra.mxu0 %v5061
  %5341 = vmatprep.subr.mxu0 0.0
  %5342 = vmatpush1.msra.mxu0 %v5062
  %5343 = vmatprep.subr.mxu0 0.0
  %5344 = vmatpush1.msra.mxu0 %v5063
  %5345 = vmatprep.subr.mxu0 0.0
  %5346 = vmatpush1.msra.mxu0 %v5064
  %5347 = vmatprep.subr.mxu0 0.0
  %5348 = vmatpush1.msra.mxu0 %v5065
  %5349 = vmatprep.subr.mxu0 0.0
  %5350 = vmatpush1.msra.mxu0 %v5066
  %5351 = vmatprep.subr.mxu0 0.0
  %5352 = vmatpush1.msra.mxu0 %v5067
  %5353 = vmatprep.subr.mxu0 0.0
  %5354 = vmatpush1.msra.mxu0 %v5068
  %5355 = vmatprep.subr.mxu0 0.0
  %5356 = vmatpush1.msra.mxu0 %v5069
  %5357 = vmatprep.subr.mxu0 0.0
  %5358 = vmatpush1.msra.mxu0 %v5070
  %5359 = vmatprep.subr.mxu0 0.0
  %5360 = vmatpush1.msra.mxu0 %v5071
  %5361 = vmatprep.subr.mxu0 0.0
  %5362 = vmatpush1.msra.mxu0 %v5072
  %5363 = vmatprep.subr.mxu0 0.0
  %5364 = vmatpush1.msra.mxu0 %v5073
  %5365 = vmatprep.subr.mxu0 0.0
  %5366 = vmatpush1.msra.mxu0 %v5074
  %5367 = vmatprep.subr.mxu0 0.0
  %5368 = vmatpush1.msra.mxu0 0.0
  %5369 = vmatprep.subr.mxu0 0.0
  %5370 = vmatpush1.msra.mxu0 0.0
  %5371 = vmatprep.subr.mxu0 0.0
  %5372 = vmatpush1.msra.mxu0 0.0
  %5373 = vmatprep.subr.mxu0 0.0
  %5374 = vmatpush1.msra.mxu0 0.0
  %5375 = vmatprep.subr.mxu0 0.0
  %5376 = vmatpush1.msra.mxu0 0.0
  %5377 = vmatprep.subr.mxu0 0.0
  %5378 = vmatpush1.msra.mxu0 0.0
  %5379 = vmatprep.subr.mxu0 0.0
  %5380 = vmatpush1.msra.mxu0 0.0
  %5381 = vmatprep.subr.mxu0 0.0
  %5382 = vmatpush1.msra.mxu0 0.0
  %5383 = vmatprep.subr.mxu0 0.0
  %5384 = vmatpush1.msra.mxu0 0.0
  %5385 = vmatprep.subr.mxu0 0.0
  %5386 = vmatpush1.msra.mxu0 0.0
  %5387 = vmatprep.subr.mxu0 0.0
  %5388 = vmatpush1.msra.mxu0 0.0
  %5389 = vmatprep.subr.mxu0 0.0
  %5390 = vmatpush1.msra.mxu0 0.0
  %5391 = vmatprep.subr.mxu0 0.0
  %5392 = vmatpush1.msra.mxu0 0.0
  %5393 = vmatprep.subr.mxu0 0.0
  %5394 = vmatpush1.msra.mxu0 0.0
  %5395 = vmatprep.subr.mxu0 0.0
  %5396 = vmatpush1.msra.mxu0 0.0
  %5397 = vmatprep.subr.mxu0 0.0
  %5398 = vmatpush1.msra.mxu0 0.0
  %5399 = vmatprep.mubr.f32.mxu0 0.0
  %5400 = vmatmul.mubr.f32.gmra.mrb[0].mxu0 %v5207
  %v5401 = vpop.f32.mrb[0].mxu0
  %v5402 = vadd.f32 0.0, %v5401
  %v5403 = vpop.f32.mrb[0].mxu0
  %5404 = vmatprep.mubr.f32.mxu0 0.0
  %5405 = vmatmul.mubr.f32.gmra.mrb[0].mxu0 %v5208
  %v5406 = vpop.f32.mrb[0].mxu0
  %v5407 = vadd.f32 0.0, %v5406
  %v5408 = vpop.f32.mrb[0].mxu0
  %5409 = vmatprep.mubr.f32.mxu0 0.0
  %5410 = vmatmul.mubr.f32.gmra.mrb[0].mxu0 %v5209
  %v5411 = vpop.f32.mrb[0].mxu0
  %v5412 = vadd.f32 0.0, %v5411
  %v5413 = vpop.f32.mrb[0].mxu0
  %5414 = vmatprep.mubr.f32.mxu0 0.0
  %5415 = vmatmul.mubr.f32.gmra.mrb[0].mxu0 %v5210
  %v5416 = vpop.f32.mrb[0].mxu0
  %v5417 = vadd.f32 0.0, %v5416
  %v5418 = vpop.f32.mrb[0].mxu0
  %5419 = vmatprep.mubr.f32.mxu0 0.0
  %5420 = vmatmul.mubr.f32.gmra.mrb[0].mxu0 %v5211
  %v5421 = vpop.f32.mrb[0].mxu0
  %v5422 = vadd.f32 0.0, %v5421
  %v5423 = vpop.f32.mrb[0].mxu0
  %5424 = vmatprep.mubr.f32.mxu0 0.0
  %5425 = vmatmul.mubr.f32.gmra.mrb[0].mxu0 %v5212
  %v5426 = vpop.f32.mrb[0].mxu0
  %v5427 = vadd.f32 0.0, %v5426
  %v5428 = vpop.f32.mrb[0].mxu0
  %5429 = vmatprep.mubr.f32.mxu0 0.0
  %5430 = vmatmul.mubr.f32.gmra.mrb[0].mxu0 %v5213
  %v5431 = vpop.f32.mrb[0].mxu0
  %v5432 = vadd.f32 0.0, %v5431
  %v5433 = vpop.f32.mrb[0].mxu0
  %5434 = vmatprep.mubr.f32.mxu0 0.0
  %5435 = vmatmul.mubr.f32.gmra.mrb[0].mxu0 %v5214
  %v5436 = vpop.f32.mrb[0].mxu0
  %v5437 = vadd.f32 0.0, %v5436
  %v5438 = vpop.f32.mrb[0].mxu0
  %5439 = vmatprep.mubr.f32.mxu0 0.0
  %5440 = vmatmul.mubr.f32.gmra.mrb[0].mxu0 %v5215
  %v5441 = vpop.f32.mrb[0].mxu0
  %v5442 = vadd.f32 0.0, %v5441
  %v5443 = vpop.f32.mrb[0].mxu0
  %5444 = vmatprep.mubr.f32.mxu0 0.0
  %5445 = vmatmul.mubr.f32.gmra.mrb[0].mxu0 %v5216
  %v5446 = vpop.f32.mrb[0].mxu0
  %v5447 = vadd.f32 0.0, %v5446
  %v5448 = vpop.f32.mrb[0].mxu0
  %5449 = vmatprep.mubr.f32.mxu0 0.0
  %5450 = vmatmul.mubr.f32.gmra.mrb[0].mxu0 %v5217
  %v5451 = vpop.f32.mrb[0].mxu0
  %v5452 = vadd.f32 0.0, %v5451
  %v5453 = vpop.f32.mrb[0].mxu0
  %5454 = vmatprep.mubr.f32.mxu0 0.0
  %5455 = vmatmul.mubr.f32.gmra.mrb[0].mxu0 %v5218
  %v5456 = vpop.f32.mrb[0].mxu0
  %v5457 = vadd.f32 0.0, %v5456
  %v5458 = vpop.f32.mrb[0].mxu0
  %5459 = vmatprep.mubr.f32.mxu0 0.0
  %5460 = vmatmul.mubr.f32.gmra.mrb[0].mxu0 %v5219
  %v5461 = vpop.f32.mrb[0].mxu0
  %v5462 = vadd.f32 0.0, %v5461
  %v5463 = vpop.f32.mrb[0].mxu0
  %5464 = vmatprep.mubr.f32.mxu0 0.0
  %5465 = vmatmul.mubr.f32.gmra.mrb[0].mxu0 %v5220
  %v5466 = vpop.f32.mrb[0].mxu0
  %v5467 = vadd.f32 0.0, %v5466
  %v5468 = vpop.f32.mrb[0].mxu0
  %5469 = vmatprep.mubr.f32.mxu0 0.0
  %5470 = vmatmul.mubr.f32.gmra.mrb[0].mxu0 %v5221
  %v5471 = vpop.f32.mrb[0].mxu0
  %v5472 = vadd.f32 0.0, %v5471
  %v5473 = vpop.f32.mrb[0].mxu0
  %5474 = vmatprep.mubr.f32.mxu0 0.0
  %5475 = vmatmul.mubr.f32.gmra.mrb[0].mxu0 %v5222
  %v5476 = vpop.f32.mrb[0].mxu0
  %v5477 = vadd.f32 0.0, %v5476
  %v5478 = vpop.f32.mrb[0].mxu0
  %5479 = vmatprep.mubr.f32.mxu0 0.0
  %5480 = vmatmul.mubr.f32.gmra.mrb[0].mxu0 %v5223
  %v5481 = vpop.f32.mrb[0].mxu0
  %v5482 = vadd.f32 0.0, %v5481
  %v5483 = vpop.f32.mrb[0].mxu0
  %5484 = vmatprep.mubr.f32.mxu0 0.0
  %5485 = vmatmul.mubr.f32.gmra.mrb[0].mxu0 %v5224
  %v5486 = vpop.f32.mrb[0].mxu0
  %v5487 = vadd.f32 0.0, %v5486
  %v5488 = vpop.f32.mrb[0].mxu0
  %5489 = vmatprep.mubr.f32.mxu0 0.0
  %5490 = vmatmul.mubr.f32.gmra.mrb[0].mxu0 %v5225
  %v5491 = vpop.f32.mrb[0].mxu0
  %v5492 = vadd.f32 0.0, %v5491
  %v5493 = vpop.f32.mrb[0].mxu0
  %5494 = vmatprep.mubr.f32.mxu0 0.0
  %5495 = vmatmul.mubr.f32.gmra.mrb[0].mxu0 %v5226
  %v5496 = vpop.f32.mrb[0].mxu0
  %v5497 = vadd.f32 0.0, %v5496
  %v5498 = vpop.f32.mrb[0].mxu0
  %5499 = vmatprep.mubr.f32.mxu0 0.0
  %5500 = vmatmul.mubr.f32.gmra.mrb[0].mxu0 %v5227
  %v5501 = vpop.f32.mrb[0].mxu0
  %v5502 = vadd.f32 0.0, %v5501
  %v5503 = vpop.f32.mrb[0].mxu0
  %5504 = vmatprep.mubr.f32.mxu0 0.0
  %5505 = vmatmul.mubr.f32.gmra.mrb[0].mxu0 %v5228
  %v5506 = vpop.f32.mrb[0].mxu0
  %v5507 = vadd.f32 0.0, %v5506
  %v5508 = vpop.f32.mrb[0].mxu0
  %5509 = vmatprep.mubr.f32.mxu0 0.0
  %5510 = vmatmul.mubr.f32.gmra.mrb[0].mxu0 %v5229
  %v5511 = vpop.f32.mrb[0].mxu0
  %v5512 = vadd.f32 0.0, %v5511
  %v5513 = vpop.f32.mrb[0].mxu0
  %5514 = vmatprep.mubr.f32.mxu0 0.0
  %5515 = vmatmul.mubr.f32.gmra.mrb[0].mxu0 %v5230
  %v5516 = vpop.f32.mrb[0].mxu0
  %v5517 = vadd.f32 0.0, %v5516
  %v5518 = vpop.f32.mrb[0].mxu0
  %5519 = vmatprep.mubr.f32.mxu0 0.0
  %5520 = vmatmul.mubr.f32.gmra.mrb[0].mxu0 %v5231
  %v5521 = vpop.f32.mrb[0].mxu0
  %v5522 = vadd.f32 0.0, %v5521
  %v5523 = vpop.f32.mrb[0].mxu0
  %5524 = vmatprep.mubr.f32.mxu0 0.0
  %5525 = vmatmul.mubr.f32.gmra.mrb[0].mxu0 %v5232
  %v5526 = vpop.f32.mrb[0].mxu0
  %v5527 = vadd.f32 0.0, %v5526
  %v5528 = vpop.f32.mrb[0].mxu0
  %5529 = vmatprep.mubr.f32.mxu0 0.0
  %5530 = vmatmul.mubr.f32.gmra.mrb[0].mxu0 %v5233
  %v5531 = vpop.f32.mrb[0].mxu0
  %v5532 = vadd.f32 0.0, %v5531
  %v5533 = vpop.f32.mrb[0].mxu0
  %5534 = vmatprep.mubr.f32.mxu0 0.0
  %5535 = vmatmul.mubr.f32.gmra.mrb[0].mxu0 %v5234
  %v5536 = vpop.f32.mrb[0].mxu0
  %v5537 = vadd.f32 0.0, %v5536
  %v5538 = vpop.f32.mrb[0].mxu0
  %5539 = vmatprep.mubr.f32.mxu0 0.0
  %5540 = vmatmul.mubr.f32.gmra.mrb[0].mxu0 %v5235
  %v5541 = vpop.f32.mrb[0].mxu0
  %v5542 = vadd.f32 0.0, %v5541
  %v5543 = vpop.f32.mrb[0].mxu0
  %5544 = vmatprep.mubr.f32.mxu0 0.0
  %5545 = vmatmul.mubr.f32.gmra.mrb[0].mxu0 %v5236
  %v5546 = vpop.f32.mrb[0].mxu0
  %v5547 = vadd.f32 0.0, %v5546
  %v5548 = vpop.f32.mrb[0].mxu0
  %5549 = vmatprep.mubr.f32.mxu0 0.0
  %5550 = vmatmul.mubr.f32.gmra.mrb[0].mxu0 %v5237
  %v5551 = vpop.f32.mrb[0].mxu0
  %v5552 = vadd.f32 0.0, %v5551
  %v5553 = vpop.f32.mrb[0].mxu0
  %5554 = vmatprep.mubr.f32.mxu0 0.0
  %5555 = vmatmul.mubr.f32.gmra.mrb[0].mxu0 %v5238
  %v5556 = vpop.f32.mrb[0].mxu0
  %v5557 = vadd.f32 0.0, %v5556
  %v5558 = vpop.f32.mrb[0].mxu0
  %5559 = vmatprep.mubr.f32.mxu0 0.0
  %5560 = vmatmul.mubr.f32.gmra.mrb[0].mxu0 %v5239
  %v5561 = vpop.f32.mrb[0].mxu0
  %v5562 = vadd.f32 0.0, %v5561
  %v5563 = vpop.f32.mrb[0].mxu0
  %5564 = vmatprep.mubr.f32.mxu0 0.0
  %5565 = vmatmul.mubr.f32.gmra.mrb[0].mxu0 %v5240
  %v5566 = vpop.f32.mrb[0].mxu0
  %v5567 = vadd.f32 0.0, %v5566
  %v5568 = vpop.f32.mrb[0].mxu0
  %5569 = vmatprep.mubr.f32.mxu0 0.0
  %5570 = vmatmul.mubr.f32.gmra.mrb[0].mxu0 %v5241
  %v5571 = vpop.f32.mrb[0].mxu0
  %v5572 = vadd.f32 0.0, %v5571
  %v5573 = vpop.f32.mrb[0].mxu0
  %5574 = vmatprep.mubr.f32.mxu0 0.0
  %5575 = vmatmul.mubr.f32.gmra.mrb[0].mxu0 %v5242
  %v5576 = vpop.f32.mrb[0].mxu0
  %v5577 = vadd.f32 0.0, %v5576
  %v5578 = vpop.f32.mrb[0].mxu0
  %5579 = vmatprep.mubr.f32.mxu0 0.0
  %5580 = vmatmul.mubr.f32.gmra.mrb[0].mxu0 %v5243
  %v5581 = vpop.f32.mrb[0].mxu0
  %v5582 = vadd.f32 0.0, %v5581
  %v5583 = vpop.f32.mrb[0].mxu0
  %5584 = vmatprep.mubr.f32.mxu0 0.0
  %5585 = vmatmul.mubr.f32.gmra.mrb[0].mxu0 %v5244
  %v5586 = vpop.f32.mrb[0].mxu0
  %v5587 = vadd.f32 0.0, %v5586
  %v5588 = vpop.f32.mrb[0].mxu0
  %5589 = vmatprep.mubr.f32.mxu0 0.0
  %5590 = vmatmul.mubr.f32.gmra.mrb[0].mxu0 %v5245
  %v5591 = vpop.f32.mrb[0].mxu0
  %v5592 = vadd.f32 0.0, %v5591
  %v5593 = vpop.f32.mrb[0].mxu0
  %5594 = vmatprep.mubr.f32.mxu0 0.0
  %5595 = vmatmul.mubr.f32.gmra.mrb[0].mxu0 %v5246
  %v5596 = vpop.f32.mrb[0].mxu0
  %v5597 = vadd.f32 0.0, %v5596
  %v5598 = vpop.f32.mrb[0].mxu0
  %5599 = vmatprep.mubr.f32.mxu0 0.0
  %5600 = vmatmul.mubr.f32.gmra.mrb[0].mxu0 %v5247
  %v5601 = vpop.f32.mrb[0].mxu0
  %v5602 = vadd.f32 0.0, %v5601
  %v5603 = vpop.f32.mrb[0].mxu0
  %5604 = vmatprep.mubr.f32.mxu0 0.0
  %5605 = vmatmul.mubr.f32.gmra.mrb[0].mxu0 %v5248
  %v5606 = vpop.f32.mrb[0].mxu0
  %v5607 = vadd.f32 0.0, %v5606
  %v5608 = vpop.f32.mrb[0].mxu0
  %5609 = vmatprep.mubr.f32.mxu0 0.0
  %5610 = vmatmul.mubr.f32.gmra.mrb[0].mxu0 %v5249
  %v5611 = vpop.f32.mrb[0].mxu0
  %v5612 = vadd.f32 0.0, %v5611
  %v5613 = vpop.f32.mrb[0].mxu0
  %5614 = vmatprep.mubr.f32.mxu0 0.0
  %5615 = vmatmul.mubr.f32.gmra.mrb[0].mxu0 %v5250
  %v5616 = vpop.f32.mrb[0].mxu0
  %v5617 = vadd.f32 0.0, %v5616
  %v5618 = vpop.f32.mrb[0].mxu0
  %5619 = vmatprep.mubr.f32.mxu0 0.0
  %5620 = vmatmul.mubr.f32.gmra.mrb[0].mxu0 %v5251
  %v5621 = vpop.f32.mrb[0].mxu0
  %v5622 = vadd.f32 0.0, %v5621
  %v5623 = vpop.f32.mrb[0].mxu0
  %5624 = vmatprep.mubr.f32.mxu0 0.0
  %5625 = vmatmul.mubr.f32.gmra.mrb[0].mxu0 %v5252
  %v5626 = vpop.f32.mrb[0].mxu0
  %v5627 = vadd.f32 0.0, %v5626
  %v5628 = vpop.f32.mrb[0].mxu0
  %5629 = vmatprep.mubr.f32.mxu0 0.0
  %5630 = vmatmul.mubr.f32.gmra.mrb[0].mxu0 %v5253
  %v5631 = vpop.f32.mrb[0].mxu0
  %v5632 = vadd.f32 0.0, %v5631
  %v5633 = vpop.f32.mrb[0].mxu0
  %5634 = vmatprep.mubr.f32.mxu0 0.0
  %5635 = vmatmul.mubr.f32.gmra.mrb[0].mxu0 %v5254
  %v5636 = vpop.f32.mrb[0].mxu0
  %v5637 = vadd.f32 0.0, %v5636
  %v5638 = vpop.f32.mrb[0].mxu0
  %5639 = vmatprep.mubr.f32.mxu0 0.0
  %5640 = vmatmul.mubr.f32.gmra.mrb[0].mxu0 %v5255
  %v5641 = vpop.f32.mrb[0].mxu0
  %v5642 = vadd.f32 0.0, %v5641
  %v5643 = vpop.f32.mrb[0].mxu0
  %5644 = vmatprep.mubr.f32.mxu0 0.0
  %5645 = vmatmul.mubr.f32.gmra.mrb[0].mxu0 %v5256
  %v5646 = vpop.f32.mrb[0].mxu0
  %v5647 = vadd.f32 0.0, %v5646
  %v5648 = vpop.f32.mrb[0].mxu0
  %5649 = vmatprep.mubr.f32.mxu0 0.0
  %5650 = vmatmul.mubr.f32.gmra.mrb[0].mxu0 %v5257
  %v5651 = vpop.f32.mrb[0].mxu0
  %v5652 = vadd.f32 0.0, %v5651
  %v5653 = vpop.f32.mrb[0].mxu0
  %5654 = vmatprep.mubr.f32.mxu0 0.0
  %5655 = vmatmul.mubr.f32.gmra.mrb[0].mxu0 %v5258
  %v5656 = vpop.f32.mrb[0].mxu0
  %v5657 = vadd.f32 0.0, %v5656
  %v5658 = vpop.f32.mrb[0].mxu0
  %5659 = vmatprep.mubr.f32.mxu0 0.0
  %5660 = vmatmul.mubr.f32.gmra.mrb[0].mxu0 %v5259
  %v5661 = vpop.f32.mrb[0].mxu0
  %v5662 = vadd.f32 0.0, %v5661
  %v5663 = vpop.f32.mrb[0].mxu0
  %5664 = vmatprep.mubr.f32.mxu0 0.0
  %5665 = vmatmul.mubr.f32.gmra.mrb[0].mxu0 %v5260
  %v5666 = vpop.f32.mrb[0].mxu0
  %v5667 = vadd.f32 0.0, %v5666
  %v5668 = vpop.f32.mrb[0].mxu0
  %5669 = vmatprep.mubr.f32.mxu0 0.0
  %5670 = vmatmul.mubr.f32.gmra.mrb[0].mxu0 %v5261
  %v5671 = vpop.f32.mrb[0].mxu0
  %v5672 = vadd.f32 0.0, %v5671
  %v5673 = vpop.f32.mrb[0].mxu0
  %5674 = vmatprep.mubr.f32.mxu0 0.0
  %5675 = vmatmul.mubr.f32.gmra.mrb[0].mxu0 %v5262
  %v5676 = vpop.f32.mrb[0].mxu0
  %v5677 = vadd.f32 0.0, %v5676
  %v5678 = vpop.f32.mrb[0].mxu0
  %5679 = vmatprep.mubr.f32.mxu0 0.0
  %5680 = vmatmul.mubr.f32.gmra.mrb[0].mxu0 %v5263
  %v5681 = vpop.f32.mrb[0].mxu0
  %v5682 = vadd.f32 0.0, %v5681
  %v5683 = vpop.f32.mrb[0].mxu0
  %5684 = vmatprep.mubr.f32.mxu0 0.0
  %5685 = vmatmul.mubr.f32.gmra.mrb[0].mxu0 %v5264
  %v5686 = vpop.f32.mrb[0].mxu0
  %v5687 = vadd.f32 0.0, %v5686
  %v5688 = vpop.f32.mrb[0].mxu0
  %5689 = vmatprep.mubr.f32.mxu0 0.0
  %5690 = vmatmul.mubr.f32.gmra.mrb[0].mxu0 %v5265
  %v5691 = vpop.f32.mrb[0].mxu0
  %v5692 = vadd.f32 0.0, %v5691
  %v5693 = vpop.f32.mrb[0].mxu0
  %5694 = vmatprep.mubr.f32.mxu0 0.0
  %5695 = vmatmul.mubr.f32.gmra.mrb[0].mxu0 %v5266
  %v5696 = vpop.f32.mrb[0].mxu0
  %v5697 = vadd.f32 0.0, %v5696
  %v5698 = vpop.f32.mrb[0].mxu0
  %5699 = vmatprep.mubr.f32.mxu0 0.0
  %5700 = vmatmul.mubr.f32.gmra.mrb[0].mxu0 %v5267
  %v5701 = vpop.f32.mrb[0].mxu0
  %v5702 = vadd.f32 0.0, %v5701
  %v5703 = vpop.f32.mrb[0].mxu0
  %5704 = vmatprep.mubr.f32.mxu0 0.0
  %5705 = vmatmul.mubr.f32.gmra.mrb[0].mxu0 %v5268
  %v5706 = vpop.f32.mrb[0].mxu0
  %v5707 = vadd.f32 0.0, %v5706
  %v5708 = vpop.f32.mrb[0].mxu0
  %5709 = vmatprep.mubr.f32.mxu0 0.0
  %5710 = vmatmul.mubr.f32.gmra.mrb[0].mxu0 %v5269
  %v5711 = vpop.f32.mrb[0].mxu0
  %v5712 = vadd.f32 0.0, %v5711
  %v5713 = vpop.f32.mrb[0].mxu0
  %5714 = vmatprep.mubr.f32.mxu0 0.0
  %5715 = vmatmul.mubr.f32.gmra.mrb[0].mxu0 %v5270
  %v5716 = vpop.f32.mrb[0].mxu0
  %v5717 = vadd.f32 0.0, %v5716
  %v5718 = vpop.f32.mrb[0].mxu0
  %5719 = vmatprep.mubr.f32.mxu0 0.0
  %5720 = vmatmul.mubr.f32.gmra.mrb[0].mxu0 %v5271
  %v5721 = vpop.f32.mrb[0].mxu0
  %v5722 = vadd.f32 0.0, %v5721
  %v5723 = vpop.f32.mrb[0].mxu0
  %5724 = vmatprep.mubr.f32.mxu0 0.0
  %5725 = vmatmul.mubr.f32.gmra.mrb[0].mxu0 %v5272
  %v5726 = vpop.f32.mrb[0].mxu0
  %v5727 = vadd.f32 0.0, %v5726
  %v5728 = vpop.f32.mrb[0].mxu0
  %5729 = vmatprep.mubr.f32.mxu0 0.0
  %5730 = vmatmul.mubr.f32.gmra.mrb[0].mxu0 %v5273
  %v5731 = vpop.f32.mrb[0].mxu0
  %v5732 = vadd.f32 0.0, %v5731
  %v5733 = vpop.f32.mrb[0].mxu0
  %5734 = vmatprep.mubr.f32.mxu0 0.0
  %5735 = vmatmul.mubr.f32.gmra.mrb[0].mxu0 %v5274
  %v5736 = vpop.f32.mrb[0].mxu0
  %v5737 = vadd.f32 0.0, %v5736
  %v5738 = vpop.f32.mrb[0].mxu0
  %5739 = vmatprep.mubr.f32.mxu0 0.0
  %5740 = vmatmul.mubr.f32.gmra.mrb[0].mxu0 %v5275
  %v5741 = vpop.f32.mrb[0].mxu0
  %v5742 = vadd.f32 0.0, %v5741
  %v5743 = vpop.f32.mrb[0].mxu0
  %5744 = vmatprep.mubr.f32.mxu0 0.0
  %5745 = vmatmul.mubr.f32.gmra.mrb[0].mxu0 %v5276
  %v5746 = vpop.f32.mrb[0].mxu0
  %v5747 = vadd.f32 0.0, %v5746
  %v5748 = vpop.f32.mrb[0].mxu0
  %5749 = vmatprep.mubr.f32.mxu0 0.0
  %5750 = vmatmul.mubr.f32.gmra.mrb[0].mxu0 %v5277
  %v5751 = vpop.f32.mrb[0].mxu0
  %v5752 = vadd.f32 0.0, %v5751
  %v5753 = vpop.f32.mrb[0].mxu0
  %5754 = vmatprep.mubr.f32.mxu0 0.0
  %5755 = vmatmul.mubr.f32.gmra.mrb[0].mxu0 %v5278
  %v5756 = vpop.f32.mrb[0].mxu0
  %v5757 = vadd.f32 0.0, %v5756
  %v5758 = vpop.f32.mrb[0].mxu0
  %5759 = vmatprep.mubr.f32.mxu0 0.0
  %5760 = vmatmul.mubr.f32.gmra.mrb[0].mxu0 %v5279
  %v5761 = vpop.f32.mrb[0].mxu0
  %v5762 = vadd.f32 0.0, %v5761
  %v5763 = vpop.f32.mrb[0].mxu0
  %5764 = vmatprep.mubr.f32.mxu0 0.0
  %5765 = vmatmul.mubr.f32.gmra.mrb[0].mxu0 %v5280
  %v5766 = vpop.f32.mrb[0].mxu0
  %v5767 = vadd.f32 0.0, %v5766
  %v5768 = vpop.f32.mrb[0].mxu0
  %5769 = vmatprep.mubr.f32.mxu0 0.0
  %5770 = vmatmul.mubr.f32.gmra.mrb[0].mxu0 %v5281
  %v5771 = vpop.f32.mrb[0].mxu0
  %v5772 = vadd.f32 0.0, %v5771
  %v5773 = vpop.f32.mrb[0].mxu0
  %5774 = vmatprep.mubr.f32.mxu0 0.0
  %5775 = vmatmul.mubr.f32.gmra.mrb[0].mxu0 %v5282
  %v5776 = vpop.f32.mrb[0].mxu0
  %v5777 = vadd.f32 0.0, %v5776
  %v5778 = vpop.f32.mrb[0].mxu0
  %5779 = vmatprep.mubr.f32.mxu0 0.0
  %5780 = vmatmul.mubr.f32.gmra.mrb[0].mxu0 %v5283
  %v5781 = vpop.f32.mrb[0].mxu0
  %v5782 = vadd.f32 0.0, %v5781
  %v5783 = vpop.f32.mrb[0].mxu0
  %5784 = vmatprep.mubr.f32.mxu0 0.0
  %5785 = vmatmul.mubr.f32.gmra.mrb[0].mxu0 %v5284
  %v5786 = vpop.f32.mrb[0].mxu0
  %v5787 = vadd.f32 0.0, %v5786
  %v5788 = vpop.f32.mrb[0].mxu0
  %5789 = vmatprep.mubr.f32.mxu0 0.0
  %5790 = vmatmul.mubr.f32.gmra.mrb[0].mxu0 %v5285
  %v5791 = vpop.f32.mrb[0].mxu0
  %v5792 = vadd.f32 0.0, %v5791
  %v5793 = vpop.f32.mrb[0].mxu0
  %5794 = vmatprep.mubr.f32.mxu0 0.0
  %5795 = vmatmul.mubr.f32.gmra.mrb[0].mxu0 %v5286
  %v5796 = vpop.f32.mrb[0].mxu0
  %v5797 = vadd.f32 0.0, %v5796
  %v5798 = vpop.f32.mrb[0].mxu0
  %5799 = vmatprep.mubr.f32.mxu0 0.0
  %5800 = vmatmul.mubr.f32.gmra.mrb[0].mxu0 %v5287
  %v5801 = vpop.f32.mrb[0].mxu0
  %v5802 = vadd.f32 0.0, %v5801
  %v5803 = vpop.f32.mrb[0].mxu0
  %5804 = vmatprep.mubr.f32.mxu0 0.0
  %5805 = vmatmul.mubr.f32.gmra.mrb[0].mxu0 %v5288
  %v5806 = vpop.f32.mrb[0].mxu0
  %v5807 = vadd.f32 0.0, %v5806
  %v5808 = vpop.f32.mrb[0].mxu0
  %5809 = vmatprep.mubr.f32.mxu0 0.0
  %5810 = vmatmul.mubr.f32.gmra.mrb[0].mxu0 %v5289
  %v5811 = vpop.f32.mrb[0].mxu0
  %v5812 = vadd.f32 0.0, %v5811
  %v5813 = vpop.f32.mrb[0].mxu0
  %5814 = vmatprep.mubr.f32.mxu0 0.0
  %5815 = vmatmul.mubr.f32.gmra.mrb[0].mxu0 %v5290
  %v5816 = vpop.f32.mrb[0].mxu0
  %v5817 = vadd.f32 0.0, %v5816
  %v5818 = vpop.f32.mrb[0].mxu0
  %5819 = vmatprep.mubr.f32.mxu0 0.0
  %5820 = vmatmul.mubr.f32.gmra.mrb[0].mxu0 %v5291
  %v5821 = vpop.f32.mrb[0].mxu0
  %v5822 = vadd.f32 0.0, %v5821
  %v5823 = vpop.f32.mrb[0].mxu0
  %5824 = vmatprep.mubr.f32.mxu0 0.0
  %5825 = vmatmul.mubr.f32.gmra.mrb[0].mxu0 %v5292
  %v5826 = vpop.f32.mrb[0].mxu0
  %v5827 = vadd.f32 0.0, %v5826
  %v5828 = vpop.f32.mrb[0].mxu0
  %5829 = vmatprep.mubr.f32.mxu0 0.0
  %5830 = vmatmul.mubr.f32.gmra.mrb[0].mxu0 %v5293
  %v5831 = vpop.f32.mrb[0].mxu0
  %v5832 = vadd.f32 0.0, %v5831
  %v5833 = vpop.f32.mrb[0].mxu0
  %5834 = vmatprep.mubr.f32.mxu0 0.0
  %5835 = vmatmul.mubr.f32.gmra.mrb[0].mxu0 %v5294
  %v5836 = vpop.f32.mrb[0].mxu0
  %v5837 = vadd.f32 0.0, %v5836
  %v5838 = vpop.f32.mrb[0].mxu0
  %5839 = vmatprep.mubr.f32.mxu0 0.0
  %5840 = vmatmul.mubr.f32.gmra.mrb[0].mxu0 %v5295
  %v5841 = vpop.f32.mrb[0].mxu0
  %v5842 = vadd.f32 0.0, %v5841
  %v5843 = vpop.f32.mrb[0].mxu0
  %5844 = vmatprep.mubr.f32.mxu0 0.0
  %5845 = vmatmul.mubr.f32.gmra.mrb[0].mxu0 %v5296
  %v5846 = vpop.f32.mrb[0].mxu0
  %v5847 = vadd.f32 0.0, %v5846
  %v5848 = vpop.f32.mrb[0].mxu0
  %5849 = vmatprep.mubr.f32.mxu0 0.0
  %5850 = vmatmul.mubr.f32.gmra.mrb[0].mxu0 %v5297
  %v5851 = vpop.f32.mrb[0].mxu0
  %v5852 = vadd.f32 0.0, %v5851
  %v5853 = vpop.f32.mrb[0].mxu0
  %5854 = vmatprep.mubr.f32.mxu0 0.0
  %5855 = vmatmul.mubr.f32.gmra.mrb[0].mxu0 %v5298
  %v5856 = vpop.f32.mrb[0].mxu0
  %v5857 = vadd.f32 0.0, %v5856
  %v5858 = vpop.f32.mrb[0].mxu0
  %5859 = vmatprep.mubr.f32.mxu0 0.0
  %5860 = vmatmul.mubr.f32.gmra.mrb[0].mxu0 %v5299
  %v5861 = vpop.f32.mrb[0].mxu0
  %v5862 = vadd.f32 0.0, %v5861
  %v5863 = vpop.f32.mrb[0].mxu0
  %5864 = vmatprep.mubr.f32.mxu0 0.0
  %5865 = vmatmul.mubr.f32.gmra.mrb[0].mxu0 %v5300
  %v5866 = vpop.f32.mrb[0].mxu0
  %v5867 = vadd.f32 0.0, %v5866
  %v5868 = vpop.f32.mrb[0].mxu0
  %5869 = vmatprep.mubr.f32.mxu0 0.0
  %5870 = vmatmul.mubr.f32.gmra.mrb[0].mxu0 %v5301
  %v5871 = vpop.f32.mrb[0].mxu0
  %v5872 = vadd.f32 0.0, %v5871
  %v5873 = vpop.f32.mrb[0].mxu0
  %5874 = vmatprep.mubr.f32.mxu0 0.0
  %5875 = vmatmul.mubr.f32.gmra.mrb[0].mxu0 %v5302
  %v5876 = vpop.f32.mrb[0].mxu0
  %v5877 = vadd.f32 0.0, %v5876
  %v5878 = vpop.f32.mrb[0].mxu0
  %5879 = vmatprep.mubr.f32.mxu0 0.0
  %5880 = vmatmul.mubr.f32.gmra.mrb[0].mxu0 %v5303
  %v5881 = vpop.f32.mrb[0].mxu0
  %v5882 = vadd.f32 0.0, %v5881
  %v5883 = vpop.f32.mrb[0].mxu0
  %5884 = vmatprep.mubr.f32.mxu0 0.0
  %5885 = vmatmul.mubr.f32.gmra.mrb[0].mxu0 %v5304
  %v5886 = vpop.f32.mrb[0].mxu0
  %v5887 = vadd.f32 0.0, %v5886
  %v5888 = vpop.f32.mrb[0].mxu0
  %5889 = vmatprep.mubr.f32.mxu0 0.0
  %5890 = vmatmul.mubr.f32.gmra.mrb[0].mxu0 %v5305
  %v5891 = vpop.f32.mrb[0].mxu0
  %v5892 = vadd.f32 0.0, %v5891
  %v5893 = vpop.f32.mrb[0].mxu0
  %5894 = vmatprep.mubr.f32.mxu0 0.0
  %5895 = vmatmul.mubr.f32.gmra.mrb[0].mxu0 %v5306
  %v5896 = vpop.f32.mrb[0].mxu0
  %v5897 = vadd.f32 0.0, %v5896
  %v5898 = vpop.f32.mrb[0].mxu0
  %5899 = vmatprep.mubr.f32.mxu0 0.0
  %5900 = vmatmul.mubr.f32.gmra.mrb[0].mxu0 %v5307
  %v5901 = vpop.f32.mrb[0].mxu0
  %v5902 = vadd.f32 0.0, %v5901
  %v5903 = vpop.f32.mrb[0].mxu0
  %5904 = vmatprep.mubr.f32.mxu0 0.0
  %5905 = vmatmul.mubr.f32.gmra.mrb[0].mxu0 %v5308
  %v5906 = vpop.f32.mrb[0].mxu0
  %v5907 = vadd.f32 0.0, %v5906
  %v5908 = vpop.f32.mrb[0].mxu0
  %5909 = vmatprep.mubr.f32.mxu0 0.0
  %5910 = vmatmul.mubr.f32.gmra.mrb[0].mxu0 %v5309
  %v5911 = vpop.f32.mrb[0].mxu0
  %v5912 = vadd.f32 0.0, %v5911
  %v5913 = vpop.f32.mrb[0].mxu0
  %5914 = vmatprep.mubr.f32.mxu0 0.0
  %5915 = vmatmul.mubr.f32.gmra.mrb[0].mxu0 %v5310
  %v5916 = vpop.f32.mrb[0].mxu0
  %v5917 = vadd.f32 0.0, %v5916
  %v5918 = vpop.f32.mrb[0].mxu0
  %5919 = vmatprep.mubr.f32.mxu0 0.0
  %5920 = vmatmul.mubr.f32.gmra.mrb[0].mxu0 %v5311
  %v5921 = vpop.f32.mrb[0].mxu0
  %v5922 = vadd.f32 0.0, %v5921
  %v5923 = vpop.f32.mrb[0].mxu0
  %5924 = vmatprep.mubr.f32.mxu0 0.0
  %5925 = vmatmul.mubr.f32.gmra.mrb[0].mxu0 %v5312
  %v5926 = vpop.f32.mrb[0].mxu0
  %v5927 = vadd.f32 0.0, %v5926
  %v5928 = vpop.f32.mrb[0].mxu0
  %5929 = vmatprep.mubr.f32.mxu0 0.0
  %5930 = vmatmul.mubr.f32.gmra.mrb[0].mxu0 %v5313
  %v5931 = vpop.f32.mrb[0].mxu0
  %v5932 = vadd.f32 0.0, %v5931
  %v5933 = vpop.f32.mrb[0].mxu0
  %5934 = vmatprep.mubr.f32.mxu0 0.0
  %5935 = vmatmul.mubr.f32.gmra.mrb[0].mxu0 %v5314
  %v5936 = vpop.f32.mrb[0].mxu0
  %v5937 = vadd.f32 0.0, %v5936
  %v5938 = vpop.f32.mrb[0].mxu0
  %5939 = vmatprep.mubr.f32.mxu0 0.0
  %5940 = vmatmul.mubr.f32.gmra.mrb[0].mxu0 %v5315
  %v5941 = vpop.f32.mrb[0].mxu0
  %v5942 = vadd.f32 0.0, %v5941
  %v5943 = vpop.f32.mrb[0].mxu0
  %5944 = vmatprep.mubr.f32.mxu0 0.0
  %5945 = vmatmul.mubr.f32.gmra.mrb[0].mxu0 %v5316
  %v5946 = vpop.f32.mrb[0].mxu0
  %v5947 = vadd.f32 0.0, %v5946
  %v5948 = vpop.f32.mrb[0].mxu0
  %5949 = vmatprep.mubr.f32.mxu0 0.0
  %5950 = vmatmul.mubr.f32.gmra.mrb[0].mxu0 %v5317
  %v5951 = vpop.f32.mrb[0].mxu0
  %v5952 = vadd.f32 0.0, %v5951
  %v5953 = vpop.f32.mrb[0].mxu0
  %5954 = vmatprep.mubr.f32.mxu0 0.0
  %5955 = vmatmul.mubr.f32.gmra.mrb[0].mxu0 %v5318
  %v5956 = vpop.f32.mrb[0].mxu0
  %v5957 = vadd.f32 0.0, %v5956
  %v5958 = vpop.f32.mrb[0].mxu0
  %5959 = vmatprep.mubr.f32.mxu0 0.0
  %5960 = vmatmul.mubr.f32.gmra.mrb[0].mxu0 %v5319
  %v5961 = vpop.f32.mrb[0].mxu0
  %v5962 = vadd.f32 0.0, %v5961
  %v5963 = vpop.f32.mrb[0].mxu0
  %5964 = vmatprep.mubr.f32.mxu0 0.0
  %5965 = vmatmul.mubr.f32.gmra.mrb[0].mxu0 %v5320
  %v5966 = vpop.f32.mrb[0].mxu0
  %v5967 = vadd.f32 0.0, %v5966
  %v5968 = vpop.f32.mrb[0].mxu0
  %5969 = vmatprep.mubr.f32.mxu0 0.0
  %5970 = vmatmul.mubr.f32.gmra.mrb[0].mxu0 %v5321
  %v5971 = vpop.f32.mrb[0].mxu0
  %v5972 = vadd.f32 0.0, %v5971
  %v5973 = vpop.f32.mrb[0].mxu0
  %5974 = vmatprep.mubr.f32.mxu0 0.0
  %5975 = vmatmul.mubr.f32.gmra.mrb[0].mxu0 %v5322
  %v5976 = vpop.f32.mrb[0].mxu0
  %v5977 = vadd.f32 0.0, %v5976
  %v5978 = vpop.f32.mrb[0].mxu0
  %5979 = vmatprep.mubr.f32.mxu0 0.0
  %5980 = vmatmul.mubr.f32.gmra.mrb[0].mxu0 %v5323
  %v5981 = vpop.f32.mrb[0].mxu0
  %v5982 = vadd.f32 0.0, %v5981
  %v5983 = vpop.f32.mrb[0].mxu0
  %5984 = vmatprep.mubr.f32.mxu0 0.0
  %5985 = vmatmul.mubr.f32.gmra.mrb[0].mxu0 %v5324
  %v5986 = vpop.f32.mrb[0].mxu0
  %v5987 = vadd.f32 0.0, %v5986
  %v5988 = vpop.f32.mrb[0].mxu0
  %5989 = vmatprep.mubr.f32.mxu0 0.0
  %5990 = vmatmul.mubr.f32.gmra.mrb[0].mxu0 %v5325
  %v5991 = vpop.f32.mrb[0].mxu0
  %v5992 = vadd.f32 0.0, %v5991
  %v5993 = vpop.f32.mrb[0].mxu0
  %5994 = vmatprep.mubr.f32.mxu0 0.0
  %5995 = vmatmul.mubr.f32.gmra.mrb[0].mxu0 %v5326
  %v5996 = vpop.f32.mrb[0].mxu0
  %v5997 = vadd.f32 0.0, %v5996
  %v5998 = vpop.f32.mrb[0].mxu0
  %5999 = vmatprep.mubr.f32.mxu0 0.0
  %6000 = vmatmul.mubr.f32.gmra.mrb[0].mxu0 %v5327
  %v6001 = vpop.f32.mrb[0].mxu0
  %v6002 = vadd.f32 0.0, %v6001
  %v6003 = vpop.f32.mrb[0].mxu0
  %6004 = vmatprep.mubr.f32.mxu0 0.0
  %6005 = vmatmul.mubr.f32.gmra.mrb[0].mxu0 %v5328
  %v6006 = vpop.f32.mrb[0].mxu0
  %v6007 = vadd.f32 0.0, %v6006
  %v6008 = vpop.f32.mrb[0].mxu0
  %6009 = vmatprep.mubr.f32.mxu0 0.0
  %6010 = vmatmul.mubr.f32.gmra.mrb[0].mxu0 %v5329
  %v6011 = vpop.f32.mrb[0].mxu0
  %v6012 = vadd.f32 0.0, %v6011
  %v6013 = vpop.f32.mrb[0].mxu0
  %6014 = vmatprep.mubr.f32.mxu0 0.0
  %6015 = vmatmul.mubr.f32.gmra.mrb[0].mxu0 %v5330
  %v6016 = vpop.f32.mrb[0].mxu0
  %v6017 = vadd.f32 0.0, %v6016
  %v6018 = vpop.f32.mrb[0].mxu0
  %6019 = vmatprep.mubr.f32.mxu0 0.0
  %6020 = vmatmul.mubr.f32.gmra.mrb[0].mxu0 %v5331
  %v6021 = vpop.f32.mrb[0].mxu0
  %v6022 = vadd.f32 0.0, %v6021
  %v6023 = vpop.f32.mrb[0].mxu0
  %6024 = vmatprep.mubr.f32.mxu0 0.0
  %6025 = vmatmul.mubr.f32.gmra.mrb[0].mxu0 %v5332
  %v6026 = vpop.f32.mrb[0].mxu0
  %v6027 = vadd.f32 0.0, %v6026
  %v6028 = vpop.f32.mrb[0].mxu0
  %6029 = vmatprep.mubr.f32.mxu0 0.0
  %6030 = vmatmul.mubr.f32.gmra.mrb[0].mxu0 %v5333
  %v6031 = vpop.f32.mrb[0].mxu0
  %v6032 = vadd.f32 0.0, %v6031
  %v6033 = vpop.f32.mrb[0].mxu0
  %6034 = vmatprep.mubr.f32.mxu0 0.0
  %6035 = vmatmul.mubr.f32.gmra.mrb[0].mxu0 %v5334
  %v6036 = vpop.f32.mrb[0].mxu0
  %v6037 = vadd.f32 0.0, %v6036
  %v6038 = vpop.f32.mrb[0].mxu0
  %6039 = vdwg.mxu0
  %v6040 = vmul.f32 %v5402, %v5059
  %v6041 = vmul.f32 %v5407, %v5060
  %v6042 = vmul.f32 %v5412, %v5061
  %v6043 = vmul.f32 %v5417, %v5062
  %v6044 = vmul.f32 %v5422, %v5063
  %v6045 = vmul.f32 %v5427, %v5064
  %v6046 = vmul.f32 %v5432, %v5065
  %v6047 = vmul.f32 %v5437, %v5066
  %v6048 = vmul.f32 %v5442, %v5067
  %v6049 = vmul.f32 %v5447, %v5068
  %v6050 = vmul.f32 %v5452, %v5069
  %v6051 = vmul.f32 %v5457, %v5070
  %v6052 = vmul.f32 %v5462, %v5071
  %v6053 = vmul.f32 %v5467, %v5072
  %v6054 = vmul.f32 %v5472, %v5073
  %v6055 = vmul.f32 %v5477, %v5074
  %v6056 = vmul.f32 %v5482, %v5059
  %v6057 = vmul.f32 %v5487, %v5060
  %v6058 = vmul.f32 %v5492, %v5061
  %v6059 = vmul.f32 %v5497, %v5062
  %v6060 = vmul.f32 %v5502, %v5063
  %v6061 = vmul.f32 %v5507, %v5064
  %v6062 = vmul.f32 %v5512, %v5065
  %v6063 = vmul.f32 %v5517, %v5066
  %v6064 = vmul.f32 %v5522, %v5067
  %v6065 = vmul.f32 %v5527, %v5068
  %v6066 = vmul.f32 %v5532, %v5069
  %v6067 = vmul.f32 %v5537, %v5070
  %v6068 = vmul.f32 %v5542, %v5071
  %v6069 = vmul.f32 %v5547, %v5072
  %v6070 = vmul.f32 %v5552, %v5073
  %v6071 = vmul.f32 %v5557, %v5074
  %v6072 = vmul.f32 %v5562, %v5059
  %v6073 = vmul.f32 %v5567, %v5060
  %v6074 = vmul.f32 %v5572, %v5061
  %v6075 = vmul.f32 %v5577, %v5062
  %v6076 = vmul.f32 %v5582, %v5063
  %v6077 = vmul.f32 %v5587, %v5064
  %v6078 = vmul.f32 %v5592, %v5065
  %v6079 = vmul.f32 %v5597, %v5066
  %v6080 = vmul.f32 %v5602, %v5067
  %v6081 = vmul.f32 %v5607, %v5068
  %v6082 = vmul.f32 %v5612, %v5069
  %v6083 = vmul.f32 %v5617, %v5070
  %v6084 = vmul.f32 %v5622, %v5071
  %v6085 = vmul.f32 %v5627, %v5072
  %v6086 = vmul.f32 %v5632, %v5073
  %v6087 = vmul.f32 %v5637, %v5074
  %v6088 = vmul.f32 %v5642, %v5059
  %v6089 = vmul.f32 %v5647, %v5060
  %v6090 = vmul.f32 %v5652, %v5061
  %v6091 = vmul.f32 %v5657, %v5062
  %v6092 = vmul.f32 %v5662, %v5063
  %v6093 = vmul.f32 %v5667, %v5064
  %v6094 = vmul.f32 %v5672, %v5065
  %v6095 = vmul.f32 %v5677, %v5066
  %v6096 = vmul.f32 %v5682, %v5067
  %v6097 = vmul.f32 %v5687, %v5068
  %v6098 = vmul.f32 %v5692, %v5069
  %v6099 = vmul.f32 %v5697, %v5070
  %v6100 = vmul.f32 %v5702, %v5071
  %v6101 = vmul.f32 %v5707, %v5072
  %v6102 = vmul.f32 %v5712, %v5073
  %v6103 = vmul.f32 %v5717, %v5074
  %v6104 = vmul.f32 %v5722, %v5059
  %v6105 = vmul.f32 %v5727, %v5060
  %v6106 = vmul.f32 %v5732, %v5061
  %v6107 = vmul.f32 %v5737, %v5062
  %v6108 = vmul.f32 %v5742, %v5063
  %v6109 = vmul.f32 %v5747, %v5064
  %v6110 = vmul.f32 %v5752, %v5065
  %v6111 = vmul.f32 %v5757, %v5066
  %v6112 = vmul.f32 %v5762, %v5067
  %v6113 = vmul.f32 %v5767, %v5068
  %v6114 = vmul.f32 %v5772, %v5069
  %v6115 = vmul.f32 %v5777, %v5070
  %v6116 = vmul.f32 %v5782, %v5071
  %v6117 = vmul.f32 %v5787, %v5072
  %v6118 = vmul.f32 %v5792, %v5073
  %v6119 = vmul.f32 %v5797, %v5074
  %v6120 = vmul.f32 %v5802, %v5059
  %v6121 = vmul.f32 %v5807, %v5060
  %v6122 = vmul.f32 %v5812, %v5061
  %v6123 = vmul.f32 %v5817, %v5062
  %v6124 = vmul.f32 %v5822, %v5063
  %v6125 = vmul.f32 %v5827, %v5064
  %v6126 = vmul.f32 %v5832, %v5065
  %v6127 = vmul.f32 %v5837, %v5066
  %v6128 = vmul.f32 %v5842, %v5067
  %v6129 = vmul.f32 %v5847, %v5068
  %v6130 = vmul.f32 %v5852, %v5069
  %v6131 = vmul.f32 %v5857, %v5070
  %v6132 = vmul.f32 %v5862, %v5071
  %v6133 = vmul.f32 %v5867, %v5072
  %v6134 = vmul.f32 %v5872, %v5073
  %v6135 = vmul.f32 %v5877, %v5074
  %v6136 = vmul.f32 %v5882, %v5059
  %v6137 = vmul.f32 %v5887, %v5060
  %v6138 = vmul.f32 %v5892, %v5061
  %v6139 = vmul.f32 %v5897, %v5062
  %v6140 = vmul.f32 %v5902, %v5063
  %v6141 = vmul.f32 %v5907, %v5064
  %v6142 = vmul.f32 %v5912, %v5065
  %v6143 = vmul.f32 %v5917, %v5066
  %v6144 = vmul.f32 %v5922, %v5067
  %v6145 = vmul.f32 %v5927, %v5068
  %v6146 = vmul.f32 %v5932, %v5069
  %v6147 = vmul.f32 %v5937, %v5070
  %v6148 = vmul.f32 %v5942, %v5071
  %v6149 = vmul.f32 %v5947, %v5072
  %v6150 = vmul.f32 %v5952, %v5073
  %v6151 = vmul.f32 %v5957, %v5074
  %v6152 = vmul.f32 %v5962, %v5059
  %v6153 = vmul.f32 %v5967, %v5060
  %v6154 = vmul.f32 %v5972, %v5061
  %v6155 = vmul.f32 %v5977, %v5062
  %v6156 = vmul.f32 %v5982, %v5063
  %v6157 = vmul.f32 %v5987, %v5064
  %v6158 = vmul.f32 %v5992, %v5065
  %v6159 = vmul.f32 %v5997, %v5066
  %v6160 = vmul.f32 %v6002, %v5067
  %v6161 = vmul.f32 %v6007, %v5068
  %v6162 = vmul.f32 %v6012, %v5069
  %v6163 = vmul.f32 %v6017, %v5070
  %v6164 = vmul.f32 %v6022, %v5071
  %v6165 = vmul.f32 %v6027, %v5072
  %v6166 = vmul.f32 %v6032, %v5073
  %v6167 = vmul.f32 %v6037, %v5074
  %v6169 = vcombine.high %v5192, %v5192
  %v6171 = vunpack.c.l.s4 1966171168
  %v6172 = vunpack.c.0.s8 %v6171
  %v6173 = vlaneseq
  %v6174 = vshrl.u32 %v6173, 7
  %v6175 = vsub.s32 %v6172, %v6174
  %v6176 = vrot.slane %v5192, %v6175
  %v6178 = vunpack.c.l.s4 1966171168
  %v6179 = vunpack.c.0.s8 %v6178
  %v6180 = vlaneseq
  %v6181 = vshrl.u32 %v6180, 7
  %v6182 = vsub.s32 %v6179, %v6181
  %v6183 = vrot.slane %v6169, %v6182
  %v6184 = vcombine.high %v6176, %v6176
  %v6185 = vcombine.high %v6183, %v6183
  %v6187 = vunpack.c.l.s4 1966171168
  %v6188 = vunpack.c.0.s8 %v6187
  %v6189 = vlaneseq
  %v6190 = vshrl.u32 %v6189, 7
  %v6191 = vsub.s32 %v6188, %v6190
  %v6192 = vrot.slane %v6176, %v6191
  %v6194 = vunpack.c.l.s4 1966171168
  %v6195 = vunpack.c.0.s8 %v6194
  %v6196 = vlaneseq
  %v6197 = vshrl.u32 %v6196, 7
  %v6198 = vsub.s32 %v6195, %v6197
  %v6199 = vrot.slane %v6183, %v6198
  %v6201 = vunpack.c.l.s4 1966171168
  %v6202 = vunpack.c.0.s8 %v6201
  %v6203 = vlaneseq
  %v6204 = vshrl.u32 %v6203, 7
  %v6205 = vsub.s32 %v6202, %v6204
  %v6206 = vrot.slane %v6184, %v6205
  %v6208 = vunpack.c.l.s4 1966171168
  %v6209 = vunpack.c.0.s8 %v6208
  %v6210 = vlaneseq
  %v6211 = vshrl.u32 %v6210, 7
  %v6212 = vsub.s32 %v6209, %v6211
  %v6213 = vrot.slane %v6185, %v6212
  %v6214 = vcombine.high %v6192, %v6192
  %v6215 = vcombine.high %v6199, %v6199
  %v6216 = vcombine.high %v6206, %v6206
  %v6217 = vcombine.high %v6213, %v6213
  %v6218 = vlaneseq
  %v6219 = vshrl.u32 %v6218, 7
  %v6220 = vsub.s32 0, %v6219
  %v6221 = vrot.slane %v6192, %v6220
  %v6222 = vlaneseq
  %v6223 = vshrl.u32 %v6222, 7
  %v6224 = vsub.s32 0, %v6223
  %v6225 = vrot.slane %v6206, %v6224
  %v6226 = vlaneseq
  %v6227 = vshrl.u32 %v6226, 7
  %v6228 = vsub.s32 0, %v6227
  %v6229 = vrot.slane %v6214, %v6228
  %v6230 = vlaneseq
  %v6231 = vshrl.u32 %v6230, 7
  %v6232 = vsub.s32 0, %v6231
  %v6233 = vrot.slane %v6216, %v6232
  %v6234 = vlaneseq
  %v6235 = vshrl.u32 %v6234, 7
  %v6236 = vsub.s32 0, %v6235
  %v6237 = vrot.slane %v6199, %v6236
  %v6238 = vlaneseq
  %v6239 = vshrl.u32 %v6238, 7
  %v6240 = vsub.s32 0, %v6239
  %v6241 = vrot.slane %v6213, %v6240
  %v6242 = vlaneseq
  %v6243 = vshrl.u32 %v6242, 7
  %v6244 = vsub.s32 0, %v6243
  %v6245 = vrot.slane %v6215, %v6244
  %v6246 = vlaneseq
  %v6247 = vshrl.u32 %v6246, 7
  %v6248 = vsub.s32 0, %v6247
  %v6249 = vrot.slane %v6217, %v6248
  %v6258 = vmul.f32 %v6040, %v6221
  %v6259 = vmul.f32 %v6041, %v6221
  %v6260 = vmul.f32 %v6042, %v6221
  %v6261 = vmul.f32 %v6043, %v6221
  %v6262 = vmul.f32 %v6044, %v6221
  %v6263 = vmul.f32 %v6045, %v6221
  %v6264 = vmul.f32 %v6046, %v6221
  %v6265 = vmul.f32 %v6047, %v6221
  %v6266 = vmul.f32 %v6048, %v6221
  %v6267 = vmul.f32 %v6049, %v6221
  %v6268 = vmul.f32 %v6050, %v6221
  %v6269 = vmul.f32 %v6051, %v6221
  %v6270 = vmul.f32 %v6052, %v6221
  %v6271 = vmul.f32 %v6053, %v6221
  %v6272 = vmul.f32 %v6054, %v6221
  %v6273 = vmul.f32 %v6055, %v6221
  %v6274 = vmul.f32 %v6056, %v6225
  %v6275 = vmul.f32 %v6057, %v6225
  %v6276 = vmul.f32 %v6058, %v6225
  %v6277 = vmul.f32 %v6059, %v6225
  %v6278 = vmul.f32 %v6060, %v6225
  %v6279 = vmul.f32 %v6061, %v6225
  %v6280 = vmul.f32 %v6062, %v6225
  %v6281 = vmul.f32 %v6063, %v6225
  %v6282 = vmul.f32 %v6064, %v6225
  %v6283 = vmul.f32 %v6065, %v6225
  %v6284 = vmul.f32 %v6066, %v6225
  %v6285 = vmul.f32 %v6067, %v6225
  %v6286 = vmul.f32 %v6068, %v6225
  %v6287 = vmul.f32 %v6069, %v6225
  %v6288 = vmul.f32 %v6070, %v6225
  %v6289 = vmul.f32 %v6071, %v6225
  %v6290 = vmul.f32 %v6072, %v6229
  %v6291 = vmul.f32 %v6073, %v6229
  %v6292 = vmul.f32 %v6074, %v6229
  %v6293 = vmul.f32 %v6075, %v6229
  %v6294 = vmul.f32 %v6076, %v6229
  %v6295 = vmul.f32 %v6077, %v6229
  %v6296 = vmul.f32 %v6078, %v6229
  %v6297 = vmul.f32 %v6079, %v6229
  %v6298 = vmul.f32 %v6080, %v6229
  %v6299 = vmul.f32 %v6081, %v6229
  %v6300 = vmul.f32 %v6082, %v6229
  %v6301 = vmul.f32 %v6083, %v6229
  %v6302 = vmul.f32 %v6084, %v6229
  %v6303 = vmul.f32 %v6085, %v6229
  %v6304 = vmul.f32 %v6086, %v6229
  %v6305 = vmul.f32 %v6087, %v6229
  %v6306 = vmul.f32 %v6088, %v6233
  %v6307 = vmul.f32 %v6089, %v6233
  %v6308 = vmul.f32 %v6090, %v6233
  %v6309 = vmul.f32 %v6091, %v6233
  %v6310 = vmul.f32 %v6092, %v6233
  %v6311 = vmul.f32 %v6093, %v6233
  %v6312 = vmul.f32 %v6094, %v6233
  %v6313 = vmul.f32 %v6095, %v6233
  %v6314 = vmul.f32 %v6096, %v6233
  %v6315 = vmul.f32 %v6097, %v6233
  %v6316 = vmul.f32 %v6098, %v6233
  %v6317 = vmul.f32 %v6099, %v6233
  %v6318 = vmul.f32 %v6100, %v6233
  %v6319 = vmul.f32 %v6101, %v6233
  %v6320 = vmul.f32 %v6102, %v6233
  %v6321 = vmul.f32 %v6103, %v6233
  %v6322 = vmul.f32 %v6104, %v6237
  %v6323 = vmul.f32 %v6105, %v6237
  %v6324 = vmul.f32 %v6106, %v6237
  %v6325 = vmul.f32 %v6107, %v6237
  %v6326 = vmul.f32 %v6108, %v6237
  %v6327 = vmul.f32 %v6109, %v6237
  %v6328 = vmul.f32 %v6110, %v6237
  %v6329 = vmul.f32 %v6111, %v6237
  %v6330 = vmul.f32 %v6112, %v6237
  %v6331 = vmul.f32 %v6113, %v6237
  %v6332 = vmul.f32 %v6114, %v6237
  %v6333 = vmul.f32 %v6115, %v6237
  %v6334 = vmul.f32 %v6116, %v6237
  %v6335 = vmul.f32 %v6117, %v6237
  %v6336 = vmul.f32 %v6118, %v6237
  %v6337 = vmul.f32 %v6119, %v6237
  %v6338 = vmul.f32 %v6120, %v6241
  %v6339 = vmul.f32 %v6121, %v6241
  %v6340 = vmul.f32 %v6122, %v6241
  %v6341 = vmul.f32 %v6123, %v6241
  %v6342 = vmul.f32 %v6124, %v6241
  %v6343 = vmul.f32 %v6125, %v6241
  %v6344 = vmul.f32 %v6126, %v6241
  %v6345 = vmul.f32 %v6127, %v6241
  %v6346 = vmul.f32 %v6128, %v6241
  %v6347 = vmul.f32 %v6129, %v6241
  %v6348 = vmul.f32 %v6130, %v6241
  %v6349 = vmul.f32 %v6131, %v6241
  %v6350 = vmul.f32 %v6132, %v6241
  %v6351 = vmul.f32 %v6133, %v6241
  %v6352 = vmul.f32 %v6134, %v6241
  %v6353 = vmul.f32 %v6135, %v6241
  %v6354 = vmul.f32 %v6136, %v6245
  %v6355 = vmul.f32 %v6137, %v6245
  %v6356 = vmul.f32 %v6138, %v6245
  %v6357 = vmul.f32 %v6139, %v6245
  %v6358 = vmul.f32 %v6140, %v6245
  %v6359 = vmul.f32 %v6141, %v6245
  %v6360 = vmul.f32 %v6142, %v6245
  %v6361 = vmul.f32 %v6143, %v6245
  %v6362 = vmul.f32 %v6144, %v6245
  %v6363 = vmul.f32 %v6145, %v6245
  %v6364 = vmul.f32 %v6146, %v6245
  %v6365 = vmul.f32 %v6147, %v6245
  %v6366 = vmul.f32 %v6148, %v6245
  %v6367 = vmul.f32 %v6149, %v6245
  %v6368 = vmul.f32 %v6150, %v6245
  %v6369 = vmul.f32 %v6151, %v6245
  %v6370 = vmul.f32 %v6152, %v6249
  %v6371 = vmul.f32 %v6153, %v6249
  %v6372 = vmul.f32 %v6154, %v6249
  %v6373 = vmul.f32 %v6155, %v6249
  %v6374 = vmul.f32 %v6156, %v6249
  %v6375 = vmul.f32 %v6157, %v6249
  %v6376 = vmul.f32 %v6158, %v6249
  %v6377 = vmul.f32 %v6159, %v6249
  %v6378 = vmul.f32 %v6160, %v6249
  %v6379 = vmul.f32 %v6161, %v6249
  %v6380 = vmul.f32 %v6162, %v6249
  %v6381 = vmul.f32 %v6163, %v6249
  %v6382 = vmul.f32 %v6164, %v6249
  %v6383 = vmul.f32 %v6165, %v6249
  %v6384 = vmul.f32 %v6166, %v6249
  %v6385 = vmul.f32 %v6167, %v6249
  %6386 = vadd.xlane.f32.xlu0 %v6258
  %v6387 = vpop.xlane.xlu0 %6386
  %6388 = vadd.xlane.f32.xlu0 %v6259
  %v6389 = vpop.xlane.xlu0 %6388
  %6390 = vadd.xlane.f32.xlu0 %v6260
  %v6391 = vpop.xlane.xlu0 %6390
  %6392 = vadd.xlane.f32.xlu0 %v6261
  %v6393 = vpop.xlane.xlu0 %6392
  %6394 = vadd.xlane.f32.xlu0 %v6262
  %v6395 = vpop.xlane.xlu0 %6394
  %6396 = vadd.xlane.f32.xlu0 %v6263
  %v6397 = vpop.xlane.xlu0 %6396
  %6398 = vadd.xlane.f32.xlu0 %v6264
  %v6399 = vpop.xlane.xlu0 %6398
  %6400 = vadd.xlane.f32.xlu0 %v6265
  %v6401 = vpop.xlane.xlu0 %6400
  %6402 = vadd.xlane.f32.xlu0 %v6266
  %v6403 = vpop.xlane.xlu0 %6402
  %6404 = vadd.xlane.f32.xlu0 %v6267
  %v6405 = vpop.xlane.xlu0 %6404
  %6406 = vadd.xlane.f32.xlu0 %v6268
  %v6407 = vpop.xlane.xlu0 %6406
  %6408 = vadd.xlane.f32.xlu0 %v6269
  %v6409 = vpop.xlane.xlu0 %6408
  %6410 = vadd.xlane.f32.xlu0 %v6270
  %v6411 = vpop.xlane.xlu0 %6410
  %6412 = vadd.xlane.f32.xlu0 %v6271
  %v6413 = vpop.xlane.xlu0 %6412
  %6414 = vadd.xlane.f32.xlu0 %v6272
  %v6415 = vpop.xlane.xlu0 %6414
  %6416 = vadd.xlane.f32.xlu0 %v6273
  %v6417 = vpop.xlane.xlu0 %6416
  %6418 = vadd.xlane.f32.xlu0 %v6274
  %v6419 = vpop.xlane.xlu0 %6418
  %6420 = vadd.xlane.f32.xlu0 %v6275
  %v6421 = vpop.xlane.xlu0 %6420
  %6422 = vadd.xlane.f32.xlu0 %v6276
  %v6423 = vpop.xlane.xlu0 %6422
  %6424 = vadd.xlane.f32.xlu0 %v6277
  %v6425 = vpop.xlane.xlu0 %6424
  %6426 = vadd.xlane.f32.xlu0 %v6278
  %v6427 = vpop.xlane.xlu0 %6426
  %6428 = vadd.xlane.f32.xlu0 %v6279
  %v6429 = vpop.xlane.xlu0 %6428
  %6430 = vadd.xlane.f32.xlu0 %v6280
  %v6431 = vpop.xlane.xlu0 %6430
  %6432 = vadd.xlane.f32.xlu0 %v6281
  %v6433 = vpop.xlane.xlu0 %6432
  %6434 = vadd.xlane.f32.xlu0 %v6282
  %v6435 = vpop.xlane.xlu0 %6434
  %6436 = vadd.xlane.f32.xlu0 %v6283
  %v6437 = vpop.xlane.xlu0 %6436
  %6438 = vadd.xlane.f32.xlu0 %v6284
  %v6439 = vpop.xlane.xlu0 %6438
  %6440 = vadd.xlane.f32.xlu0 %v6285
  %v6441 = vpop.xlane.xlu0 %6440
  %6442 = vadd.xlane.f32.xlu0 %v6286
  %v6443 = vpop.xlane.xlu0 %6442
  %6444 = vadd.xlane.f32.xlu0 %v6287
  %v6445 = vpop.xlane.xlu0 %6444
  %6446 = vadd.xlane.f32.xlu0 %v6288
  %v6447 = vpop.xlane.xlu0 %6446
  %6448 = vadd.xlane.f32.xlu0 %v6289
  %v6449 = vpop.xlane.xlu0 %6448
  %6450 = vadd.xlane.f32.xlu0 %v6290
  %v6451 = vpop.xlane.xlu0 %6450
  %6452 = vadd.xlane.f32.xlu0 %v6291
  %v6453 = vpop.xlane.xlu0 %6452
  %6454 = vadd.xlane.f32.xlu0 %v6292
  %v6455 = vpop.xlane.xlu0 %6454
  %6456 = vadd.xlane.f32.xlu0 %v6293
  %v6457 = vpop.xlane.xlu0 %6456
  %6458 = vadd.xlane.f32.xlu0 %v6294
  %v6459 = vpop.xlane.xlu0 %6458
  %6460 = vadd.xlane.f32.xlu0 %v6295
  %v6461 = vpop.xlane.xlu0 %6460
  %6462 = vadd.xlane.f32.xlu0 %v6296
  %v6463 = vpop.xlane.xlu0 %6462
  %6464 = vadd.xlane.f32.xlu0 %v6297
  %v6465 = vpop.xlane.xlu0 %6464
  %6466 = vadd.xlane.f32.xlu0 %v6298
  %v6467 = vpop.xlane.xlu0 %6466
  %6468 = vadd.xlane.f32.xlu0 %v6299
  %v6469 = vpop.xlane.xlu0 %6468
  %6470 = vadd.xlane.f32.xlu0 %v6300
  %v6471 = vpop.xlane.xlu0 %6470
  %6472 = vadd.xlane.f32.xlu0 %v6301
  %v6473 = vpop.xlane.xlu0 %6472
  %6474 = vadd.xlane.f32.xlu0 %v6302
  %v6475 = vpop.xlane.xlu0 %6474
  %6476 = vadd.xlane.f32.xlu0 %v6303
  %v6477 = vpop.xlane.xlu0 %6476
  %6478 = vadd.xlane.f32.xlu0 %v6304
  %v6479 = vpop.xlane.xlu0 %6478
  %6480 = vadd.xlane.f32.xlu0 %v6305
  %v6481 = vpop.xlane.xlu0 %6480
  %6482 = vadd.xlane.f32.xlu0 %v6306
  %v6483 = vpop.xlane.xlu0 %6482
  %6484 = vadd.xlane.f32.xlu0 %v6307
  %v6485 = vpop.xlane.xlu0 %6484
  %6486 = vadd.xlane.f32.xlu0 %v6308
  %v6487 = vpop.xlane.xlu0 %6486
  %6488 = vadd.xlane.f32.xlu0 %v6309
  %v6489 = vpop.xlane.xlu0 %6488
  %6490 = vadd.xlane.f32.xlu0 %v6310
  %v6491 = vpop.xlane.xlu0 %6490
  %6492 = vadd.xlane.f32.xlu0 %v6311
  %v6493 = vpop.xlane.xlu0 %6492
  %6494 = vadd.xlane.f32.xlu0 %v6312
  %v6495 = vpop.xlane.xlu0 %6494
  %6496 = vadd.xlane.f32.xlu0 %v6313
  %v6497 = vpop.xlane.xlu0 %6496
  %6498 = vadd.xlane.f32.xlu0 %v6314
  %v6499 = vpop.xlane.xlu0 %6498
  %6500 = vadd.xlane.f32.xlu0 %v6315
  %v6501 = vpop.xlane.xlu0 %6500
  %6502 = vadd.xlane.f32.xlu0 %v6316
  %v6503 = vpop.xlane.xlu0 %6502
  %6504 = vadd.xlane.f32.xlu0 %v6317
  %v6505 = vpop.xlane.xlu0 %6504
  %6506 = vadd.xlane.f32.xlu0 %v6318
  %v6507 = vpop.xlane.xlu0 %6506
  %6508 = vadd.xlane.f32.xlu0 %v6319
  %v6509 = vpop.xlane.xlu0 %6508
  %6510 = vadd.xlane.f32.xlu0 %v6320
  %v6511 = vpop.xlane.xlu0 %6510
  %6512 = vadd.xlane.f32.xlu0 %v6321
  %v6513 = vpop.xlane.xlu0 %6512
  %6514 = vadd.xlane.f32.xlu0 %v6322
  %v6515 = vpop.xlane.xlu0 %6514
  %6516 = vadd.xlane.f32.xlu0 %v6323
  %v6517 = vpop.xlane.xlu0 %6516
  %6518 = vadd.xlane.f32.xlu0 %v6324
  %v6519 = vpop.xlane.xlu0 %6518
  %6520 = vadd.xlane.f32.xlu0 %v6325
  %v6521 = vpop.xlane.xlu0 %6520
  %6522 = vadd.xlane.f32.xlu0 %v6326
  %v6523 = vpop.xlane.xlu0 %6522
  %6524 = vadd.xlane.f32.xlu0 %v6327
  %v6525 = vpop.xlane.xlu0 %6524
  %6526 = vadd.xlane.f32.xlu0 %v6328
  %v6527 = vpop.xlane.xlu0 %6526
  %6528 = vadd.xlane.f32.xlu0 %v6329
  %v6529 = vpop.xlane.xlu0 %6528
  %6530 = vadd.xlane.f32.xlu0 %v6330
  %v6531 = vpop.xlane.xlu0 %6530
  %6532 = vadd.xlane.f32.xlu0 %v6331
  %v6533 = vpop.xlane.xlu0 %6532
  %6534 = vadd.xlane.f32.xlu0 %v6332
  %v6535 = vpop.xlane.xlu0 %6534
  %6536 = vadd.xlane.f32.xlu0 %v6333
  %v6537 = vpop.xlane.xlu0 %6536
  %6538 = vadd.xlane.f32.xlu0 %v6334
  %v6539 = vpop.xlane.xlu0 %6538
  %6540 = vadd.xlane.f32.xlu0 %v6335
  %v6541 = vpop.xlane.xlu0 %6540
  %6542 = vadd.xlane.f32.xlu0 %v6336
  %v6543 = vpop.xlane.xlu0 %6542
  %6544 = vadd.xlane.f32.xlu0 %v6337
  %v6545 = vpop.xlane.xlu0 %6544
  %6546 = vadd.xlane.f32.xlu0 %v6338
  %v6547 = vpop.xlane.xlu0 %6546
  %6548 = vadd.xlane.f32.xlu0 %v6339
  %v6549 = vpop.xlane.xlu0 %6548
  %6550 = vadd.xlane.f32.xlu0 %v6340
  %v6551 = vpop.xlane.xlu0 %6550
  %6552 = vadd.xlane.f32.xlu0 %v6341
  %v6553 = vpop.xlane.xlu0 %6552
  %6554 = vadd.xlane.f32.xlu0 %v6342
  %v6555 = vpop.xlane.xlu0 %6554
  %6556 = vadd.xlane.f32.xlu0 %v6343
  %v6557 = vpop.xlane.xlu0 %6556
  %6558 = vadd.xlane.f32.xlu0 %v6344
  %v6559 = vpop.xlane.xlu0 %6558
  %6560 = vadd.xlane.f32.xlu0 %v6345
  %v6561 = vpop.xlane.xlu0 %6560
  %6562 = vadd.xlane.f32.xlu0 %v6346
  %v6563 = vpop.xlane.xlu0 %6562
  %6564 = vadd.xlane.f32.xlu0 %v6347
  %v6565 = vpop.xlane.xlu0 %6564
  %6566 = vadd.xlane.f32.xlu0 %v6348
  %v6567 = vpop.xlane.xlu0 %6566
  %6568 = vadd.xlane.f32.xlu0 %v6349
  %v6569 = vpop.xlane.xlu0 %6568
  %6570 = vadd.xlane.f32.xlu0 %v6350
  %v6571 = vpop.xlane.xlu0 %6570
  %6572 = vadd.xlane.f32.xlu0 %v6351
  %v6573 = vpop.xlane.xlu0 %6572
  %6574 = vadd.xlane.f32.xlu0 %v6352
  %v6575 = vpop.xlane.xlu0 %6574
  %6576 = vadd.xlane.f32.xlu0 %v6353
  %v6577 = vpop.xlane.xlu0 %6576
  %6578 = vadd.xlane.f32.xlu0 %v6354
  %v6579 = vpop.xlane.xlu0 %6578
  %6580 = vadd.xlane.f32.xlu0 %v6355
  %v6581 = vpop.xlane.xlu0 %6580
  %6582 = vadd.xlane.f32.xlu0 %v6356
  %v6583 = vpop.xlane.xlu0 %6582
  %6584 = vadd.xlane.f32.xlu0 %v6357
  %v6585 = vpop.xlane.xlu0 %6584
  %6586 = vadd.xlane.f32.xlu0 %v6358
  %v6587 = vpop.xlane.xlu0 %6586
  %6588 = vadd.xlane.f32.xlu0 %v6359
  %v6589 = vpop.xlane.xlu0 %6588
  %6590 = vadd.xlane.f32.xlu0 %v6360
  %v6591 = vpop.xlane.xlu0 %6590
  %6592 = vadd.xlane.f32.xlu0 %v6361
  %v6593 = vpop.xlane.xlu0 %6592
  %6594 = vadd.xlane.f32.xlu0 %v6362
  %v6595 = vpop.xlane.xlu0 %6594
  %6596 = vadd.xlane.f32.xlu0 %v6363
  %v6597 = vpop.xlane.xlu0 %6596
  %6598 = vadd.xlane.f32.xlu0 %v6364
  %v6599 = vpop.xlane.xlu0 %6598
  %6600 = vadd.xlane.f32.xlu0 %v6365
  %v6601 = vpop.xlane.xlu0 %6600
  %6602 = vadd.xlane.f32.xlu0 %v6366
  %v6603 = vpop.xlane.xlu0 %6602
  %6604 = vadd.xlane.f32.xlu0 %v6367
  %v6605 = vpop.xlane.xlu0 %6604
  %6606 = vadd.xlane.f32.xlu0 %v6368
  %v6607 = vpop.xlane.xlu0 %6606
  %6608 = vadd.xlane.f32.xlu0 %v6369
  %v6609 = vpop.xlane.xlu0 %6608
  %6610 = vadd.xlane.f32.xlu0 %v6370
  %v6611 = vpop.xlane.xlu0 %6610
  %6612 = vadd.xlane.f32.xlu0 %v6371
  %v6613 = vpop.xlane.xlu0 %6612
  %6614 = vadd.xlane.f32.xlu0 %v6372
  %v6615 = vpop.xlane.xlu0 %6614
  %6616 = vadd.xlane.f32.xlu0 %v6373
  %v6617 = vpop.xlane.xlu0 %6616
  %6618 = vadd.xlane.f32.xlu0 %v6374
  %v6619 = vpop.xlane.xlu0 %6618
  %6620 = vadd.xlane.f32.xlu0 %v6375
  %v6621 = vpop.xlane.xlu0 %6620
  %6622 = vadd.xlane.f32.xlu0 %v6376
  %v6623 = vpop.xlane.xlu0 %6622
  %6624 = vadd.xlane.f32.xlu0 %v6377
  %v6625 = vpop.xlane.xlu0 %6624
  %6626 = vadd.xlane.f32.xlu0 %v6378
  %v6627 = vpop.xlane.xlu0 %6626
  %6628 = vadd.xlane.f32.xlu0 %v6379
  %v6629 = vpop.xlane.xlu0 %6628
  %6630 = vadd.xlane.f32.xlu0 %v6380
  %v6631 = vpop.xlane.xlu0 %6630
  %6632 = vadd.xlane.f32.xlu0 %v6381
  %v6633 = vpop.xlane.xlu0 %6632
  %6634 = vadd.xlane.f32.xlu0 %v6382
  %v6635 = vpop.xlane.xlu0 %6634
  %6636 = vadd.xlane.f32.xlu0 %v6383
  %v6637 = vpop.xlane.xlu0 %6636
  %6638 = vadd.xlane.f32.xlu0 %v6384
  %v6639 = vpop.xlane.xlu0 %6638
  %6640 = vadd.xlane.f32.xlu0 %v6385
  %v6641 = vpop.xlane.xlu0 %6640
  %v6770 = vlaneseq
  %v6771 = vshrl.u32 %v6770, 7
  %v6772 = vsub.s32 %v46, %v6771
  %v6773 = vrot.slane %v6387, %v6772
  %v6774 = vlaneseq
  %v6775 = vshrl.u32 %v6774, 7
  %v6776 = vsub.s32 %v3025, %v6775
  %v6777 = vrot.slane %v6389, %v6776
  %v6778 = vsel %vm3030, %v6777, %v6773
  %v6779 = vlaneseq
  %v6780 = vshrl.u32 %v6779, 7
  %v6781 = vsub.s32 %v3032, %v6780
  %v6782 = vrot.slane %v6391, %v6781
  %v6783 = vsel %vm3037, %v6782, %v6778
  %v6784 = vlaneseq
  %v6785 = vshrl.u32 %v6784, 7
  %v6786 = vsub.s32 %v3039, %v6785
  %v6787 = vrot.slane %v6393, %v6786
  %v6788 = vsel %vm3044, %v6787, %v6783
  %v6789 = vlaneseq
  %v6790 = vshrl.u32 %v6789, 7
  %v6791 = vsub.s32 %v3046, %v6790
  %v6792 = vrot.slane %v6395, %v6791
  %v6793 = vsel %vm3051, %v6792, %v6788
  %v6794 = vlaneseq
  %v6795 = vshrl.u32 %v6794, 7
  %v6796 = vsub.s32 %v3053, %v6795
  %v6797 = vrot.slane %v6397, %v6796
  %v6798 = vsel %vm3058, %v6797, %v6793
  %v6799 = vlaneseq
  %v6800 = vshrl.u32 %v6799, 7
  %v6801 = vsub.s32 %v3060, %v6800
  %v6802 = vrot.slane %v6399, %v6801
  %v6803 = vsel %vm3065, %v6802, %v6798
  %v6804 = vlaneseq
  %v6805 = vshrl.u32 %v6804, 7
  %v6806 = vsub.s32 %v3067, %v6805
  %v6807 = vrot.slane %v6401, %v6806
  %v6808 = vsel %vm3072, %v6807, %v6803
  %v6809 = vlaneseq
  %v6810 = vshrl.u32 %v6809, 7
  %v6811 = vsub.s32 %v3074, %v6810
  %v6812 = vrot.slane %v6403, %v6811
  %v6813 = vsel %vm3079, %v6812, %v6808
  %v6814 = vlaneseq
  %v6815 = vshrl.u32 %v6814, 7
  %v6816 = vsub.s32 %v3081, %v6815
  %v6817 = vrot.slane %v6405, %v6816
  %v6818 = vsel %vm3086, %v6817, %v6813
  %v6819 = vlaneseq
  %v6820 = vshrl.u32 %v6819, 7
  %v6821 = vsub.s32 %v3088, %v6820
  %v6822 = vrot.slane %v6407, %v6821
  %v6823 = vsel %vm3093, %v6822, %v6818
  %v6824 = vlaneseq
  %v6825 = vshrl.u32 %v6824, 7
  %v6826 = vsub.s32 %v3095, %v6825
  %v6827 = vrot.slane %v6409, %v6826
  %v6828 = vsel %vm3100, %v6827, %v6823
  %v6829 = vlaneseq
  %v6830 = vshrl.u32 %v6829, 7
  %v6831 = vsub.s32 %v3102, %v6830
  %v6832 = vrot.slane %v6411, %v6831
  %v6833 = vsel %vm3107, %v6832, %v6828
  %v6834 = vlaneseq
  %v6835 = vshrl.u32 %v6834, 7
  %v6836 = vsub.s32 %v3109, %v6835
  %v6837 = vrot.slane %v6413, %v6836
  %v6838 = vsel %vm3114, %v6837, %v6833
  %v6839 = vlaneseq
  %v6840 = vshrl.u32 %v6839, 7
  %v6841 = vsub.s32 %v3116, %v6840
  %v6842 = vrot.slane %v6415, %v6841
  %v6843 = vsel %vm3121, %v6842, %v6838
  %v6844 = vlaneseq
  %v6845 = vshrl.u32 %v6844, 7
  %v6846 = vsub.s32 %v3123, %v6845
  %v6847 = vrot.slane %v6417, %v6846
  %v6848 = vsel %vm3128, %v6847, %v6843
  %v6849 = vlaneseq
  %v6850 = vshrl.u32 %v6849, 7
  %v6851 = vsub.s32 %v46, %v6850
  %v6852 = vrot.slane %v6419, %v6851
  %v6853 = vlaneseq
  %v6854 = vshrl.u32 %v6853, 7
  %v6855 = vsub.s32 %v3025, %v6854
  %v6856 = vrot.slane %v6421, %v6855
  %v6857 = vsel %vm3030, %v6856, %v6852
  %v6858 = vlaneseq
  %v6859 = vshrl.u32 %v6858, 7
  %v6860 = vsub.s32 %v3032, %v6859
  %v6861 = vrot.slane %v6423, %v6860
  %v6862 = vsel %vm3037, %v6861, %v6857
  %v6863 = vlaneseq
  %v6864 = vshrl.u32 %v6863, 7
  %v6865 = vsub.s32 %v3039, %v6864
  %v6866 = vrot.slane %v6425, %v6865
  %v6867 = vsel %vm3044, %v6866, %v6862
  %v6868 = vlaneseq
  %v6869 = vshrl.u32 %v6868, 7
  %v6870 = vsub.s32 %v3046, %v6869
  %v6871 = vrot.slane %v6427, %v6870
  %v6872 = vsel %vm3051, %v6871, %v6867
  %v6873 = vlaneseq
  %v6874 = vshrl.u32 %v6873, 7
  %v6875 = vsub.s32 %v3053, %v6874
  %v6876 = vrot.slane %v6429, %v6875
  %v6877 = vsel %vm3058, %v6876, %v6872
  %v6878 = vlaneseq
  %v6879 = vshrl.u32 %v6878, 7
  %v6880 = vsub.s32 %v3060, %v6879
  %v6881 = vrot.slane %v6431, %v6880
  %v6882 = vsel %vm3065, %v6881, %v6877
  %v6883 = vlaneseq
  %v6884 = vshrl.u32 %v6883, 7
  %v6885 = vsub.s32 %v3067, %v6884
  %v6886 = vrot.slane %v6433, %v6885
  %v6887 = vsel %vm3072, %v6886, %v6882
  %v6888 = vlaneseq
  %v6889 = vshrl.u32 %v6888, 7
  %v6890 = vsub.s32 %v3074, %v6889
  %v6891 = vrot.slane %v6435, %v6890
  %v6892 = vsel %vm3079, %v6891, %v6887
  %v6893 = vlaneseq
  %v6894 = vshrl.u32 %v6893, 7
  %v6895 = vsub.s32 %v3081, %v6894
  %v6896 = vrot.slane %v6437, %v6895
  %v6897 = vsel %vm3086, %v6896, %v6892
  %v6898 = vlaneseq
  %v6899 = vshrl.u32 %v6898, 7
  %v6900 = vsub.s32 %v3088, %v6899
  %v6901 = vrot.slane %v6439, %v6900
  %v6902 = vsel %vm3093, %v6901, %v6897
  %v6903 = vlaneseq
  %v6904 = vshrl.u32 %v6903, 7
  %v6905 = vsub.s32 %v3095, %v6904
  %v6906 = vrot.slane %v6441, %v6905
  %v6907 = vsel %vm3100, %v6906, %v6902
  %v6908 = vlaneseq
  %v6909 = vshrl.u32 %v6908, 7
  %v6910 = vsub.s32 %v3102, %v6909
  %v6911 = vrot.slane %v6443, %v6910
  %v6912 = vsel %vm3107, %v6911, %v6907
  %v6913 = vlaneseq
  %v6914 = vshrl.u32 %v6913, 7
  %v6915 = vsub.s32 %v3109, %v6914
  %v6916 = vrot.slane %v6445, %v6915
  %v6917 = vsel %vm3114, %v6916, %v6912
  %v6918 = vlaneseq
  %v6919 = vshrl.u32 %v6918, 7
  %v6920 = vsub.s32 %v3116, %v6919
  %v6921 = vrot.slane %v6447, %v6920
  %v6922 = vsel %vm3121, %v6921, %v6917
  %v6923 = vlaneseq
  %v6924 = vshrl.u32 %v6923, 7
  %v6925 = vsub.s32 %v3123, %v6924
  %v6926 = vrot.slane %v6449, %v6925
  %v6927 = vsel %vm3128, %v6926, %v6922
  %v6928 = vlaneseq
  %v6929 = vshrl.u32 %v6928, 7
  %v6930 = vsub.s32 %v46, %v6929
  %v6931 = vrot.slane %v6451, %v6930
  %v6932 = vlaneseq
  %v6933 = vshrl.u32 %v6932, 7
  %v6934 = vsub.s32 %v3025, %v6933
  %v6935 = vrot.slane %v6453, %v6934
  %v6936 = vsel %vm3030, %v6935, %v6931
  %v6937 = vlaneseq
  %v6938 = vshrl.u32 %v6937, 7
  %v6939 = vsub.s32 %v3032, %v6938
  %v6940 = vrot.slane %v6455, %v6939
  %v6941 = vsel %vm3037, %v6940, %v6936
  %v6942 = vlaneseq
  %v6943 = vshrl.u32 %v6942, 7
  %v6944 = vsub.s32 %v3039, %v6943
  %v6945 = vrot.slane %v6457, %v6944
  %v6946 = vsel %vm3044, %v6945, %v6941
  %v6947 = vlaneseq
  %v6948 = vshrl.u32 %v6947, 7
  %v6949 = vsub.s32 %v3046, %v6948
  %v6950 = vrot.slane %v6459, %v6949
  %v6951 = vsel %vm3051, %v6950, %v6946
  %v6952 = vlaneseq
  %v6953 = vshrl.u32 %v6952, 7
  %v6954 = vsub.s32 %v3053, %v6953
  %v6955 = vrot.slane %v6461, %v6954
  %v6956 = vsel %vm3058, %v6955, %v6951
  %v6957 = vlaneseq
  %v6958 = vshrl.u32 %v6957, 7
  %v6959 = vsub.s32 %v3060, %v6958
  %v6960 = vrot.slane %v6463, %v6959
  %v6961 = vsel %vm3065, %v6960, %v6956
  %v6962 = vlaneseq
  %v6963 = vshrl.u32 %v6962, 7
  %v6964 = vsub.s32 %v3067, %v6963
  %v6965 = vrot.slane %v6465, %v6964
  %v6966 = vsel %vm3072, %v6965, %v6961
  %v6967 = vlaneseq
  %v6968 = vshrl.u32 %v6967, 7
  %v6969 = vsub.s32 %v3074, %v6968
  %v6970 = vrot.slane %v6467, %v6969
  %v6971 = vsel %vm3079, %v6970, %v6966
  %v6972 = vlaneseq
  %v6973 = vshrl.u32 %v6972, 7
  %v6974 = vsub.s32 %v3081, %v6973
  %v6975 = vrot.slane %v6469, %v6974
  %v6976 = vsel %vm3086, %v6975, %v6971
  %v6977 = vlaneseq
  %v6978 = vshrl.u32 %v6977, 7
  %v6979 = vsub.s32 %v3088, %v6978
  %v6980 = vrot.slane %v6471, %v6979
  %v6981 = vsel %vm3093, %v6980, %v6976
  %v6982 = vlaneseq
  %v6983 = vshrl.u32 %v6982, 7
  %v6984 = vsub.s32 %v3095, %v6983
  %v6985 = vrot.slane %v6473, %v6984
  %v6986 = vsel %vm3100, %v6985, %v6981
  %v6987 = vlaneseq
  %v6988 = vshrl.u32 %v6987, 7
  %v6989 = vsub.s32 %v3102, %v6988
  %v6990 = vrot.slane %v6475, %v6989
  %v6991 = vsel %vm3107, %v6990, %v6986
  %v6992 = vlaneseq
  %v6993 = vshrl.u32 %v6992, 7
  %v6994 = vsub.s32 %v3109, %v6993
  %v6995 = vrot.slane %v6477, %v6994
  %v6996 = vsel %vm3114, %v6995, %v6991
  %v6997 = vlaneseq
  %v6998 = vshrl.u32 %v6997, 7
  %v6999 = vsub.s32 %v3116, %v6998
  %v7000 = vrot.slane %v6479, %v6999
  %v7001 = vsel %vm3121, %v7000, %v6996
  %v7002 = vlaneseq
  %v7003 = vshrl.u32 %v7002, 7
  %v7004 = vsub.s32 %v3123, %v7003
  %v7005 = vrot.slane %v6481, %v7004
  %v7006 = vsel %vm3128, %v7005, %v7001
  %v7007 = vlaneseq
  %v7008 = vshrl.u32 %v7007, 7
  %v7009 = vsub.s32 %v46, %v7008
  %v7010 = vrot.slane %v6483, %v7009
  %v7011 = vlaneseq
  %v7012 = vshrl.u32 %v7011, 7
  %v7013 = vsub.s32 %v3025, %v7012
  %v7014 = vrot.slane %v6485, %v7013
  %v7015 = vsel %vm3030, %v7014, %v7010
  %v7016 = vlaneseq
  %v7017 = vshrl.u32 %v7016, 7
  %v7018 = vsub.s32 %v3032, %v7017
  %v7019 = vrot.slane %v6487, %v7018
  %v7020 = vsel %vm3037, %v7019, %v7015
  %v7021 = vlaneseq
  %v7022 = vshrl.u32 %v7021, 7
  %v7023 = vsub.s32 %v3039, %v7022
  %v7024 = vrot.slane %v6489, %v7023
  %v7025 = vsel %vm3044, %v7024, %v7020
  %v7026 = vlaneseq
  %v7027 = vshrl.u32 %v7026, 7
  %v7028 = vsub.s32 %v3046, %v7027
  %v7029 = vrot.slane %v6491, %v7028
  %v7030 = vsel %vm3051, %v7029, %v7025
  %v7031 = vlaneseq
  %v7032 = vshrl.u32 %v7031, 7
  %v7033 = vsub.s32 %v3053, %v7032
  %v7034 = vrot.slane %v6493, %v7033
  %v7035 = vsel %vm3058, %v7034, %v7030
  %v7036 = vlaneseq
  %v7037 = vshrl.u32 %v7036, 7
  %v7038 = vsub.s32 %v3060, %v7037
  %v7039 = vrot.slane %v6495, %v7038
  %v7040 = vsel %vm3065, %v7039, %v7035
  %v7041 = vlaneseq
  %v7042 = vshrl.u32 %v7041, 7
  %v7043 = vsub.s32 %v3067, %v7042
  %v7044 = vrot.slane %v6497, %v7043
  %v7045 = vsel %vm3072, %v7044, %v7040
  %v7046 = vlaneseq
  %v7047 = vshrl.u32 %v7046, 7
  %v7048 = vsub.s32 %v3074, %v7047
  %v7049 = vrot.slane %v6499, %v7048
  %v7050 = vsel %vm3079, %v7049, %v7045
  %v7051 = vlaneseq
  %v7052 = vshrl.u32 %v7051, 7
  %v7053 = vsub.s32 %v3081, %v7052
  %v7054 = vrot.slane %v6501, %v7053
  %v7055 = vsel %vm3086, %v7054, %v7050
  %v7056 = vlaneseq
  %v7057 = vshrl.u32 %v7056, 7
  %v7058 = vsub.s32 %v3088, %v7057
  %v7059 = vrot.slane %v6503, %v7058
  %v7060 = vsel %vm3093, %v7059, %v7055
  %v7061 = vlaneseq
  %v7062 = vshrl.u32 %v7061, 7
  %v7063 = vsub.s32 %v3095, %v7062
  %v7064 = vrot.slane %v6505, %v7063
  %v7065 = vsel %vm3100, %v7064, %v7060
  %v7066 = vlaneseq
  %v7067 = vshrl.u32 %v7066, 7
  %v7068 = vsub.s32 %v3102, %v7067
  %v7069 = vrot.slane %v6507, %v7068
  %v7070 = vsel %vm3107, %v7069, %v7065
  %v7071 = vlaneseq
  %v7072 = vshrl.u32 %v7071, 7
  %v7073 = vsub.s32 %v3109, %v7072
  %v7074 = vrot.slane %v6509, %v7073
  %v7075 = vsel %vm3114, %v7074, %v7070
  %v7076 = vlaneseq
  %v7077 = vshrl.u32 %v7076, 7
  %v7078 = vsub.s32 %v3116, %v7077
  %v7079 = vrot.slane %v6511, %v7078
  %v7080 = vsel %vm3121, %v7079, %v7075
  %v7081 = vlaneseq
  %v7082 = vshrl.u32 %v7081, 7
  %v7083 = vsub.s32 %v3123, %v7082
  %v7084 = vrot.slane %v6513, %v7083
  %v7085 = vsel %vm3128, %v7084, %v7080
  %v7086 = vlaneseq
  %v7087 = vshrl.u32 %v7086, 7
  %v7088 = vsub.s32 %v46, %v7087
  %v7089 = vrot.slane %v6515, %v7088
  %v7090 = vlaneseq
  %v7091 = vshrl.u32 %v7090, 7
  %v7092 = vsub.s32 %v3025, %v7091
  %v7093 = vrot.slane %v6517, %v7092
  %v7094 = vsel %vm3030, %v7093, %v7089
  %v7095 = vlaneseq
  %v7096 = vshrl.u32 %v7095, 7
  %v7097 = vsub.s32 %v3032, %v7096
  %v7098 = vrot.slane %v6519, %v7097
  %v7099 = vsel %vm3037, %v7098, %v7094
  %v7100 = vlaneseq
  %v7101 = vshrl.u32 %v7100, 7
  %v7102 = vsub.s32 %v3039, %v7101
  %v7103 = vrot.slane %v6521, %v7102
  %v7104 = vsel %vm3044, %v7103, %v7099
  %v7105 = vlaneseq
  %v7106 = vshrl.u32 %v7105, 7
  %v7107 = vsub.s32 %v3046, %v7106
  %v7108 = vrot.slane %v6523, %v7107
  %v7109 = vsel %vm3051, %v7108, %v7104
  %v7110 = vlaneseq
  %v7111 = vshrl.u32 %v7110, 7
  %v7112 = vsub.s32 %v3053, %v7111
  %v7113 = vrot.slane %v6525, %v7112
  %v7114 = vsel %vm3058, %v7113, %v7109
  %v7115 = vlaneseq
  %v7116 = vshrl.u32 %v7115, 7
  %v7117 = vsub.s32 %v3060, %v7116
  %v7118 = vrot.slane %v6527, %v7117
  %v7119 = vsel %vm3065, %v7118, %v7114
  %v7120 = vlaneseq
  %v7121 = vshrl.u32 %v7120, 7
  %v7122 = vsub.s32 %v3067, %v7121
  %v7123 = vrot.slane %v6529, %v7122
  %v7124 = vsel %vm3072, %v7123, %v7119
  %v7125 = vlaneseq
  %v7126 = vshrl.u32 %v7125, 7
  %v7127 = vsub.s32 %v3074, %v7126
  %v7128 = vrot.slane %v6531, %v7127
  %v7129 = vsel %vm3079, %v7128, %v7124
  %v7130 = vlaneseq
  %v7131 = vshrl.u32 %v7130, 7
  %v7132 = vsub.s32 %v3081, %v7131
  %v7133 = vrot.slane %v6533, %v7132
  %v7134 = vsel %vm3086, %v7133, %v7129
  %v7135 = vlaneseq
  %v7136 = vshrl.u32 %v7135, 7
  %v7137 = vsub.s32 %v3088, %v7136
  %v7138 = vrot.slane %v6535, %v7137
  %v7139 = vsel %vm3093, %v7138, %v7134
  %v7140 = vlaneseq
  %v7141 = vshrl.u32 %v7140, 7
  %v7142 = vsub.s32 %v3095, %v7141
  %v7143 = vrot.slane %v6537, %v7142
  %v7144 = vsel %vm3100, %v7143, %v7139
  %v7145 = vlaneseq
  %v7146 = vshrl.u32 %v7145, 7
  %v7147 = vsub.s32 %v3102, %v7146
  %v7148 = vrot.slane %v6539, %v7147
  %v7149 = vsel %vm3107, %v7148, %v7144
  %v7150 = vlaneseq
  %v7151 = vshrl.u32 %v7150, 7
  %v7152 = vsub.s32 %v3109, %v7151
  %v7153 = vrot.slane %v6541, %v7152
  %v7154 = vsel %vm3114, %v7153, %v7149
  %v7155 = vlaneseq
  %v7156 = vshrl.u32 %v7155, 7
  %v7157 = vsub.s32 %v3116, %v7156
  %v7158 = vrot.slane %v6543, %v7157
  %v7159 = vsel %vm3121, %v7158, %v7154
  %v7160 = vlaneseq
  %v7161 = vshrl.u32 %v7160, 7
  %v7162 = vsub.s32 %v3123, %v7161
  %v7163 = vrot.slane %v6545, %v7162
  %v7164 = vsel %vm3128, %v7163, %v7159
  %v7165 = vlaneseq
  %v7166 = vshrl.u32 %v7165, 7
  %v7167 = vsub.s32 %v46, %v7166
  %v7168 = vrot.slane %v6547, %v7167
  %v7169 = vlaneseq
  %v7170 = vshrl.u32 %v7169, 7
  %v7171 = vsub.s32 %v3025, %v7170
  %v7172 = vrot.slane %v6549, %v7171
  %v7173 = vsel %vm3030, %v7172, %v7168
  %v7174 = vlaneseq
  %v7175 = vshrl.u32 %v7174, 7
  %v7176 = vsub.s32 %v3032, %v7175
  %v7177 = vrot.slane %v6551, %v7176
  %v7178 = vsel %vm3037, %v7177, %v7173
  %v7179 = vlaneseq
  %v7180 = vshrl.u32 %v7179, 7
  %v7181 = vsub.s32 %v3039, %v7180
  %v7182 = vrot.slane %v6553, %v7181
  %v7183 = vsel %vm3044, %v7182, %v7178
  %v7184 = vlaneseq
  %v7185 = vshrl.u32 %v7184, 7
  %v7186 = vsub.s32 %v3046, %v7185
  %v7187 = vrot.slane %v6555, %v7186
  %v7188 = vsel %vm3051, %v7187, %v7183
  %v7189 = vlaneseq
  %v7190 = vshrl.u32 %v7189, 7
  %v7191 = vsub.s32 %v3053, %v7190
  %v7192 = vrot.slane %v6557, %v7191
  %v7193 = vsel %vm3058, %v7192, %v7188
  %v7194 = vlaneseq
  %v7195 = vshrl.u32 %v7194, 7
  %v7196 = vsub.s32 %v3060, %v7195
  %v7197 = vrot.slane %v6559, %v7196
  %v7198 = vsel %vm3065, %v7197, %v7193
  %v7199 = vlaneseq
  %v7200 = vshrl.u32 %v7199, 7
  %v7201 = vsub.s32 %v3067, %v7200
  %v7202 = vrot.slane %v6561, %v7201
  %v7203 = vsel %vm3072, %v7202, %v7198
  %v7204 = vlaneseq
  %v7205 = vshrl.u32 %v7204, 7
  %v7206 = vsub.s32 %v3074, %v7205
  %v7207 = vrot.slane %v6563, %v7206
  %v7208 = vsel %vm3079, %v7207, %v7203
  %v7209 = vlaneseq
  %v7210 = vshrl.u32 %v7209, 7
  %v7211 = vsub.s32 %v3081, %v7210
  %v7212 = vrot.slane %v6565, %v7211
  %v7213 = vsel %vm3086, %v7212, %v7208
  %v7214 = vlaneseq
  %v7215 = vshrl.u32 %v7214, 7
  %v7216 = vsub.s32 %v3088, %v7215
  %v7217 = vrot.slane %v6567, %v7216
  %v7218 = vsel %vm3093, %v7217, %v7213
  %v7219 = vlaneseq
  %v7220 = vshrl.u32 %v7219, 7
  %v7221 = vsub.s32 %v3095, %v7220
  %v7222 = vrot.slane %v6569, %v7221
  %v7223 = vsel %vm3100, %v7222, %v7218
  %v7224 = vlaneseq
  %v7225 = vshrl.u32 %v7224, 7
  %v7226 = vsub.s32 %v3102, %v7225
  %v7227 = vrot.slane %v6571, %v7226
  %v7228 = vsel %vm3107, %v7227, %v7223
  %v7229 = vlaneseq
  %v7230 = vshrl.u32 %v7229, 7
  %v7231 = vsub.s32 %v3109, %v7230
  %v7232 = vrot.slane %v6573, %v7231
  %v7233 = vsel %vm3114, %v7232, %v7228
  %v7234 = vlaneseq
  %v7235 = vshrl.u32 %v7234, 7
  %v7236 = vsub.s32 %v3116, %v7235
  %v7237 = vrot.slane %v6575, %v7236
  %v7238 = vsel %vm3121, %v7237, %v7233
  %v7239 = vlaneseq
  %v7240 = vshrl.u32 %v7239, 7
  %v7241 = vsub.s32 %v3123, %v7240
  %v7242 = vrot.slane %v6577, %v7241
  %v7243 = vsel %vm3128, %v7242, %v7238
  %v7244 = vlaneseq
  %v7245 = vshrl.u32 %v7244, 7
  %v7246 = vsub.s32 %v46, %v7245
  %v7247 = vrot.slane %v6579, %v7246
  %v7248 = vlaneseq
  %v7249 = vshrl.u32 %v7248, 7
  %v7250 = vsub.s32 %v3025, %v7249
  %v7251 = vrot.slane %v6581, %v7250
  %v7252 = vsel %vm3030, %v7251, %v7247
  %v7253 = vlaneseq
  %v7254 = vshrl.u32 %v7253, 7
  %v7255 = vsub.s32 %v3032, %v7254
  %v7256 = vrot.slane %v6583, %v7255
  %v7257 = vsel %vm3037, %v7256, %v7252
  %v7258 = vlaneseq
  %v7259 = vshrl.u32 %v7258, 7
  %v7260 = vsub.s32 %v3039, %v7259
  %v7261 = vrot.slane %v6585, %v7260
  %v7262 = vsel %vm3044, %v7261, %v7257
  %v7263 = vlaneseq
  %v7264 = vshrl.u32 %v7263, 7
  %v7265 = vsub.s32 %v3046, %v7264
  %v7266 = vrot.slane %v6587, %v7265
  %v7267 = vsel %vm3051, %v7266, %v7262
  %v7268 = vlaneseq
  %v7269 = vshrl.u32 %v7268, 7
  %v7270 = vsub.s32 %v3053, %v7269
  %v7271 = vrot.slane %v6589, %v7270
  %v7272 = vsel %vm3058, %v7271, %v7267
  %v7273 = vlaneseq
  %v7274 = vshrl.u32 %v7273, 7
  %v7275 = vsub.s32 %v3060, %v7274
  %v7276 = vrot.slane %v6591, %v7275
  %v7277 = vsel %vm3065, %v7276, %v7272
  %v7278 = vlaneseq
  %v7279 = vshrl.u32 %v7278, 7
  %v7280 = vsub.s32 %v3067, %v7279
  %v7281 = vrot.slane %v6593, %v7280
  %v7282 = vsel %vm3072, %v7281, %v7277
  %v7283 = vlaneseq
  %v7284 = vshrl.u32 %v7283, 7
  %v7285 = vsub.s32 %v3074, %v7284
  %v7286 = vrot.slane %v6595, %v7285
  %v7287 = vsel %vm3079, %v7286, %v7282
  %v7288 = vlaneseq
  %v7289 = vshrl.u32 %v7288, 7
  %v7290 = vsub.s32 %v3081, %v7289
  %v7291 = vrot.slane %v6597, %v7290
  %v7292 = vsel %vm3086, %v7291, %v7287
  %v7293 = vlaneseq
  %v7294 = vshrl.u32 %v7293, 7
  %v7295 = vsub.s32 %v3088, %v7294
  %v7296 = vrot.slane %v6599, %v7295
  %v7297 = vsel %vm3093, %v7296, %v7292
  %v7298 = vlaneseq
  %v7299 = vshrl.u32 %v7298, 7
  %v7300 = vsub.s32 %v3095, %v7299
  %v7301 = vrot.slane %v6601, %v7300
  %v7302 = vsel %vm3100, %v7301, %v7297
  %v7303 = vlaneseq
  %v7304 = vshrl.u32 %v7303, 7
  %v7305 = vsub.s32 %v3102, %v7304
  %v7306 = vrot.slane %v6603, %v7305
  %v7307 = vsel %vm3107, %v7306, %v7302
  %v7308 = vlaneseq
  %v7309 = vshrl.u32 %v7308, 7
  %v7310 = vsub.s32 %v3109, %v7309
  %v7311 = vrot.slane %v6605, %v7310
  %v7312 = vsel %vm3114, %v7311, %v7307
  %v7313 = vlaneseq
  %v7314 = vshrl.u32 %v7313, 7
  %v7315 = vsub.s32 %v3116, %v7314
  %v7316 = vrot.slane %v6607, %v7315
  %v7317 = vsel %vm3121, %v7316, %v7312
  %v7318 = vlaneseq
  %v7319 = vshrl.u32 %v7318, 7
  %v7320 = vsub.s32 %v3123, %v7319
  %v7321 = vrot.slane %v6609, %v7320
  %v7322 = vsel %vm3128, %v7321, %v7317
  %v7323 = vlaneseq
  %v7324 = vshrl.u32 %v7323, 7
  %v7325 = vsub.s32 %v46, %v7324
  %v7326 = vrot.slane %v6611, %v7325
  %v7327 = vlaneseq
  %v7328 = vshrl.u32 %v7327, 7
  %v7329 = vsub.s32 %v3025, %v7328
  %v7330 = vrot.slane %v6613, %v7329
  %v7331 = vsel %vm3030, %v7330, %v7326
  %v7332 = vlaneseq
  %v7333 = vshrl.u32 %v7332, 7
  %v7334 = vsub.s32 %v3032, %v7333
  %v7335 = vrot.slane %v6615, %v7334
  %v7336 = vsel %vm3037, %v7335, %v7331
  %v7337 = vlaneseq
  %v7338 = vshrl.u32 %v7337, 7
  %v7339 = vsub.s32 %v3039, %v7338
  %v7340 = vrot.slane %v6617, %v7339
  %v7341 = vsel %vm3044, %v7340, %v7336
  %v7342 = vlaneseq
  %v7343 = vshrl.u32 %v7342, 7
  %v7344 = vsub.s32 %v3046, %v7343
  %v7345 = vrot.slane %v6619, %v7344
  %v7346 = vsel %vm3051, %v7345, %v7341
  %v7347 = vlaneseq
  %v7348 = vshrl.u32 %v7347, 7
  %v7349 = vsub.s32 %v3053, %v7348
  %v7350 = vrot.slane %v6621, %v7349
  %v7351 = vsel %vm3058, %v7350, %v7346
  %v7352 = vlaneseq
  %v7353 = vshrl.u32 %v7352, 7
  %v7354 = vsub.s32 %v3060, %v7353
  %v7355 = vrot.slane %v6623, %v7354
  %v7356 = vsel %vm3065, %v7355, %v7351
  %v7357 = vlaneseq
  %v7358 = vshrl.u32 %v7357, 7
  %v7359 = vsub.s32 %v3067, %v7358
  %v7360 = vrot.slane %v6625, %v7359
  %v7361 = vsel %vm3072, %v7360, %v7356
  %v7362 = vlaneseq
  %v7363 = vshrl.u32 %v7362, 7
  %v7364 = vsub.s32 %v3074, %v7363
  %v7365 = vrot.slane %v6627, %v7364
  %v7366 = vsel %vm3079, %v7365, %v7361
  %v7367 = vlaneseq
  %v7368 = vshrl.u32 %v7367, 7
  %v7369 = vsub.s32 %v3081, %v7368
  %v7370 = vrot.slane %v6629, %v7369
  %v7371 = vsel %vm3086, %v7370, %v7366
  %v7372 = vlaneseq
  %v7373 = vshrl.u32 %v7372, 7
  %v7374 = vsub.s32 %v3088, %v7373
  %v7375 = vrot.slane %v6631, %v7374
  %v7376 = vsel %vm3093, %v7375, %v7371
  %v7377 = vlaneseq
  %v7378 = vshrl.u32 %v7377, 7
  %v7379 = vsub.s32 %v3095, %v7378
  %v7380 = vrot.slane %v6633, %v7379
  %v7381 = vsel %vm3100, %v7380, %v7376
  %v7382 = vlaneseq
  %v7383 = vshrl.u32 %v7382, 7
  %v7384 = vsub.s32 %v3102, %v7383
  %v7385 = vrot.slane %v6635, %v7384
  %v7386 = vsel %vm3107, %v7385, %v7381
  %v7387 = vlaneseq
  %v7388 = vshrl.u32 %v7387, 7
  %v7389 = vsub.s32 %v3109, %v7388
  %v7390 = vrot.slane %v6637, %v7389
  %v7391 = vsel %vm3114, %v7390, %v7386
  %v7392 = vlaneseq
  %v7393 = vshrl.u32 %v7392, 7
  %v7394 = vsub.s32 %v3116, %v7393
  %v7395 = vrot.slane %v6639, %v7394
  %v7396 = vsel %vm3121, %v7395, %v7391
  %v7397 = vlaneseq
  %v7398 = vshrl.u32 %v7397, 7
  %v7399 = vsub.s32 %v3123, %v7398
  %v7400 = vrot.slane %v6641, %v7399
  %v7401 = vsel %vm3128, %v7400, %v7396
  %v7402 = vsel %vm3683, %v6927, %v6848
  %v7403 = vsel %vm3685, %v7006, %v7402
  %v7404 = vsel %vm3687, %v7085, %v7403
  %v7405 = vsel %vm3689, %v7164, %v7404
  %v7406 = vsel %vm3691, %v7243, %v7405
  %v7407 = vsel %vm3693, %v7322, %v7406
  %v7408 = vsel %vm3695, %v7401, %v7407
  %7410 = vadd.xlane.f32.xlu0 %v7408
  %v7411 = vpop.xlane.xlu0 %7410
  %v7412 = vmul.f32 %v5192, %v5206
  %7413 = vadd.xlane.f32.xlu0 %v7412
  %v7414 = vpop.xlane.xlu0 %7413
  %v7415 = vadd.f32 %v7411, %v7414
  %s7416 = scalar_lea.vmem %s2, 384
  %v7417 = vld [vmem:[%s7416] sm:$0xff]
  %v7418 = vlaneseq
  %v7419 = vshrl.u32 %v7418, 7
  %v7420 = vsub.s32 0, %v7419
  %v7421 = vrot.slane %v7417, %v7420
  %v7422 = vmul.f32 %v5192, %v7421
  %s7423 = scalar_lea.vmem %s2, 256
  %v7424 = vld [vmem:[%s7423] sm:$0xff]
  %v7425 = vld [vmem:[%s7423 + $0x8] sm:$0xff]
  %v7426 = vld [vmem:[%s7423 + $0x10] sm:$0xff]
  %v7427 = vld [vmem:[%s7423 + $0x18] sm:$0xff]
  %v7428 = vld [vmem:[%s7423 + $0x20] sm:$0xff]
  %v7429 = vld [vmem:[%s7423 + $0x28] sm:$0xff]
  %v7430 = vld [vmem:[%s7423 + $0x30] sm:$0xff]
  %v7431 = vld [vmem:[%s7423 + $0x38] sm:$0xff]
  %v7432 = vld [vmem:[%s7423 + $0x40] sm:$0xff]
  %v7433 = vld [vmem:[%s7423 + $0x48] sm:$0xff]
  %v7434 = vld [vmem:[%s7423 + $0x50] sm:$0xff]
  %v7435 = vld [vmem:[%s7423 + $0x58] sm:$0xff]
  %v7436 = vld [vmem:[%s7423 + $0x60] sm:$0xff]
  %v7437 = vld [vmem:[%s7423 + $0x68] sm:$0xff]
  %v7438 = vld [vmem:[%s7423 + $0x70] sm:$0xff]
  %v7439 = vld [vmem:[%s7423 + $0x78] sm:$0xff]
  %7440 = vmatprep.subr.mxu0 0.0
  %7441 = vmatpush1.msra.mxu0 %v7424
  %7442 = vmatprep.subr.mxu0 0.0
  %7443 = vmatpush1.msra.mxu0 %v7425
  %7444 = vmatprep.subr.mxu0 0.0
  %7445 = vmatpush1.msra.mxu0 %v7426
  %7446 = vmatprep.subr.mxu0 0.0
  %7447 = vmatpush1.msra.mxu0 %v7427
  %7448 = vmatprep.subr.mxu0 0.0
  %7449 = vmatpush1.msra.mxu0 %v7428
  %7450 = vmatprep.subr.mxu0 0.0
  %7451 = vmatpush1.msra.mxu0 %v7429
  %7452 = vmatprep.subr.mxu0 0.0
  %7453 = vmatpush1.msra.mxu0 %v7430
  %7454 = vmatprep.subr.mxu0 0.0
  %7455 = vmatpush1.msra.mxu0 %v7431
  %7456 = vmatprep.subr.mxu0 0.0
  %7457 = vmatpush1.msra.mxu0 %v7432
  %7458 = vmatprep.subr.mxu0 0.0
  %7459 = vmatpush1.msra.mxu0 %v7433
  %7460 = vmatprep.subr.mxu0 0.0
  %7461 = vmatpush1.msra.mxu0 %v7434
  %7462 = vmatprep.subr.mxu0 0.0
  %7463 = vmatpush1.msra.mxu0 %v7435
  %7464 = vmatprep.subr.mxu0 0.0
  %7465 = vmatpush1.msra.mxu0 %v7436
  %7466 = vmatprep.subr.mxu0 0.0
  %7467 = vmatpush1.msra.mxu0 %v7437
  %7468 = vmatprep.subr.mxu0 0.0
  %7469 = vmatpush1.msra.mxu0 %v7438
  %7470 = vmatprep.subr.mxu0 0.0
  %7471 = vmatpush1.msra.mxu0 %v7439
  %7472 = vmatprep.subr.mxu0 0.0
  %7473 = vmatpush1.msra.mxu0 0.0
  %7474 = vmatprep.subr.mxu0 0.0
  %7475 = vmatpush1.msra.mxu0 0.0
  %7476 = vmatprep.subr.mxu0 0.0
  %7477 = vmatpush1.msra.mxu0 0.0
  %7478 = vmatprep.subr.mxu0 0.0
  %7479 = vmatpush1.msra.mxu0 0.0
  %7480 = vmatprep.subr.mxu0 0.0
  %7481 = vmatpush1.msra.mxu0 0.0
  %7482 = vmatprep.subr.mxu0 0.0
  %7483 = vmatpush1.msra.mxu0 0.0
  %7484 = vmatprep.subr.mxu0 0.0
  %7485 = vmatpush1.msra.mxu0 0.0
  %7486 = vmatprep.subr.mxu0 0.0
  %7487 = vmatpush1.msra.mxu0 0.0
  %7488 = vmatprep.subr.mxu0 0.0
  %7489 = vmatpush1.msra.mxu0 0.0
  %7490 = vmatprep.subr.mxu0 0.0
  %7491 = vmatpush1.msra.mxu0 0.0
  %7492 = vmatprep.subr.mxu0 0.0
  %7493 = vmatpush1.msra.mxu0 0.0
  %7494 = vmatprep.subr.mxu0 0.0
  %7495 = vmatpush1.msra.mxu0 0.0
  %7496 = vmatprep.subr.mxu0 0.0
  %7497 = vmatpush1.msra.mxu0 0.0
  %7498 = vmatprep.subr.mxu0 0.0
  %7499 = vmatpush1.msra.mxu0 0.0
  %7500 = vmatprep.subr.mxu0 0.0
  %7501 = vmatpush1.msra.mxu0 0.0
  %7502 = vmatprep.subr.mxu0 0.0
  %7503 = vmatpush1.msra.mxu0 0.0
  %7504 = vmatprep.mubr.f32.mxu0 0.0
  %7505 = vmatmul.mubr.f32.gmra.mrb[0].mxu0 %v7422
  %v7506 = vpop.f32.mrb[0].mxu0
  %v7507 = vadd.f32 0.0, %v7506
  %v7508 = vpop.f32.mrb[0].mxu0
  %7509 = vdwg.mxu0
  %v7511 = vcombine.high %v7422, %v7422
  %v7513 = vunpack.c.l.s4 1966171168
  %v7514 = vunpack.c.0.s8 %v7513
  %v7515 = vlaneseq
  %v7516 = vshrl.u32 %v7515, 7
  %v7517 = vsub.s32 %v7514, %v7516
  %v7518 = vrot.slane %v7422, %v7517
  %v7520 = vunpack.c.l.s4 1966171168
  %v7521 = vunpack.c.0.s8 %v7520
  %v7522 = vlaneseq
  %v7523 = vshrl.u32 %v7522, 7
  %v7524 = vsub.s32 %v7521, %v7523
  %v7525 = vrot.slane %v7511, %v7524
  %v7526 = vcombine.high %v7518, %v7518
  %v7527 = vcombine.high %v7525, %v7525
  %v7529 = vunpack.c.l.s4 1966171168
  %v7530 = vunpack.c.0.s8 %v7529
  %v7531 = vlaneseq
  %v7532 = vshrl.u32 %v7531, 7
  %v7533 = vsub.s32 %v7530, %v7532
  %v7534 = vrot.slane %v7518, %v7533
  %v7536 = vunpack.c.l.s4 1966171168
  %v7537 = vunpack.c.0.s8 %v7536
  %v7538 = vlaneseq
  %v7539 = vshrl.u32 %v7538, 7
  %v7540 = vsub.s32 %v7537, %v7539
  %v7541 = vrot.slane %v7525, %v7540
  %v7543 = vunpack.c.l.s4 1966171168
  %v7544 = vunpack.c.0.s8 %v7543
  %v7545 = vlaneseq
  %v7546 = vshrl.u32 %v7545, 7
  %v7547 = vsub.s32 %v7544, %v7546
  %v7548 = vrot.slane %v7526, %v7547
  %v7550 = vunpack.c.l.s4 1966171168
  %v7551 = vunpack.c.0.s8 %v7550
  %v7552 = vlaneseq
  %v7553 = vshrl.u32 %v7552, 7
  %v7554 = vsub.s32 %v7551, %v7553
  %v7555 = vrot.slane %v7527, %v7554
  %v7556 = vcombine.high %v7534, %v7534
  %v7557 = vcombine.high %v7541, %v7541
  %v7558 = vcombine.high %v7548, %v7548
  %v7559 = vcombine.high %v7555, %v7555
  %v7560 = vlaneseq
  %v7561 = vshrl.u32 %v7560, 7
  %v7562 = vsub.s32 0, %v7561
  %v7563 = vrot.slane %v7534, %v7562
  %v7564 = vlaneseq
  %v7565 = vshrl.u32 %v7564, 7
  %v7566 = vsub.s32 0, %v7565
  %v7567 = vrot.slane %v7548, %v7566
  %v7568 = vlaneseq
  %v7569 = vshrl.u32 %v7568, 7
  %v7570 = vsub.s32 0, %v7569
  %v7571 = vrot.slane %v7556, %v7570
  %v7572 = vlaneseq
  %v7573 = vshrl.u32 %v7572, 7
  %v7574 = vsub.s32 0, %v7573
  %v7575 = vrot.slane %v7558, %v7574
  %v7576 = vlaneseq
  %v7577 = vshrl.u32 %v7576, 7
  %v7578 = vsub.s32 0, %v7577
  %v7579 = vrot.slane %v7541, %v7578
  %v7580 = vlaneseq
  %v7581 = vshrl.u32 %v7580, 7
  %v7582 = vsub.s32 0, %v7581
  %v7583 = vrot.slane %v7555, %v7582
  %v7584 = vlaneseq
  %v7585 = vshrl.u32 %v7584, 7
  %v7586 = vsub.s32 0, %v7585
  %v7587 = vrot.slane %v7557, %v7586
  %v7588 = vlaneseq
  %v7589 = vshrl.u32 %v7588, 7
  %v7590 = vsub.s32 0, %v7589
  %v7591 = vrot.slane %v7559, %v7590
  %v7600 = vmul.f32 %v5402, %v7563
  %v7601 = vmul.f32 %v5407, %v7563
  %v7602 = vmul.f32 %v5412, %v7563
  %v7603 = vmul.f32 %v5417, %v7563
  %v7604 = vmul.f32 %v5422, %v7563
  %v7605 = vmul.f32 %v5427, %v7563
  %v7606 = vmul.f32 %v5432, %v7563
  %v7607 = vmul.f32 %v5437, %v7563
  %v7608 = vmul.f32 %v5442, %v7563
  %v7609 = vmul.f32 %v5447, %v7563
  %v7610 = vmul.f32 %v5452, %v7563
  %v7611 = vmul.f32 %v5457, %v7563
  %v7612 = vmul.f32 %v5462, %v7563
  %v7613 = vmul.f32 %v5467, %v7563
  %v7614 = vmul.f32 %v5472, %v7563
  %v7615 = vmul.f32 %v5477, %v7563
  %v7616 = vmul.f32 %v5482, %v7567
  %v7617 = vmul.f32 %v5487, %v7567
  %v7618 = vmul.f32 %v5492, %v7567
  %v7619 = vmul.f32 %v5497, %v7567
  %v7620 = vmul.f32 %v5502, %v7567
  %v7621 = vmul.f32 %v5507, %v7567
  %v7622 = vmul.f32 %v5512, %v7567
  %v7623 = vmul.f32 %v5517, %v7567
  %v7624 = vmul.f32 %v5522, %v7567
  %v7625 = vmul.f32 %v5527, %v7567
  %v7626 = vmul.f32 %v5532, %v7567
  %v7627 = vmul.f32 %v5537, %v7567
  %v7628 = vmul.f32 %v5542, %v7567
  %v7629 = vmul.f32 %v5547, %v7567
  %v7630 = vmul.f32 %v5552, %v7567
  %v7631 = vmul.f32 %v5557, %v7567
  %v7632 = vmul.f32 %v5562, %v7571
  %v7633 = vmul.f32 %v5567, %v7571
  %v7634 = vmul.f32 %v5572, %v7571
  %v7635 = vmul.f32 %v5577, %v7571
  %v7636 = vmul.f32 %v5582, %v7571
  %v7637 = vmul.f32 %v5587, %v7571
  %v7638 = vmul.f32 %v5592, %v7571
  %v7639 = vmul.f32 %v5597, %v7571
  %v7640 = vmul.f32 %v5602, %v7571
  %v7641 = vmul.f32 %v5607, %v7571
  %v7642 = vmul.f32 %v5612, %v7571
  %v7643 = vmul.f32 %v5617, %v7571
  %v7644 = vmul.f32 %v5622, %v7571
  %v7645 = vmul.f32 %v5627, %v7571
  %v7646 = vmul.f32 %v5632, %v7571
  %v7647 = vmul.f32 %v5637, %v7571
  %v7648 = vmul.f32 %v5642, %v7575
  %v7649 = vmul.f32 %v5647, %v7575
  %v7650 = vmul.f32 %v5652, %v7575
  %v7651 = vmul.f32 %v5657, %v7575
  %v7652 = vmul.f32 %v5662, %v7575
  %v7653 = vmul.f32 %v5667, %v7575
  %v7654 = vmul.f32 %v5672, %v7575
  %v7655 = vmul.f32 %v5677, %v7575
  %v7656 = vmul.f32 %v5682, %v7575
  %v7657 = vmul.f32 %v5687, %v7575
  %v7658 = vmul.f32 %v5692, %v7575
  %v7659 = vmul.f32 %v5697, %v7575
  %v7660 = vmul.f32 %v5702, %v7575
  %v7661 = vmul.f32 %v5707, %v7575
  %v7662 = vmul.f32 %v5712, %v7575
  %v7663 = vmul.f32 %v5717, %v7575
  %v7664 = vmul.f32 %v5722, %v7579
  %v7665 = vmul.f32 %v5727, %v7579
  %v7666 = vmul.f32 %v5732, %v7579
  %v7667 = vmul.f32 %v5737, %v7579
  %v7668 = vmul.f32 %v5742, %v7579
  %v7669 = vmul.f32 %v5747, %v7579
  %v7670 = vmul.f32 %v5752, %v7579
  %v7671 = vmul.f32 %v5757, %v7579
  %v7672 = vmul.f32 %v5762, %v7579
  %v7673 = vmul.f32 %v5767, %v7579
  %v7674 = vmul.f32 %v5772, %v7579
  %v7675 = vmul.f32 %v5777, %v7579
  %v7676 = vmul.f32 %v5782, %v7579
  %v7677 = vmul.f32 %v5787, %v7579
  %v7678 = vmul.f32 %v5792, %v7579
  %v7679 = vmul.f32 %v5797, %v7579
  %v7680 = vmul.f32 %v5802, %v7583
  %v7681 = vmul.f32 %v5807, %v7583
  %v7682 = vmul.f32 %v5812, %v7583
  %v7683 = vmul.f32 %v5817, %v7583
  %v7684 = vmul.f32 %v5822, %v7583
  %v7685 = vmul.f32 %v5827, %v7583
  %v7686 = vmul.f32 %v5832, %v7583
  %v7687 = vmul.f32 %v5837, %v7583
  %v7688 = vmul.f32 %v5842, %v7583
  %v7689 = vmul.f32 %v5847, %v7583
  %v7690 = vmul.f32 %v5852, %v7583
  %v7691 = vmul.f32 %v5857, %v7583
  %v7692 = vmul.f32 %v5862, %v7583
  %v7693 = vmul.f32 %v5867, %v7583
  %v7694 = vmul.f32 %v5872, %v7583
  %v7695 = vmul.f32 %v5877, %v7583
  %v7696 = vmul.f32 %v5882, %v7587
  %v7697 = vmul.f32 %v5887, %v7587
  %v7698 = vmul.f32 %v5892, %v7587
  %v7699 = vmul.f32 %v5897, %v7587
  %v7700 = vmul.f32 %v5902, %v7587
  %v7701 = vmul.f32 %v5907, %v7587
  %v7702 = vmul.f32 %v5912, %v7587
  %v7703 = vmul.f32 %v5917, %v7587
  %v7704 = vmul.f32 %v5922, %v7587
  %v7705 = vmul.f32 %v5927, %v7587
  %v7706 = vmul.f32 %v5932, %v7587
  %v7707 = vmul.f32 %v5937, %v7587
  %v7708 = vmul.f32 %v5942, %v7587
  %v7709 = vmul.f32 %v5947, %v7587
  %v7710 = vmul.f32 %v5952, %v7587
  %v7711 = vmul.f32 %v5957, %v7587
  %v7712 = vmul.f32 %v5962, %v7591
  %v7713 = vmul.f32 %v5967, %v7591
  %v7714 = vmul.f32 %v5972, %v7591
  %v7715 = vmul.f32 %v5977, %v7591
  %v7716 = vmul.f32 %v5982, %v7591
  %v7717 = vmul.f32 %v5987, %v7591
  %v7718 = vmul.f32 %v5992, %v7591
  %v7719 = vmul.f32 %v5997, %v7591
  %v7720 = vmul.f32 %v6002, %v7591
  %v7721 = vmul.f32 %v6007, %v7591
  %v7722 = vmul.f32 %v6012, %v7591
  %v7723 = vmul.f32 %v6017, %v7591
  %v7724 = vmul.f32 %v6022, %v7591
  %v7725 = vmul.f32 %v6027, %v7591
  %v7726 = vmul.f32 %v6032, %v7591
  %v7727 = vmul.f32 %v6037, %v7591
  %7728 = vadd.xlane.f32.xlu0 %v7600
  %v7729 = vpop.xlane.xlu0 %7728
  %7730 = vadd.xlane.f32.xlu0 %v7601
  %v7731 = vpop.xlane.xlu0 %7730
  %7732 = vadd.xlane.f32.xlu0 %v7602
  %v7733 = vpop.xlane.xlu0 %7732
  %7734 = vadd.xlane.f32.xlu0 %v7603
  %v7735 = vpop.xlane.xlu0 %7734
  %7736 = vadd.xlane.f32.xlu0 %v7604
  %v7737 = vpop.xlane.xlu0 %7736
  %7738 = vadd.xlane.f32.xlu0 %v7605
  %v7739 = vpop.xlane.xlu0 %7738
  %7740 = vadd.xlane.f32.xlu0 %v7606
  %v7741 = vpop.xlane.xlu0 %7740
  %7742 = vadd.xlane.f32.xlu0 %v7607
  %v7743 = vpop.xlane.xlu0 %7742
  %7744 = vadd.xlane.f32.xlu0 %v7608
  %v7745 = vpop.xlane.xlu0 %7744
  %7746 = vadd.xlane.f32.xlu0 %v7609
  %v7747 = vpop.xlane.xlu0 %7746
  %7748 = vadd.xlane.f32.xlu0 %v7610
  %v7749 = vpop.xlane.xlu0 %7748
  %7750 = vadd.xlane.f32.xlu0 %v7611
  %v7751 = vpop.xlane.xlu0 %7750
  %7752 = vadd.xlane.f32.xlu0 %v7612
  %v7753 = vpop.xlane.xlu0 %7752
  %7754 = vadd.xlane.f32.xlu0 %v7613
  %v7755 = vpop.xlane.xlu0 %7754
  %7756 = vadd.xlane.f32.xlu0 %v7614
  %v7757 = vpop.xlane.xlu0 %7756
  %7758 = vadd.xlane.f32.xlu0 %v7615
  %v7759 = vpop.xlane.xlu0 %7758
  %7760 = vadd.xlane.f32.xlu0 %v7616
  %v7761 = vpop.xlane.xlu0 %7760
  %7762 = vadd.xlane.f32.xlu0 %v7617
  %v7763 = vpop.xlane.xlu0 %7762
  %7764 = vadd.xlane.f32.xlu0 %v7618
  %v7765 = vpop.xlane.xlu0 %7764
  %7766 = vadd.xlane.f32.xlu0 %v7619
  %v7767 = vpop.xlane.xlu0 %7766
  %7768 = vadd.xlane.f32.xlu0 %v7620
  %v7769 = vpop.xlane.xlu0 %7768
  %7770 = vadd.xlane.f32.xlu0 %v7621
  %v7771 = vpop.xlane.xlu0 %7770
  %7772 = vadd.xlane.f32.xlu0 %v7622
  %v7773 = vpop.xlane.xlu0 %7772
  %7774 = vadd.xlane.f32.xlu0 %v7623
  %v7775 = vpop.xlane.xlu0 %7774
  %7776 = vadd.xlane.f32.xlu0 %v7624
  %v7777 = vpop.xlane.xlu0 %7776
  %7778 = vadd.xlane.f32.xlu0 %v7625
  %v7779 = vpop.xlane.xlu0 %7778
  %7780 = vadd.xlane.f32.xlu0 %v7626
  %v7781 = vpop.xlane.xlu0 %7780
  %7782 = vadd.xlane.f32.xlu0 %v7627
  %v7783 = vpop.xlane.xlu0 %7782
  %7784 = vadd.xlane.f32.xlu0 %v7628
  %v7785 = vpop.xlane.xlu0 %7784
  %7786 = vadd.xlane.f32.xlu0 %v7629
  %v7787 = vpop.xlane.xlu0 %7786
  %7788 = vadd.xlane.f32.xlu0 %v7630
  %v7789 = vpop.xlane.xlu0 %7788
  %7790 = vadd.xlane.f32.xlu0 %v7631
  %v7791 = vpop.xlane.xlu0 %7790
  %7792 = vadd.xlane.f32.xlu0 %v7632
  %v7793 = vpop.xlane.xlu0 %7792
  %7794 = vadd.xlane.f32.xlu0 %v7633
  %v7795 = vpop.xlane.xlu0 %7794
  %7796 = vadd.xlane.f32.xlu0 %v7634
  %v7797 = vpop.xlane.xlu0 %7796
  %7798 = vadd.xlane.f32.xlu0 %v7635
  %v7799 = vpop.xlane.xlu0 %7798
  %7800 = vadd.xlane.f32.xlu0 %v7636
  %v7801 = vpop.xlane.xlu0 %7800
  %7802 = vadd.xlane.f32.xlu0 %v7637
  %v7803 = vpop.xlane.xlu0 %7802
  %7804 = vadd.xlane.f32.xlu0 %v7638
  %v7805 = vpop.xlane.xlu0 %7804
  %7806 = vadd.xlane.f32.xlu0 %v7639
  %v7807 = vpop.xlane.xlu0 %7806
  %7808 = vadd.xlane.f32.xlu0 %v7640
  %v7809 = vpop.xlane.xlu0 %7808
  %7810 = vadd.xlane.f32.xlu0 %v7641
  %v7811 = vpop.xlane.xlu0 %7810
  %7812 = vadd.xlane.f32.xlu0 %v7642
  %v7813 = vpop.xlane.xlu0 %7812
  %7814 = vadd.xlane.f32.xlu0 %v7643
  %v7815 = vpop.xlane.xlu0 %7814
  %7816 = vadd.xlane.f32.xlu0 %v7644
  %v7817 = vpop.xlane.xlu0 %7816
  %7818 = vadd.xlane.f32.xlu0 %v7645
  %v7819 = vpop.xlane.xlu0 %7818
  %7820 = vadd.xlane.f32.xlu0 %v7646
  %v7821 = vpop.xlane.xlu0 %7820
  %7822 = vadd.xlane.f32.xlu0 %v7647
  %v7823 = vpop.xlane.xlu0 %7822
  %7824 = vadd.xlane.f32.xlu0 %v7648
  %v7825 = vpop.xlane.xlu0 %7824
  %7826 = vadd.xlane.f32.xlu0 %v7649
  %v7827 = vpop.xlane.xlu0 %7826
  %7828 = vadd.xlane.f32.xlu0 %v7650
  %v7829 = vpop.xlane.xlu0 %7828
  %7830 = vadd.xlane.f32.xlu0 %v7651
  %v7831 = vpop.xlane.xlu0 %7830
  %7832 = vadd.xlane.f32.xlu0 %v7652
  %v7833 = vpop.xlane.xlu0 %7832
  %7834 = vadd.xlane.f32.xlu0 %v7653
  %v7835 = vpop.xlane.xlu0 %7834
  %7836 = vadd.xlane.f32.xlu0 %v7654
  %v7837 = vpop.xlane.xlu0 %7836
  %7838 = vadd.xlane.f32.xlu0 %v7655
  %v7839 = vpop.xlane.xlu0 %7838
  %7840 = vadd.xlane.f32.xlu0 %v7656
  %v7841 = vpop.xlane.xlu0 %7840
  %7842 = vadd.xlane.f32.xlu0 %v7657
  %v7843 = vpop.xlane.xlu0 %7842
  %7844 = vadd.xlane.f32.xlu0 %v7658
  %v7845 = vpop.xlane.xlu0 %7844
  %7846 = vadd.xlane.f32.xlu0 %v7659
  %v7847 = vpop.xlane.xlu0 %7846
  %7848 = vadd.xlane.f32.xlu0 %v7660
  %v7849 = vpop.xlane.xlu0 %7848
  %7850 = vadd.xlane.f32.xlu0 %v7661
  %v7851 = vpop.xlane.xlu0 %7850
  %7852 = vadd.xlane.f32.xlu0 %v7662
  %v7853 = vpop.xlane.xlu0 %7852
  %7854 = vadd.xlane.f32.xlu0 %v7663
  %v7855 = vpop.xlane.xlu0 %7854
  %7856 = vadd.xlane.f32.xlu0 %v7664
  %v7857 = vpop.xlane.xlu0 %7856
  %7858 = vadd.xlane.f32.xlu0 %v7665
  %v7859 = vpop.xlane.xlu0 %7858
  %7860 = vadd.xlane.f32.xlu0 %v7666
  %v7861 = vpop.xlane.xlu0 %7860
  %7862 = vadd.xlane.f32.xlu0 %v7667
  %v7863 = vpop.xlane.xlu0 %7862
  %7864 = vadd.xlane.f32.xlu0 %v7668
  %v7865 = vpop.xlane.xlu0 %7864
  %7866 = vadd.xlane.f32.xlu0 %v7669
  %v7867 = vpop.xlane.xlu0 %7866
  %7868 = vadd.xlane.f32.xlu0 %v7670
  %v7869 = vpop.xlane.xlu0 %7868
  %7870 = vadd.xlane.f32.xlu0 %v7671
  %v7871 = vpop.xlane.xlu0 %7870
  %7872 = vadd.xlane.f32.xlu0 %v7672
  %v7873 = vpop.xlane.xlu0 %7872
  %7874 = vadd.xlane.f32.xlu0 %v7673
  %v7875 = vpop.xlane.xlu0 %7874
  %7876 = vadd.xlane.f32.xlu0 %v7674
  %v7877 = vpop.xlane.xlu0 %7876
  %7878 = vadd.xlane.f32.xlu0 %v7675
  %v7879 = vpop.xlane.xlu0 %7878
  %7880 = vadd.xlane.f32.xlu0 %v7676
  %v7881 = vpop.xlane.xlu0 %7880
  %7882 = vadd.xlane.f32.xlu0 %v7677
  %v7883 = vpop.xlane.xlu0 %7882
  %7884 = vadd.xlane.f32.xlu0 %v7678
  %v7885 = vpop.xlane.xlu0 %7884
  %7886 = vadd.xlane.f32.xlu0 %v7679
  %v7887 = vpop.xlane.xlu0 %7886
  %7888 = vadd.xlane.f32.xlu0 %v7680
  %v7889 = vpop.xlane.xlu0 %7888
  %7890 = vadd.xlane.f32.xlu0 %v7681
  %v7891 = vpop.xlane.xlu0 %7890
  %7892 = vadd.xlane.f32.xlu0 %v7682
  %v7893 = vpop.xlane.xlu0 %7892
  %7894 = vadd.xlane.f32.xlu0 %v7683
  %v7895 = vpop.xlane.xlu0 %7894
  %7896 = vadd.xlane.f32.xlu0 %v7684
  %v7897 = vpop.xlane.xlu0 %7896
  %7898 = vadd.xlane.f32.xlu0 %v7685
  %v7899 = vpop.xlane.xlu0 %7898
  %7900 = vadd.xlane.f32.xlu0 %v7686
  %v7901 = vpop.xlane.xlu0 %7900
  %7902 = vadd.xlane.f32.xlu0 %v7687
  %v7903 = vpop.xlane.xlu0 %7902
  %7904 = vadd.xlane.f32.xlu0 %v7688
  %v7905 = vpop.xlane.xlu0 %7904
  %7906 = vadd.xlane.f32.xlu0 %v7689
  %v7907 = vpop.xlane.xlu0 %7906
  %7908 = vadd.xlane.f32.xlu0 %v7690
  %v7909 = vpop.xlane.xlu0 %7908
  %7910 = vadd.xlane.f32.xlu0 %v7691
  %v7911 = vpop.xlane.xlu0 %7910
  %7912 = vadd.xlane.f32.xlu0 %v7692
  %v7913 = vpop.xlane.xlu0 %7912
  %7914 = vadd.xlane.f32.xlu0 %v7693
  %v7915 = vpop.xlane.xlu0 %7914
  %7916 = vadd.xlane.f32.xlu0 %v7694
  %v7917 = vpop.xlane.xlu0 %7916
  %7918 = vadd.xlane.f32.xlu0 %v7695
  %v7919 = vpop.xlane.xlu0 %7918
  %7920 = vadd.xlane.f32.xlu0 %v7696
  %v7921 = vpop.xlane.xlu0 %7920
  %7922 = vadd.xlane.f32.xlu0 %v7697
  %v7923 = vpop.xlane.xlu0 %7922
  %7924 = vadd.xlane.f32.xlu0 %v7698
  %v7925 = vpop.xlane.xlu0 %7924
  %7926 = vadd.xlane.f32.xlu0 %v7699
  %v7927 = vpop.xlane.xlu0 %7926
  %7928 = vadd.xlane.f32.xlu0 %v7700
  %v7929 = vpop.xlane.xlu0 %7928
  %7930 = vadd.xlane.f32.xlu0 %v7701
  %v7931 = vpop.xlane.xlu0 %7930
  %7932 = vadd.xlane.f32.xlu0 %v7702
  %v7933 = vpop.xlane.xlu0 %7932
  %7934 = vadd.xlane.f32.xlu0 %v7703
  %v7935 = vpop.xlane.xlu0 %7934
  %7936 = vadd.xlane.f32.xlu0 %v7704
  %v7937 = vpop.xlane.xlu0 %7936
  %7938 = vadd.xlane.f32.xlu0 %v7705
  %v7939 = vpop.xlane.xlu0 %7938
  %7940 = vadd.xlane.f32.xlu0 %v7706
  %v7941 = vpop.xlane.xlu0 %7940
  %7942 = vadd.xlane.f32.xlu0 %v7707
  %v7943 = vpop.xlane.xlu0 %7942
  %7944 = vadd.xlane.f32.xlu0 %v7708
  %v7945 = vpop.xlane.xlu0 %7944
  %7946 = vadd.xlane.f32.xlu0 %v7709
  %v7947 = vpop.xlane.xlu0 %7946
  %7948 = vadd.xlane.f32.xlu0 %v7710
  %v7949 = vpop.xlane.xlu0 %7948
  %7950 = vadd.xlane.f32.xlu0 %v7711
  %v7951 = vpop.xlane.xlu0 %7950
  %7952 = vadd.xlane.f32.xlu0 %v7712
  %v7953 = vpop.xlane.xlu0 %7952
  %7954 = vadd.xlane.f32.xlu0 %v7713
  %v7955 = vpop.xlane.xlu0 %7954
  %7956 = vadd.xlane.f32.xlu0 %v7714
  %v7957 = vpop.xlane.xlu0 %7956
  %7958 = vadd.xlane.f32.xlu0 %v7715
  %v7959 = vpop.xlane.xlu0 %7958
  %7960 = vadd.xlane.f32.xlu0 %v7716
  %v7961 = vpop.xlane.xlu0 %7960
  %7962 = vadd.xlane.f32.xlu0 %v7717
  %v7963 = vpop.xlane.xlu0 %7962
  %7964 = vadd.xlane.f32.xlu0 %v7718
  %v7965 = vpop.xlane.xlu0 %7964
  %7966 = vadd.xlane.f32.xlu0 %v7719
  %v7967 = vpop.xlane.xlu0 %7966
  %7968 = vadd.xlane.f32.xlu0 %v7720
  %v7969 = vpop.xlane.xlu0 %7968
  %7970 = vadd.xlane.f32.xlu0 %v7721
  %v7971 = vpop.xlane.xlu0 %7970
  %7972 = vadd.xlane.f32.xlu0 %v7722
  %v7973 = vpop.xlane.xlu0 %7972
  %7974 = vadd.xlane.f32.xlu0 %v7723
  %v7975 = vpop.xlane.xlu0 %7974
  %7976 = vadd.xlane.f32.xlu0 %v7724
  %v7977 = vpop.xlane.xlu0 %7976
  %7978 = vadd.xlane.f32.xlu0 %v7725
  %v7979 = vpop.xlane.xlu0 %7978
  %7980 = vadd.xlane.f32.xlu0 %v7726
  %v7981 = vpop.xlane.xlu0 %7980
  %7982 = vadd.xlane.f32.xlu0 %v7727
  %v7983 = vpop.xlane.xlu0 %7982
  %v8112 = vlaneseq
  %v8113 = vshrl.u32 %v8112, 7
  %v8114 = vsub.s32 %v46, %v8113
  %v8115 = vrot.slane %v7729, %v8114
  %v8116 = vlaneseq
  %v8117 = vshrl.u32 %v8116, 7
  %v8118 = vsub.s32 %v3025, %v8117
  %v8119 = vrot.slane %v7731, %v8118
  %v8120 = vsel %vm3030, %v8119, %v8115
  %v8121 = vlaneseq
  %v8122 = vshrl.u32 %v8121, 7
  %v8123 = vsub.s32 %v3032, %v8122
  %v8124 = vrot.slane %v7733, %v8123
  %v8125 = vsel %vm3037, %v8124, %v8120
  %v8126 = vlaneseq
  %v8127 = vshrl.u32 %v8126, 7
  %v8128 = vsub.s32 %v3039, %v8127
  %v8129 = vrot.slane %v7735, %v8128
  %v8130 = vsel %vm3044, %v8129, %v8125
  %v8131 = vlaneseq
  %v8132 = vshrl.u32 %v8131, 7
  %v8133 = vsub.s32 %v3046, %v8132
  %v8134 = vrot.slane %v7737, %v8133
  %v8135 = vsel %vm3051, %v8134, %v8130
  %v8136 = vlaneseq
  %v8137 = vshrl.u32 %v8136, 7
  %v8138 = vsub.s32 %v3053, %v8137
  %v8139 = vrot.slane %v7739, %v8138
  %v8140 = vsel %vm3058, %v8139, %v8135
  %v8141 = vlaneseq
  %v8142 = vshrl.u32 %v8141, 7
  %v8143 = vsub.s32 %v3060, %v8142
  %v8144 = vrot.slane %v7741, %v8143
  %v8145 = vsel %vm3065, %v8144, %v8140
  %v8146 = vlaneseq
  %v8147 = vshrl.u32 %v8146, 7
  %v8148 = vsub.s32 %v3067, %v8147
  %v8149 = vrot.slane %v7743, %v8148
  %v8150 = vsel %vm3072, %v8149, %v8145
  %v8151 = vlaneseq
  %v8152 = vshrl.u32 %v8151, 7
  %v8153 = vsub.s32 %v3074, %v8152
  %v8154 = vrot.slane %v7745, %v8153
  %v8155 = vsel %vm3079, %v8154, %v8150
  %v8156 = vlaneseq
  %v8157 = vshrl.u32 %v8156, 7
  %v8158 = vsub.s32 %v3081, %v8157
  %v8159 = vrot.slane %v7747, %v8158
  %v8160 = vsel %vm3086, %v8159, %v8155
  %v8161 = vlaneseq
  %v8162 = vshrl.u32 %v8161, 7
  %v8163 = vsub.s32 %v3088, %v8162
  %v8164 = vrot.slane %v7749, %v8163
  %v8165 = vsel %vm3093, %v8164, %v8160
  %v8166 = vlaneseq
  %v8167 = vshrl.u32 %v8166, 7
  %v8168 = vsub.s32 %v3095, %v8167
  %v8169 = vrot.slane %v7751, %v8168
  %v8170 = vsel %vm3100, %v8169, %v8165
  %v8171 = vlaneseq
  %v8172 = vshrl.u32 %v8171, 7
  %v8173 = vsub.s32 %v3102, %v8172
  %v8174 = vrot.slane %v7753, %v8173
  %v8175 = vsel %vm3107, %v8174, %v8170
  %v8176 = vlaneseq
  %v8177 = vshrl.u32 %v8176, 7
  %v8178 = vsub.s32 %v3109, %v8177
  %v8179 = vrot.slane %v7755, %v8178
  %v8180 = vsel %vm3114, %v8179, %v8175
  %v8181 = vlaneseq
  %v8182 = vshrl.u32 %v8181, 7
  %v8183 = vsub.s32 %v3116, %v8182
  %v8184 = vrot.slane %v7757, %v8183
  %v8185 = vsel %vm3121, %v8184, %v8180
  %v8186 = vlaneseq
  %v8187 = vshrl.u32 %v8186, 7
  %v8188 = vsub.s32 %v3123, %v8187
  %v8189 = vrot.slane %v7759, %v8188
  %v8190 = vsel %vm3128, %v8189, %v8185
  %v8191 = vlaneseq
  %v8192 = vshrl.u32 %v8191, 7
  %v8193 = vsub.s32 %v46, %v8192
  %v8194 = vrot.slane %v7761, %v8193
  %v8195 = vlaneseq
  %v8196 = vshrl.u32 %v8195, 7
  %v8197 = vsub.s32 %v3025, %v8196
  %v8198 = vrot.slane %v7763, %v8197
  %v8199 = vsel %vm3030, %v8198, %v8194
  %v8200 = vlaneseq
  %v8201 = vshrl.u32 %v8200, 7
  %v8202 = vsub.s32 %v3032, %v8201
  %v8203 = vrot.slane %v7765, %v8202
  %v8204 = vsel %vm3037, %v8203, %v8199
  %v8205 = vlaneseq
  %v8206 = vshrl.u32 %v8205, 7
  %v8207 = vsub.s32 %v3039, %v8206
  %v8208 = vrot.slane %v7767, %v8207
  %v8209 = vsel %vm3044, %v8208, %v8204
  %v8210 = vlaneseq
  %v8211 = vshrl.u32 %v8210, 7
  %v8212 = vsub.s32 %v3046, %v8211
  %v8213 = vrot.slane %v7769, %v8212
  %v8214 = vsel %vm3051, %v8213, %v8209
  %v8215 = vlaneseq
  %v8216 = vshrl.u32 %v8215, 7
  %v8217 = vsub.s32 %v3053, %v8216
  %v8218 = vrot.slane %v7771, %v8217
  %v8219 = vsel %vm3058, %v8218, %v8214
  %v8220 = vlaneseq
  %v8221 = vshrl.u32 %v8220, 7
  %v8222 = vsub.s32 %v3060, %v8221
  %v8223 = vrot.slane %v7773, %v8222
  %v8224 = vsel %vm3065, %v8223, %v8219
  %v8225 = vlaneseq
  %v8226 = vshrl.u32 %v8225, 7
  %v8227 = vsub.s32 %v3067, %v8226
  %v8228 = vrot.slane %v7775, %v8227
  %v8229 = vsel %vm3072, %v8228, %v8224
  %v8230 = vlaneseq
  %v8231 = vshrl.u32 %v8230, 7
  %v8232 = vsub.s32 %v3074, %v8231
  %v8233 = vrot.slane %v7777, %v8232
  %v8234 = vsel %vm3079, %v8233, %v8229
  %v8235 = vlaneseq
  %v8236 = vshrl.u32 %v8235, 7
  %v8237 = vsub.s32 %v3081, %v8236
  %v8238 = vrot.slane %v7779, %v8237
  %v8239 = vsel %vm3086, %v8238, %v8234
  %v8240 = vlaneseq
  %v8241 = vshrl.u32 %v8240, 7
  %v8242 = vsub.s32 %v3088, %v8241
  %v8243 = vrot.slane %v7781, %v8242
  %v8244 = vsel %vm3093, %v8243, %v8239
  %v8245 = vlaneseq
  %v8246 = vshrl.u32 %v8245, 7
  %v8247 = vsub.s32 %v3095, %v8246
  %v8248 = vrot.slane %v7783, %v8247
  %v8249 = vsel %vm3100, %v8248, %v8244
  %v8250 = vlaneseq
  %v8251 = vshrl.u32 %v8250, 7
  %v8252 = vsub.s32 %v3102, %v8251
  %v8253 = vrot.slane %v7785, %v8252
  %v8254 = vsel %vm3107, %v8253, %v8249
  %v8255 = vlaneseq
  %v8256 = vshrl.u32 %v8255, 7
  %v8257 = vsub.s32 %v3109, %v8256
  %v8258 = vrot.slane %v7787, %v8257
  %v8259 = vsel %vm3114, %v8258, %v8254
  %v8260 = vlaneseq
  %v8261 = vshrl.u32 %v8260, 7
  %v8262 = vsub.s32 %v3116, %v8261
  %v8263 = vrot.slane %v7789, %v8262
  %v8264 = vsel %vm3121, %v8263, %v8259
  %v8265 = vlaneseq
  %v8266 = vshrl.u32 %v8265, 7
  %v8267 = vsub.s32 %v3123, %v8266
  %v8268 = vrot.slane %v7791, %v8267
  %v8269 = vsel %vm3128, %v8268, %v8264
  %v8270 = vlaneseq
  %v8271 = vshrl.u32 %v8270, 7
  %v8272 = vsub.s32 %v46, %v8271
  %v8273 = vrot.slane %v7793, %v8272
  %v8274 = vlaneseq
  %v8275 = vshrl.u32 %v8274, 7
  %v8276 = vsub.s32 %v3025, %v8275
  %v8277 = vrot.slane %v7795, %v8276
  %v8278 = vsel %vm3030, %v8277, %v8273
  %v8279 = vlaneseq
  %v8280 = vshrl.u32 %v8279, 7
  %v8281 = vsub.s32 %v3032, %v8280
  %v8282 = vrot.slane %v7797, %v8281
  %v8283 = vsel %vm3037, %v8282, %v8278
  %v8284 = vlaneseq
  %v8285 = vshrl.u32 %v8284, 7
  %v8286 = vsub.s32 %v3039, %v8285
  %v8287 = vrot.slane %v7799, %v8286
  %v8288 = vsel %vm3044, %v8287, %v8283
  %v8289 = vlaneseq
  %v8290 = vshrl.u32 %v8289, 7
  %v8291 = vsub.s32 %v3046, %v8290
  %v8292 = vrot.slane %v7801, %v8291
  %v8293 = vsel %vm3051, %v8292, %v8288
  %v8294 = vlaneseq
  %v8295 = vshrl.u32 %v8294, 7
  %v8296 = vsub.s32 %v3053, %v8295
  %v8297 = vrot.slane %v7803, %v8296
  %v8298 = vsel %vm3058, %v8297, %v8293
  %v8299 = vlaneseq
  %v8300 = vshrl.u32 %v8299, 7
  %v8301 = vsub.s32 %v3060, %v8300
  %v8302 = vrot.slane %v7805, %v8301
  %v8303 = vsel %vm3065, %v8302, %v8298
  %v8304 = vlaneseq
  %v8305 = vshrl.u32 %v8304, 7
  %v8306 = vsub.s32 %v3067, %v8305
  %v8307 = vrot.slane %v7807, %v8306
  %v8308 = vsel %vm3072, %v8307, %v8303
  %v8309 = vlaneseq
  %v8310 = vshrl.u32 %v8309, 7
  %v8311 = vsub.s32 %v3074, %v8310
  %v8312 = vrot.slane %v7809, %v8311
  %v8313 = vsel %vm3079, %v8312, %v8308
  %v8314 = vlaneseq
  %v8315 = vshrl.u32 %v8314, 7
  %v8316 = vsub.s32 %v3081, %v8315
  %v8317 = vrot.slane %v7811, %v8316
  %v8318 = vsel %vm3086, %v8317, %v8313
  %v8319 = vlaneseq
  %v8320 = vshrl.u32 %v8319, 7
  %v8321 = vsub.s32 %v3088, %v8320
  %v8322 = vrot.slane %v7813, %v8321
  %v8323 = vsel %vm3093, %v8322, %v8318
  %v8324 = vlaneseq
  %v8325 = vshrl.u32 %v8324, 7
  %v8326 = vsub.s32 %v3095, %v8325
  %v8327 = vrot.slane %v7815, %v8326
  %v8328 = vsel %vm3100, %v8327, %v8323
  %v8329 = vlaneseq
  %v8330 = vshrl.u32 %v8329, 7
  %v8331 = vsub.s32 %v3102, %v8330
  %v8332 = vrot.slane %v7817, %v8331
  %v8333 = vsel %vm3107, %v8332, %v8328
  %v8334 = vlaneseq
  %v8335 = vshrl.u32 %v8334, 7
  %v8336 = vsub.s32 %v3109, %v8335
  %v8337 = vrot.slane %v7819, %v8336
  %v8338 = vsel %vm3114, %v8337, %v8333
  %v8339 = vlaneseq
  %v8340 = vshrl.u32 %v8339, 7
  %v8341 = vsub.s32 %v3116, %v8340
  %v8342 = vrot.slane %v7821, %v8341
  %v8343 = vsel %vm3121, %v8342, %v8338
  %v8344 = vlaneseq
  %v8345 = vshrl.u32 %v8344, 7
  %v8346 = vsub.s32 %v3123, %v8345
  %v8347 = vrot.slane %v7823, %v8346
  %v8348 = vsel %vm3128, %v8347, %v8343
  %v8349 = vlaneseq
  %v8350 = vshrl.u32 %v8349, 7
  %v8351 = vsub.s32 %v46, %v8350
  %v8352 = vrot.slane %v7825, %v8351
  %v8353 = vlaneseq
  %v8354 = vshrl.u32 %v8353, 7
  %v8355 = vsub.s32 %v3025, %v8354
  %v8356 = vrot.slane %v7827, %v8355
  %v8357 = vsel %vm3030, %v8356, %v8352
  %v8358 = vlaneseq
  %v8359 = vshrl.u32 %v8358, 7
  %v8360 = vsub.s32 %v3032, %v8359
  %v8361 = vrot.slane %v7829, %v8360
  %v8362 = vsel %vm3037, %v8361, %v8357
  %v8363 = vlaneseq
  %v8364 = vshrl.u32 %v8363, 7
  %v8365 = vsub.s32 %v3039, %v8364
  %v8366 = vrot.slane %v7831, %v8365
  %v8367 = vsel %vm3044, %v8366, %v8362
  %v8368 = vlaneseq
  %v8369 = vshrl.u32 %v8368, 7
  %v8370 = vsub.s32 %v3046, %v8369
  %v8371 = vrot.slane %v7833, %v8370
  %v8372 = vsel %vm3051, %v8371, %v8367
  %v8373 = vlaneseq
  %v8374 = vshrl.u32 %v8373, 7
  %v8375 = vsub.s32 %v3053, %v8374
  %v8376 = vrot.slane %v7835, %v8375
  %v8377 = vsel %vm3058, %v8376, %v8372
  %v8378 = vlaneseq
  %v8379 = vshrl.u32 %v8378, 7
  %v8380 = vsub.s32 %v3060, %v8379
  %v8381 = vrot.slane %v7837, %v8380
  %v8382 = vsel %vm3065, %v8381, %v8377
  %v8383 = vlaneseq
  %v8384 = vshrl.u32 %v8383, 7
  %v8385 = vsub.s32 %v3067, %v8384
  %v8386 = vrot.slane %v7839, %v8385
  %v8387 = vsel %vm3072, %v8386, %v8382
  %v8388 = vlaneseq
  %v8389 = vshrl.u32 %v8388, 7
  %v8390 = vsub.s32 %v3074, %v8389
  %v8391 = vrot.slane %v7841, %v8390
  %v8392 = vsel %vm3079, %v8391, %v8387
  %v8393 = vlaneseq
  %v8394 = vshrl.u32 %v8393, 7
  %v8395 = vsub.s32 %v3081, %v8394
  %v8396 = vrot.slane %v7843, %v8395
  %v8397 = vsel %vm3086, %v8396, %v8392
  %v8398 = vlaneseq
  %v8399 = vshrl.u32 %v8398, 7
  %v8400 = vsub.s32 %v3088, %v8399
  %v8401 = vrot.slane %v7845, %v8400
  %v8402 = vsel %vm3093, %v8401, %v8397
  %v8403 = vlaneseq
  %v8404 = vshrl.u32 %v8403, 7
  %v8405 = vsub.s32 %v3095, %v8404
  %v8406 = vrot.slane %v7847, %v8405
  %v8407 = vsel %vm3100, %v8406, %v8402
  %v8408 = vlaneseq
  %v8409 = vshrl.u32 %v8408, 7
  %v8410 = vsub.s32 %v3102, %v8409
  %v8411 = vrot.slane %v7849, %v8410
  %v8412 = vsel %vm3107, %v8411, %v8407
  %v8413 = vlaneseq
  %v8414 = vshrl.u32 %v8413, 7
  %v8415 = vsub.s32 %v3109, %v8414
  %v8416 = vrot.slane %v7851, %v8415
  %v8417 = vsel %vm3114, %v8416, %v8412
  %v8418 = vlaneseq
  %v8419 = vshrl.u32 %v8418, 7
  %v8420 = vsub.s32 %v3116, %v8419
  %v8421 = vrot.slane %v7853, %v8420
  %v8422 = vsel %vm3121, %v8421, %v8417
  %v8423 = vlaneseq
  %v8424 = vshrl.u32 %v8423, 7
  %v8425 = vsub.s32 %v3123, %v8424
  %v8426 = vrot.slane %v7855, %v8425
  %v8427 = vsel %vm3128, %v8426, %v8422
  %v8428 = vlaneseq
  %v8429 = vshrl.u32 %v8428, 7
  %v8430 = vsub.s32 %v46, %v8429
  %v8431 = vrot.slane %v7857, %v8430
  %v8432 = vlaneseq
  %v8433 = vshrl.u32 %v8432, 7
  %v8434 = vsub.s32 %v3025, %v8433
  %v8435 = vrot.slane %v7859, %v8434
  %v8436 = vsel %vm3030, %v8435, %v8431
  %v8437 = vlaneseq
  %v8438 = vshrl.u32 %v8437, 7
  %v8439 = vsub.s32 %v3032, %v8438
  %v8440 = vrot.slane %v7861, %v8439
  %v8441 = vsel %vm3037, %v8440, %v8436
  %v8442 = vlaneseq
  %v8443 = vshrl.u32 %v8442, 7
  %v8444 = vsub.s32 %v3039, %v8443
  %v8445 = vrot.slane %v7863, %v8444
  %v8446 = vsel %vm3044, %v8445, %v8441
  %v8447 = vlaneseq
  %v8448 = vshrl.u32 %v8447, 7
  %v8449 = vsub.s32 %v3046, %v8448
  %v8450 = vrot.slane %v7865, %v8449
  %v8451 = vsel %vm3051, %v8450, %v8446
  %v8452 = vlaneseq
  %v8453 = vshrl.u32 %v8452, 7
  %v8454 = vsub.s32 %v3053, %v8453
  %v8455 = vrot.slane %v7867, %v8454
  %v8456 = vsel %vm3058, %v8455, %v8451
  %v8457 = vlaneseq
  %v8458 = vshrl.u32 %v8457, 7
  %v8459 = vsub.s32 %v3060, %v8458
  %v8460 = vrot.slane %v7869, %v8459
  %v8461 = vsel %vm3065, %v8460, %v8456
  %v8462 = vlaneseq
  %v8463 = vshrl.u32 %v8462, 7
  %v8464 = vsub.s32 %v3067, %v8463
  %v8465 = vrot.slane %v7871, %v8464
  %v8466 = vsel %vm3072, %v8465, %v8461
  %v8467 = vlaneseq
  %v8468 = vshrl.u32 %v8467, 7
  %v8469 = vsub.s32 %v3074, %v8468
  %v8470 = vrot.slane %v7873, %v8469
  %v8471 = vsel %vm3079, %v8470, %v8466
  %v8472 = vlaneseq
  %v8473 = vshrl.u32 %v8472, 7
  %v8474 = vsub.s32 %v3081, %v8473
  %v8475 = vrot.slane %v7875, %v8474
  %v8476 = vsel %vm3086, %v8475, %v8471
  %v8477 = vlaneseq
  %v8478 = vshrl.u32 %v8477, 7
  %v8479 = vsub.s32 %v3088, %v8478
  %v8480 = vrot.slane %v7877, %v8479
  %v8481 = vsel %vm3093, %v8480, %v8476
  %v8482 = vlaneseq
  %v8483 = vshrl.u32 %v8482, 7
  %v8484 = vsub.s32 %v3095, %v8483
  %v8485 = vrot.slane %v7879, %v8484
  %v8486 = vsel %vm3100, %v8485, %v8481
  %v8487 = vlaneseq
  %v8488 = vshrl.u32 %v8487, 7
  %v8489 = vsub.s32 %v3102, %v8488
  %v8490 = vrot.slane %v7881, %v8489
  %v8491 = vsel %vm3107, %v8490, %v8486
  %v8492 = vlaneseq
  %v8493 = vshrl.u32 %v8492, 7
  %v8494 = vsub.s32 %v3109, %v8493
  %v8495 = vrot.slane %v7883, %v8494
  %v8496 = vsel %vm3114, %v8495, %v8491
  %v8497 = vlaneseq
  %v8498 = vshrl.u32 %v8497, 7
  %v8499 = vsub.s32 %v3116, %v8498
  %v8500 = vrot.slane %v7885, %v8499
  %v8501 = vsel %vm3121, %v8500, %v8496
  %v8502 = vlaneseq
  %v8503 = vshrl.u32 %v8502, 7
  %v8504 = vsub.s32 %v3123, %v8503
  %v8505 = vrot.slane %v7887, %v8504
  %v8506 = vsel %vm3128, %v8505, %v8501
  %v8507 = vlaneseq
  %v8508 = vshrl.u32 %v8507, 7
  %v8509 = vsub.s32 %v46, %v8508
  %v8510 = vrot.slane %v7889, %v8509
  %v8511 = vlaneseq
  %v8512 = vshrl.u32 %v8511, 7
  %v8513 = vsub.s32 %v3025, %v8512
  %v8514 = vrot.slane %v7891, %v8513
  %v8515 = vsel %vm3030, %v8514, %v8510
  %v8516 = vlaneseq
  %v8517 = vshrl.u32 %v8516, 7
  %v8518 = vsub.s32 %v3032, %v8517
  %v8519 = vrot.slane %v7893, %v8518
  %v8520 = vsel %vm3037, %v8519, %v8515
  %v8521 = vlaneseq
  %v8522 = vshrl.u32 %v8521, 7
  %v8523 = vsub.s32 %v3039, %v8522
  %v8524 = vrot.slane %v7895, %v8523
  %v8525 = vsel %vm3044, %v8524, %v8520
  %v8526 = vlaneseq
  %v8527 = vshrl.u32 %v8526, 7
  %v8528 = vsub.s32 %v3046, %v8527
  %v8529 = vrot.slane %v7897, %v8528
  %v8530 = vsel %vm3051, %v8529, %v8525
  %v8531 = vlaneseq
  %v8532 = vshrl.u32 %v8531, 7
  %v8533 = vsub.s32 %v3053, %v8532
  %v8534 = vrot.slane %v7899, %v8533
  %v8535 = vsel %vm3058, %v8534, %v8530
  %v8536 = vlaneseq
  %v8537 = vshrl.u32 %v8536, 7
  %v8538 = vsub.s32 %v3060, %v8537
  %v8539 = vrot.slane %v7901, %v8538
  %v8540 = vsel %vm3065, %v8539, %v8535
  %v8541 = vlaneseq
  %v8542 = vshrl.u32 %v8541, 7
  %v8543 = vsub.s32 %v3067, %v8542
  %v8544 = vrot.slane %v7903, %v8543
  %v8545 = vsel %vm3072, %v8544, %v8540
  %v8546 = vlaneseq
  %v8547 = vshrl.u32 %v8546, 7
  %v8548 = vsub.s32 %v3074, %v8547
  %v8549 = vrot.slane %v7905, %v8548
  %v8550 = vsel %vm3079, %v8549, %v8545
  %v8551 = vlaneseq
  %v8552 = vshrl.u32 %v8551, 7
  %v8553 = vsub.s32 %v3081, %v8552
  %v8554 = vrot.slane %v7907, %v8553
  %v8555 = vsel %vm3086, %v8554, %v8550
  %v8556 = vlaneseq
  %v8557 = vshrl.u32 %v8556, 7
  %v8558 = vsub.s32 %v3088, %v8557
  %v8559 = vrot.slane %v7909, %v8558
  %v8560 = vsel %vm3093, %v8559, %v8555
  %v8561 = vlaneseq
  %v8562 = vshrl.u32 %v8561, 7
  %v8563 = vsub.s32 %v3095, %v8562
  %v8564 = vrot.slane %v7911, %v8563
  %v8565 = vsel %vm3100, %v8564, %v8560
  %v8566 = vlaneseq
  %v8567 = vshrl.u32 %v8566, 7
  %v8568 = vsub.s32 %v3102, %v8567
  %v8569 = vrot.slane %v7913, %v8568
  %v8570 = vsel %vm3107, %v8569, %v8565
  %v8571 = vlaneseq
  %v8572 = vshrl.u32 %v8571, 7
  %v8573 = vsub.s32 %v3109, %v8572
  %v8574 = vrot.slane %v7915, %v8573
  %v8575 = vsel %vm3114, %v8574, %v8570
  %v8576 = vlaneseq
  %v8577 = vshrl.u32 %v8576, 7
  %v8578 = vsub.s32 %v3116, %v8577
  %v8579 = vrot.slane %v7917, %v8578
  %v8580 = vsel %vm3121, %v8579, %v8575
  %v8581 = vlaneseq
  %v8582 = vshrl.u32 %v8581, 7
  %v8583 = vsub.s32 %v3123, %v8582
  %v8584 = vrot.slane %v7919, %v8583
  %v8585 = vsel %vm3128, %v8584, %v8580
  %v8586 = vlaneseq
  %v8587 = vshrl.u32 %v8586, 7
  %v8588 = vsub.s32 %v46, %v8587
  %v8589 = vrot.slane %v7921, %v8588
  %v8590 = vlaneseq
  %v8591 = vshrl.u32 %v8590, 7
  %v8592 = vsub.s32 %v3025, %v8591
  %v8593 = vrot.slane %v7923, %v8592
  %v8594 = vsel %vm3030, %v8593, %v8589
  %v8595 = vlaneseq
  %v8596 = vshrl.u32 %v8595, 7
  %v8597 = vsub.s32 %v3032, %v8596
  %v8598 = vrot.slane %v7925, %v8597
  %v8599 = vsel %vm3037, %v8598, %v8594
  %v8600 = vlaneseq
  %v8601 = vshrl.u32 %v8600, 7
  %v8602 = vsub.s32 %v3039, %v8601
  %v8603 = vrot.slane %v7927, %v8602
  %v8604 = vsel %vm3044, %v8603, %v8599
  %v8605 = vlaneseq
  %v8606 = vshrl.u32 %v8605, 7
  %v8607 = vsub.s32 %v3046, %v8606
  %v8608 = vrot.slane %v7929, %v8607
  %v8609 = vsel %vm3051, %v8608, %v8604
  %v8610 = vlaneseq
  %v8611 = vshrl.u32 %v8610, 7
  %v8612 = vsub.s32 %v3053, %v8611
  %v8613 = vrot.slane %v7931, %v8612
  %v8614 = vsel %vm3058, %v8613, %v8609
  %v8615 = vlaneseq
  %v8616 = vshrl.u32 %v8615, 7
  %v8617 = vsub.s32 %v3060, %v8616
  %v8618 = vrot.slane %v7933, %v8617
  %v8619 = vsel %vm3065, %v8618, %v8614
  %v8620 = vlaneseq
  %v8621 = vshrl.u32 %v8620, 7
  %v8622 = vsub.s32 %v3067, %v8621
  %v8623 = vrot.slane %v7935, %v8622
  %v8624 = vsel %vm3072, %v8623, %v8619
  %v8625 = vlaneseq
  %v8626 = vshrl.u32 %v8625, 7
  %v8627 = vsub.s32 %v3074, %v8626
  %v8628 = vrot.slane %v7937, %v8627
  %v8629 = vsel %vm3079, %v8628, %v8624
  %v8630 = vlaneseq
  %v8631 = vshrl.u32 %v8630, 7
  %v8632 = vsub.s32 %v3081, %v8631
  %v8633 = vrot.slane %v7939, %v8632
  %v8634 = vsel %vm3086, %v8633, %v8629
  %v8635 = vlaneseq
  %v8636 = vshrl.u32 %v8635, 7
  %v8637 = vsub.s32 %v3088, %v8636
  %v8638 = vrot.slane %v7941, %v8637
  %v8639 = vsel %vm3093, %v8638, %v8634
  %v8640 = vlaneseq
  %v8641 = vshrl.u32 %v8640, 7
  %v8642 = vsub.s32 %v3095, %v8641
  %v8643 = vrot.slane %v7943, %v8642
  %v8644 = vsel %vm3100, %v8643, %v8639
  %v8645 = vlaneseq
  %v8646 = vshrl.u32 %v8645, 7
  %v8647 = vsub.s32 %v3102, %v8646
  %v8648 = vrot.slane %v7945, %v8647
  %v8649 = vsel %vm3107, %v8648, %v8644
  %v8650 = vlaneseq
  %v8651 = vshrl.u32 %v8650, 7
  %v8652 = vsub.s32 %v3109, %v8651
  %v8653 = vrot.slane %v7947, %v8652
  %v8654 = vsel %vm3114, %v8653, %v8649
  %v8655 = vlaneseq
  %v8656 = vshrl.u32 %v8655, 7
  %v8657 = vsub.s32 %v3116, %v8656
  %v8658 = vrot.slane %v7949, %v8657
  %v8659 = vsel %vm3121, %v8658, %v8654
  %v8660 = vlaneseq
  %v8661 = vshrl.u32 %v8660, 7
  %v8662 = vsub.s32 %v3123, %v8661
  %v8663 = vrot.slane %v7951, %v8662
  %v8664 = vsel %vm3128, %v8663, %v8659
  %v8665 = vlaneseq
  %v8666 = vshrl.u32 %v8665, 7
  %v8667 = vsub.s32 %v46, %v8666
  %v8668 = vrot.slane %v7953, %v8667
  %v8669 = vlaneseq
  %v8670 = vshrl.u32 %v8669, 7
  %v8671 = vsub.s32 %v3025, %v8670
  %v8672 = vrot.slane %v7955, %v8671
  %v8673 = vsel %vm3030, %v8672, %v8668
  %v8674 = vlaneseq
  %v8675 = vshrl.u32 %v8674, 7
  %v8676 = vsub.s32 %v3032, %v8675
  %v8677 = vrot.slane %v7957, %v8676
  %v8678 = vsel %vm3037, %v8677, %v8673
  %v8679 = vlaneseq
  %v8680 = vshrl.u32 %v8679, 7
  %v8681 = vsub.s32 %v3039, %v8680
  %v8682 = vrot.slane %v7959, %v8681
  %v8683 = vsel %vm3044, %v8682, %v8678
  %v8684 = vlaneseq
  %v8685 = vshrl.u32 %v8684, 7
  %v8686 = vsub.s32 %v3046, %v8685
  %v8687 = vrot.slane %v7961, %v8686
  %v8688 = vsel %vm3051, %v8687, %v8683
  %v8689 = vlaneseq
  %v8690 = vshrl.u32 %v8689, 7
  %v8691 = vsub.s32 %v3053, %v8690
  %v8692 = vrot.slane %v7963, %v8691
  %v8693 = vsel %vm3058, %v8692, %v8688
  %v8694 = vlaneseq
  %v8695 = vshrl.u32 %v8694, 7
  %v8696 = vsub.s32 %v3060, %v8695
  %v8697 = vrot.slane %v7965, %v8696
  %v8698 = vsel %vm3065, %v8697, %v8693
  %v8699 = vlaneseq
  %v8700 = vshrl.u32 %v8699, 7
  %v8701 = vsub.s32 %v3067, %v8700
  %v8702 = vrot.slane %v7967, %v8701
  %v8703 = vsel %vm3072, %v8702, %v8698
  %v8704 = vlaneseq
  %v8705 = vshrl.u32 %v8704, 7
  %v8706 = vsub.s32 %v3074, %v8705
  %v8707 = vrot.slane %v7969, %v8706
  %v8708 = vsel %vm3079, %v8707, %v8703
  %v8709 = vlaneseq
  %v8710 = vshrl.u32 %v8709, 7
  %v8711 = vsub.s32 %v3081, %v8710
  %v8712 = vrot.slane %v7971, %v8711
  %v8713 = vsel %vm3086, %v8712, %v8708
  %v8714 = vlaneseq
  %v8715 = vshrl.u32 %v8714, 7
  %v8716 = vsub.s32 %v3088, %v8715
  %v8717 = vrot.slane %v7973, %v8716
  %v8718 = vsel %vm3093, %v8717, %v8713
  %v8719 = vlaneseq
  %v8720 = vshrl.u32 %v8719, 7
  %v8721 = vsub.s32 %v3095, %v8720
  %v8722 = vrot.slane %v7975, %v8721
  %v8723 = vsel %vm3100, %v8722, %v8718
  %v8724 = vlaneseq
  %v8725 = vshrl.u32 %v8724, 7
  %v8726 = vsub.s32 %v3102, %v8725
  %v8727 = vrot.slane %v7977, %v8726
  %v8728 = vsel %vm3107, %v8727, %v8723
  %v8729 = vlaneseq
  %v8730 = vshrl.u32 %v8729, 7
  %v8731 = vsub.s32 %v3109, %v8730
  %v8732 = vrot.slane %v7979, %v8731
  %v8733 = vsel %vm3114, %v8732, %v8728
  %v8734 = vlaneseq
  %v8735 = vshrl.u32 %v8734, 7
  %v8736 = vsub.s32 %v3116, %v8735
  %v8737 = vrot.slane %v7981, %v8736
  %v8738 = vsel %vm3121, %v8737, %v8733
  %v8739 = vlaneseq
  %v8740 = vshrl.u32 %v8739, 7
  %v8741 = vsub.s32 %v3123, %v8740
  %v8742 = vrot.slane %v7983, %v8741
  %v8743 = vsel %vm3128, %v8742, %v8738
  %v8744 = vsel %vm3683, %v8269, %v8190
  %v8745 = vsel %vm3685, %v8348, %v8744
  %v8746 = vsel %vm3687, %v8427, %v8745
  %v8747 = vsel %vm3689, %v8506, %v8746
  %v8748 = vsel %vm3691, %v8585, %v8747
  %v8749 = vsel %vm3693, %v8664, %v8748
  %v8750 = vsel %vm3695, %v8743, %v8749
  %v8752 = vmul.f32 %v7507, %v8750
  %8753 = vadd.xlane.f32.xlu0 %v8752
  %v8754 = vpop.xlane.xlu0 %8753
  %v8755 = vmul.f32 %v7422, %v7422
  %v8756 = vmul.f32 %v8755, %v5206
  %8757 = vadd.xlane.f32.xlu0 %v8756
  %v8758 = vpop.xlane.xlu0 %8757
  %s8759 = scalar_lea.vmem %s1, 384
  %v8760 = vld [vmem:[%s8759] sm:$0xff]
  %v8761 = vld [vmem:[%s8759 + $0x8] sm:$0xff]
  %v8762 = vld [vmem:[%s8759 + $0x10] sm:$0xff]
  %v8763 = vld [vmem:[%s8759 + $0x18] sm:$0xff]
  %v8764 = vld [vmem:[%s8759 + $0x20] sm:$0xff]
  %v8765 = vld [vmem:[%s8759 + $0x28] sm:$0xff]
  %v8766 = vld [vmem:[%s8759 + $0x30] sm:$0xff]
  %v8767 = vld [vmem:[%s8759 + $0x38] sm:$0xff]
  %v8768 = vld [vmem:[%s8759 + $0x40] sm:$0xff]
  %v8769 = vld [vmem:[%s8759 + $0x48] sm:$0xff]
  %v8770 = vld [vmem:[%s8759 + $0x50] sm:$0xff]
  %v8771 = vld [vmem:[%s8759 + $0x58] sm:$0xff]
  %v8772 = vld [vmem:[%s8759 + $0x60] sm:$0xff]
  %v8773 = vld [vmem:[%s8759 + $0x68] sm:$0xff]
  %v8774 = vld [vmem:[%s8759 + $0x70] sm:$0xff]
  %v8775 = vld [vmem:[%s8759 + $0x78] sm:$0xff]
  %s8776 = scalar_lea.vmem %s3, 3
  %v8777 = vld [vmem:[%s8776] sm:$0x1]
  %v8779 = vlaneseq
  %v8780 = vshrl.u32 %v8779, 7
  %v8781 = vsub.s32 0, %v8780
  %v8782 = vrot.slane %v8777, %v8781
  %8784 = vmatprep.subr.mxu0 0.0
  %8785 = vmatpush1.msra.mxu0 %v8760
  %8786 = vmatprep.subr.mxu0 0.0
  %8787 = vmatpush1.msra.mxu0 %v8761
  %8788 = vmatprep.subr.mxu0 0.0
  %8789 = vmatpush1.msra.mxu0 %v8762
  %8790 = vmatprep.subr.mxu0 0.0
  %8791 = vmatpush1.msra.mxu0 %v8763
  %8792 = vmatprep.subr.mxu0 0.0
  %8793 = vmatpush1.msra.mxu0 %v8764
  %8794 = vmatprep.subr.mxu0 0.0
  %8795 = vmatpush1.msra.mxu0 %v8765
  %8796 = vmatprep.subr.mxu0 0.0
  %8797 = vmatpush1.msra.mxu0 %v8766
  %8798 = vmatprep.subr.mxu0 0.0
  %8799 = vmatpush1.msra.mxu0 %v8767
  %8800 = vmatprep.subr.mxu0 0.0
  %8801 = vmatpush1.msra.mxu0 %v8768
  %8802 = vmatprep.subr.mxu0 0.0
  %8803 = vmatpush1.msra.mxu0 %v8769
  %8804 = vmatprep.subr.mxu0 0.0
  %8805 = vmatpush1.msra.mxu0 %v8770
  %8806 = vmatprep.subr.mxu0 0.0
  %8807 = vmatpush1.msra.mxu0 %v8771
  %8808 = vmatprep.subr.mxu0 0.0
  %8809 = vmatpush1.msra.mxu0 %v8772
  %8810 = vmatprep.subr.mxu0 0.0
  %8811 = vmatpush1.msra.mxu0 %v8773
  %8812 = vmatprep.subr.mxu0 0.0
  %8813 = vmatpush1.msra.mxu0 %v8774
  %8814 = vmatprep.subr.mxu0 0.0
  %8815 = vmatpush1.msra.mxu0 %v8775
  %8816 = vmatprep.subr.mxu0 0.0
  %8817 = vmatpush1.msra.mxu0 0.0
  %8818 = vmatprep.subr.mxu0 0.0
  %8819 = vmatpush1.msra.mxu0 0.0
  %8820 = vmatprep.subr.mxu0 0.0
  %8821 = vmatpush1.msra.mxu0 0.0
  %8822 = vmatprep.subr.mxu0 0.0
  %8823 = vmatpush1.msra.mxu0 0.0
  %8824 = vmatprep.subr.mxu0 0.0
  %8825 = vmatpush1.msra.mxu0 0.0
  %8826 = vmatprep.subr.mxu0 0.0
  %8827 = vmatpush1.msra.mxu0 0.0
  %8828 = vmatprep.subr.mxu0 0.0
  %8829 = vmatpush1.msra.mxu0 0.0
  %8830 = vmatprep.subr.mxu0 0.0
  %8831 = vmatpush1.msra.mxu0 0.0
  %8832 = vmatprep.subr.mxu0 0.0
  %8833 = vmatpush1.msra.mxu0 0.0
  %8834 = vmatprep.subr.mxu0 0.0
  %8835 = vmatpush1.msra.mxu0 0.0
  %8836 = vmatprep.subr.mxu0 0.0
  %8837 = vmatpush1.msra.mxu0 0.0
  %8838 = vmatprep.subr.mxu0 0.0
  %8839 = vmatpush1.msra.mxu0 0.0
  %8840 = vmatprep.subr.mxu0 0.0
  %8841 = vmatpush1.msra.mxu0 0.0
  %8842 = vmatprep.subr.mxu0 0.0
  %8843 = vmatpush1.msra.mxu0 0.0
  %8844 = vmatprep.subr.mxu0 0.0
  %8845 = vmatpush1.msra.mxu0 0.0
  %8846 = vmatprep.subr.mxu0 0.0
  %8847 = vmatpush1.msra.mxu0 0.0
  %8848 = vmatprep.mubr.f32.mxu0 0.0
  %8849 = vmatmul.mubr.f32.gmra.mrb[0].mxu0 %v5193
  %v8850 = vpop.f32.mrb[0].mxu0
  %v8851 = vadd.f32 %v8782, %v8850
  %v8852 = vpop.f32.mrb[0].mxu0
  %8853 = vdwg.mxu0
  %v8854 = vrot.slane %v8851, 4
  %v8855 = vadd.f32 %v8851, %v8854
  %v8856 = vrot.slane %v8855, 2
  %v8857 = vadd.f32 %v8855, %v8856
  %v8858 = vrot.slane %v8857, 1
  %v8859 = vadd.f32 %v8857, %v8858
  %v8860 = vmul.f32 %v8859, %v195
  %v8861 = vsub.f32 %v8851, %v8860
  %v8862 = vmul.f32 %v8861, %v8861
  %v8863 = vrot.slane %v8862, 4
  %v8864 = vadd.f32 %v8862, %v8863
  %v8865 = vrot.slane %v8864, 2
  %v8866 = vadd.f32 %v8864, %v8865
  %v8867 = vrot.slane %v8866, 1
  %v8868 = vadd.f32 %v8866, %v8867
  %v8869 = vmul.f32 %v8868, %v195
  %v8870 = vadd.f32 %v8869, 1e-05
  %v8871 = vrsqrt.pop %v8870
  %v8872 = vmul.f32 %v8861, %v8871
  %s8873 = scalar_lea.vmem %s5, 3
  %v8874 = vld [vmem:[%s8873] sm:$0x1]
  %v8876 = vlaneseq
  %v8877 = vshrl.u32 %v8876, 7
  %v8878 = vsub.s32 0, %v8877
  %v8879 = vrot.slane %v8874, %v8878
  %v8881 = vmul.f32 %v8872, %v8879
  %s8882 = scalar_lea.vmem %s6, 3
  %v8883 = vld [vmem:[%s8882] sm:$0x1]
  %v8885 = vlaneseq
  %v8886 = vshrl.u32 %v8885, 7
  %v8887 = vsub.s32 0, %v8886
  %v8888 = vrot.slane %v8883, %v8887
  %v8890 = vadd.f32 %v8881, %v8888
  %v8891 = vmul.f32 %v5193, %v5193
  %8892 = vadd.xlane.f32.xlu0 %v8891
  %v8893 = vpop.xlane.xlu0 %8892
  %8894 = vst [vmem:[%s7] sm:$0xff] %v8890
  %v8895 = vadd.f32 %v8754, %v8758
  %v8896 = vlaneseq
  %v8897 = vshrl.u32 %v8896, 7
  %v8898 = vsub.s32 0, %v8897
  %v8899 = vrot.slane %v79, %v8898
  %v8900 = vmul.f32 %v8895, %v8899
  %s8901 = scalar_lea.vmem %s4, 3
  %v8902 = vld [vmem:[%s8901] sm:$0x1]
  %v8903 = vadd.f32 %v8893, %v7415
  %v8905 = vlaneseq
  %v8906 = vshrl.u32 %v8905, 7
  %v8907 = vsub.s32 0, %v8906
  %v8908 = vrot.slane %v8902, %v8907
  %v8910 = vmul.f32 %v8908, %v8903
  %v8911 = vadd.f32 %v8900, %v8910
  %8912 = vst [vmem:[%s8] sm:$0xff] %v8911
  // Predicated region
  $region30: #{vdpnet_forward.1} parent=0 // pred_check
    _
  $region31: #{vdpnet_forward.1} parent=0 // pred_check_branch
    %8914 = sbr.rel (0) target = $region33
  $region32: #{vdpnet_forward.1} parent=0 // pred_region
    _
  $region33: #{vdpnet_forward.1} parent=0 // pred_fallthru
    _
  // Predicated region
  $region34: #{vdpnet_forward.1} parent=0 // pred_check
    _
  $region35: #{vdpnet_forward.1} parent=0 // pred_check_branch
    %8916 = sbr.rel (0) target = $region37
  $region36: #{vdpnet_forward.1} parent=0 // pred_region
    _
  $region37: #{vdpnet_forward.1} parent=0 // pred_fallthru
    _
  // Predicated region
  $region38: #{vdpnet_forward.1} parent=0 // pred_check
    _
  $region39: #{vdpnet_forward.1} parent=0 // pred_check_branch
    %8918 = sbr.rel (0) target = $region41
  $region40: #{vdpnet_forward.1} parent=0 // pred_region
    _
  $region41: #{vdpnet_forward.1} parent=0 // pred_fallthru
    _
  // Predicated region
  $region42: #{vdpnet_forward.1} parent=0 // pred_check
    _
  $region43: #{vdpnet_forward.1} parent=0 // pred_check_branch
    %8920 = sbr.rel (0) target = $region45
  $region44: #{vdpnet_forward.1} parent=0 // pred_region
    _
  $region45: #{vdpnet_forward.1} parent=0 // pred_fallthru
    _

</llo_original>
